<compile_context>
chip_gen: v7x
topology: tpu7x:2x2x1
jax: 0.10.0
libtpu: 0.0.40
codegen_flags: <defaults>
</compile_context>

<pallas_src>
import functools

import jax
import jax.numpy as jnp
from jax.experimental import pallas as pl
from jax.experimental.pallas import tpu as pltpu

NUM_BINS = 64
MIN_DEPTH = 0.3
MAX_DEPTH = 10.0

_VMEM_LIMIT = 32 * 1024 * 1024   # explicit scoped-VMEM budget (v7x-safe)


def _cparams(*sem):
    return pltpu.CompilerParams(dimension_semantics=sem,
                                vmem_limit_bytes=_VMEM_LIMIT)


def _round_up(x, m):
    return ((x + m - 1) // m) * m


def _largest_divisor_leq(n, cap):
    cap = max(1, min(n, cap))
    for d in range(cap, 0, -1):
        if n % d == 0:
            return d
    return 1


# ----------------------------------------------------------------------------
# Encoder: 3x3 stride-2 conv + ReLU via space-to-depth (no 9x im2col in HBM)
# ----------------------------------------------------------------------------
def _space_to_depth_pad(x):
    """x: (B,H,W,C), H,W even -> s (B, (Ho+1)*(Wo+1), 4C) bf16, Ho, Wo."""
    B, H, W, C = x.shape
    Ho, Wo = H // 2, W // 2
    xp = jnp.pad(x, ((0, 0), (1, 1), (1, 1), (0, 0)))            # (B,H+2,W+2,C)
    s = xp.reshape(B, Ho + 1, 2, Wo + 1, 2, C)
    s = s.transpose(0, 1, 3, 2, 4, 5).reshape(B, (Ho + 1) * (Wo + 1), 4 * C)
    return s.astype(jnp.bfloat16), Ho, Wo


def _s2d_taps(w):
    """(3,3,Cin,Cout) -> (4, 4*Cin, Cout) bf16 tap weights (precomputed once)."""
    _, _, Cin, Cout = w.shape
    taps = []
    for dy in (0, 1):
        for dx in (0, 1):
            blocks = []
            for a in (0, 1):
                for c in (0, 1):
                    di, dj = 2 * dy + a, 2 * dx + c
                    blocks.append(w[di, dj] if (di <= 2 and dj <= 2)
                                  else jnp.zeros((Cin, Cout), w.dtype))
            taps.append(jnp.concatenate(blocks, axis=0))
    return jnp.stack(taps, axis=0).astype(jnp.bfloat16)


def _conv3x3s2_kernel(s_ref, w_ref, b_ref, o_ref, *, wo):
    # One image per grid step.  4 shifted MXU dots; the row shifts of the f32
    # partial products are done with pltpu.roll (XLU) instead of unaligned
    # pl.ds slices -> no 4x relayout copies of the input slab.
    R = s_ref.shape[1]
    s = s_ref[0]                                                  # (R, 4Cin) bf16
    parts = [jnp.dot(s, w_ref[t], preferred_element_type=jnp.float32)
             for t in range(4)]                                   # 4 x (R, Cout)
    shifts = (0, 1, wo + 1, wo + 2)
    acc = parts[0]
    for t in range(1, 4):
        acc = acc + pltpu.roll(parts[t], R - shifts[t], axis=0)
    acc = acc + b_ref[...]
    o_ref[0] = jnp.maximum(acc, 0.0).astype(o_ref.dtype)


def conv3x3_s2_relu(x, taps, b):
    """x: (B,H,W,Cin), taps: (4,4Cin,Cout) bf16, b: (1,Cout) f32 -> bf16 NHWC."""
    B = x.shape[0]
    Cout = taps.shape[-1]
    s, Ho, Wo = _space_to_depth_pad(x)
    R = (Ho + 1) * (Wo + 1)
    kern = functools.partial(_conv3x3s2_kernel, wo=Wo)
    out = pl.pallas_call(
        kern,
        out_shape=jax.ShapeDtypeStruct((B, R, Cout), jnp.bfloat16),
        grid_spec=pltpu.PrefetchScalarGridSpec(
            num_scalar_prefetch=0,
            grid=(B,),
            in_specs=[
                pl.BlockSpec((1, R, s.shape[-1]), lambda bi: (bi, 0, 0)),
                pl.BlockSpec(taps.shape, lambda bi: (0, 0, 0)),
                pl.BlockSpec((1, Cout), lambda bi: (0, 0)),
            ],
            out_specs=pl.BlockSpec((1, R, Cout), lambda bi: (bi, 0, 0)),
        ),
        compiler_params=_cparams("parallel"),
    )(s, taps, b)
    # TODO(synk): for very large images, additionally tile rows inside each
    # image with a halo-carrying scratch (per-image slab must fit VMEM today).
    return out.reshape(B, Ho + 1, Wo + 1, Cout)[:, :Ho, :Wo, :]


# ----------------------------------------------------------------------------
# dec0 fused with the dec1 up-branch projection: relu(f4 @ W0 + b0) @ W1a
# ----------------------------------------------------------------------------
def _proj0_kernel(x_ref, w0_ref, b0_ref, wn_ref, o_ref):
    acc = jnp.dot(x_ref[...], w0_ref[...], preferred_element_type=jnp.float32)
    d = jnp.maximum(acc + b0_ref[...], 0.0)
    o_ref[...] = jnp.dot(d.astype(jnp.bfloat16), wn_ref[...],
                         preferred_element_type=jnp.float32).astype(o_ref.dtype)


def dec0_project(f4, w0, b0, w1a):
    B, H, W, C = f4.shape
    M = B * H * W
    N = w1a.shape[-1]
    x = f4.reshape(M, C)
    Mp = _round_up(M, 8)
    if Mp != M:                      # only for exotic shapes; no-op here
        x = jnp.pad(x, ((0, Mp - M), (0, 0)))
    tm = min(512, Mp)
    out = pl.pallas_call(
        _proj0_kernel,
        out_shape=jax.ShapeDtypeStruct((Mp, N), jnp.bfloat16),
        grid_spec=pltpu.PrefetchScalarGridSpec(
            num_scalar_prefetch=0,
            grid=(pl.cdiv(Mp, tm),),
            in_specs=[
                pl.BlockSpec((tm, C), lambda i: (i, 0)),
                pl.BlockSpec(w0.shape, lambda i: (0, 0)),
                pl.BlockSpec(b0.shape, lambda i: (0, 0)),
                pl.BlockSpec(w1a.shape, lambda i: (0, 0)),
            ],
            out_specs=pl.BlockSpec((tm, N), lambda i: (i, 0)),
        ),
        compiler_params=_cparams("parallel"),
    )(x, w0, b0, w1a)
    return out[:M].reshape(B, H, W, N)


# ----------------------------------------------------------------------------
# Fused decoder stage: relu(up2(prev@Wa) + skip@Wb + b) @ Wnext
#   - prev@Wa arrives as a low-res projection (4x fewer FLOPs / bytes)
#   - H replication is free (h -> h//2 index map + row-pair loop)
#   - concat and intermediate d_k never hit HBM
# ----------------------------------------------------------------------------
def _stage_kernel(pw_ref, skip_ref, wb_ref, bias_ref, wn_ref, o_ref, *, rows):
    wb = wb_ref[...]
    wn = wn_ref[...]
    bias = bias_ref[...]
    for r in range(rows):                       # low-res rows in this block
        base = pw_ref[0, r]                     # (W, N) bf16  (already W-expanded)
        for a in range(2):                      # the two replicated output rows
            sk = skip_ref[0, 2 * r + a]         # (W, Cb) bf16
            acc = jnp.dot(sk, wb, preferred_element_type=jnp.float32)
            d = jnp.maximum(acc + base.astype(jnp.float32) + bias, 0.0)
            o_ref[0, 2 * r + a] = jnp.dot(
                d.astype(jnp.bfloat16), wn,
                preferred_element_type=jnp.float32).astype(o_ref.dtype)


def fused_up_skip_stage(p_lo, skip, wb, bias, wnext):
    """p_lo: (B,H/2,W/2,N) bf16 low-res projection of the previous decode.
       skip: (B,H,W,Cb) bf16 encoder feature.
       Returns next projection (B,H,W,Nn) = relu(up2(p_lo)+skip@wb+bias)@wnext."""
    B, Hs, Ws, Cb = skip.shape
    N = p_lo.shape[-1]
    Nn = wnext.shape[-1]
    H_lo = Hs // 2
    # W replication in the (cheap, half-height) wrapper; H replication is free
    # via the block index map + in-kernel row-pair loop.
    pw = jnp.repeat(p_lo, 2, axis=2)                          # (B, H/2, W, N)
    per_row_bytes = Ws * (2 * Cb + 2 * N + 4 * Nn) * 2 + Ws * N * 2
    cap = max(1, (1 << 20) // max(per_row_bytes, 1))
    R = _largest_divisor_leq(H_lo, min(cap, 8))
    kern = functools.partial(_stage_kernel, rows=R)
    out = pl.pallas_call(
        kern,
        out_shape=jax.ShapeDtypeStruct((B, Hs, Ws, Nn), jnp.bfloat16),
        grid_spec=pltpu.PrefetchScalarGridSpec(
            num_scalar_prefetch=0,
            grid=(B, H_lo // R),
            in_specs=[
                pl.BlockSpec((1, R, Ws, N), lambda b, i: (b, i, 0, 0)),
                pl.BlockSpec((1, 2 * R, Ws, Cb), lambda b, i: (b, i, 0, 0)),
                pl.BlockSpec(wb.shape, lambda b, i: (0, 0)),
                pl.BlockSpec(bias.shape, lambda b, i: (0, 0)),
                pl.BlockSpec(wnext.shape, lambda b, i: (0, 0)),
            ],
            out_specs=pl.BlockSpec((1, 2 * R, Ws, Nn), lambda b, i: (b, i, 0, 0)),
        ),
        compiler_params=_cparams("parallel", "parallel"),
    )(pw, skip, wb, bias, wnext)
    return out


# ----------------------------------------------------------------------------
# Fused dec4 + depth head at H/2 x W/2, transposed (bins on sublanes, pixels on
# lanes -> lane-dense stores), logits emitted directly in (B, NB, H*W) layout.
# ----------------------------------------------------------------------------
def _head_kernel(xt_ref, b4_ref, wht_ref, bh_ref, centers_ref,
                 logit_ref, pred_ref, conf_ref):
    x = xt_ref[0]                                             # (C4, tn) bf16
    d4 = jnp.maximum(x.astype(jnp.float32) + b4_ref[...], 0.0)
    logits = jnp.dot(wht_ref[...], d4.astype(jnp.bfloat16),
                     preferred_element_type=jnp.float32) + bh_ref[...]
    logit_ref[0] = logits.astype(logit_ref.dtype)
    m = jnp.max(logits, axis=0, keepdims=True)                # (1, tn)
    e = jnp.exp(logits - m)
    s = jnp.sum(e, axis=0, keepdims=True)
    r = 1.0 / s                      # exact softmax normalization (f32)
    pred_ref[0] = jnp.sum(e * centers_ref[...], axis=0, keepdims=True) * r
    conf_ref[0] = r                  # max(prob) = exp(0) / sum = 1/s


def fused_head(p4, b4, wh_t, bh, centers):
    """p4: (B,H2,W2,C4) bf16 = up-branch projection of d3 through dec4's 1x1 conv.
       Runs at half resolution; caller nearest-replicates the small outputs."""
    B, H2, W2, C4 = p4.shape
    NB = wh_t.shape[0]
    M2 = H2 * W2
    # TODO(synk): emit p4 pre-transposed from the stage-3 kernel so this small
    # XLA transpose disappears too.
    xt = jnp.transpose(p4, (0, 3, 1, 2)).reshape(B, C4, M2)
    tn = min(1024, _round_up(M2, 128))
    logits, pred, conf = pl.pallas_call(
        _head_kernel,
        out_shape=(jax.ShapeDtypeStruct((B, NB, M2), jnp.float32),
                   jax.ShapeDtypeStruct((B, 1, M2), jnp.float32),
                   jax.ShapeDtypeStruct((B, 1, M2), jnp.float32)),
        grid_spec=pltpu.PrefetchScalarGridSpec(
            num_scalar_prefetch=0,
            grid=(B, pl.cdiv(M2, tn)),
            in_specs=[
                pl.BlockSpec((1, C4, tn), lambda b, i: (b, 0, i)),
                pl.BlockSpec((C4, 1), lambda b, i: (0, 0)),
                pl.BlockSpec((NB, C4), lambda b, i: (0, 0)),
                pl.BlockSpec((NB, 1), lambda b, i: (0, 0)),
                pl.BlockSpec((NB, 1), lambda b, i: (0, 0)),
            ],
            out_specs=[
                pl.BlockSpec((1, NB, tn), lambda b, i: (b, 0, i)),
                pl.BlockSpec((1, 1, tn), lambda b, i: (b, 0, i)),
                pl.BlockSpec((1, 1, tn), lambda b, i: (b, 0, i)),
            ],
        ),
        compiler_params=_cparams("parallel", "parallel"),
    )(xt, b4, wh_t, bh, centers)
    return (logits.reshape(B, NB, H2, W2),
            pred.reshape(B, 1, H2, W2),
            conf.reshape(B, 1, H2, W2))


def _nearest_up2(x):
    x = jnp.repeat(x, 2, axis=-2)
    return jnp.repeat(x, 2, axis=-1)


# ----------------------------------------------------------------------------
# Parameters (deterministic synthetic instantiation of the config-driven model)
# ----------------------------------------------------------------------------
def _init_conv(key, kh, kw, cin, cout):
    kw_, kb_ = jax.random.split(key)
    scale = 1.0 / float(kh * kw * cin) ** 0.5
    w = jax.random.uniform(kw_, (kh, kw, cin, cout), jnp.float32, -scale, scale)
    b = jax.random.uniform(kb_, (cout,), jnp.float32, -scale, scale)
    return w, b


def init_params(key):
    keys = jax.random.split(key, 10)
    p = {}
    enc_ch = [3, 16, 32, 64, 128]
    for i in range(4):
        p[f"enc{i}"] = _init_conv(keys[i], 3, 3, enc_ch[i], enc_ch[i + 1])

    def lin(k, cin, cout):
        w, b = _init_conv(k, 1, 1, cin, cout)
        return w.reshape(cin, cout), b

    p["dec0"] = lin(keys[4], 128, 64)         # on f4
    p["dec1"] = lin(keys[5], 64 + 64, 64)     # [up(d0), f3]
    p["dec2"] = lin(keys[6], 64 + 32, 32)     # [up(d1), f2]
    p["dec3"] = lin(keys[7], 32 + 16, 16)     # [up(d2), f1]
    p["dec4"] = lin(keys[8], 16, 16)          # on up(d3)
    p["head"] = lin(keys[9], 16, NUM_BINS)    # depth_out_head 1x1 conv
    return p


def prepare_params(p):
    """One-time weight prep hoisted out of the forward (bf16 casts, s2d taps,
    Wa/Wb splits, head transpose, bin edges/centers)."""
    q = {}
    for i in range(4):
        w, b = p[f"enc{i}"]
        q[f"enc{i}"] = (_s2d_taps(w), b.reshape(1, -1).astype(jnp.float32))

    def bf(w):
        return w.astype(jnp.bfloat16)

    w0, b0 = p["dec0"]
    w1, b1 = p["dec1"]
    w2, b2 = p["dec2"]
    w3, b3 = p["dec3"]
    w4, b4 = p["dec4"]
    wh, bh = p["head"]
    q["dec0_w"], q["dec0_b"] = bf(w0), b0.reshape(1, -1).astype(jnp.float32)
    q["dec1_wa"], q["dec1_wb"] = bf(w1[:64]), bf(w1[64:])
    q["dec1_b"] = b1.reshape(1, -1).astype(jnp.float32)
    q["dec2_wa"], q["dec2_wb"] = bf(w2[:64]), bf(w2[64:])
    q["dec2_b"] = b2.reshape(1, -1).astype(jnp.float32)
    q["dec3_wa"], q["dec3_wb"] = bf(w3[:32]), bf(w3[32:])
    q["dec3_b"] = b3.reshape(1, -1).astype(jnp.float32)
    q["dec4_w"] = bf(w4)
    q["dec4_b"] = b4.reshape(-1, 1).astype(jnp.float32)       # (C4, 1) column
    q["head_wt"] = bf(wh.T)                                   # (NB, C4)
    q["head_b"] = bh.reshape(-1, 1).astype(jnp.float32)       # (NB, 1) column
    edges = jnp.exp(jnp.linspace(jnp.log(MIN_DEPTH), jnp.log(MAX_DEPTH),
                                 NUM_BINS + 1)).astype(jnp.float32)
    centers = jnp.sqrt(edges[:-1] * edges[1:])
    q["bins_edges"] = edges
    q["bin_centers"] = centers.reshape(-1, 1)
    return q


# ----------------------------------------------------------------------------
# EncoderDecoder forward
# ----------------------------------------------------------------------------
def encoder_decoder_forward(params, x_nchw):
    x = jnp.transpose(x_nchw, (0, 2, 3, 1)).astype(jnp.float32)   # NCHW -> NHWC

    # ----- encoder: bf16 features -----
    feats = []
    h = x
    for i in range(4):
        taps, b = params[f"enc{i}"]
        h = conv3x3_s2_relu(h, taps, b)
        feats.append(h)
    f1, f2, f3, f4 = feats

    # ----- decoder: each kernel emits the NEXT stage's low-res projection,
    #       so d0..d3 / up(d_k) / concat never hit HBM -----
    p1 = dec0_project(f4, params["dec0_w"], params["dec0_b"], params["dec1_wa"])
    p2 = fused_up_skip_stage(p1, f3, params["dec1_wb"], params["dec1_b"],
                             params["dec2_wa"])
    p3 = fused_up_skip_stage(p2, f2, params["dec2_wb"], params["dec2_b"],
                             params["dec3_wa"])
    p4 = fused_up_skip_stage(p3, f1, params["dec3_wb"], params["dec3_b"],
                             params["dec4_w"])

    # ----- dec4 + classification depth head at H/2 x W/2 (relu/softmax commute
    #       with nearest upsampling), then one nearest replication to full res.
    logits_h, pred_h, conf_h = fused_head(p4, params["dec4_b"],
                                          params["head_wt"], params["head_b"],
                                          params["bin_centers"])
    pred = _nearest_up2(pred_h)                                   # (B,1,H,W)
    conf = _nearest_up2(conf_h)                                   # (B,1,H,W)
    logit = _nearest_up2(logits_h)                                # (B,NB,H,W)

    # auxi_preds / auxi_logits are always None in the reference forward.
    return dict(prediction=pred,
                confidence=conf,
                pred_logit=logit,
                auxi_pred=None,
                auxi_logit_list=None,
                bins_edges=params["bins_edges"])


if __name__ == "__main__":
    key = jax.random.PRNGKey(0)
    pkey, xkey = jax.random.split(key)
    params = prepare_params(init_params(pkey))
    x = jax.random.normal(xkey, (2, 3, 32, 32), jnp.float32)      # NCHW input

    fwd = jax.jit(encoder_decoder_forward)
    out = fwd(params, x)
    out = jax.block_until_ready(out)

    assert out["prediction"].shape == (2, 1, 32, 32)
    assert out["confidence"].shape == (2, 1, 32, 32)
    assert out["pred_logit"].shape == (2, NUM_BINS, 32, 32)
    assert out["bins_edges"].shape == (NUM_BINS + 1,)
    assert bool(jnp.all(jnp.isfinite(out["prediction"])))
    assert bool(jnp.all(jnp.isfinite(out["confidence"])))
    assert bool(jnp.all(jnp.isfinite(out["pred_logit"])))
    print("KERNEL_OK")
</pallas_src>

<mosaic_0001>
module attributes {stable_mosaic.version = 11 : i64} {
  func.func @_conv3x3s2_kernel(%arg0: i32, %arg1: memref<1x289x12xbf16, #tpu.memory_space<vmem>>, %arg2: memref<4x12x16xbf16, #tpu.memory_space<vmem>>, %arg3: memref<1x16xf32, #tpu.memory_space<vmem>>, %arg4: memref<1x289x16xbf16, #tpu.memory_space<vmem>>) attributes {dimension_semantics = [#tpu.dimension_semantics<parallel>], iteration_bounds = array<i64: 2>, scalar_prefetch = 0 : i64, scratch_operands = 0 : i64, tpu.core_type = #tpu.core_type<tc>, window_params = [{transform_indices = @transform_0, window_bounds = array<i64: 1, 289, 12>}, {pipeline_mode = #tpu.pipeline_mode<synchronous>, transform_indices = @transform_1, window_bounds = array<i64: 4, 12, 16>}, {pipeline_mode = #tpu.pipeline_mode<synchronous>, transform_indices = @transform_2, window_bounds = array<i64: 1, 16>}, {transform_indices = @transform_3, window_bounds = array<i64: 1, 289, 16>}]} {
    %c0 = arith.constant 0 : index
    %c0_0 = arith.constant 0 : index
    %c0_1 = arith.constant 0 : index
    %0 = vector.load %arg1[%c0, %c0_0, %c0_1] : memref<1x289x12xbf16, #tpu.memory_space<vmem>>, vector<1x289x12xbf16>
    %1 = vector.shape_cast %0 : vector<1x289x12xbf16> to vector<289x12xbf16>
    %c0_2 = arith.constant 0 : index
    %c0_3 = arith.constant 0 : index
    %c0_4 = arith.constant 0 : index
    %2 = vector.load %arg2[%c0_2, %c0_3, %c0_4] : memref<4x12x16xbf16, #tpu.memory_space<vmem>>, vector<1x12x16xbf16>
    %3 = vector.shape_cast %2 : vector<1x12x16xbf16> to vector<12x16xbf16>
    %cst = arith.constant dense<0.000000e+00> : vector<289x16xf32>
    %4 = tpu.matmul %1, %3, %cst {dimension_numbers = #tpu.dot_dimension_numbers<[1], [0], [0], [1], [0, 0, 1, 1], [], []>} : vector<289x12xbf16>, vector<12x16xbf16>, vector<289x16xf32> -> vector<289x16xf32>
    %c1 = arith.constant 1 : index
    %c0_5 = arith.constant 0 : index
    %c0_6 = arith.constant 0 : index
    %5 = vector.load %arg2[%c1, %c0_5, %c0_6] : memref<4x12x16xbf16, #tpu.memory_space<vmem>>, vector<1x12x16xbf16>
    %6 = vector.shape_cast %5 : vector<1x12x16xbf16> to vector<12x16xbf16>
    %cst_7 = arith.constant dense<0.000000e+00> : vector<289x16xf32>
    %7 = tpu.matmul %1, %6, %cst_7 {dimension_numbers = #tpu.dot_dimension_numbers<[1], [0], [0], [1], [0, 0, 1, 1], [], []>} : vector<289x12xbf16>, vector<12x16xbf16>, vector<289x16xf32> -> vector<289x16xf32>
    %c2 = arith.constant 2 : index
    %c0_8 = arith.constant 0 : index
    %c0_9 = arith.constant 0 : index
    %8 = vector.load %arg2[%c2, %c0_8, %c0_9] : memref<4x12x16xbf16, #tpu.memory_space<vmem>>, vector<1x12x16xbf16>
    %9 = vector.shape_cast %8 : vector<1x12x16xbf16> to vector<12x16xbf16>
    %cst_10 = arith.constant dense<0.000000e+00> : vector<289x16xf32>
    %10 = tpu.matmul %1, %9, %cst_10 {dimension_numbers = #tpu.dot_dimension_numbers<[1], [0], [0], [1], [0, 0, 1, 1], [], []>} : vector<289x12xbf16>, vector<12x16xbf16>, vector<289x16xf32> -> vector<289x16xf32>
    %c3 = arith.constant 3 : index
    %c0_11 = arith.constant 0 : index
    %c0_12 = arith.constant 0 : index
    %11 = vector.load %arg2[%c3, %c0_11, %c0_12] : memref<4x12x16xbf16, #tpu.memory_space<vmem>>, vector<1x12x16xbf16>
    %12 = vector.shape_cast %11 : vector<1x12x16xbf16> to vector<12x16xbf16>
    %cst_13 = arith.constant dense<0.000000e+00> : vector<289x16xf32>
    %13 = tpu.matmul %1, %12, %cst_13 {dimension_numbers = #tpu.dot_dimension_numbers<[1], [0], [0], [1], [0, 0, 1, 1], [], []>} : vector<289x12xbf16>, vector<12x16xbf16>, vector<289x16xf32> -> vector<289x16xf32>
    %c288_i32 = arith.constant 288 : i32
    %14 = tpu.dynamic_rotate %7 by %c288_i32 dim 0 : vector<289x16xf32>, i32 -> vector<289x16xf32>
    %15 = arith.addf %4, %14 : vector<289x16xf32>
    %c272_i32 = arith.constant 272 : i32
    %16 = tpu.dynamic_rotate %10 by %c272_i32 dim 0 : vector<289x16xf32>, i32 -> vector<289x16xf32>
    %17 = arith.addf %15, %16 : vector<289x16xf32>
    %c271_i32 = arith.constant 271 : i32
    %18 = tpu.dynamic_rotate %13 by %c271_i32 dim 0 : vector<289x16xf32>, i32 -> vector<289x16xf32>
    %19 = arith.addf %17, %18 : vector<289x16xf32>
    %c0_14 = arith.constant 0 : index
    %c0_15 = arith.constant 0 : index
    %20 = vector.load %arg3[%c0_14, %c0_15] : memref<1x16xf32, #tpu.memory_space<vmem>>, vector<1x16xf32>
    %21 = vector.broadcast %20 : vector<1x16xf32> to vector<289x16xf32>
    %22 = arith.addf %19, %21 : vector<289x16xf32>
    %cst_16 = arith.constant 0.000000e+00 : f32
    %23 = vector.broadcast %cst_16 : f32 to vector<289x16xf32>
    %24 = arith.maximumf %22, %23 : vector<289x16xf32>
    %25 = arith.truncf %24 : vector<289x16xf32> to vector<289x16xbf16>
    %c0_17 = arith.constant 0 : index
    %c0_18 = arith.constant 0 : index
    %c0_19 = arith.constant 0 : index
    %26 = vector.load %arg4[%c0_17, %c0_18, %c0_19] : memref<1x289x16xbf16, #tpu.memory_space<vmem>>, vector<1x289x16xbf16>
    %27 = vector.shape_cast %26 : vector<1x289x16xbf16> to vector<289x16xbf16>
    %28 = vector.shape_cast %25 : vector<289x16xbf16> to vector<1x289x16xbf16>
    tpu.vector_store %arg4[%c0_17, %c0_18, %c0_19], %28 {strides = array<i32>} : memref<1x289x16xbf16, #tpu.memory_space<vmem>>, vector<1x289x16xbf16>,
    return
  }
  func.func @transform_0(%arg0: i32) -> (i32, i32, i32) {
    %c0_i32 = arith.constant 0 : i32
    %c0_i32_0 = arith.constant 0 : i32
    %c0_i32_1 = arith.constant 0 : i32
    return %arg0, %c0_i32, %c0_i32_0 : i32, i32, i32
  }
  func.func @transform_1(%arg0: i32) -> (i32, i32, i32) {
    %c0_i32 = arith.constant 0 : i32
    %c0_i32_0 = arith.constant 0 : i32
    %c0_i32_1 = arith.constant 0 : i32
    %c0_i32_2 = arith.constant 0 : i32
    return %c0_i32, %c0_i32_0, %c0_i32_1 : i32, i32, i32
  }
  func.func @transform_2(%arg0: i32) -> (i32, i32) {
    %c0_i32 = arith.constant 0 : i32
    %c0_i32_0 = arith.constant 0 : i32
    %c0_i32_1 = arith.constant 0 : i32
    return %c0_i32, %c0_i32_0 : i32, i32
  }
  func.func @transform_3(%arg0: i32) -> (i32, i32, i32) {
    %c0_i32 = arith.constant 0 : i32
    %c0_i32_0 = arith.constant 0 : i32
    %c0_i32_1 = arith.constant 0 : i32
    return %arg0, %c0_i32, %c0_i32_0 : i32, i32, i32
  }
}

module attributes {stable_mosaic.version = 11 : i64} {
  func.func @_conv3x3s2_kernel(%arg0: i32, %arg1: memref<1x81x64xbf16, #tpu.memory_space<vmem>>, %arg2: memref<4x64x32xbf16, #tpu.memory_space<vmem>>, %arg3: memref<1x32xf32, #tpu.memory_space<vmem>>, %arg4: memref<1x81x32xbf16, #tpu.memory_space<vmem>>) attributes {dimension_semantics = [#tpu.dimension_semantics<parallel>], iteration_bounds = array<i64: 2>, scalar_prefetch = 0 : i64, scratch_operands = 0 : i64, tpu.core_type = #tpu.core_type<tc>, window_params = [{transform_indices = @transform_0, window_bounds = array<i64: 1, 81, 64>}, {pipeline_mode = #tpu.pipeline_mode<synchronous>, transform_indices = @transform_1, window_bounds = array<i64: 4, 64, 32>}, {pipeline_mode = #tpu.pipeline_mode<synchronous>, transform_indices = @transform_2, window_bounds = array<i64: 1, 32>}, {transform_indices = @transform_3, window_bounds = array<i64: 1, 81, 32>}]} {
    %c0 = arith.constant 0 : index
    %c0_0 = arith.constant 0 : index
    %c0_1 = arith.constant 0 : index
    %0 = vector.load %arg1[%c0, %c0_0, %c0_1] : memref<1x81x64xbf16, #tpu.memory_space<vmem>>, vector<1x81x64xbf16>
    %1 = vector.shape_cast %0 : vector<1x81x64xbf16> to vector<81x64xbf16>
    %c0_2 = arith.constant 0 : index
    %c0_3 = arith.constant 0 : index
    %c0_4 = arith.constant 0 : index
    %2 = vector.load %arg2[%c0_2, %c0_3, %c0_4] : memref<4x64x32xbf16, #tpu.memory_space<vmem>>, vector<1x64x32xbf16>
    %3 = vector.shape_cast %2 : vector<1x64x32xbf16> to vector<64x32xbf16>
    %cst = arith.constant dense<0.000000e+00> : vector<81x32xf32>
    %4 = tpu.matmul %1, %3, %cst {dimension_numbers = #tpu.dot_dimension_numbers<[1], [0], [0], [1], [0, 0, 1, 1], [], []>} : vector<81x64xbf16>, vector<64x32xbf16>, vector<81x32xf32> -> vector<81x32xf32>
    %c1 = arith.constant 1 : index
    %c0_5 = arith.constant 0 : index
    %c0_6 = arith.constant 0 : index
    %5 = vector.load %arg2[%c1, %c0_5, %c0_6] : memref<4x64x32xbf16, #tpu.memory_space<vmem>>, vector<1x64x32xbf16>
    %6 = vector.shape_cast %5 : vector<1x64x32xbf16> to vector<64x32xbf16>
    %cst_7 = arith.constant dense<0.000000e+00> : vector<81x32xf32>
    %7 = tpu.matmul %1, %6, %cst_7 {dimension_numbers = #tpu.dot_dimension_numbers<[1], [0], [0], [1], [0, 0, 1, 1], [], []>} : vector<81x64xbf16>, vector<64x32xbf16>, vector<81x32xf32> -> vector<81x32xf32>
    %c2 = arith.constant 2 : index
    %c0_8 = arith.constant 0 : index
    %c0_9 = arith.constant 0 : index
    %8 = vector.load %arg2[%c2, %c0_8, %c0_9] : memref<4x64x32xbf16, #tpu.memory_space<vmem>>, vector<1x64x32xbf16>
    %9 = vector.shape_cast %8 : vector<1x64x32xbf16> to vector<64x32xbf16>
    %cst_10 = arith.constant dense<0.000000e+00> : vector<81x32xf32>
    %10 = tpu.matmul %1, %9, %cst_10 {dimension_numbers = #tpu.dot_dimension_numbers<[1], [0], [0], [1], [0, 0, 1, 1], [], []>} : vector<81x64xbf16>, vector<64x32xbf16>, vector<81x32xf32> -> vector<81x32xf32>
    %c3 = arith.constant 3 : index
    %c0_11 = arith.constant 0 : index
    %c0_12 = arith.constant 0 : index
    %11 = vector.load %arg2[%c3, %c0_11, %c0_12] : memref<4x64x32xbf16, #tpu.memory_space<vmem>>, vector<1x64x32xbf16>
    %12 = vector.shape_cast %11 : vector<1x64x32xbf16> to vector<64x32xbf16>
    %cst_13 = arith.constant dense<0.000000e+00> : vector<81x32xf32>
    %13 = tpu.matmul %1, %12, %cst_13 {dimension_numbers = #tpu.dot_dimension_numbers<[1], [0], [0], [1], [0, 0, 1, 1], [], []>} : vector<81x64xbf16>, vector<64x32xbf16>, vector<81x32xf32> -> vector<81x32xf32>
    %c80_i32 = arith.constant 80 : i32
    %14 = tpu.dynamic_rotate %7 by %c80_i32 dim 0 : vector<81x32xf32>, i32 -> vector<81x32xf32>
    %15 = arith.addf %4, %14 : vector<81x32xf32>
    %c72_i32 = arith.constant 72 : i32
    %16 = tpu.dynamic_rotate %10 by %c72_i32 dim 0 : vector<81x32xf32>, i32 -> vector<81x32xf32>
    %17 = arith.addf %15, %16 : vector<81x32xf32>
    %c71_i32 = arith.constant 71 : i32
    %18 = tpu.dynamic_rotate %13 by %c71_i32 dim 0 : vector<81x32xf32>, i32 -> vector<81x32xf32>
    %19 = arith.addf %17, %18 : vector<81x32xf32>
    %c0_14 = arith.constant 0 : index
    %c0_15 = arith.constant 0 : index
    %20 = vector.load %arg3[%c0_14, %c0_15] : memref<1x32xf32, #tpu.memory_space<vmem>>, vector<1x32xf32>
    %21 = vector.broadcast %20 : vector<1x32xf32> to vector<81x32xf32>
    %22 = arith.addf %19, %21 : vector<81x32xf32>
    %cst_16 = arith.constant 0.000000e+00 : f32
    %23 = vector.broadcast %cst_16 : f32 to vector<81x32xf32>
    %24 = arith.maximumf %22, %23 : vector<81x32xf32>
    %25 = arith.truncf %24 : vector<81x32xf32> to vector<81x32xbf16>
    %c0_17 = arith.constant 0 : index
    %c0_18 = arith.constant 0 : index
    %c0_19 = arith.constant 0 : index
    %26 = vector.load %arg4[%c0_17, %c0_18, %c0_19] : memref<1x81x32xbf16, #tpu.memory_space<vmem>>, vector<1x81x32xbf16>
    %27 = vector.shape_cast %26 : vector<1x81x32xbf16> to vector<81x32xbf16>
    %28 = vector.shape_cast %25 : vector<81x32xbf16> to vector<1x81x32xbf16>
    tpu.vector_store %arg4[%c0_17, %c0_18, %c0_19], %28 {strides = array<i32>} : memref<1x81x32xbf16, #tpu.memory_space<vmem>>, vector<1x81x32xbf16>,
    return
  }
  func.func @transform_0(%arg0: i32) -> (i32, i32, i32) {
    %c0_i32 = arith.constant 0 : i32
    %c0_i32_0 = arith.constant 0 : i32
    %c0_i32_1 = arith.constant 0 : i32
    return %arg0, %c0_i32, %c0_i32_0 : i32, i32, i32
  }
  func.func @transform_1(%arg0: i32) -> (i32, i32, i32) {
    %c0_i32 = arith.constant 0 : i32
    %c0_i32_0 = arith.constant 0 : i32
    %c0_i32_1 = arith.constant 0 : i32
    %c0_i32_2 = arith.constant 0 : i32
    return %c0_i32, %c0_i32_0, %c0_i32_1 : i32, i32, i32
  }
  func.func @transform_2(%arg0: i32) -> (i32, i32) {
    %c0_i32 = arith.constant 0 : i32
    %c0_i32_0 = arith.constant 0 : i32
    %c0_i32_1 = arith.constant 0 : i32
    return %c0_i32, %c0_i32_0 : i32, i32
  }
  func.func @transform_3(%arg0: i32) -> (i32, i32, i32) {
    %c0_i32 = arith.constant 0 : i32
    %c0_i32_0 = arith.constant 0 : i32
    %c0_i32_1 = arith.constant 0 : i32
    return %arg0, %c0_i32, %c0_i32_0 : i32, i32, i32
  }
}

module attributes {stable_mosaic.version = 11 : i64} {
  func.func @_conv3x3s2_kernel(%arg0: i32, %arg1: memref<1x25x128xbf16, #tpu.memory_space<vmem>>, %arg2: memref<4x128x64xbf16, #tpu.memory_space<vmem>>, %arg3: memref<1x64xf32, #tpu.memory_space<vmem>>, %arg4: memref<1x25x64xbf16, #tpu.memory_space<vmem>>) attributes {dimension_semantics = [#tpu.dimension_semantics<parallel>], iteration_bounds = array<i64: 2>, scalar_prefetch = 0 : i64, scratch_operands = 0 : i64, tpu.core_type = #tpu.core_type<tc>, window_params = [{transform_indices = @transform_0, window_bounds = array<i64: 1, 25, 128>}, {pipeline_mode = #tpu.pipeline_mode<synchronous>, transform_indices = @transform_1, window_bounds = array<i64: 4, 128, 64>}, {pipeline_mode = #tpu.pipeline_mode<synchronous>, transform_indices = @transform_2, window_bounds = array<i64: 1, 64>}, {transform_indices = @transform_3, window_bounds = array<i64: 1, 25, 64>}]} {
    %c0 = arith.constant 0 : index
    %c0_0 = arith.constant 0 : index
    %c0_1 = arith.constant 0 : index
    %0 = vector.load %arg1[%c0, %c0_0, %c0_1] : memref<1x25x128xbf16, #tpu.memory_space<vmem>>, vector<1x25x128xbf16>
    %1 = vector.shape_cast %0 : vector<1x25x128xbf16> to vector<25x128xbf16>
    %c0_2 = arith.constant 0 : index
    %c0_3 = arith.constant 0 : index
    %c0_4 = arith.constant 0 : index
    %2 = vector.load %arg2[%c0_2, %c0_3, %c0_4] : memref<4x128x64xbf16, #tpu.memory_space<vmem>>, vector<1x128x64xbf16>
    %3 = vector.shape_cast %2 : vector<1x128x64xbf16> to vector<128x64xbf16>
    %cst = arith.constant dense<0.000000e+00> : vector<25x64xf32>
    %4 = tpu.matmul %1, %3, %cst {dimension_numbers = #tpu.dot_dimension_numbers<[1], [0], [0], [1], [0, 0, 1, 1], [], []>} : vector<25x128xbf16>, vector<128x64xbf16>, vector<25x64xf32> -> vector<25x64xf32>
    %c1 = arith.constant 1 : index
    %c0_5 = arith.constant 0 : index
    %c0_6 = arith.constant 0 : index
    %5 = vector.load %arg2[%c1, %c0_5, %c0_6] : memref<4x128x64xbf16, #tpu.memory_space<vmem>>, vector<1x128x64xbf16>
    %6 = vector.shape_cast %5 : vector<1x128x64xbf16> to vector<128x64xbf16>
    %cst_7 = arith.constant dense<0.000000e+00> : vector<25x64xf32>
    %7 = tpu.matmul %1, %6, %cst_7 {dimension_numbers = #tpu.dot_dimension_numbers<[1], [0], [0], [1], [0, 0, 1, 1], [], []>} : vector<25x128xbf16>, vector<128x64xbf16>, vector<25x64xf32> -> vector<25x64xf32>
    %c2 = arith.constant 2 : index
    %c0_8 = arith.constant 0 : index
    %c0_9 = arith.constant 0 : index
    %8 = vector.load %arg2[%c2, %c0_8, %c0_9] : memref<4x128x64xbf16, #tpu.memory_space<vmem>>, vector<1x128x64xbf16>
    %9 = vector.shape_cast %8 : vector<1x128x64xbf16> to vector<128x64xbf16>
    %cst_10 = arith.constant dense<0.000000e+00> : vector<25x64xf32>
    %10 = tpu.matmul %1, %9, %cst_10 {dimension_numbers = #tpu.dot_dimension_numbers<[1], [0], [0], [1], [0, 0, 1, 1], [], []>} : vector<25x128xbf16>, vector<128x64xbf16>, vector<25x64xf32> -> vector<25x64xf32>
    %c3 = arith.constant 3 : index
    %c0_11 = arith.constant 0 : index
    %c0_12 = arith.constant 0 : index
    %11 = vector.load %arg2[%c3, %c0_11, %c0_12] : memref<4x128x64xbf16, #tpu.memory_space<vmem>>, vector<1x128x64xbf16>
    %12 = vector.shape_cast %11 : vector<1x128x64xbf16> to vector<128x64xbf16>
    %cst_13 = arith.constant dense<0.000000e+00> : vector<25x64xf32>
    %13 = tpu.matmul %1, %12, %cst_13 {dimension_numbers = #tpu.dot_dimension_numbers<[1], [0], [0], [1], [0, 0, 1, 1], [], []>} : vector<25x128xbf16>, vector<128x64xbf16>, vector<25x64xf32> -> vector<25x64xf32>
    %c24_i32 = arith.constant 24 : i32
    %14 = tpu.dynamic_rotate %7 by %c24_i32 dim 0 : vector<25x64xf32>, i32 -> vector<25x64xf32>
    %15 = arith.addf %4, %14 : vector<25x64xf32>
    %c20_i32 = arith.constant 20 : i32
    %16 = tpu.dynamic_rotate %10 by %c20_i32 dim 0 : vector<25x64xf32>, i32 -> vector<25x64xf32>
    %17 = arith.addf %15, %16 : vector<25x64xf32>
    %c19_i32 = arith.constant 19 : i32
    %18 = tpu.dynamic_rotate %13 by %c19_i32 dim 0 : vector<25x64xf32>, i32 -> vector<25x64xf32>
    %19 = arith.addf %17, %18 : vector<25x64xf32>
    %c0_14 = arith.constant 0 : index
    %c0_15 = arith.constant 0 : index
    %20 = vector.load %arg3[%c0_14, %c0_15] : memref<1x64xf32, #tpu.memory_space<vmem>>, vector<1x64xf32>
    %21 = vector.broadcast %20 : vector<1x64xf32> to vector<25x64xf32>
    %22 = arith.addf %19, %21 : vector<25x64xf32>
    %cst_16 = arith.constant 0.000000e+00 : f32
    %23 = vector.broadcast %cst_16 : f32 to vector<25x64xf32>
    %24 = arith.maximumf %22, %23 : vector<25x64xf32>
    %25 = arith.truncf %24 : vector<25x64xf32> to vector<25x64xbf16>
    %c0_17 = arith.constant 0 : index
    %c0_18 = arith.constant 0 : index
    %c0_19 = arith.constant 0 : index
    %26 = vector.load %arg4[%c0_17, %c0_18, %c0_19] : memref<1x25x64xbf16, #tpu.memory_space<vmem>>, vector<1x25x64xbf16>
    %27 = vector.shape_cast %26 : vector<1x25x64xbf16> to vector<25x64xbf16>
    %28 = vector.shape_cast %25 : vector<25x64xbf16> to vector<1x25x64xbf16>
    tpu.vector_store %arg4[%c0_17, %c0_18, %c0_19], %28 {strides = array<i32>} : memref<1x25x64xbf16, #tpu.memory_space<vmem>>, vector<1x25x64xbf16>,
    return
  }
  func.func @transform_0(%arg0: i32) -> (i32, i32, i32) {
    %c0_i32 = arith.constant 0 : i32
    %c0_i32_0 = arith.constant 0 : i32
    %c0_i32_1 = arith.constant 0 : i32
    return %arg0, %c0_i32, %c0_i32_0 : i32, i32, i32
  }
  func.func @transform_1(%arg0: i32) -> (i32, i32, i32) {
    %c0_i32 = arith.constant 0 : i32
    %c0_i32_0 = arith.constant 0 : i32
    %c0_i32_1 = arith.constant 0 : i32
    %c0_i32_2 = arith.constant 0 : i32
    return %c0_i32, %c0_i32_0, %c0_i32_1 : i32, i32, i32
  }
  func.func @transform_2(%arg0: i32) -> (i32, i32) {
    %c0_i32 = arith.constant 0 : i32
    %c0_i32_0 = arith.constant 0 : i32
    %c0_i32_1 = arith.constant 0 : i32
    return %c0_i32, %c0_i32_0 : i32, i32
  }
  func.func @transform_3(%arg0: i32) -> (i32, i32, i32) {
    %c0_i32 = arith.constant 0 : i32
    %c0_i32_0 = arith.constant 0 : i32
    %c0_i32_1 = arith.constant 0 : i32
    return %arg0, %c0_i32, %c0_i32_0 : i32, i32, i32
  }
}

module attributes {stable_mosaic.version = 11 : i64} {
  func.func @_conv3x3s2_kernel(%arg0: i32, %arg1: memref<1x9x256xbf16, #tpu.memory_space<vmem>>, %arg2: memref<4x256x128xbf16, #tpu.memory_space<vmem>>, %arg3: memref<1x128xf32, #tpu.memory_space<vmem>>, %arg4: memref<1x9x128xbf16, #tpu.memory_space<vmem>>) attributes {dimension_semantics = [#tpu.dimension_semantics<parallel>], iteration_bounds = array<i64: 2>, scalar_prefetch = 0 : i64, scratch_operands = 0 : i64, tpu.core_type = #tpu.core_type<tc>, window_params = [{transform_indices = @transform_0, window_bounds = array<i64: 1, 9, 256>}, {pipeline_mode = #tpu.pipeline_mode<synchronous>, transform_indices = @transform_1, window_bounds = array<i64: 4, 256, 128>}, {pipeline_mode = #tpu.pipeline_mode<synchronous>, transform_indices = @transform_2, window_bounds = array<i64: 1, 128>}, {transform_indices = @transform_3, window_bounds = array<i64: 1, 9, 128>}]} {
    %c0 = arith.constant 0 : index
    %c0_0 = arith.constant 0 : index
    %c0_1 = arith.constant 0 : index
    %0 = vector.load %arg1[%c0, %c0_0, %c0_1] : memref<1x9x256xbf16, #tpu.memory_space<vmem>>, vector<1x9x256xbf16>
    %1 = vector.shape_cast %0 : vector<1x9x256xbf16> to vector<9x256xbf16>
    %c0_2 = arith.constant 0 : index
    %c0_3 = arith.constant 0 : index
    %c0_4 = arith.constant 0 : index
    %2 = vector.load %arg2[%c0_2, %c0_3, %c0_4] : memref<4x256x128xbf16, #tpu.memory_space<vmem>>, vector<1x256x128xbf16>
    %3 = vector.shape_cast %2 : vector<1x256x128xbf16> to vector<256x128xbf16>
    %cst = arith.constant dense<0.000000e+00> : vector<9x128xf32>
    %4 = tpu.matmul %1, %3, %cst {dimension_numbers = #tpu.dot_dimension_numbers<[1], [0], [0], [1], [0, 0, 1, 1], [], []>} : vector<9x256xbf16>, vector<256x128xbf16>, vector<9x128xf32> -> vector<9x128xf32>
    %c1 = arith.constant 1 : index
    %c0_5 = arith.constant 0 : index
    %c0_6 = arith.constant 0 : index
    %5 = vector.load %arg2[%c1, %c0_5, %c0_6] : memref<4x256x128xbf16, #tpu.memory_space<vmem>>, vector<1x256x128xbf16>
    %6 = vector.shape_cast %5 : vector<1x256x128xbf16> to vector<256x128xbf16>
    %cst_7 = arith.constant dense<0.000000e+00> : vector<9x128xf32>
    %7 = tpu.matmul %1, %6, %cst_7 {dimension_numbers = #tpu.dot_dimension_numbers<[1], [0], [0], [1], [0, 0, 1, 1], [], []>} : vector<9x256xbf16>, vector<256x128xbf16>, vector<9x128xf32> -> vector<9x128xf32>
    %c2 = arith.constant 2 : index
    %c0_8 = arith.constant 0 : index
    %c0_9 = arith.constant 0 : index
    %8 = vector.load %arg2[%c2, %c0_8, %c0_9] : memref<4x256x128xbf16, #tpu.memory_space<vmem>>, vector<1x256x128xbf16>
    %9 = vector.shape_cast %8 : vector<1x256x128xbf16> to vector<256x128xbf16>
    %cst_10 = arith.constant dense<0.000000e+00> : vector<9x128xf32>
    %10 = tpu.matmul %1, %9, %cst_10 {dimension_numbers = #tpu.dot_dimension_numbers<[1], [0], [0], [1], [0, 0, 1, 1], [], []>} : vector<9x256xbf16>, vector<256x128xbf16>, vector<9x128xf32> -> vector<9x128xf32>
    %c3 = arith.constant 3 : index
    %c0_11 = arith.constant 0 : index
    %c0_12 = arith.constant 0 : index
    %11 = vector.load %arg2[%c3, %c0_11, %c0_12] : memref<4x256x128xbf16, #tpu.memory_space<vmem>>, vector<1x256x128xbf16>
    %12 = vector.shape_cast %11 : vector<1x256x128xbf16> to vector<256x128xbf16>
    %cst_13 = arith.constant dense<0.000000e+00> : vector<9x128xf32>
    %13 = tpu.matmul %1, %12, %cst_13 {dimension_numbers = #tpu.dot_dimension_numbers<[1], [0], [0], [1], [0, 0, 1, 1], [], []>} : vector<9x256xbf16>, vector<256x128xbf16>, vector<9x128xf32> -> vector<9x128xf32>
    %c8_i32 = arith.constant 8 : i32
    %14 = tpu.dynamic_rotate %7 by %c8_i32 dim 0 : vector<9x128xf32>, i32 -> vector<9x128xf32>
    %15 = arith.addf %4, %14 : vector<9x128xf32>
    %c6_i32 = arith.constant 6 : i32
    %16 = tpu.dynamic_rotate %10 by %c6_i32 dim 0 : vector<9x128xf32>, i32 -> vector<9x128xf32>
    %17 = arith.addf %15, %16 : vector<9x128xf32>
    %c5_i32 = arith.constant 5 : i32
    %18 = tpu.dynamic_rotate %13 by %c5_i32 dim 0 : vector<9x128xf32>, i32 -> vector<9x128xf32>
    %19 = arith.addf %17, %18 : vector<9x128xf32>
    %c0_14 = arith.constant 0 : index
    %c0_15 = arith.constant 0 : index
    %20 = vector.load %arg3[%c0_14, %c0_15] : memref<1x128xf32, #tpu.memory_space<vmem>>, vector<1x128xf32>
    %21 = vector.broadcast %20 : vector<1x128xf32> to vector<9x128xf32>
    %22 = arith.addf %19, %21 : vector<9x128xf32>
    %cst_16 = arith.constant 0.000000e+00 : f32
    %23 = vector.broadcast %cst_16 : f32 to vector<9x128xf32>
    %24 = arith.maximumf %22, %23 : vector<9x128xf32>
    %25 = arith.truncf %24 : vector<9x128xf32> to vector<9x128xbf16>
    %c0_17 = arith.constant 0 : index
    %c0_18 = arith.constant 0 : index
    %c0_19 = arith.constant 0 : index
    %26 = vector.load %arg4[%c0_17, %c0_18, %c0_19] : memref<1x9x128xbf16, #tpu.memory_space<vmem>>, vector<1x9x128xbf16>
    %27 = vector.shape_cast %26 : vector<1x9x128xbf16> to vector<9x128xbf16>
    %28 = vector.shape_cast %25 : vector<9x128xbf16> to vector<1x9x128xbf16>
    tpu.vector_store %arg4[%c0_17, %c0_18, %c0_19], %28 {strides = array<i32>} : memref<1x9x128xbf16, #tpu.memory_space<vmem>>, vector<1x9x128xbf16>,
    return
  }
  func.func @transform_0(%arg0: i32) -> (i32, i32, i32) {
    %c0_i32 = arith.constant 0 : i32
    %c0_i32_0 = arith.constant 0 : i32
    %c0_i32_1 = arith.constant 0 : i32
    return %arg0, %c0_i32, %c0_i32_0 : i32, i32, i32
  }
  func.func @transform_1(%arg0: i32) -> (i32, i32, i32) {
    %c0_i32 = arith.constant 0 : i32
    %c0_i32_0 = arith.constant 0 : i32
    %c0_i32_1 = arith.constant 0 : i32
    %c0_i32_2 = arith.constant 0 : i32
    return %c0_i32, %c0_i32_0, %c0_i32_1 : i32, i32, i32
  }
  func.func @transform_2(%arg0: i32) -> (i32, i32) {
    %c0_i32 = arith.constant 0 : i32
    %c0_i32_0 = arith.constant 0 : i32
    %c0_i32_1 = arith.constant 0 : i32
    return %c0_i32, %c0_i32_0 : i32, i32
  }
  func.func @transform_3(%arg0: i32) -> (i32, i32, i32) {
    %c0_i32 = arith.constant 0 : i32
    %c0_i32_0 = arith.constant 0 : i32
    %c0_i32_1 = arith.constant 0 : i32
    return %arg0, %c0_i32, %c0_i32_0 : i32, i32, i32
  }
}

module attributes {stable_mosaic.version = 11 : i64} {
  func.func @_proj0_kernel(%arg0: i32, %arg1: memref<8x128xbf16, #tpu.memory_space<vmem>>, %arg2: memref<128x64xbf16, #tpu.memory_space<vmem>>, %arg3: memref<1x64xf32, #tpu.memory_space<vmem>>, %arg4: memref<64x64xbf16, #tpu.memory_space<vmem>>, %arg5: memref<8x64xbf16, #tpu.memory_space<vmem>>) attributes {dimension_semantics = [#tpu.dimension_semantics<parallel>], iteration_bounds = array<i64: 1>, scalar_prefetch = 0 : i64, scratch_operands = 0 : i64, tpu.core_type = #tpu.core_type<tc>, window_params = [{transform_indices = @transform_0, window_bounds = array<i64: 8, 128>}, {pipeline_mode = #tpu.pipeline_mode<synchronous>, transform_indices = @transform_1, window_bounds = array<i64: 128, 64>}, {pipeline_mode = #tpu.pipeline_mode<synchronous>, transform_indices = @transform_2, window_bounds = array<i64: 1, 64>}, {pipeline_mode = #tpu.pipeline_mode<synchronous>, transform_indices = @transform_3, window_bounds = array<i64: 64, 64>}, {transform_indices = @transform_4, window_bounds = array<i64: 8, 64>}]} {
    %c0 = arith.constant 0 : index
    %c0_0 = arith.constant 0 : index
    %0 = vector.load %arg1[%c0, %c0_0] : memref<8x128xbf16, #tpu.memory_space<vmem>>, vector<8x128xbf16>
    %c0_1 = arith.constant 0 : index
    %c0_2 = arith.constant 0 : index
    %1 = vector.load %arg2[%c0_1, %c0_2] : memref<128x64xbf16, #tpu.memory_space<vmem>>, vector<128x64xbf16>
    %cst = arith.constant dense<0.000000e+00> : vector<8x64xf32>
    %2 = tpu.matmul %0, %1, %cst {dimension_numbers = #tpu.dot_dimension_numbers<[1], [0], [0], [1], [0, 0, 1, 1], [], []>} : vector<8x128xbf16>, vector<128x64xbf16>, vector<8x64xf32> -> vector<8x64xf32>
    %c0_3 = arith.constant 0 : index
    %c0_4 = arith.constant 0 : index
    %3 = vector.load %arg3[%c0_3, %c0_4] : memref<1x64xf32, #tpu.memory_space<vmem>>, vector<1x64xf32>
    %4 = vector.broadcast %3 : vector<1x64xf32> to vector<8x64xf32>
    %5 = arith.addf %2, %4 : vector<8x64xf32>
    %cst_5 = arith.constant 0.000000e+00 : f32
    %6 = vector.broadcast %cst_5 : f32 to vector<8x64xf32>
    %7 = arith.maximumf %5, %6 : vector<8x64xf32>
    %8 = arith.truncf %7 : vector<8x64xf32> to vector<8x64xbf16>
    %c0_6 = arith.constant 0 : index
    %c0_7 = arith.constant 0 : index
    %9 = vector.load %arg4[%c0_6, %c0_7] : memref<64x64xbf16, #tpu.memory_space<vmem>>, vector<64x64xbf16>
    %cst_8 = arith.constant dense<0.000000e+00> : vector<8x64xf32>
    %10 = tpu.matmul %8, %9, %cst_8 {dimension_numbers = #tpu.dot_dimension_numbers<[1], [0], [0], [1], [0, 0, 1, 1], [], []>} : vector<8x64xbf16>, vector<64x64xbf16>, vector<8x64xf32> -> vector<8x64xf32>
    %11 = arith.truncf %10 : vector<8x64xf32> to vector<8x64xbf16>
    %c0_9 = arith.constant 0 : index
    %c0_10 = arith.constant 0 : index
    %12 = vector.load %arg5[%c0_9, %c0_10] : memref<8x64xbf16, #tpu.memory_space<vmem>>, vector<8x64xbf16>
    tpu.vector_store %arg5[%c0_9, %c0_10], %11 {strides = array<i32>} : memref<8x64xbf16, #tpu.memory_space<vmem>>, vector<8x64xbf16>,
    return
  }
  func.func @transform_0(%arg0: i32) -> (i32, i32) {
    %c0_i32 = arith.constant 0 : i32
    %c0_i32_0 = arith.constant 0 : i32
    return %arg0, %c0_i32 : i32, i32
  }
  func.func @transform_1(%arg0: i32) -> (i32, i32) {
    %c0_i32 = arith.constant 0 : i32
    %c0_i32_0 = arith.constant 0 : i32
    %c0_i32_1 = arith.constant 0 : i32
    return %c0_i32, %c0_i32_0 : i32, i32
  }
  func.func @transform_2(%arg0: i32) -> (i32, i32) {
    %c0_i32 = arith.constant 0 : i32
    %c0_i32_0 = arith.constant 0 : i32
    %c0_i32_1 = arith.constant 0 : i32
    return %c0_i32, %c0_i32_0 : i32, i32
  }
  func.func @transform_3(%arg0: i32) -> (i32, i32) {
    %c0_i32 = arith.constant 0 : i32
    %c0_i32_0 = arith.constant 0 : i32
    %c0_i32_1 = arith.constant 0 : i32
    return %c0_i32, %c0_i32_0 : i32, i32
  }
  func.func @transform_4(%arg0: i32) -> (i32, i32) {
    %c0_i32 = arith.constant 0 : i32
    %c0_i32_0 = arith.constant 0 : i32
    return %arg0, %c0_i32 : i32, i32
  }
}

module attributes {stable_mosaic.version = 11 : i64} {
  func.func @_stage_kernel(%arg0: i32, %arg1: i32, %arg2: memref<1x2x4x64xbf16, #tpu.memory_space<vmem>>, %arg3: memref<1x4x4x64xbf16, #tpu.memory_space<vmem>>, %arg4: memref<64x64xbf16, #tpu.memory_space<vmem>>, %arg5: memref<1x64xf32, #tpu.memory_space<vmem>>, %arg6: memref<64x32xbf16, #tpu.memory_space<vmem>>, %arg7: memref<1x4x4x32xbf16, #tpu.memory_space<vmem>>) attributes {dimension_semantics = [#tpu.dimension_semantics<parallel>, #tpu.dimension_semantics<parallel>], iteration_bounds = array<i64: 2, 1>, scalar_prefetch = 0 : i64, scratch_operands = 0 : i64, tpu.core_type = #tpu.core_type<tc>, window_params = [{transform_indices = @transform_0, window_bounds = array<i64: 1, 2, 4, 64>}, {transform_indices = @transform_1, window_bounds = array<i64: 1, 4, 4, 64>}, {pipeline_mode = #tpu.pipeline_mode<synchronous>, transform_indices = @transform_2, window_bounds = array<i64: 64, 64>}, {pipeline_mode = #tpu.pipeline_mode<synchronous>, transform_indices = @transform_3, window_bounds = array<i64: 1, 64>}, {pipeline_mode = #tpu.pipeline_mode<synchronous>, transform_indices = @transform_4, window_bounds = array<i64: 64, 32>}, {transform_indices = @transform_5, window_bounds = array<i64: 1, 4, 4, 32>}]} {
    %c0 = arith.constant 0 : index
    %c0_0 = arith.constant 0 : index
    %0 = vector.load %arg4[%c0, %c0_0] : memref<64x64xbf16, #tpu.memory_space<vmem>>, vector<64x64xbf16>
    %c0_1 = arith.constant 0 : index
    %c0_2 = arith.constant 0 : index
    %1 = vector.load %arg6[%c0_1, %c0_2] : memref<64x32xbf16, #tpu.memory_space<vmem>>, vector<64x32xbf16>
    %c0_3 = arith.constant 0 : index
    %c0_4 = arith.constant 0 : index
    %2 = vector.load %arg5[%c0_3, %c0_4] : memref<1x64xf32, #tpu.memory_space<vmem>>, vector<1x64xf32>
    %c0_5 = arith.constant 0 : index
    %c0_6 = arith.constant 0 : index
    %c0_7 = arith.constant 0 : index
    %c0_8 = arith.constant 0 : index
    %3 = vector.load %arg2[%c0_5, %c0_6, %c0_7, %c0_8] : memref<1x2x4x64xbf16, #tpu.memory_space<vmem>>, vector<1x1x4x64xbf16>
    %4 = vector.shape_cast %3 : vector<1x1x4x64xbf16> to vector<4x64xbf16>
    %c0_9 = arith.constant 0 : index
    %c0_10 = arith.constant 0 : index
    %c0_11 = arith.constant 0 : index
    %c0_12 = arith.constant 0 : index
    %5 = vector.load %arg3[%c0_9, %c0_10, %c0_11, %c0_12] : memref<1x4x4x64xbf16, #tpu.memory_space<vmem>>, vector<1x1x4x64xbf16>
    %6 = vector.shape_cast %5 : vector<1x1x4x64xbf16> to vector<4x64xbf16>
    %cst = arith.constant dense<0.000000e+00> : vector<4x64xf32>
    %7 = tpu.matmul %6, %0, %cst {dimension_numbers = #tpu.dot_dimension_numbers<[1], [0], [0], [1], [0, 0, 1, 1], [], []>} : vector<4x64xbf16>, vector<64x64xbf16>, vector<4x64xf32> -> vector<4x64xf32>
    %8 = arith.extf %4 : vector<4x64xbf16> to vector<4x64xf32>
    %9 = arith.addf %7, %8 : vector<4x64xf32>
    %10 = vector.broadcast %2 : vector<1x64xf32> to vector<4x64xf32>
    %11 = arith.addf %9, %10 : vector<4x64xf32>
    %cst_13 = arith.constant 0.000000e+00 : f32
    %12 = vector.broadcast %cst_13 : f32 to vector<4x64xf32>
    %13 = arith.maximumf %11, %12 : vector<4x64xf32>
    %14 = arith.truncf %13 : vector<4x64xf32> to vector<4x64xbf16>
    %cst_14 = arith.constant dense<0.000000e+00> : vector<4x32xf32>
    %15 = tpu.matmul %14, %1, %cst_14 {dimension_numbers = #tpu.dot_dimension_numbers<[1], [0], [0], [1], [0, 0, 1, 1], [], []>} : vector<4x64xbf16>, vector<64x32xbf16>, vector<4x32xf32> -> vector<4x32xf32>
    %16 = arith.truncf %15 : vector<4x32xf32> to vector<4x32xbf16>
    %c0_15 = arith.constant 0 : index
    %c0_16 = arith.constant 0 : index
    %c0_17 = arith.constant 0 : index
    %c0_18 = arith.constant 0 : index
    %17 = vector.load %arg7[%c0_15, %c0_16, %c0_17, %c0_18] : memref<1x4x4x32xbf16, #tpu.memory_space<vmem>>, vector<1x1x4x32xbf16>
    %18 = vector.shape_cast %17 : vector<1x1x4x32xbf16> to vector<4x32xbf16>
    %19 = vector.shape_cast %16 : vector<4x32xbf16> to vector<1x1x4x32xbf16>
    tpu.vector_store %arg7[%c0_15, %c0_16, %c0_17, %c0_18], %19 {strides = array<i32>} : memref<1x4x4x32xbf16, #tpu.memory_space<vmem>>, vector<1x1x4x32xbf16>,
    %c0_19 = arith.constant 0 : index
    %c1 = arith.constant 1 : index
    %c0_20 = arith.constant 0 : index
    %c0_21 = arith.constant 0 : index
    %20 = vector.load %arg3[%c0_19, %c1, %c0_20, %c0_21] : memref<1x4x4x64xbf16, #tpu.memory_space<vmem>>, vector<1x1x4x64xbf16>
    %21 = vector.shape_cast %20 : vector<1x1x4x64xbf16> to vector<4x64xbf16>
    %cst_22 = arith.constant dense<0.000000e+00> : vector<4x64xf32>
    %22 = tpu.matmul %21, %0, %cst_22 {dimension_numbers = #tpu.dot_dimension_numbers<[1], [0], [0], [1], [0, 0, 1, 1], [], []>} : vector<4x64xbf16>, vector<64x64xbf16>, vector<4x64xf32> -> vector<4x64xf32>
    %23 = arith.extf %4 : vector<4x64xbf16> to vector<4x64xf32>
    %24 = arith.addf %22, %23 : vector<4x64xf32>
    %25 = vector.broadcast %2 : vector<1x64xf32> to vector<4x64xf32>
    %26 = arith.addf %24, %25 : vector<4x64xf32>
    %cst_23 = arith.constant 0.000000e+00 : f32
    %27 = vector.broadcast %cst_23 : f32 to vector<4x64xf32>
    %28 = arith.maximumf %26, %27 : vector<4x64xf32>
    %29 = arith.truncf %28 : vector<4x64xf32> to vector<4x64xbf16>
    %cst_24 = arith.constant dense<0.000000e+00> : vector<4x32xf32>
    %30 = tpu.matmul %29, %1, %cst_24 {dimension_numbers = #tpu.dot_dimension_numbers<[1], [0], [0], [1], [0, 0, 1, 1], [], []>} : vector<4x64xbf16>, vector<64x32xbf16>, vector<4x32xf32> -> vector<4x32xf32>
    %31 = arith.truncf %30 : vector<4x32xf32> to vector<4x32xbf16>
    %c0_25 = arith.constant 0 : index
    %c1_26 = arith.constant 1 : index
    %c0_27 = arith.constant 0 : index
    %c0_28 = arith.constant 0 : index
    %32 = vector.load %arg7[%c0_25, %c1_26, %c0_27, %c0_28] : memref<1x4x4x32xbf16, #tpu.memory_space<vmem>>, vector<1x1x4x32xbf16>
    %33 = vector.shape_cast %32 : vector<1x1x4x32xbf16> to vector<4x32xbf16>
    %34 = vector.shape_cast %31 : vector<4x32xbf16> to vector<1x1x4x32xbf16>
    tpu.vector_store %arg7[%c0_25, %c1_26, %c0_27, %c0_28], %34 {strides = array<i32>} : memref<1x4x4x32xbf16, #tpu.memory_space<vmem>>, vector<1x1x4x32xbf16>,
    %c0_29 = arith.constant 0 : index
    %c1_30 = arith.constant 1 : index
    %c0_31 = arith.constant 0 : index
    %c0_32 = arith.constant 0 : index
    %35 = vector.load %arg2[%c0_29, %c1_30, %c0_31, %c0_32] : memref<1x2x4x64xbf16, #tpu.memory_space<vmem>>, vector<1x1x4x64xbf16>
    %36 = vector.shape_cast %35 : vector<1x1x4x64xbf16> to vector<4x64xbf16>
    %c0_33 = arith.constant 0 : index
    %c2 = arith.constant 2 : index
    %c0_34 = arith.constant 0 : index
    %c0_35 = arith.constant 0 : index
    %37 = vector.load %arg3[%c0_33, %c2, %c0_34, %c0_35] : memref<1x4x4x64xbf16, #tpu.memory_space<vmem>>, vector<1x1x4x64xbf16>
    %38 = vector.shape_cast %37 : vector<1x1x4x64xbf16> to vector<4x64xbf16>
    %cst_36 = arith.constant dense<0.000000e+00> : vector<4x64xf32>
    %39 = tpu.matmul %38, %0, %cst_36 {dimension_numbers = #tpu.dot_dimension_numbers<[1], [0], [0], [1], [0, 0, 1, 1], [], []>} : vector<4x64xbf16>, vector<64x64xbf16>, vector<4x64xf32> -> vector<4x64xf32>
    %40 = arith.extf %36 : vector<4x64xbf16> to vector<4x64xf32>
    %41 = arith.addf %39, %40 : vector<4x64xf32>
    %42 = vector.broadcast %2 : vector<1x64xf32> to vector<4x64xf32>
    %43 = arith.addf %41, %42 : vector<4x64xf32>
    %cst_37 = arith.constant 0.000000e+00 : f32
    %44 = vector.broadcast %cst_37 : f32 to vector<4x64xf32>
    %45 = arith.maximumf %43, %44 : vector<4x64xf32>
    %46 = arith.truncf %45 : vector<4x64xf32> to vector<4x64xbf16>
    %cst_38 = arith.constant dense<0.000000e+00> : vector<4x32xf32>
    %47 = tpu.matmul %46, %1, %cst_38 {dimension_numbers = #tpu.dot_dimension_numbers<[1], [0], [0], [1], [0, 0, 1, 1], [], []>} : vector<4x64xbf16>, vector<64x32xbf16>, vector<4x32xf32> -> vector<4x32xf32>
    %48 = arith.truncf %47 : vector<4x32xf32> to vector<4x32xbf16>
    %c0_39 = arith.constant 0 : index
    %c2_40 = arith.constant 2 : index
    %c0_41 = arith.constant 0 : index
    %c0_42 = arith.constant 0 : index
    %49 = vector.load %arg7[%c0_39, %c2_40, %c0_41, %c0_42] : memref<1x4x4x32xbf16, #tpu.memory_space<vmem>>, vector<1x1x4x32xbf16>
    %50 = vector.shape_cast %49 : vector<1x1x4x32xbf16> to vector<4x32xbf16>
    %51 = vector.shape_cast %48 : vector<4x32xbf16> to vector<1x1x4x32xbf16>
    tpu.vector_store %arg7[%c0_39, %c2_40, %c0_41, %c0_42], %51 {strides = array<i32>} : memref<1x4x4x32xbf16, #tpu.memory_space<vmem>>, vector<1x1x4x32xbf16>,
    %c0_43 = arith.constant 0 : index
    %c3 = arith.constant 3 : index
    %c0_44 = arith.constant 0 : index
    %c0_45 = arith.constant 0 : index
    %52 = vector.load %arg3[%c0_43, %c3, %c0_44, %c0_45] : memref<1x4x4x64xbf16, #tpu.memory_space<vmem>>, vector<1x1x4x64xbf16>
    %53 = vector.shape_cast %52 : vector<1x1x4x64xbf16> to vector<4x64xbf16>
    %cst_46 = arith.constant dense<0.000000e+00> : vector<4x64xf32>
    %54 = tpu.matmul %53, %0, %cst_46 {dimension_numbers = #tpu.dot_dimension_numbers<[1], [0], [0], [1], [0, 0, 1, 1], [], []>} : vector<4x64xbf16>, vector<64x64xbf16>, vector<4x64xf32> -> vector<4x64xf32>
    %55 = arith.extf %36 : vector<4x64xbf16> to vector<4x64xf32>
    %56 = arith.addf %54, %55 : vector<4x64xf32>
    %57 = vector.broadcast %2 : vector<1x64xf32> to vector<4x64xf32>
    %58 = arith.addf %56, %57 : vector<4x64xf32>
    %cst_47 = arith.constant 0.000000e+00 : f32
    %59 = vector.broadcast %cst_47 : f32 to vector<4x64xf32>
    %60 = arith.maximumf %58, %59 : vector<4x64xf32>
    %61 = arith.truncf %60 : vector<4x64xf32> to vector<4x64xbf16>
    %cst_48 = arith.constant dense<0.000000e+00> : vector<4x32xf32>
    %62 = tpu.matmul %61, %1, %cst_48 {dimension_numbers = #tpu.dot_dimension_numbers<[1], [0], [0], [1], [0, 0, 1, 1], [], []>} : vector<4x64xbf16>, vector<64x32xbf16>, vector<4x32xf32> -> vector<4x32xf32>
    %63 = arith.truncf %62 : vector<4x32xf32> to vector<4x32xbf16>
    %c0_49 = arith.constant 0 : index
    %c3_50 = arith.constant 3 : index
    %c0_51 = arith.constant 0 : index
    %c0_52 = arith.constant 0 : index
    %64 = vector.load %arg7[%c0_49, %c3_50, %c0_51, %c0_52] : memref<1x4x4x32xbf16, #tpu.memory_space<vmem>>, vector<1x1x4x32xbf16>
    %65 = vector.shape_cast %64 : vector<1x1x4x32xbf16> to vector<4x32xbf16>
    %66 = vector.shape_cast %63 : vector<4x32xbf16> to vector<1x1x4x32xbf16>
    tpu.vector_store %arg7[%c0_49, %c3_50, %c0_51, %c0_52], %66 {strides = array<i32>} : memref<1x4x4x32xbf16, #tpu.memory_space<vmem>>, vector<1x1x4x32xbf16>,
    return
  }
  func.func @transform_0(%arg0: i32, %arg1: i32) -> (i32, i32, i32, i32) {
    %c0_i32 = arith.constant 0 : i32
    %c0_i32_0 = arith.constant 0 : i32
    %c0_i32_1 = arith.constant 0 : i32
    return %arg0, %arg1, %c0_i32, %c0_i32_0 : i32, i32, i32, i32
  }
  func.func @transform_1(%arg0: i32, %arg1: i32) -> (i32, i32, i32, i32) {
    %c0_i32 = arith.constant 0 : i32
    %c0_i32_0 = arith.constant 0 : i32
    %c0_i32_1 = arith.constant 0 : i32
    return %arg0, %arg1, %c0_i32, %c0_i32_0 : i32, i32, i32, i32
  }
  func.func @transform_2(%arg0: i32, %arg1: i32) -> (i32, i32) {
    %c0_i32 = arith.constant 0 : i32
    %c0_i32_0 = arith.constant 0 : i32
    %c0_i32_1 = arith.constant 0 : i32
    return %c0_i32, %c0_i32_0 : i32, i32
  }
  func.func @transform_3(%arg0: i32, %arg1: i32) -> (i32, i32) {
    %c0_i32 = arith.constant 0 : i32
    %c0_i32_0 = arith.constant 0 : i32
    %c0_i32_1 = arith.constant 0 : i32
    return %c0_i32, %c0_i32_0 : i32, i32
  }
  func.func @transform_4(%arg0: i32, %arg1: i32) -> (i32, i32) {
    %c0_i32 = arith.constant 0 : i32
    %c0_i32_0 = arith.constant 0 : i32
    %c0_i32_1 = arith.constant 0 : i32
    return %c0_i32, %c0_i32_0 : i32, i32
  }
  func.func @transform_5(%arg0: i32, %arg1: i32) -> (i32, i32, i32, i32) {
    %c0_i32 = arith.constant 0 : i32
    %c0_i32_0 = arith.constant 0 : i32
    %c0_i32_1 = arith.constant 0 : i32
    return %arg0, %arg1, %c0_i32, %c0_i32_0 : i32, i32, i32, i32
  }
}

module attributes {stable_mosaic.version = 11 : i64} {
  func.func @_stage_kernel(%arg0: i32, %arg1: i32, %arg2: memref<1x4x8x32xbf16, #tpu.memory_space<vmem>>, %arg3: memref<1x8x8x32xbf16, #tpu.memory_space<vmem>>, %arg4: memref<32x32xbf16, #tpu.memory_space<vmem>>, %arg5: memref<1x32xf32, #tpu.memory_space<vmem>>, %arg6: memref<32x16xbf16, #tpu.memory_space<vmem>>, %arg7: memref<1x8x8x16xbf16, #tpu.memory_space<vmem>>) attributes {dimension_semantics = [#tpu.dimension_semantics<parallel>, #tpu.dimension_semantics<parallel>], iteration_bounds = array<i64: 2, 1>, scalar_prefetch = 0 : i64, scratch_operands = 0 : i64, tpu.core_type = #tpu.core_type<tc>, window_params = [{transform_indices = @transform_0, window_bounds = array<i64: 1, 4, 8, 32>}, {transform_indices = @transform_1, window_bounds = array<i64: 1, 8, 8, 32>}, {pipeline_mode = #tpu.pipeline_mode<synchronous>, transform_indices = @transform_2, window_bounds = array<i64: 32, 32>}, {pipeline_mode = #tpu.pipeline_mode<synchronous>, transform_indices = @transform_3, window_bounds = array<i64: 1, 32>}, {pipeline_mode = #tpu.pipeline_mode<synchronous>, transform_indices = @transform_4, window_bounds = array<i64: 32, 16>}, {transform_indices = @transform_5, window_bounds = array<i64: 1, 8, 8, 16>}]} {
    %c0 = arith.constant 0 : index
    %c0_0 = arith.constant 0 : index
    %0 = vector.load %arg4[%c0, %c0_0] : memref<32x32xbf16, #tpu.memory_space<vmem>>, vector<32x32xbf16>
    %c0_1 = arith.constant 0 : index
    %c0_2 = arith.constant 0 : index
    %1 = vector.load %arg6[%c0_1, %c0_2] : memref<32x16xbf16, #tpu.memory_space<vmem>>, vector<32x16xbf16>
    %c0_3 = arith.constant 0 : index
    %c0_4 = arith.constant 0 : index
    %2 = vector.load %arg5[%c0_3, %c0_4] : memref<1x32xf32, #tpu.memory_space<vmem>>, vector<1x32xf32>
    %c0_5 = arith.constant 0 : index
    %c0_6 = arith.constant 0 : index
    %c0_7 = arith.constant 0 : index
    %c0_8 = arith.constant 0 : index
    %3 = vector.load %arg2[%c0_5, %c0_6, %c0_7, %c0_8] : memref<1x4x8x32xbf16, #tpu.memory_space<vmem>>, vector<1x1x8x32xbf16>
    %4 = vector.shape_cast %3 : vector<1x1x8x32xbf16> to vector<8x32xbf16>
    %c0_9 = arith.constant 0 : index
    %c0_10 = arith.constant 0 : index
    %c0_11 = arith.constant 0 : index
    %c0_12 = arith.constant 0 : index
    %5 = vector.load %arg3[%c0_9, %c0_10, %c0_11, %c0_12] : memref<1x8x8x32xbf16, #tpu.memory_space<vmem>>, vector<1x1x8x32xbf16>
    %6 = vector.shape_cast %5 : vector<1x1x8x32xbf16> to vector<8x32xbf16>
    %cst = arith.constant dense<0.000000e+00> : vector<8x32xf32>
    %7 = tpu.matmul %6, %0, %cst {dimension_numbers = #tpu.dot_dimension_numbers<[1], [0], [0], [1], [0, 0, 1, 1], [], []>} : vector<8x32xbf16>, vector<32x32xbf16>, vector<8x32xf32> -> vector<8x32xf32>
    %8 = arith.extf %4 : vector<8x32xbf16> to vector<8x32xf32>
    %9 = arith.addf %7, %8 : vector<8x32xf32>
    %10 = vector.broadcast %2 : vector<1x32xf32> to vector<8x32xf32>
    %11 = arith.addf %9, %10 : vector<8x32xf32>
    %cst_13 = arith.constant 0.000000e+00 : f32
    %12 = vector.broadcast %cst_13 : f32 to vector<8x32xf32>
    %13 = arith.maximumf %11, %12 : vector<8x32xf32>
    %14 = arith.truncf %13 : vector<8x32xf32> to vector<8x32xbf16>
    %cst_14 = arith.constant dense<0.000000e+00> : vector<8x16xf32>
    %15 = tpu.matmul %14, %1, %cst_14 {dimension_numbers = #tpu.dot_dimension_numbers<[1], [0], [0], [1], [0, 0, 1, 1], [], []>} : vector<8x32xbf16>, vector<32x16xbf16>, vector<8x16xf32> -> vector<8x16xf32>
    %16 = arith.truncf %15 : vector<8x16xf32> to vector<8x16xbf16>
    %c0_15 = arith.constant 0 : index
    %c0_16 = arith.constant 0 : index
    %c0_17 = arith.constant 0 : index
    %c0_18 = arith.constant 0 : index
    %17 = vector.load %arg7[%c0_15, %c0_16, %c0_17, %c0_18] : memref<1x8x8x16xbf16, #tpu.memory_space<vmem>>, vector<1x1x8x16xbf16>
    %18 = vector.shape_cast %17 : vector<1x1x8x16xbf16> to vector<8x16xbf16>
    %19 = vector.shape_cast %16 : vector<8x16xbf16> to vector<1x1x8x16xbf16>
    tpu.vector_store %arg7[%c0_15, %c0_16, %c0_17, %c0_18], %19 {strides = array<i32>} : memref<1x8x8x16xbf16, #tpu.memory_space<vmem>>, vector<1x1x8x16xbf16>,
    %c0_19 = arith.constant 0 : index
    %c1 = arith.constant 1 : index
    %c0_20 = arith.constant 0 : index
    %c0_21 = arith.constant 0 : index
    %20 = vector.load %arg3[%c0_19, %c1, %c0_20, %c0_21] : memref<1x8x8x32xbf16, #tpu.memory_space<vmem>>, vector<1x1x8x32xbf16>
    %21 = vector.shape_cast %20 : vector<1x1x8x32xbf16> to vector<8x32xbf16>
    %cst_22 = arith.constant dense<0.000000e+00> : vector<8x32xf32>
    %22 = tpu.matmul %21, %0, %cst_22 {dimension_numbers = #tpu.dot_dimension_numbers<[1], [0], [0], [1], [0, 0, 1, 1], [], []>} : vector<8x32xbf16>, vector<32x32xbf16>, vector<8x32xf32> -> vector<8x32xf32>
    %23 = arith.extf %4 : vector<8x32xbf16> to vector<8x32xf32>
    %24 = arith.addf %22, %23 : vector<8x32xf32>
    %25 = vector.broadcast %2 : vector<1x32xf32> to vector<8x32xf32>
    %26 = arith.addf %24, %25 : vector<8x32xf32>
    %cst_23 = arith.constant 0.000000e+00 : f32
    %27 = vector.broadcast %cst_23 : f32 to vector<8x32xf32>
    %28 = arith.maximumf %26, %27 : vector<8x32xf32>
    %29 = arith.truncf %28 : vector<8x32xf32> to vector<8x32xbf16>
    %cst_24 = arith.constant dense<0.000000e+00> : vector<8x16xf32>
    %30 = tpu.matmul %29, %1, %cst_24 {dimension_numbers = #tpu.dot_dimension_numbers<[1], [0], [0], [1], [0, 0, 1, 1], [], []>} : vector<8x32xbf16>, vector<32x16xbf16>, vector<8x16xf32> -> vector<8x16xf32>
    %31 = arith.truncf %30 : vector<8x16xf32> to vector<8x16xbf16>
    %c0_25 = arith.constant 0 : index
    %c1_26 = arith.constant 1 : index
    %c0_27 = arith.constant 0 : index
    %c0_28 = arith.constant 0 : index
    %32 = vector.load %arg7[%c0_25, %c1_26, %c0_27, %c0_28] : memref<1x8x8x16xbf16, #tpu.memory_space<vmem>>, vector<1x1x8x16xbf16>
    %33 = vector.shape_cast %32 : vector<1x1x8x16xbf16> to vector<8x16xbf16>
    %34 = vector.shape_cast %31 : vector<8x16xbf16> to vector<1x1x8x16xbf16>
    tpu.vector_store %arg7[%c0_25, %c1_26, %c0_27, %c0_28], %34 {strides = array<i32>} : memref<1x8x8x16xbf16, #tpu.memory_space<vmem>>, vector<1x1x8x16xbf16>,
    %c0_29 = arith.constant 0 : index
    %c1_30 = arith.constant 1 : index
    %c0_31 = arith.constant 0 : index
    %c0_32 = arith.constant 0 : index
    %35 = vector.load %arg2[%c0_29, %c1_30, %c0_31, %c0_32] : memref<1x4x8x32xbf16, #tpu.memory_space<vmem>>, vector<1x1x8x32xbf16>
    %36 = vector.shape_cast %35 : vector<1x1x8x32xbf16> to vector<8x32xbf16>
    %c0_33 = arith.constant 0 : index
    %c2 = arith.constant 2 : index
    %c0_34 = arith.constant 0 : index
    %c0_35 = arith.constant 0 : index
    %37 = vector.load %arg3[%c0_33, %c2, %c0_34, %c0_35] : memref<1x8x8x32xbf16, #tpu.memory_space<vmem>>, vector<1x1x8x32xbf16>
    %38 = vector.shape_cast %37 : vector<1x1x8x32xbf16> to vector<8x32xbf16>
    %cst_36 = arith.constant dense<0.000000e+00> : vector<8x32xf32>
    %39 = tpu.matmul %38, %0, %cst_36 {dimension_numbers = #tpu.dot_dimension_numbers<[1], [0], [0], [1], [0, 0, 1, 1], [], []>} : vector<8x32xbf16>, vector<32x32xbf16>, vector<8x32xf32> -> vector<8x32xf32>
    %40 = arith.extf %36 : vector<8x32xbf16> to vector<8x32xf32>
    %41 = arith.addf %39, %40 : vector<8x32xf32>
    %42 = vector.broadcast %2 : vector<1x32xf32> to vector<8x32xf32>
    %43 = arith.addf %41, %42 : vector<8x32xf32>
    %cst_37 = arith.constant 0.000000e+00 : f32
    %44 = vector.broadcast %cst_37 : f32 to vector<8x32xf32>
    %45 = arith.maximumf %43, %44 : vector<8x32xf32>
    %46 = arith.truncf %45 : vector<8x32xf32> to vector<8x32xbf16>
    %cst_38 = arith.constant dense<0.000000e+00> : vector<8x16xf32>
    %47 = tpu.matmul %46, %1, %cst_38 {dimension_numbers = #tpu.dot_dimension_numbers<[1], [0], [0], [1], [0, 0, 1, 1], [], []>} : vector<8x32xbf16>, vector<32x16xbf16>, vector<8x16xf32> -> vector<8x16xf32>
    %48 = arith.truncf %47 : vector<8x16xf32> to vector<8x16xbf16>
    %c0_39 = arith.constant 0 : index
    %c2_40 = arith.constant 2 : index
    %c0_41 = arith.constant 0 : index
    %c0_42 = arith.constant 0 : index
    %49 = vector.load %arg7[%c0_39, %c2_40, %c0_41, %c0_42] : memref<1x8x8x16xbf16, #tpu.memory_space<vmem>>, vector<1x1x8x16xbf16>
    %50 = vector.shape_cast %49 : vector<1x1x8x16xbf16> to vector<8x16xbf16>
    %51 = vector.shape_cast %48 : vector<8x16xbf16> to vector<1x1x8x16xbf16>
    tpu.vector_store %arg7[%c0_39, %c2_40, %c0_41, %c0_42], %51 {strides = array<i32>} : memref<1x8x8x16xbf16, #tpu.memory_space<vmem>>, vector<1x1x8x16xbf16>,
    %c0_43 = arith.constant 0 : index
    %c3 = arith.constant 3 : index
    %c0_44 = arith.constant 0 : index
    %c0_45 = arith.constant 0 : index
    %52 = vector.load %arg3[%c0_43, %c3, %c0_44, %c0_45] : memref<1x8x8x32xbf16, #tpu.memory_space<vmem>>, vector<1x1x8x32xbf16>
    %53 = vector.shape_cast %52 : vector<1x1x8x32xbf16> to vector<8x32xbf16>
    %cst_46 = arith.constant dense<0.000000e+00> : vector<8x32xf32>
    %54 = tpu.matmul %53, %0, %cst_46 {dimension_numbers = #tpu.dot_dimension_numbers<[1], [0], [0], [1], [0, 0, 1, 1], [], []>} : vector<8x32xbf16>, vector<32x32xbf16>, vector<8x32xf32> -> vector<8x32xf32>
    %55 = arith.extf %36 : vector<8x32xbf16> to vector<8x32xf32>
    %56 = arith.addf %54, %55 : vector<8x32xf32>
    %57 = vector.broadcast %2 : vector<1x32xf32> to vector<8x32xf32>
    %58 = arith.addf %56, %57 : vector<8x32xf32>
    %cst_47 = arith.constant 0.000000e+00 : f32
    %59 = vector.broadcast %cst_47 : f32 to vector<8x32xf32>
    %60 = arith.maximumf %58, %59 : vector<8x32xf32>
    %61 = arith.truncf %60 : vector<8x32xf32> to vector<8x32xbf16>
    %cst_48 = arith.constant dense<0.000000e+00> : vector<8x16xf32>
    %62 = tpu.matmul %61, %1, %cst_48 {dimension_numbers = #tpu.dot_dimension_numbers<[1], [0], [0], [1], [0, 0, 1, 1], [], []>} : vector<8x32xbf16>, vector<32x16xbf16>, vector<8x16xf32> -> vector<8x16xf32>
    %63 = arith.truncf %62 : vector<8x16xf32> to vector<8x16xbf16>
    %c0_49 = arith.constant 0 : index
    %c3_50 = arith.constant 3 : index
    %c0_51 = arith.constant 0 : index
    %c0_52 = arith.constant 0 : index
    %64 = vector.load %arg7[%c0_49, %c3_50, %c0_51, %c0_52] : memref<1x8x8x16xbf16, #tpu.memory_space<vmem>>, vector<1x1x8x16xbf16>
    %65 = vector.shape_cast %64 : vector<1x1x8x16xbf16> to vector<8x16xbf16>
    %66 = vector.shape_cast %63 : vector<8x16xbf16> to vector<1x1x8x16xbf16>
    tpu.vector_store %arg7[%c0_49, %c3_50, %c0_51, %c0_52], %66 {strides = array<i32>} : memref<1x8x8x16xbf16, #tpu.memory_space<vmem>>, vector<1x1x8x16xbf16>,
    %c0_53 = arith.constant 0 : index
    %c2_54 = arith.constant 2 : index
    %c0_55 = arith.constant 0 : index
    %c0_56 = arith.constant 0 : index
    %67 = vector.load %arg2[%c0_53, %c2_54, %c0_55, %c0_56] : memref<1x4x8x32xbf16, #tpu.memory_space<vmem>>, vector<1x1x8x32xbf16>
    %68 = vector.shape_cast %67 : vector<1x1x8x32xbf16> to vector<8x32xbf16>
    %c0_57 = arith.constant 0 : index
    %c4 = arith.constant 4 : index
    %c0_58 = arith.constant 0 : index
    %c0_59 = arith.constant 0 : index
    %69 = vector.load %arg3[%c0_57, %c4, %c0_58, %c0_59] : memref<1x8x8x32xbf16, #tpu.memory_space<vmem>>, vector<1x1x8x32xbf16>
    %70 = vector.shape_cast %69 : vector<1x1x8x32xbf16> to vector<8x32xbf16>
    %cst_60 = arith.constant dense<0.000000e+00> : vector<8x32xf32>
    %71 = tpu.matmul %70, %0, %cst_60 {dimension_numbers = #tpu.dot_dimension_numbers<[1], [0], [0], [1], [0, 0, 1, 1], [], []>} : vector<8x32xbf16>, vector<32x32xbf16>, vector<8x32xf32> -> vector<8x32xf32>
    %72 = arith.extf %68 : vector<8x32xbf16> to vector<8x32xf32>
    %73 = arith.addf %71, %72 : vector<8x32xf32>
    %74 = vector.broadcast %2 : vector<1x32xf32> to vector<8x32xf32>
    %75 = arith.addf %73, %74 : vector<8x32xf32>
    %cst_61 = arith.constant 0.000000e+00 : f32
    %76 = vector.broadcast %cst_61 : f32 to vector<8x32xf32>
    %77 = arith.maximumf %75, %76 : vector<8x32xf32>
    %78 = arith.truncf %77 : vector<8x32xf32> to vector<8x32xbf16>
    %cst_62 = arith.constant dense<0.000000e+00> : vector<8x16xf32>
    %79 = tpu.matmul %78, %1, %cst_62 {dimension_numbers = #tpu.dot_dimension_numbers<[1], [0], [0], [1], [0, 0, 1, 1], [], []>} : vector<8x32xbf16>, vector<32x16xbf16>, vector<8x16xf32> -> vector<8x16xf32>
    %80 = arith.truncf %79 : vector<8x16xf32> to vector<8x16xbf16>
    %c0_63 = arith.constant 0 : index
    %c4_64 = arith.constant 4 : index
    %c0_65 = arith.constant 0 : index
    %c0_66 = arith.constant 0 : index
    %81 = vector.load %arg7[%c0_63, %c4_64, %c0_65, %c0_66] : memref<1x8x8x16xbf16, #tpu.memory_space<vmem>>, vector<1x1x8x16xbf16>
    %82 = vector.shape_cast %81 : vector<1x1x8x16xbf16> to vector<8x16xbf16>
    %83 = vector.shape_cast %80 : vector<8x16xbf16> to vector<1x1x8x16xbf16>
    tpu.vector_store %arg7[%c0_63, %c4_64, %c0_65, %c0_66], %83 {strides = array<i32>} : memref<1x8x8x16xbf16, #tpu.memory_space<vmem>>, vector<1x1x8x16xbf16>,
    %c0_67 = arith.constant 0 : index
    %c5 = arith.constant 5 : index
    %c0_68 = arith.constant 0 : index
    %c0_69 = arith.constant 0 : index
    %84 = vector.load %arg3[%c0_67, %c5, %c0_68, %c0_69] : memref<1x8x8x32xbf16, #tpu.memory_space<vmem>>, vector<1x1x8x32xbf16>
    %85 = vector.shape_cast %84 : vector<1x1x8x32xbf16> to vector<8x32xbf16>
    %cst_70 = arith.constant dense<0.000000e+00> : vector<8x32xf32>
    %86 = tpu.matmul %85, %0, %cst_70 {dimension_numbers = #tpu.dot_dimension_numbers<[1], [0], [0], [1], [0, 0, 1, 1], [], []>} : vector<8x32xbf16>, vector<32x32xbf16>, vector<8x32xf32> -> vector<8x32xf32>
    %87 = arith.extf %68 : vector<8x32xbf16> to vector<8x32xf32>
    %88 = arith.addf %86, %87 : vector<8x32xf32>
    %89 = vector.broadcast %2 : vector<1x32xf32> to vector<8x32xf32>
    %90 = arith.addf %88, %89 : vector<8x32xf32>
    %cst_71 = arith.constant 0.000000e+00 : f32
    %91 = vector.broadcast %cst_71 : f32 to vector<8x32xf32>
    %92 = arith.maximumf %90, %91 : vector<8x32xf32>
    %93 = arith.truncf %92 : vector<8x32xf32> to vector<8x32xbf16>
    %cst_72 = arith.constant dense<0.000000e+00> : vector<8x16xf32>
    %94 = tpu.matmul %93, %1, %cst_72 {dimension_numbers = #tpu.dot_dimension_numbers<[1], [0], [0], [1], [0, 0, 1, 1], [], []>} : vector<8x32xbf16>, vector<32x16xbf16>, vector<8x16xf32> -> vector<8x16xf32>
    %95 = arith.truncf %94 : vector<8x16xf32> to vector<8x16xbf16>
    %c0_73 = arith.constant 0 : index
    %c5_74 = arith.constant 5 : index
    %c0_75 = arith.constant 0 : index
    %c0_76 = arith.constant 0 : index
    %96 = vector.load %arg7[%c0_73, %c5_74, %c0_75, %c0_76] : memref<1x8x8x16xbf16, #tpu.memory_space<vmem>>, vector<1x1x8x16xbf16>
    %97 = vector.shape_cast %96 : vector<1x1x8x16xbf16> to vector<8x16xbf16>
    %98 = vector.shape_cast %95 : vector<8x16xbf16> to vector<1x1x8x16xbf16>
    tpu.vector_store %arg7[%c0_73, %c5_74, %c0_75, %c0_76], %98 {strides = array<i32>} : memref<1x8x8x16xbf16, #tpu.memory_space<vmem>>, vector<1x1x8x16xbf16>,
    %c0_77 = arith.constant 0 : index
    %c3_78 = arith.constant 3 : index
    %c0_79 = arith.constant 0 : index
    %c0_80 = arith.constant 0 : index
    %99 = vector.load %arg2[%c0_77, %c3_78, %c0_79, %c0_80] : memref<1x4x8x32xbf16, #tpu.memory_space<vmem>>, vector<1x1x8x32xbf16>
    %100 = vector.shape_cast %99 : vector<1x1x8x32xbf16> to vector<8x32xbf16>
    %c0_81 = arith.constant 0 : index
    %c6 = arith.constant 6 : index
    %c0_82 = arith.constant 0 : index
    %c0_83 = arith.constant 0 : index
    %101 = vector.load %arg3[%c0_81, %c6, %c0_82, %c0_83] : memref<1x8x8x32xbf16, #tpu.memory_space<vmem>>, vector<1x1x8x32xbf16>
    %102 = vector.shape_cast %101 : vector<1x1x8x32xbf16> to vector<8x32xbf16>
    %cst_84 = arith.constant dense<0.000000e+00> : vector<8x32xf32>
    %103 = tpu.matmul %102, %0, %cst_84 {dimension_numbers = #tpu.dot_dimension_numbers<[1], [0], [0], [1], [0, 0, 1, 1], [], []>} : vector<8x32xbf16>, vector<32x32xbf16>, vector<8x32xf32> -> vector<8x32xf32>
    %104 = arith.extf %100 : vector<8x32xbf16> to vector<8x32xf32>
    %105 = arith.addf %103, %104 : vector<8x32xf32>
    %106 = vector.broadcast %2 : vector<1x32xf32> to vector<8x32xf32>
    %107 = arith.addf %105, %106 : vector<8x32xf32>
    %cst_85 = arith.constant 0.000000e+00 : f32
    %108 = vector.broadcast %cst_85 : f32 to vector<8x32xf32>
    %109 = arith.maximumf %107, %108 : vector<8x32xf32>
    %110 = arith.truncf %109 : vector<8x32xf32> to vector<8x32xbf16>
    %cst_86 = arith.constant dense<0.000000e+00> : vector<8x16xf32>
    %111 = tpu.matmul %110, %1, %cst_86 {dimension_numbers = #tpu.dot_dimension_numbers<[1], [0], [0], [1], [0, 0, 1, 1], [], []>} : vector<8x32xbf16>, vector<32x16xbf16>, vector<8x16xf32> -> vector<8x16xf32>
    %112 = arith.truncf %111 : vector<8x16xf32> to vector<8x16xbf16>
    %c0_87 = arith.constant 0 : index
    %c6_88 = arith.constant 6 : index
    %c0_89 = arith.constant 0 : index
    %c0_90 = arith.constant 0 : index
    %113 = vector.load %arg7[%c0_87, %c6_88, %c0_89, %c0_90] : memref<1x8x8x16xbf16, #tpu.memory_space<vmem>>, vector<1x1x8x16xbf16>
    %114 = vector.shape_cast %113 : vector<1x1x8x16xbf16> to vector<8x16xbf16>
    %115 = vector.shape_cast %112 : vector<8x16xbf16> to vector<1x1x8x16xbf16>
    tpu.vector_store %arg7[%c0_87, %c6_88, %c0_89, %c0_90], %115 {strides = array<i32>} : memref<1x8x8x16xbf16, #tpu.memory_space<vmem>>, vector<1x1x8x16xbf16>,
    %c0_91 = arith.constant 0 : index
    %c7 = arith.constant 7 : index
    %c0_92 = arith.constant 0 : index
    %c0_93 = arith.constant 0 : index
    %116 = vector.load %arg3[%c0_91, %c7, %c0_92, %c0_93] : memref<1x8x8x32xbf16, #tpu.memory_space<vmem>>, vector<1x1x8x32xbf16>
    %117 = vector.shape_cast %116 : vector<1x1x8x32xbf16> to vector<8x32xbf16>
    %cst_94 = arith.constant dense<0.000000e+00> : vector<8x32xf32>
    %118 = tpu.matmul %117, %0, %cst_94 {dimension_numbers = #tpu.dot_dimension_numbers<[1], [0], [0], [1], [0, 0, 1, 1], [], []>} : vector<8x32xbf16>, vector<32x32xbf16>, vector<8x32xf32> -> vector<8x32xf32>
    %119 = arith.extf %100 : vector<8x32xbf16> to vector<8x32xf32>
    %120 = arith.addf %118, %119 : vector<8x32xf32>
    %121 = vector.broadcast %2 : vector<1x32xf32> to vector<8x32xf32>
    %122 = arith.addf %120, %121 : vector<8x32xf32>
    %cst_95 = arith.constant 0.000000e+00 : f32
    %123 = vector.broadcast %cst_95 : f32 to vector<8x32xf32>
    %124 = arith.maximumf %122, %123 : vector<8x32xf32>
    %125 = arith.truncf %124 : vector<8x32xf32> to vector<8x32xbf16>
    %cst_96 = arith.constant dense<0.000000e+00> : vector<8x16xf32>
    %126 = tpu.matmul %125, %1, %cst_96 {dimension_numbers = #tpu.dot_dimension_numbers<[1], [0], [0], [1], [0, 0, 1, 1], [], []>} : vector<8x32xbf16>, vector<32x16xbf16>, vector<8x16xf32> -> vector<8x16xf32>
    %127 = arith.truncf %126 : vector<8x16xf32> to vector<8x16xbf16>
    %c0_97 = arith.constant 0 : index
    %c7_98 = arith.constant 7 : index
    %c0_99 = arith.constant 0 : index
    %c0_100 = arith.constant 0 : index
    %128 = vector.load %arg7[%c0_97, %c7_98, %c0_99, %c0_100] : memref<1x8x8x16xbf16, #tpu.memory_space<vmem>>, vector<1x1x8x16xbf16>
    %129 = vector.shape_cast %128 : vector<1x1x8x16xbf16> to vector<8x16xbf16>
    %130 = vector.shape_cast %127 : vector<8x16xbf16> to vector<1x1x8x16xbf16>
    tpu.vector_store %arg7[%c0_97, %c7_98, %c0_99, %c0_100], %130 {strides = array<i32>} : memref<1x8x8x16xbf16, #tpu.memory_space<vmem>>, vector<1x1x8x16xbf16>,
    return
  }
  func.func @transform_0(%arg0: i32, %arg1: i32) -> (i32, i32, i32, i32) {
    %c0_i32 = arith.constant 0 : i32
    %c0_i32_0 = arith.constant 0 : i32
    %c0_i32_1 = arith.constant 0 : i32
    return %arg0, %arg1, %c0_i32, %c0_i32_0 : i32, i32, i32, i32
  }
  func.func @transform_1(%arg0: i32, %arg1: i32) -> (i32, i32, i32, i32) {
    %c0_i32 = arith.constant 0 : i32
    %c0_i32_0 = arith.constant 0 : i32
    %c0_i32_1 = arith.constant 0 : i32
    return %arg0, %arg1, %c0_i32, %c0_i32_0 : i32, i32, i32, i32
  }
  func.func @transform_2(%arg0: i32, %arg1: i32) -> (i32, i32) {
    %c0_i32 = arith.constant 0 : i32
    %c0_i32_0 = arith.constant 0 : i32
    %c0_i32_1 = arith.constant 0 : i32
    return %c0_i32, %c0_i32_0 : i32, i32
  }
  func.func @transform_3(%arg0: i32, %arg1: i32) -> (i32, i32) {
    %c0_i32 = arith.constant 0 : i32
    %c0_i32_0 = arith.constant 0 : i32
    %c0_i32_1 = arith.constant 0 : i32
    return %c0_i32, %c0_i32_0 : i32, i32
  }
  func.func @transform_4(%arg0: i32, %arg1: i32) -> (i32, i32) {
    %c0_i32 = arith.constant 0 : i32
    %c0_i32_0 = arith.constant 0 : i32
    %c0_i32_1 = arith.constant 0 : i32
    return %c0_i32, %c0_i32_0 : i32, i32
  }
  func.func @transform_5(%arg0: i32, %arg1: i32) -> (i32, i32, i32, i32) {
    %c0_i32 = arith.constant 0 : i32
    %c0_i32_0 = arith.constant 0 : i32
    %c0_i32_1 = arith.constant 0 : i32
    return %arg0, %arg1, %c0_i32, %c0_i32_0 : i32, i32, i32, i32
  }
}

module attributes {stable_mosaic.version = 11 : i64} {
  func.func @_stage_kernel(%arg0: i32, %arg1: i32, %arg2: memref<1x8x16x16xbf16, #tpu.memory_space<vmem>>, %arg3: memref<1x16x16x16xbf16, #tpu.memory_space<vmem>>, %arg4: memref<16x16xbf16, #tpu.memory_space<vmem>>, %arg5: memref<1x16xf32, #tpu.memory_space<vmem>>, %arg6: memref<16x16xbf16, #tpu.memory_space<vmem>>, %arg7: memref<1x16x16x16xbf16, #tpu.memory_space<vmem>>) attributes {dimension_semantics = [#tpu.dimension_semantics<parallel>, #tpu.dimension_semantics<parallel>], iteration_bounds = array<i64: 2, 1>, scalar_prefetch = 0 : i64, scratch_operands = 0 : i64, tpu.core_type = #tpu.core_type<tc>, window_params = [{transform_indices = @transform_0, window_bounds = array<i64: 1, 8, 16, 16>}, {transform_indices = @transform_1, window_bounds = array<i64: 1, 16, 16, 16>}, {pipeline_mode = #tpu.pipeline_mode<synchronous>, transform_indices = @transform_2, window_bounds = array<i64: 16, 16>}, {pipeline_mode = #tpu.pipeline_mode<synchronous>, transform_indices = @transform_3, window_bounds = array<i64: 1, 16>}, {pipeline_mode = #tpu.pipeline_mode<synchronous>, transform_indices = @transform_4, window_bounds = array<i64: 16, 16>}, {transform_indices = @transform_5, window_bounds = array<i64: 1, 16, 16, 16>}]} {
    %c0 = arith.constant 0 : index
    %c0_0 = arith.constant 0 : index
    %0 = vector.load %arg4[%c0, %c0_0] : memref<16x16xbf16, #tpu.memory_space<vmem>>, vector<16x16xbf16>
    %c0_1 = arith.constant 0 : index
    %c0_2 = arith.constant 0 : index
    %1 = vector.load %arg6[%c0_1, %c0_2] : memref<16x16xbf16, #tpu.memory_space<vmem>>, vector<16x16xbf16>
    %c0_3 = arith.constant 0 : index
    %c0_4 = arith.constant 0 : index
    %2 = vector.load %arg5[%c0_3, %c0_4] : memref<1x16xf32, #tpu.memory_space<vmem>>, vector<1x16xf32>
    %c0_5 = arith.constant 0 : index
    %c0_6 = arith.constant 0 : index
    %c0_7 = arith.constant 0 : index
    %c0_8 = arith.constant 0 : index
    %3 = vector.load %arg2[%c0_5, %c0_6, %c0_7, %c0_8] : memref<1x8x16x16xbf16, #tpu.memory_space<vmem>>, vector<1x1x16x16xbf16>
    %4 = vector.shape_cast %3 : vector<1x1x16x16xbf16> to vector<16x16xbf16>
    %c0_9 = arith.constant 0 : index
    %c0_10 = arith.constant 0 : index
    %c0_11 = arith.constant 0 : index
    %c0_12 = arith.constant 0 : index
    %5 = vector.load %arg3[%c0_9, %c0_10, %c0_11, %c0_12] : memref<1x16x16x16xbf16, #tpu.memory_space<vmem>>, vector<1x1x16x16xbf16>
    %6 = vector.shape_cast %5 : vector<1x1x16x16xbf16> to vector<16x16xbf16>
    %cst = arith.constant dense<0.000000e+00> : vector<16x16xf32>
    %7 = tpu.matmul %6, %0, %cst {dimension_numbers = #tpu.dot_dimension_numbers<[1], [0], [0], [1], [0, 0, 1, 1], [], []>} : vector<16x16xbf16>, vector<16x16xbf16>, vector<16x16xf32> -> vector<16x16xf32>
    %8 = arith.extf %4 : vector<16x16xbf16> to vector<16x16xf32>
    %9 = arith.addf %7, %8 : vector<16x16xf32>
    %10 = vector.broadcast %2 : vector<1x16xf32> to vector<16x16xf32>
    %11 = arith.addf %9, %10 : vector<16x16xf32>
    %cst_13 = arith.constant 0.000000e+00 : f32
    %12 = vector.broadcast %cst_13 : f32 to vector<16x16xf32>
    %13 = arith.maximumf %11, %12 : vector<16x16xf32>
    %14 = arith.truncf %13 : vector<16x16xf32> to vector<16x16xbf16>
    %cst_14 = arith.constant dense<0.000000e+00> : vector<16x16xf32>
    %15 = tpu.matmul %14, %1, %cst_14 {dimension_numbers = #tpu.dot_dimension_numbers<[1], [0], [0], [1], [0, 0, 1, 1], [], []>} : vector<16x16xbf16>, vector<16x16xbf16>, vector<16x16xf32> -> vector<16x16xf32>
    %16 = arith.truncf %15 : vector<16x16xf32> to vector<16x16xbf16>
    %c0_15 = arith.constant 0 : index
    %c0_16 = arith.constant 0 : index
    %c0_17 = arith.constant 0 : index
    %c0_18 = arith.constant 0 : index
    %17 = vector.load %arg7[%c0_15, %c0_16, %c0_17, %c0_18] : memref<1x16x16x16xbf16, #tpu.memory_space<vmem>>, vector<1x1x16x16xbf16>
    %18 = vector.shape_cast %17 : vector<1x1x16x16xbf16> to vector<16x16xbf16>
    %19 = vector.shape_cast %16 : vector<16x16xbf16> to vector<1x1x16x16xbf16>
    tpu.vector_store %arg7[%c0_15, %c0_16, %c0_17, %c0_18], %19 {strides = array<i32>} : memref<1x16x16x16xbf16, #tpu.memory_space<vmem>>, vector<1x1x16x16xbf16>,
    %c0_19 = arith.constant 0 : index
    %c1 = arith.constant 1 : index
    %c0_20 = arith.constant 0 : index
    %c0_21 = arith.constant 0 : index
    %20 = vector.load %arg3[%c0_19, %c1, %c0_20, %c0_21] : memref<1x16x16x16xbf16, #tpu.memory_space<vmem>>, vector<1x1x16x16xbf16>
    %21 = vector.shape_cast %20 : vector<1x1x16x16xbf16> to vector<16x16xbf16>
    %cst_22 = arith.constant dense<0.000000e+00> : vector<16x16xf32>
    %22 = tpu.matmul %21, %0, %cst_22 {dimension_numbers = #tpu.dot_dimension_numbers<[1], [0], [0], [1], [0, 0, 1, 1], [], []>} : vector<16x16xbf16>, vector<16x16xbf16>, vector<16x16xf32> -> vector<16x16xf32>
    %23 = arith.extf %4 : vector<16x16xbf16> to vector<16x16xf32>
    %24 = arith.addf %22, %23 : vector<16x16xf32>
    %25 = vector.broadcast %2 : vector<1x16xf32> to vector<16x16xf32>
    %26 = arith.addf %24, %25 : vector<16x16xf32>
    %cst_23 = arith.constant 0.000000e+00 : f32
    %27 = vector.broadcast %cst_23 : f32 to vector<16x16xf32>
    %28 = arith.maximumf %26, %27 : vector<16x16xf32>
    %29 = arith.truncf %28 : vector<16x16xf32> to vector<16x16xbf16>
    %cst_24 = arith.constant dense<0.000000e+00> : vector<16x16xf32>
    %30 = tpu.matmul %29, %1, %cst_24 {dimension_numbers = #tpu.dot_dimension_numbers<[1], [0], [0], [1], [0, 0, 1, 1], [], []>} : vector<16x16xbf16>, vector<16x16xbf16>, vector<16x16xf32> -> vector<16x16xf32>
    %31 = arith.truncf %30 : vector<16x16xf32> to vector<16x16xbf16>
    %c0_25 = arith.constant 0 : index
    %c1_26 = arith.constant 1 : index
    %c0_27 = arith.constant 0 : index
    %c0_28 = arith.constant 0 : index
    %32 = vector.load %arg7[%c0_25, %c1_26, %c0_27, %c0_28] : memref<1x16x16x16xbf16, #tpu.memory_space<vmem>>, vector<1x1x16x16xbf16>
    %33 = vector.shape_cast %32 : vector<1x1x16x16xbf16> to vector<16x16xbf16>
    %34 = vector.shape_cast %31 : vector<16x16xbf16> to vector<1x1x16x16xbf16>
    tpu.vector_store %arg7[%c0_25, %c1_26, %c0_27, %c0_28], %34 {strides = array<i32>} : memref<1x16x16x16xbf16, #tpu.memory_space<vmem>>, vector<1x1x16x16xbf16>,
    %c0_29 = arith.constant 0 : index
    %c1_30 = arith.constant 1 : index
    %c0_31 = arith.constant 0 : index
    %c0_32 = arith.constant 0 : index
    %35 = vector.load %arg2[%c0_29, %c1_30, %c0_31, %c0_32] : memref<1x8x16x16xbf16, #tpu.memory_space<vmem>>, vector<1x1x16x16xbf16>
    %36 = vector.shape_cast %35 : vector<1x1x16x16xbf16> to vector<16x16xbf16>
    %c0_33 = arith.constant 0 : index
    %c2 = arith.constant 2 : index
    %c0_34 = arith.constant 0 : index
    %c0_35 = arith.constant 0 : index
    %37 = vector.load %arg3[%c0_33, %c2, %c0_34, %c0_35] : memref<1x16x16x16xbf16, #tpu.memory_space<vmem>>, vector<1x1x16x16xbf16>
    %38 = vector.shape_cast %37 : vector<1x1x16x16xbf16> to vector<16x16xbf16>
    %cst_36 = arith.constant dense<0.000000e+00> : vector<16x16xf32>
    %39 = tpu.matmul %38, %0, %cst_36 {dimension_numbers = #tpu.dot_dimension_numbers<[1], [0], [0], [1], [0, 0, 1, 1], [], []>} : vector<16x16xbf16>, vector<16x16xbf16>, vector<16x16xf32> -> vector<16x16xf32>
    %40 = arith.extf %36 : vector<16x16xbf16> to vector<16x16xf32>
    %41 = arith.addf %39, %40 : vector<16x16xf32>
    %42 = vector.broadcast %2 : vector<1x16xf32> to vector<16x16xf32>
    %43 = arith.addf %41, %42 : vector<16x16xf32>
    %cst_37 = arith.constant 0.000000e+00 : f32
    %44 = vector.broadcast %cst_37 : f32 to vector<16x16xf32>
    %45 = arith.maximumf %43, %44 : vector<16x16xf32>
    %46 = arith.truncf %45 : vector<16x16xf32> to vector<16x16xbf16>
    %cst_38 = arith.constant dense<0.000000e+00> : vector<16x16xf32>
    %47 = tpu.matmul %46, %1, %cst_38 {dimension_numbers = #tpu.dot_dimension_numbers<[1], [0], [0], [1], [0, 0, 1, 1], [], []>} : vector<16x16xbf16>, vector<16x16xbf16>, vector<16x16xf32> -> vector<16x16xf32>
    %48 = arith.truncf %47 : vector<16x16xf32> to vector<16x16xbf16>
    %c0_39 = arith.constant 0 : index
    %c2_40 = arith.constant 2 : index
    %c0_41 = arith.constant 0 : index
    %c0_42 = arith.constant 0 : index
    %49 = vector.load %arg7[%c0_39, %c2_40, %c0_41, %c0_42] : memref<1x16x16x16xbf16, #tpu.memory_space<vmem>>, vector<1x1x16x16xbf16>
    %50 = vector.shape_cast %49 : vector<1x1x16x16xbf16> to vector<16x16xbf16>
    %51 = vector.shape_cast %48 : vector<16x16xbf16> to vector<1x1x16x16xbf16>
    tpu.vector_store %arg7[%c0_39, %c2_40, %c0_41, %c0_42], %51 {strides = array<i32>} : memref<1x16x16x16xbf16, #tpu.memory_space<vmem>>, vector<1x1x16x16xbf16>,
    %c0_43 = arith.constant 0 : index
    %c3 = arith.constant 3 : index
    %c0_44 = arith.constant 0 : index
    %c0_45 = arith.constant 0 : index
    %52 = vector.load %arg3[%c0_43, %c3, %c0_44, %c0_45] : memref<1x16x16x16xbf16, #tpu.memory_space<vmem>>, vector<1x1x16x16xbf16>
    %53 = vector.shape_cast %52 : vector<1x1x16x16xbf16> to vector<16x16xbf16>
    %cst_46 = arith.constant dense<0.000000e+00> : vector<16x16xf32>
    %54 = tpu.matmul %53, %0, %cst_46 {dimension_numbers = #tpu.dot_dimension_numbers<[1], [0], [0], [1], [0, 0, 1, 1], [], []>} : vector<16x16xbf16>, vector<16x16xbf16>, vector<16x16xf32> -> vector<16x16xf32>
    %55 = arith.extf %36 : vector<16x16xbf16> to vector<16x16xf32>
    %56 = arith.addf %54, %55 : vector<16x16xf32>
    %57 = vector.broadcast %2 : vector<1x16xf32> to vector<16x16xf32>
    %58 = arith.addf %56, %57 : vector<16x16xf32>
    %cst_47 = arith.constant 0.000000e+00 : f32
    %59 = vector.broadcast %cst_47 : f32 to vector<16x16xf32>
    %60 = arith.maximumf %58, %59 : vector<16x16xf32>
    %61 = arith.truncf %60 : vector<16x16xf32> to vector<16x16xbf16>
    %cst_48 = arith.constant dense<0.000000e+00> : vector<16x16xf32>
    %62 = tpu.matmul %61, %1, %cst_48 {dimension_numbers = #tpu.dot_dimension_numbers<[1], [0], [0], [1], [0, 0, 1, 1], [], []>} : vector<16x16xbf16>, vector<16x16xbf16>, vector<16x16xf32> -> vector<16x16xf32>
    %63 = arith.truncf %62 : vector<16x16xf32> to vector<16x16xbf16>
    %c0_49 = arith.constant 0 : index
    %c3_50 = arith.constant 3 : index
    %c0_51 = arith.constant 0 : index
    %c0_52 = arith.constant 0 : index
    %64 = vector.load %arg7[%c0_49, %c3_50, %c0_51, %c0_52] : memref<1x16x16x16xbf16, #tpu.memory_space<vmem>>, vector<1x1x16x16xbf16>
    %65 = vector.shape_cast %64 : vector<1x1x16x16xbf16> to vector<16x16xbf16>
    %66 = vector.shape_cast %63 : vector<16x16xbf16> to vector<1x1x16x16xbf16>
    tpu.vector_store %arg7[%c0_49, %c3_50, %c0_51, %c0_52], %66 {strides = array<i32>} : memref<1x16x16x16xbf16, #tpu.memory_space<vmem>>, vector<1x1x16x16xbf16>,
    %c0_53 = arith.constant 0 : index
    %c2_54 = arith.constant 2 : index
    %c0_55 = arith.constant 0 : index
    %c0_56 = arith.constant 0 : index
    %67 = vector.load %arg2[%c0_53, %c2_54, %c0_55, %c0_56] : memref<1x8x16x16xbf16, #tpu.memory_space<vmem>>, vector<1x1x16x16xbf16>
    %68 = vector.shape_cast %67 : vector<1x1x16x16xbf16> to vector<16x16xbf16>
    %c0_57 = arith.constant 0 : index
    %c4 = arith.constant 4 : index
    %c0_58 = arith.constant 0 : index
    %c0_59 = arith.constant 0 : index
    %69 = vector.load %arg3[%c0_57, %c4, %c0_58, %c0_59] : memref<1x16x16x16xbf16, #tpu.memory_space<vmem>>, vector<1x1x16x16xbf16>
    %70 = vector.shape_cast %69 : vector<1x1x16x16xbf16> to vector<16x16xbf16>
    %cst_60 = arith.constant dense<0.000000e+00> : vector<16x16xf32>
    %71 = tpu.matmul %70, %0, %cst_60 {dimension_numbers = #tpu.dot_dimension_numbers<[1], [0], [0], [1], [0, 0, 1, 1], [], []>} : vector<16x16xbf16>, vector<16x16xbf16>, vector<16x16xf32> -> vector<16x16xf32>
    %72 = arith.extf %68 : vector<16x16xbf16> to vector<16x16xf32>
    %73 = arith.addf %71, %72 : vector<16x16xf32>
    %74 = vector.broadcast %2 : vector<1x16xf32> to vector<16x16xf32>
    %75 = arith.addf %73, %74 : vector<16x16xf32>
    %cst_61 = arith.constant 0.000000e+00 : f32
    %76 = vector.broadcast %cst_61 : f32 to vector<16x16xf32>
    %77 = arith.maximumf %75, %76 : vector<16x16xf32>
    %78 = arith.truncf %77 : vector<16x16xf32> to vector<16x16xbf16>
    %cst_62 = arith.constant dense<0.000000e+00> : vector<16x16xf32>
    %79 = tpu.matmul %78, %1, %cst_62 {dimension_numbers = #tpu.dot_dimension_numbers<[1], [0], [0], [1], [0, 0, 1, 1], [], []>} : vector<16x16xbf16>, vector<16x16xbf16>, vector<16x16xf32> -> vector<16x16xf32>
    %80 = arith.truncf %79 : vector<16x16xf32> to vector<16x16xbf16>
    %c0_63 = arith.constant 0 : index
    %c4_64 = arith.constant 4 : index
    %c0_65 = arith.constant 0 : index
    %c0_66 = arith.constant 0 : index
    %81 = vector.load %arg7[%c0_63, %c4_64, %c0_65, %c0_66] : memref<1x16x16x16xbf16, #tpu.memory_space<vmem>>, vector<1x1x16x16xbf16>
    %82 = vector.shape_cast %81 : vector<1x1x16x16xbf16> to vector<16x16xbf16>
    %83 = vector.shape_cast %80 : vector<16x16xbf16> to vector<1x1x16x16xbf16>
    tpu.vector_store %arg7[%c0_63, %c4_64, %c0_65, %c0_66], %83 {strides = array<i32>} : memref<1x16x16x16xbf16, #tpu.memory_space<vmem>>, vector<1x1x16x16xbf16>,
    %c0_67 = arith.constant 0 : index
    %c5 = arith.constant 5 : index
    %c0_68 = arith.constant 0 : index
    %c0_69 = arith.constant 0 : index
    %84 = vector.load %arg3[%c0_67, %c5, %c0_68, %c0_69] : memref<1x16x16x16xbf16, #tpu.memory_space<vmem>>, vector<1x1x16x16xbf16>
    %85 = vector.shape_cast %84 : vector<1x1x16x16xbf16> to vector<16x16xbf16>
    %cst_70 = arith.constant dense<0.000000e+00> : vector<16x16xf32>
    %86 = tpu.matmul %85, %0, %cst_70 {dimension_numbers = #tpu.dot_dimension_numbers<[1], [0], [0], [1], [0, 0, 1, 1], [], []>} : vector<16x16xbf16>, vector<16x16xbf16>, vector<16x16xf32> -> vector<16x16xf32>
    %87 = arith.extf %68 : vector<16x16xbf16> to vector<16x16xf32>
    %88 = arith.addf %86, %87 : vector<16x16xf32>
    %89 = vector.broadcast %2 : vector<1x16xf32> to vector<16x16xf32>
    %90 = arith.addf %88, %89 : vector<16x16xf32>
    %cst_71 = arith.constant 0.000000e+00 : f32
    %91 = vector.broadcast %cst_71 : f32 to vector<16x16xf32>
    %92 = arith.maximumf %90, %91 : vector<16x16xf32>
    %93 = arith.truncf %92 : vector<16x16xf32> to vector<16x16xbf16>
    %cst_72 = arith.constant dense<0.000000e+00> : vector<16x16xf32>
    %94 = tpu.matmul %93, %1, %cst_72 {dimension_numbers = #tpu.dot_dimension_numbers<[1], [0], [0], [1], [0, 0, 1, 1], [], []>} : vector<16x16xbf16>, vector<16x16xbf16>, vector<16x16xf32> -> vector<16x16xf32>
    %95 = arith.truncf %94 : vector<16x16xf32> to vector<16x16xbf16>
    %c0_73 = arith.constant 0 : index
    %c5_74 = arith.constant 5 : index
    %c0_75 = arith.constant 0 : index
    %c0_76 = arith.constant 0 : index
    %96 = vector.load %arg7[%c0_73, %c5_74, %c0_75, %c0_76] : memref<1x16x16x16xbf16, #tpu.memory_space<vmem>>, vector<1x1x16x16xbf16>
    %97 = vector.shape_cast %96 : vector<1x1x16x16xbf16> to vector<16x16xbf16>
    %98 = vector.shape_cast %95 : vector<16x16xbf16> to vector<1x1x16x16xbf16>
    tpu.vector_store %arg7[%c0_73, %c5_74, %c0_75, %c0_76], %98 {strides = array<i32>} : memref<1x16x16x16xbf16, #tpu.memory_space<vmem>>, vector<1x1x16x16xbf16>,
    %c0_77 = arith.constant 0 : index
    %c3_78 = arith.constant 3 : index
    %c0_79 = arith.constant 0 : index
    %c0_80 = arith.constant 0 : index
    %99 = vector.load %arg2[%c0_77, %c3_78, %c0_79, %c0_80] : memref<1x8x16x16xbf16, #tpu.memory_space<vmem>>, vector<1x1x16x16xbf16>
    %100 = vector.shape_cast %99 : vector<1x1x16x16xbf16> to vector<16x16xbf16>
    %c0_81 = arith.constant 0 : index
    %c6 = arith.constant 6 : index
    %c0_82 = arith.constant 0 : index
    %c0_83 = arith.constant 0 : index
    %101 = vector.load %arg3[%c0_81, %c6, %c0_82, %c0_83] : memref<1x16x16x16xbf16, #tpu.memory_space<vmem>>, vector<1x1x16x16xbf16>
    %102 = vector.shape_cast %101 : vector<1x1x16x16xbf16> to vector<16x16xbf16>
    %cst_84 = arith.constant dense<0.000000e+00> : vector<16x16xf32>
    %103 = tpu.matmul %102, %0, %cst_84 {dimension_numbers = #tpu.dot_dimension_numbers<[1], [0], [0], [1], [0, 0, 1, 1], [], []>} : vector<16x16xbf16>, vector<16x16xbf16>, vector<16x16xf32> -> vector<16x16xf32>
    %104 = arith.extf %100 : vector<16x16xbf16> to vector<16x16xf32>
    %105 = arith.addf %103, %104 : vector<16x16xf32>
    %106 = vector.broadcast %2 : vector<1x16xf32> to vector<16x16xf32>
    %107 = arith.addf %105, %106 : vector<16x16xf32>
    %cst_85 = arith.constant 0.000000e+00 : f32
    %108 = vector.broadcast %cst_85 : f32 to vector<16x16xf32>
    %109 = arith.maximumf %107, %108 : vector<16x16xf32>
    %110 = arith.truncf %109 : vector<16x16xf32> to vector<16x16xbf16>
    %cst_86 = arith.constant dense<0.000000e+00> : vector<16x16xf32>
    %111 = tpu.matmul %110, %1, %cst_86 {dimension_numbers = #tpu.dot_dimension_numbers<[1], [0], [0], [1], [0, 0, 1, 1], [], []>} : vector<16x16xbf16>, vector<16x16xbf16>, vector<16x16xf32> -> vector<16x16xf32>
    %112 = arith.truncf %111 : vector<16x16xf32> to vector<16x16xbf16>
    %c0_87 = arith.constant 0 : index
    %c6_88 = arith.constant 6 : index
    %c0_89 = arith.constant 0 : index
    %c0_90 = arith.constant 0 : index
    %113 = vector.load %arg7[%c0_87, %c6_88, %c0_89, %c0_90] : memref<1x16x16x16xbf16, #tpu.memory_space<vmem>>, vector<1x1x16x16xbf16>
    %114 = vector.shape_cast %113 : vector<1x1x16x16xbf16> to vector<16x16xbf16>
    %115 = vector.shape_cast %112 : vector<16x16xbf16> to vector<1x1x16x16xbf16>
    tpu.vector_store %arg7[%c0_87, %c6_88, %c0_89, %c0_90], %115 {strides = array<i32>} : memref<1x16x16x16xbf16, #tpu.memory_space<vmem>>, vector<1x1x16x16xbf16>,
    %c0_91 = arith.constant 0 : index
    %c7 = arith.constant 7 : index
    %c0_92 = arith.constant 0 : index
    %c0_93 = arith.constant 0 : index
    %116 = vector.load %arg3[%c0_91, %c7, %c0_92, %c0_93] : memref<1x16x16x16xbf16, #tpu.memory_space<vmem>>, vector<1x1x16x16xbf16>
    %117 = vector.shape_cast %116 : vector<1x1x16x16xbf16> to vector<16x16xbf16>
    %cst_94 = arith.constant dense<0.000000e+00> : vector<16x16xf32>
    %118 = tpu.matmul %117, %0, %cst_94 {dimension_numbers = #tpu.dot_dimension_numbers<[1], [0], [0], [1], [0, 0, 1, 1], [], []>} : vector<16x16xbf16>, vector<16x16xbf16>, vector<16x16xf32> -> vector<16x16xf32>
    %119 = arith.extf %100 : vector<16x16xbf16> to vector<16x16xf32>
    %120 = arith.addf %118, %119 : vector<16x16xf32>
    %121 = vector.broadcast %2 : vector<1x16xf32> to vector<16x16xf32>
    %122 = arith.addf %120, %121 : vector<16x16xf32>
    %cst_95 = arith.constant 0.000000e+00 : f32
    %123 = vector.broadcast %cst_95 : f32 to vector<16x16xf32>
    %124 = arith.maximumf %122, %123 : vector<16x16xf32>
    %125 = arith.truncf %124 : vector<16x16xf32> to vector<16x16xbf16>
    %cst_96 = arith.constant dense<0.000000e+00> : vector<16x16xf32>
    %126 = tpu.matmul %125, %1, %cst_96 {dimension_numbers = #tpu.dot_dimension_numbers<[1], [0], [0], [1], [0, 0, 1, 1], [], []>} : vector<16x16xbf16>, vector<16x16xbf16>, vector<16x16xf32> -> vector<16x16xf32>
    %127 = arith.truncf %126 : vector<16x16xf32> to vector<16x16xbf16>
    %c0_97 = arith.constant 0 : index
    %c7_98 = arith.constant 7 : index
    %c0_99 = arith.constant 0 : index
    %c0_100 = arith.constant 0 : index
    %128 = vector.load %arg7[%c0_97, %c7_98, %c0_99, %c0_100] : memref<1x16x16x16xbf16, #tpu.memory_space<vmem>>, vector<1x1x16x16xbf16>
    %129 = vector.shape_cast %128 : vector<1x1x16x16xbf16> to vector<16x16xbf16>
    %130 = vector.shape_cast %127 : vector<16x16xbf16> to vector<1x1x16x16xbf16>
    tpu.vector_store %arg7[%c0_97, %c7_98, %c0_99, %c0_100], %130 {strides = array<i32>} : memref<1x16x16x16xbf16, #tpu.memory_space<vmem>>, vector<1x1x16x16xbf16>,
    %c0_101 = arith.constant 0 : index
    %c4_102 = arith.constant 4 : index
    %c0_103 = arith.constant 0 : index
    %c0_104 = arith.constant 0 : index
    %131 = vector.load %arg2[%c0_101, %c4_102, %c0_103, %c0_104] : memref<1x8x16x16xbf16, #tpu.memory_space<vmem>>, vector<1x1x16x16xbf16>
    %132 = vector.shape_cast %131 : vector<1x1x16x16xbf16> to vector<16x16xbf16>
    %c0_105 = arith.constant 0 : index
    %c8 = arith.constant 8 : index
    %c0_106 = arith.constant 0 : index
    %c0_107 = arith.constant 0 : index
    %133 = vector.load %arg3[%c0_105, %c8, %c0_106, %c0_107] : memref<1x16x16x16xbf16, #tpu.memory_space<vmem>>, vector<1x1x16x16xbf16>
    %134 = vector.shape_cast %133 : vector<1x1x16x16xbf16> to vector<16x16xbf16>
    %cst_108 = arith.constant dense<0.000000e+00> : vector<16x16xf32>
    %135 = tpu.matmul %134, %0, %cst_108 {dimension_numbers = #tpu.dot_dimension_numbers<[1], [0], [0], [1], [0, 0, 1, 1], [], []>} : vector<16x16xbf16>, vector<16x16xbf16>, vector<16x16xf32> -> vector<16x16xf32>
    %136 = arith.extf %132 : vector<16x16xbf16> to vector<16x16xf32>
    %137 = arith.addf %135, %136 : vector<16x16xf32>
    %138 = vector.broadcast %2 : vector<1x16xf32> to vector<16x16xf32>
    %139 = arith.addf %137, %138 : vector<16x16xf32>
    %cst_109 = arith.constant 0.000000e+00 : f32
    %140 = vector.broadcast %cst_109 : f32 to vector<16x16xf32>
    %141 = arith.maximumf %139, %140 : vector<16x16xf32>
    %142 = arith.truncf %141 : vector<16x16xf32> to vector<16x16xbf16>
    %cst_110 = arith.constant dense<0.000000e+00> : vector<16x16xf32>
    %143 = tpu.matmul %142, %1, %cst_110 {dimension_numbers = #tpu.dot_dimension_numbers<[1], [0], [0], [1], [0, 0, 1, 1], [], []>} : vector<16x16xbf16>, vector<16x16xbf16>, vector<16x16xf32> -> vector<16x16xf32>
    %144 = arith.truncf %143 : vector<16x16xf32> to vector<16x16xbf16>
    %c0_111 = arith.constant 0 : index
    %c8_112 = arith.constant 8 : index
    %c0_113 = arith.constant 0 : index
    %c0_114 = arith.constant 0 : index
    %145 = vector.load %arg7[%c0_111, %c8_112, %c0_113, %c0_114] : memref<1x16x16x16xbf16, #tpu.memory_space<vmem>>, vector<1x1x16x16xbf16>
    %146 = vector.shape_cast %145 : vector<1x1x16x16xbf16> to vector<16x16xbf16>
    %147 = vector.shape_cast %144 : vector<16x16xbf16> to vector<1x1x16x16xbf16>
    tpu.vector_store %arg7[%c0_111, %c8_112, %c0_113, %c0_114], %147 {strides = array<i32>} : memref<1x16x16x16xbf16, #tpu.memory_space<vmem>>, vector<1x1x16x16xbf16>,
    %c0_115 = arith.constant 0 : index
    %c9 = arith.constant 9 : index
    %c0_116 = arith.constant 0 : index
    %c0_117 = arith.constant 0 : index
    %148 = vector.load %arg3[%c0_115, %c9, %c0_116, %c0_117] : memref<1x16x16x16xbf16, #tpu.memory_space<vmem>>, vector<1x1x16x16xbf16>
    %149 = vector.shape_cast %148 : vector<1x1x16x16xbf16> to vector<16x16xbf16>
    %cst_118 = arith.constant dense<0.000000e+00> : vector<16x16xf32>
    %150 = tpu.matmul %149, %0, %cst_118 {dimension_numbers = #tpu.dot_dimension_numbers<[1], [0], [0], [1], [0, 0, 1, 1], [], []>} : vector<16x16xbf16>, vector<16x16xbf16>, vector<16x16xf32> -> vector<16x16xf32>
    %151 = arith.extf %132 : vector<16x16xbf16> to vector<16x16xf32>
    %152 = arith.addf %150, %151 : vector<16x16xf32>
    %153 = vector.broadcast %2 : vector<1x16xf32> to vector<16x16xf32>
    %154 = arith.addf %152, %153 : vector<16x16xf32>
    %cst_119 = arith.constant 0.000000e+00 : f32
    %155 = vector.broadcast %cst_119 : f32 to vector<16x16xf32>
    %156 = arith.maximumf %154, %155 : vector<16x16xf32>
    %157 = arith.truncf %156 : vector<16x16xf32> to vector<16x16xbf16>
    %cst_120 = arith.constant dense<0.000000e+00> : vector<16x16xf32>
    %158 = tpu.matmul %157, %1, %cst_120 {dimension_numbers = #tpu.dot_dimension_numbers<[1], [0], [0], [1], [0, 0, 1, 1], [], []>} : vector<16x16xbf16>, vector<16x16xbf16>, vector<16x16xf32> -> vector<16x16xf32>
    %159 = arith.truncf %158 : vector<16x16xf32> to vector<16x16xbf16>
    %c0_121 = arith.constant 0 : index
    %c9_122 = arith.constant 9 : index
    %c0_123 = arith.constant 0 : index
    %c0_124 = arith.constant 0 : index
    %160 = vector.load %arg7[%c0_121, %c9_122, %c0_123, %c0_124] : memref<1x16x16x16xbf16, #tpu.memory_space<vmem>>, vector<1x1x16x16xbf16>
    %161 = vector.shape_cast %160 : vector<1x1x16x16xbf16> to vector<16x16xbf16>
    %162 = vector.shape_cast %159 : vector<16x16xbf16> to vector<1x1x16x16xbf16>
    tpu.vector_store %arg7[%c0_121, %c9_122, %c0_123, %c0_124], %162 {strides = array<i32>} : memref<1x16x16x16xbf16, #tpu.memory_space<vmem>>, vector<1x1x16x16xbf16>,
    %c0_125 = arith.constant 0 : index
    %c5_126 = arith.constant 5 : index
    %c0_127 = arith.constant 0 : index
    %c0_128 = arith.constant 0 : index
    %163 = vector.load %arg2[%c0_125, %c5_126, %c0_127, %c0_128] : memref<1x8x16x16xbf16, #tpu.memory_space<vmem>>, vector<1x1x16x16xbf16>
    %164 = vector.shape_cast %163 : vector<1x1x16x16xbf16> to vector<16x16xbf16>
    %c0_129 = arith.constant 0 : index
    %c10 = arith.constant 10 : index
    %c0_130 = arith.constant 0 : index
    %c0_131 = arith.constant 0 : index
    %165 = vector.load %arg3[%c0_129, %c10, %c0_130, %c0_131] : memref<1x16x16x16xbf16, #tpu.memory_space<vmem>>, vector<1x1x16x16xbf16>
    %166 = vector.shape_cast %165 : vector<1x1x16x16xbf16> to vector<16x16xbf16>
    %cst_132 = arith.constant dense<0.000000e+00> : vector<16x16xf32>
    %167 = tpu.matmul %166, %0, %cst_132 {dimension_numbers = #tpu.dot_dimension_numbers<[1], [0], [0], [1], [0, 0, 1, 1], [], []>} : vector<16x16xbf16>, vector<16x16xbf16>, vector<16x16xf32> -> vector<16x16xf32>
    %168 = arith.extf %164 : vector<16x16xbf16> to vector<16x16xf32>
    %169 = arith.addf %167, %168 : vector<16x16xf32>
    %170 = vector.broadcast %2 : vector<1x16xf32> to vector<16x16xf32>
    %171 = arith.addf %169, %170 : vector<16x16xf32>
    %cst_133 = arith.constant 0.000000e+00 : f32
    %172 = vector.broadcast %cst_133 : f32 to vector<16x16xf32>
    %173 = arith.maximumf %171, %172 : vector<16x16xf32>
    %174 = arith.truncf %173 : vector<16x16xf32> to vector<16x16xbf16>
    %cst_134 = arith.constant dense<0.000000e+00> : vector<16x16xf32>
    %175 = tpu.matmul %174, %1, %cst_134 {dimension_numbers = #tpu.dot_dimension_numbers<[1], [0], [0], [1], [0, 0, 1, 1], [], []>} : vector<16x16xbf16>, vector<16x16xbf16>, vector<16x16xf32> -> vector<16x16xf32>
    %176 = arith.truncf %175 : vector<16x16xf32> to vector<16x16xbf16>
    %c0_135 = arith.constant 0 : index
    %c10_136 = arith.constant 10 : index
    %c0_137 = arith.constant 0 : index
    %c0_138 = arith.constant 0 : index
    %177 = vector.load %arg7[%c0_135, %c10_136, %c0_137, %c0_138] : memref<1x16x16x16xbf16, #tpu.memory_space<vmem>>, vector<1x1x16x16xbf16>
    %178 = vector.shape_cast %177 : vector<1x1x16x16xbf16> to vector<16x16xbf16>
    %179 = vector.shape_cast %176 : vector<16x16xbf16> to vector<1x1x16x16xbf16>
    tpu.vector_store %arg7[%c0_135, %c10_136, %c0_137, %c0_138], %179 {strides = array<i32>} : memref<1x16x16x16xbf16, #tpu.memory_space<vmem>>, vector<1x1x16x16xbf16>,
    %c0_139 = arith.constant 0 : index
    %c11 = arith.constant 11 : index
    %c0_140 = arith.constant 0 : index
    %c0_141 = arith.constant 0 : index
    %180 = vector.load %arg3[%c0_139, %c11, %c0_140, %c0_141] : memref<1x16x16x16xbf16, #tpu.memory_space<vmem>>, vector<1x1x16x16xbf16>
    %181 = vector.shape_cast %180 : vector<1x1x16x16xbf16> to vector<16x16xbf16>
    %cst_142 = arith.constant dense<0.000000e+00> : vector<16x16xf32>
    %182 = tpu.matmul %181, %0, %cst_142 {dimension_numbers = #tpu.dot_dimension_numbers<[1], [0], [0], [1], [0, 0, 1, 1], [], []>} : vector<16x16xbf16>, vector<16x16xbf16>, vector<16x16xf32> -> vector<16x16xf32>
    %183 = arith.extf %164 : vector<16x16xbf16> to vector<16x16xf32>
    %184 = arith.addf %182, %183 : vector<16x16xf32>
    %185 = vector.broadcast %2 : vector<1x16xf32> to vector<16x16xf32>
    %186 = arith.addf %184, %185 : vector<16x16xf32>
    %cst_143 = arith.constant 0.000000e+00 : f32
    %187 = vector.broadcast %cst_143 : f32 to vector<16x16xf32>
    %188 = arith.maximumf %186, %187 : vector<16x16xf32>
    %189 = arith.truncf %188 : vector<16x16xf32> to vector<16x16xbf16>
    %cst_144 = arith.constant dense<0.000000e+00> : vector<16x16xf32>
    %190 = tpu.matmul %189, %1, %cst_144 {dimension_numbers = #tpu.dot_dimension_numbers<[1], [0], [0], [1], [0, 0, 1, 1], [], []>} : vector<16x16xbf16>, vector<16x16xbf16>, vector<16x16xf32> -> vector<16x16xf32>
    %191 = arith.truncf %190 : vector<16x16xf32> to vector<16x16xbf16>
    %c0_145 = arith.constant 0 : index
    %c11_146 = arith.constant 11 : index
    %c0_147 = arith.constant 0 : index
    %c0_148 = arith.constant 0 : index
    %192 = vector.load %arg7[%c0_145, %c11_146, %c0_147, %c0_148] : memref<1x16x16x16xbf16, #tpu.memory_space<vmem>>, vector<1x1x16x16xbf16>
    %193 = vector.shape_cast %192 : vector<1x1x16x16xbf16> to vector<16x16xbf16>
    %194 = vector.shape_cast %191 : vector<16x16xbf16> to vector<1x1x16x16xbf16>
    tpu.vector_store %arg7[%c0_145, %c11_146, %c0_147, %c0_148], %194 {strides = array<i32>} : memref<1x16x16x16xbf16, #tpu.memory_space<vmem>>, vector<1x1x16x16xbf16>,
    %c0_149 = arith.constant 0 : index
    %c6_150 = arith.constant 6 : index
    %c0_151 = arith.constant 0 : index
    %c0_152 = arith.constant 0 : index
    %195 = vector.load %arg2[%c0_149, %c6_150, %c0_151, %c0_152] : memref<1x8x16x16xbf16, #tpu.memory_space<vmem>>, vector<1x1x16x16xbf16>
    %196 = vector.shape_cast %195 : vector<1x1x16x16xbf16> to vector<16x16xbf16>
    %c0_153 = arith.constant 0 : index
    %c12 = arith.constant 12 : index
    %c0_154 = arith.constant 0 : index
    %c0_155 = arith.constant 0 : index
    %197 = vector.load %arg3[%c0_153, %c12, %c0_154, %c0_155] : memref<1x16x16x16xbf16, #tpu.memory_space<vmem>>, vector<1x1x16x16xbf16>
    %198 = vector.shape_cast %197 : vector<1x1x16x16xbf16> to vector<16x16xbf16>
    %cst_156 = arith.constant dense<0.000000e+00> : vector<16x16xf32>
    %199 = tpu.matmul %198, %0, %cst_156 {dimension_numbers = #tpu.dot_dimension_numbers<[1], [0], [0], [1], [0, 0, 1, 1], [], []>} : vector<16x16xbf16>, vector<16x16xbf16>, vector<16x16xf32> -> vector<16x16xf32>
    %200 = arith.extf %196 : vector<16x16xbf16> to vector<16x16xf32>
    %201 = arith.addf %199, %200 : vector<16x16xf32>
    %202 = vector.broadcast %2 : vector<1x16xf32> to vector<16x16xf32>
    %203 = arith.addf %201, %202 : vector<16x16xf32>
    %cst_157 = arith.constant 0.000000e+00 : f32
    %204 = vector.broadcast %cst_157 : f32 to vector<16x16xf32>
    %205 = arith.maximumf %203, %204 : vector<16x16xf32>
    %206 = arith.truncf %205 : vector<16x16xf32> to vector<16x16xbf16>
    %cst_158 = arith.constant dense<0.000000e+00> : vector<16x16xf32>
    %207 = tpu.matmul %206, %1, %cst_158 {dimension_numbers = #tpu.dot_dimension_numbers<[1], [0], [0], [1], [0, 0, 1, 1], [], []>} : vector<16x16xbf16>, vector<16x16xbf16>, vector<16x16xf32> -> vector<16x16xf32>
    %208 = arith.truncf %207 : vector<16x16xf32> to vector<16x16xbf16>
    %c0_159 = arith.constant 0 : index
    %c12_160 = arith.constant 12 : index
    %c0_161 = arith.constant 0 : index
    %c0_162 = arith.constant 0 : index
    %209 = vector.load %arg7[%c0_159, %c12_160, %c0_161, %c0_162] : memref<1x16x16x16xbf16, #tpu.memory_space<vmem>>, vector<1x1x16x16xbf16>
    %210 = vector.shape_cast %209 : vector<1x1x16x16xbf16> to vector<16x16xbf16>
    %211 = vector.shape_cast %208 : vector<16x16xbf16> to vector<1x1x16x16xbf16>
    tpu.vector_store %arg7[%c0_159, %c12_160, %c0_161, %c0_162], %211 {strides = array<i32>} : memref<1x16x16x16xbf16, #tpu.memory_space<vmem>>, vector<1x1x16x16xbf16>,
    %c0_163 = arith.constant 0 : index
    %c13 = arith.constant 13 : index
    %c0_164 = arith.constant 0 : index
    %c0_165 = arith.constant 0 : index
    %212 = vector.load %arg3[%c0_163, %c13, %c0_164, %c0_165] : memref<1x16x16x16xbf16, #tpu.memory_space<vmem>>, vector<1x1x16x16xbf16>
    %213 = vector.shape_cast %212 : vector<1x1x16x16xbf16> to vector<16x16xbf16>
    %cst_166 = arith.constant dense<0.000000e+00> : vector<16x16xf32>
    %214 = tpu.matmul %213, %0, %cst_166 {dimension_numbers = #tpu.dot_dimension_numbers<[1], [0], [0], [1], [0, 0, 1, 1], [], []>} : vector<16x16xbf16>, vector<16x16xbf16>, vector<16x16xf32> -> vector<16x16xf32>
    %215 = arith.extf %196 : vector<16x16xbf16> to vector<16x16xf32>
    %216 = arith.addf %214, %215 : vector<16x16xf32>
    %217 = vector.broadcast %2 : vector<1x16xf32> to vector<16x16xf32>
    %218 = arith.addf %216, %217 : vector<16x16xf32>
    %cst_167 = arith.constant 0.000000e+00 : f32
    %219 = vector.broadcast %cst_167 : f32 to vector<16x16xf32>
    %220 = arith.maximumf %218, %219 : vector<16x16xf32>
    %221 = arith.truncf %220 : vector<16x16xf32> to vector<16x16xbf16>
    %cst_168 = arith.constant dense<0.000000e+00> : vector<16x16xf32>
    %222 = tpu.matmul %221, %1, %cst_168 {dimension_numbers = #tpu.dot_dimension_numbers<[1], [0], [0], [1], [0, 0, 1, 1], [], []>} : vector<16x16xbf16>, vector<16x16xbf16>, vector<16x16xf32> -> vector<16x16xf32>
    %223 = arith.truncf %222 : vector<16x16xf32> to vector<16x16xbf16>
    %c0_169 = arith.constant 0 : index
    %c13_170 = arith.constant 13 : index
    %c0_171 = arith.constant 0 : index
    %c0_172 = arith.constant 0 : index
    %224 = vector.load %arg7[%c0_169, %c13_170, %c0_171, %c0_172] : memref<1x16x16x16xbf16, #tpu.memory_space<vmem>>, vector<1x1x16x16xbf16>
    %225 = vector.shape_cast %224 : vector<1x1x16x16xbf16> to vector<16x16xbf16>
    %226 = vector.shape_cast %223 : vector<16x16xbf16> to vector<1x1x16x16xbf16>
    tpu.vector_store %arg7[%c0_169, %c13_170, %c0_171, %c0_172], %226 {strides = array<i32>} : memref<1x16x16x16xbf16, #tpu.memory_space<vmem>>, vector<1x1x16x16xbf16>,
    %c0_173 = arith.constant 0 : index
    %c7_174 = arith.constant 7 : index
    %c0_175 = arith.constant 0 : index
    %c0_176 = arith.constant 0 : index
    %227 = vector.load %arg2[%c0_173, %c7_174, %c0_175, %c0_176] : memref<1x8x16x16xbf16, #tpu.memory_space<vmem>>, vector<1x1x16x16xbf16>
    %228 = vector.shape_cast %227 : vector<1x1x16x16xbf16> to vector<16x16xbf16>
    %c0_177 = arith.constant 0 : index
    %c14 = arith.constant 14 : index
    %c0_178 = arith.constant 0 : index
    %c0_179 = arith.constant 0 : index
    %229 = vector.load %arg3[%c0_177, %c14, %c0_178, %c0_179] : memref<1x16x16x16xbf16, #tpu.memory_space<vmem>>, vector<1x1x16x16xbf16>
    %230 = vector.shape_cast %229 : vector<1x1x16x16xbf16> to vector<16x16xbf16>
    %cst_180 = arith.constant dense<0.000000e+00> : vector<16x16xf32>
    %231 = tpu.matmul %230, %0, %cst_180 {dimension_numbers = #tpu.dot_dimension_numbers<[1], [0], [0], [1], [0, 0, 1, 1], [], []>} : vector<16x16xbf16>, vector<16x16xbf16>, vector<16x16xf32> -> vector<16x16xf32>
    %232 = arith.extf %228 : vector<16x16xbf16> to vector<16x16xf32>
    %233 = arith.addf %231, %232 : vector<16x16xf32>
    %234 = vector.broadcast %2 : vector<1x16xf32> to vector<16x16xf32>
    %235 = arith.addf %233, %234 : vector<16x16xf32>
    %cst_181 = arith.constant 0.000000e+00 : f32
    %236 = vector.broadcast %cst_181 : f32 to vector<16x16xf32>
    %237 = arith.maximumf %235, %236 : vector<16x16xf32>
    %238 = arith.truncf %237 : vector<16x16xf32> to vector<16x16xbf16>
    %cst_182 = arith.constant dense<0.000000e+00> : vector<16x16xf32>
    %239 = tpu.matmul %238, %1, %cst_182 {dimension_numbers = #tpu.dot_dimension_numbers<[1], [0], [0], [1], [0, 0, 1, 1], [], []>} : vector<16x16xbf16>, vector<16x16xbf16>, vector<16x16xf32> -> vector<16x16xf32>
    %240 = arith.truncf %239 : vector<16x16xf32> to vector<16x16xbf16>
    %c0_183 = arith.constant 0 : index
    %c14_184 = arith.constant 14 : index
    %c0_185 = arith.constant 0 : index
    %c0_186 = arith.constant 0 : index
    %241 = vector.load %arg7[%c0_183, %c14_184, %c0_185, %c0_186] : memref<1x16x16x16xbf16, #tpu.memory_space<vmem>>, vector<1x1x16x16xbf16>
    %242 = vector.shape_cast %241 : vector<1x1x16x16xbf16> to vector<16x16xbf16>
    %243 = vector.shape_cast %240 : vector<16x16xbf16> to vector<1x1x16x16xbf16>
    tpu.vector_store %arg7[%c0_183, %c14_184, %c0_185, %c0_186], %243 {strides = array<i32>} : memref<1x16x16x16xbf16, #tpu.memory_space<vmem>>, vector<1x1x16x16xbf16>,
    %c0_187 = arith.constant 0 : index
    %c15 = arith.constant 15 : index
    %c0_188 = arith.constant 0 : index
    %c0_189 = arith.constant 0 : index
    %244 = vector.load %arg3[%c0_187, %c15, %c0_188, %c0_189] : memref<1x16x16x16xbf16, #tpu.memory_space<vmem>>, vector<1x1x16x16xbf16>
    %245 = vector.shape_cast %244 : vector<1x1x16x16xbf16> to vector<16x16xbf16>
    %cst_190 = arith.constant dense<0.000000e+00> : vector<16x16xf32>
    %246 = tpu.matmul %245, %0, %cst_190 {dimension_numbers = #tpu.dot_dimension_numbers<[1], [0], [0], [1], [0, 0, 1, 1], [], []>} : vector<16x16xbf16>, vector<16x16xbf16>, vector<16x16xf32> -> vector<16x16xf32>
    %247 = arith.extf %228 : vector<16x16xbf16> to vector<16x16xf32>
    %248 = arith.addf %246, %247 : vector<16x16xf32>
    %249 = vector.broadcast %2 : vector<1x16xf32> to vector<16x16xf32>
    %250 = arith.addf %248, %249 : vector<16x16xf32>
    %cst_191 = arith.constant 0.000000e+00 : f32
    %251 = vector.broadcast %cst_191 : f32 to vector<16x16xf32>
    %252 = arith.maximumf %250, %251 : vector<16x16xf32>
    %253 = arith.truncf %252 : vector<16x16xf32> to vector<16x16xbf16>
    %cst_192 = arith.constant dense<0.000000e+00> : vector<16x16xf32>
    %254 = tpu.matmul %253, %1, %cst_192 {dimension_numbers = #tpu.dot_dimension_numbers<[1], [0], [0], [1], [0, 0, 1, 1], [], []>} : vector<16x16xbf16>, vector<16x16xbf16>, vector<16x16xf32> -> vector<16x16xf32>
    %255 = arith.truncf %254 : vector<16x16xf32> to vector<16x16xbf16>
    %c0_193 = arith.constant 0 : index
    %c15_194 = arith.constant 15 : index
    %c0_195 = arith.constant 0 : index
    %c0_196 = arith.constant 0 : index
    %256 = vector.load %arg7[%c0_193, %c15_194, %c0_195, %c0_196] : memref<1x16x16x16xbf16, #tpu.memory_space<vmem>>, vector<1x1x16x16xbf16>
    %257 = vector.shape_cast %256 : vector<1x1x16x16xbf16> to vector<16x16xbf16>
    %258 = vector.shape_cast %255 : vector<16x16xbf16> to vector<1x1x16x16xbf16>
    tpu.vector_store %arg7[%c0_193, %c15_194, %c0_195, %c0_196], %258 {strides = array<i32>} : memref<1x16x16x16xbf16, #tpu.memory_space<vmem>>, vector<1x1x16x16xbf16>,
    return
  }
  func.func @transform_0(%arg0: i32, %arg1: i32) -> (i32, i32, i32, i32) {
    %c0_i32 = arith.constant 0 : i32
    %c0_i32_0 = arith.constant 0 : i32
    %c0_i32_1 = arith.constant 0 : i32
    return %arg0, %arg1, %c0_i32, %c0_i32_0 : i32, i32, i32, i32
  }
  func.func @transform_1(%arg0: i32, %arg1: i32) -> (i32, i32, i32, i32) {
    %c0_i32 = arith.constant 0 : i32
    %c0_i32_0 = arith.constant 0 : i32
    %c0_i32_1 = arith.constant 0 : i32
    return %arg0, %arg1, %c0_i32, %c0_i32_0 : i32, i32, i32, i32
  }
  func.func @transform_2(%arg0: i32, %arg1: i32) -> (i32, i32) {
    %c0_i32 = arith.constant 0 : i32
    %c0_i32_0 = arith.constant 0 : i32
    %c0_i32_1 = arith.constant 0 : i32
    return %c0_i32, %c0_i32_0 : i32, i32
  }
  func.func @transform_3(%arg0: i32, %arg1: i32) -> (i32, i32) {
    %c0_i32 = arith.constant 0 : i32
    %c0_i32_0 = arith.constant 0 : i32
    %c0_i32_1 = arith.constant 0 : i32
    return %c0_i32, %c0_i32_0 : i32, i32
  }
  func.func @transform_4(%arg0: i32, %arg1: i32) -> (i32, i32) {
    %c0_i32 = arith.constant 0 : i32
    %c0_i32_0 = arith.constant 0 : i32
    %c0_i32_1 = arith.constant 0 : i32
    return %c0_i32, %c0_i32_0 : i32, i32
  }
  func.func @transform_5(%arg0: i32, %arg1: i32) -> (i32, i32, i32, i32) {
    %c0_i32 = arith.constant 0 : i32
    %c0_i32_0 = arith.constant 0 : i32
    %c0_i32_1 = arith.constant 0 : i32
    return %arg0, %arg1, %c0_i32, %c0_i32_0 : i32, i32, i32, i32
  }
}

module attributes {stable_mosaic.version = 11 : i64} {
  func.func @_head_kernel(%arg0: i32, %arg1: i32, %arg2: memref<1x16x256xbf16, #tpu.memory_space<vmem>>, %arg3: memref<16x1xf32, #tpu.memory_space<vmem>>, %arg4: memref<64x16xbf16, #tpu.memory_space<vmem>>, %arg5: memref<64x1xf32, #tpu.memory_space<vmem>>, %arg6: memref<64x1xf32, #tpu.memory_space<vmem>>, %arg7: memref<1x64x256xf32, #tpu.memory_space<vmem>>, %arg8: memref<1x1x256xf32, #tpu.memory_space<vmem>>, %arg9: memref<1x1x256xf32, #tpu.memory_space<vmem>>) attributes {dimension_semantics = [#tpu.dimension_semantics<parallel>, #tpu.dimension_semantics<parallel>], iteration_bounds = array<i64: 2, 1>, scalar_prefetch = 0 : i64, scratch_operands = 0 : i64, tpu.core_type = #tpu.core_type<tc>, window_params = [{transform_indices = @transform_0, window_bounds = array<i64: 1, 16, 256>}, {pipeline_mode = #tpu.pipeline_mode<synchronous>, transform_indices = @transform_1, window_bounds = array<i64: 16, 1>}, {pipeline_mode = #tpu.pipeline_mode<synchronous>, transform_indices = @transform_2, window_bounds = array<i64: 64, 16>}, {pipeline_mode = #tpu.pipeline_mode<synchronous>, transform_indices = @transform_3, window_bounds = array<i64: 64, 1>}, {pipeline_mode = #tpu.pipeline_mode<synchronous>, transform_indices = @transform_4, window_bounds = array<i64: 64, 1>}, {transform_indices = @transform_5, window_bounds = array<i64: 1, 64, 256>}, {transform_indices = @transform_6, window_bounds = array<i64: 1, 1, 256>}, {transform_indices = @transform_7, window_bounds = array<i64: 1, 1, 256>}]} {
    %c0 = arith.constant 0 : index
    %c0_0 = arith.constant 0 : index
    %c0_1 = arith.constant 0 : index
    %0 = vector.load %arg2[%c0, %c0_0, %c0_1] : memref<1x16x256xbf16, #tpu.memory_space<vmem>>, vector<1x16x256xbf16>
    %1 = vector.shape_cast %0 : vector<1x16x256xbf16> to vector<16x256xbf16>
    %2 = arith.extf %1 : vector<16x256xbf16> to vector<16x256xf32>
    %c0_2 = arith.constant 0 : index
    %c0_3 = arith.constant 0 : index
    %3 = vector.load %arg3[%c0_2, %c0_3] : memref<16x1xf32, #tpu.memory_space<vmem>>, vector<16x1xf32>
    %4 = vector.broadcast %3 : vector<16x1xf32> to vector<16x256xf32>
    %5 = arith.addf %2, %4 : vector<16x256xf32>
    %cst = arith.constant 0.000000e+00 : f32
    %6 = vector.broadcast %cst : f32 to vector<16x256xf32>
    %7 = arith.maximumf %5, %6 : vector<16x256xf32>
    %c0_4 = arith.constant 0 : index
    %c0_5 = arith.constant 0 : index
    %8 = vector.load %arg4[%c0_4, %c0_5] : memref<64x16xbf16, #tpu.memory_space<vmem>>, vector<64x16xbf16>
    %9 = arith.truncf %7 : vector<16x256xf32> to vector<16x256xbf16>
    %cst_6 = arith.constant dense<0.000000e+00> : vector<64x256xf32>
    %10 = tpu.matmul %8, %9, %cst_6 {dimension_numbers = #tpu.dot_dimension_numbers<[1], [0], [0], [1], [0, 0, 1, 1], [], []>} : vector<64x16xbf16>, vector<16x256xbf16>, vector<64x256xf32> -> vector<64x256xf32>
    %c0_7 = arith.constant 0 : index
    %c0_8 = arith.constant 0 : index
    %11 = vector.load %arg5[%c0_7, %c0_8] : memref<64x1xf32, #tpu.memory_space<vmem>>, vector<64x1xf32>
    %12 = vector.broadcast %11 : vector<64x1xf32> to vector<64x256xf32>
    %13 = arith.addf %10, %12 : vector<64x256xf32>
    %c0_9 = arith.constant 0 : index
    %c0_10 = arith.constant 0 : index
    %c0_11 = arith.constant 0 : index
    %14 = vector.load %arg7[%c0_9, %c0_10, %c0_11] : memref<1x64x256xf32, #tpu.memory_space<vmem>>, vector<1x64x256xf32>
    %15 = vector.shape_cast %14 : vector<1x64x256xf32> to vector<64x256xf32>
    %16 = vector.shape_cast %13 : vector<64x256xf32> to vector<1x64x256xf32>
    tpu.vector_store %arg7[%c0_9, %c0_10, %c0_11], %16 {strides = array<i32>} : memref<1x64x256xf32, #tpu.memory_space<vmem>>, vector<1x64x256xf32>,
    %cst_12 = arith.constant dense<0xFF800000> : vector<256xf32>
    %17 = vector.multi_reduction <maximumf>, %13, %cst_12 [0] : vector<64x256xf32> to vector<256xf32>
    %18 = vector.shape_cast %17 : vector<256xf32> to vector<1x256xf32>
    %19 = vector.broadcast %18 : vector<1x256xf32> to vector<64x256xf32>
    %20 = arith.subf %13, %19 : vector<64x256xf32>
    %21 = math.exp %20 : vector<64x256xf32>
    %cst_13 = arith.constant dense<0.000000e+00> : vector<256xf32>
    %22 = vector.multi_reduction <add>, %21, %cst_13 [0] : vector<64x256xf32> to vector<256xf32>
    %23 = vector.shape_cast %22 : vector<256xf32> to vector<1x256xf32>
    %cst_14 = arith.constant 1.000000e+00 : f32
    %24 = vector.broadcast %cst_14 : f32 to vector<1x256xf32>
    %25 = arith.divf %24, %23 : vector<1x256xf32>
    %c0_15 = arith.constant 0 : index
    %c0_16 = arith.constant 0 : index
    %26 = vector.load %arg6[%c0_15, %c0_16] : memref<64x1xf32, #tpu.memory_space<vmem>>, vector<64x1xf32>
    %27 = vector.broadcast %26 : vector<64x1xf32> to vector<64x256xf32>
    %28 = arith.mulf %21, %27 : vector<64x256xf32>
    %cst_17 = arith.constant dense<0.000000e+00> : vector<256xf32>
    %29 = vector.multi_reduction <add>, %28, %cst_17 [0] : vector<64x256xf32> to vector<256xf32>
    %30 = vector.shape_cast %29 : vector<256xf32> to vector<1x256xf32>
    %31 = arith.mulf %30, %25 : vector<1x256xf32>
    %c0_18 = arith.constant 0 : index
    %c0_19 = arith.constant 0 : index
    %c0_20 = arith.constant 0 : index
    %32 = vector.load %arg8[%c0_18, %c0_19, %c0_20] : memref<1x1x256xf32, #tpu.memory_space<vmem>>, vector<1x1x256xf32>
    %33 = vector.shape_cast %32 : vector<1x1x256xf32> to vector<1x256xf32>
    %34 = vector.shape_cast %31 : vector<1x256xf32> to vector<1x1x256xf32>
    tpu.vector_store %arg8[%c0_18, %c0_19, %c0_20], %34 {strides = array<i32>} : memref<1x1x256xf32, #tpu.memory_space<vmem>>, vector<1x1x256xf32>,
    %c0_21 = arith.constant 0 : index
    %c0_22 = arith.constant 0 : index
    %c0_23 = arith.constant 0 : index
    %35 = vector.load %arg9[%c0_21, %c0_22, %c0_23] : memref<1x1x256xf32, #tpu.memory_space<vmem>>, vector<1x1x256xf32>
    %36 = vector.shape_cast %35 : vector<1x1x256xf32> to vector<1x256xf32>
    %37 = vector.shape_cast %25 : vector<1x256xf32> to vector<1x1x256xf32>
    tpu.vector_store %arg9[%c0_21, %c0_22, %c0_23], %37 {strides = array<i32>} : memref<1x1x256xf32, #tpu.memory_space<vmem>>, vector<1x1x256xf32>,
    return
  }
  func.func @transform_0(%arg0: i32, %arg1: i32) -> (i32, i32, i32) {
    %c0_i32 = arith.constant 0 : i32
    %c0_i32_0 = arith.constant 0 : i32
    return %arg0, %c0_i32, %arg1 : i32, i32, i32
  }
  func.func @transform_1(%arg0: i32, %arg1: i32) -> (i32, i32) {
    %c0_i32 = arith.constant 0 : i32
    %c0_i32_0 = arith.constant 0 : i32
    %c0_i32_1 = arith.constant 0 : i32
    return %c0_i32, %c0_i32_0 : i32, i32
  }
  func.func @transform_2(%arg0: i32, %arg1: i32) -> (i32, i32) {
    %c0_i32 = arith.constant 0 : i32
    %c0_i32_0 = arith.constant 0 : i32
    %c0_i32_1 = arith.constant 0 : i32
    return %c0_i32, %c0_i32_0 : i32, i32
  }
  func.func @transform_3(%arg0: i32, %arg1: i32) -> (i32, i32) {
    %c0_i32 = arith.constant 0 : i32
    %c0_i32_0 = arith.constant 0 : i32
    %c0_i32_1 = arith.constant 0 : i32
    return %c0_i32, %c0_i32_0 : i32, i32
  }
  func.func @transform_4(%arg0: i32, %arg1: i32) -> (i32, i32) {
    %c0_i32 = arith.constant 0 : i32
    %c0_i32_0 = arith.constant 0 : i32
    %c0_i32_1 = arith.constant 0 : i32
    return %c0_i32, %c0_i32_0 : i32, i32
  }
  func.func @transform_5(%arg0: i32, %arg1: i32) -> (i32, i32, i32) {
    %c0_i32 = arith.constant 0 : i32
    %c0_i32_0 = arith.constant 0 : i32
    return %arg0, %c0_i32, %arg1 : i32, i32, i32
  }
  func.func @transform_6(%arg0: i32, %arg1: i32) -> (i32, i32, i32) {
    %c0_i32 = arith.constant 0 : i32
    %c0_i32_0 = arith.constant 0 : i32
    return %arg0, %c0_i32, %arg1 : i32, i32, i32
  }
  func.func @transform_7(%arg0: i32, %arg1: i32) -> (i32, i32, i32) {
    %c0_i32 = arith.constant 0 : i32
    %c0_i32_0 = arith.constant 0 : i32
    return %arg0, %c0_i32, %arg1 : i32, i32, i32
  }
}

</mosaic_0001>

<llo_original>
// kernel: encoder_decoder_forward.9
$region0: #{encoder_decoder_forward.9}
  #allocation0 [shape = 'u32[]', space=smem, size = 0x4, offset = 0x4, fixed_abs, tag = 'smem constant byte address 0x4 - core index']
  #allocation1 [shape = 'u32[144,128]{1,0:T(1,128)}', space=vmem, size = 0x12000, scoped, tag = 'internal scratch']
  %s0 = inlined_call_operand.vmem [shape: bf16[2,289,12], index: 0, kind: input, shape index: {}]
  %s1 = inlined_call_operand.vmem [shape: bf16[4,12,16], index: 1, kind: input, shape index: {}]
  %s2 = inlined_call_operand.vmem [shape: f32[1,16], index: 2, kind: input, shape index: {}]
  %s3 = inlined_call_operand.vmem [shape: bf16[2,289,16], index: 3, kind: output, shape index: {}]
  %s4 = sld [smem:[#allocation0]]
  $region45: #{encoder_decoder_forward.9} parent=0
    _
  %s6 = ssub.s32 1, %s4
  %s7 = scalar_select 0, %s6, %s4
  loop: start=0, step=1, limit=4
  $region2: #{encoder_decoder_forward.9} parent=0 // loop_pre_header
    _
  $region3: #{encoder_decoder_forward.9} parent=0 // loop_header
    %s9 = sphi 0, %s13
    %p10 = scmp.ge.s32.totalorder %s9, 4
    %s19 = sphi 0, %s21
    %s22 = sphi 0, %s19
    %s23 = sphi 0, %s22
    %s39 = sphi 0, %s23
    %s43 = sphi 0, %s43
    %s45 = sphi 0, %s43
    %s46 = sphi 0, %s45
    %s60 = sphi 0, %s46
    %s64 = sphi 0, %s64
    %s66 = sphi 0, %s64
    %s67 = sphi 0, %s66
    %s81 = sphi 0, %s67
    %s87 = sphi 0, %s89
    %s90 = sphi 0, %s87
    %s91 = sphi 0, %s90
    %s107 = sphi 0, %s91
  $region4: #{encoder_decoder_forward.9} parent=0 // loop_header_branch
    %12 = sbr.rel (%p10) target = $region8
  $region5: #{encoder_decoder_forward.9} parent=0 // loop_body
    %s14 = ssub.s32 %s9, 1
    %s15 = ssub.s32 %s9, 2
    %s16 = sadd.s32 %s9, 1
    %s17 = ssub.s32 %s9, %s16
    %p18 = scmp.eq.s32.totalorder %s17, 0
    %s20 = sadd.s32 %s19, 1
    %s21 = scalar_select %p18, %s19, %s20
    %p24 = pneg %p18
    %p25 = scmp.eq.s32.totalorder %s9, 1
    %p26 = por %p24, %p25
    %p27 = scmp.ne.s32.totalorder %s19, %s22
    %p28 = scmp.eq.s32.totalorder %s9, 0
    %p29 = por %p27, %p28
    %p30 = scmp.ne.s32.totalorder %s19, %s22
    %p31 = scmp.eq.s32.totalorder %s14, 1
    %p32 = por %p30, %p31
    %p33 = scmp.ne.s32.totalorder %s22, %s23
    %p34 = scmp.eq.s32.totalorder %s14, 0
    %p35 = por %p33, %p34
    %p36 = scmp.ne.s32.totalorder %s22, %s23
    %p37 = scmp.eq.s32.totalorder %s15, 1
    %p38 = por %p36, %p37
    %p40 = scmp.ne.s32.totalorder %s23, %s39
    %p41 = scmp.eq.s32.totalorder %s15, 0
    %p42 = por %p40, %p41
    %s44 = sadd.s32 %s43, 1
    %p47 = scmp.eq.s32.totalorder %s9, 1
    %p48 = scmp.ne.s32.totalorder %s43, %s45
    %p49 = scmp.eq.s32.totalorder %s9, 0
    %p50 = por %p48, %p49
    %p51 = scmp.ne.s32.totalorder %s43, %s45
    %p52 = scmp.eq.s32.totalorder %s14, 1
    %p53 = por %p51, %p52
    %p54 = scmp.ne.s32.totalorder %s45, %s46
    %p55 = scmp.eq.s32.totalorder %s14, 0
    %p56 = por %p54, %p55
    %p57 = scmp.ne.s32.totalorder %s45, %s46
    %p58 = scmp.eq.s32.totalorder %s15, 1
    %p59 = por %p57, %p58
    %p61 = scmp.ne.s32.totalorder %s46, %s60
    %p62 = scmp.eq.s32.totalorder %s15, 0
    %p63 = por %p61, %p62
    %s65 = sadd.s32 %s64, 1
    %p68 = scmp.eq.s32.totalorder %s9, 1
    %p69 = scmp.ne.s32.totalorder %s64, %s66
    %p70 = scmp.eq.s32.totalorder %s9, 0
    %p71 = por %p69, %p70
    %p72 = scmp.ne.s32.totalorder %s64, %s66
    %p73 = scmp.eq.s32.totalorder %s14, 1
    %p74 = por %p72, %p73
    %p75 = scmp.ne.s32.totalorder %s66, %s67
    %p76 = scmp.eq.s32.totalorder %s14, 0
    %p77 = por %p75, %p76
    %p78 = scmp.ne.s32.totalorder %s66, %s67
    %p79 = scmp.eq.s32.totalorder %s15, 1
    %p80 = por %p78, %p79
    %p82 = scmp.ne.s32.totalorder %s67, %s81
    %p83 = scmp.eq.s32.totalorder %s15, 0
    %p84 = por %p82, %p83
    %s85 = ssub.s32 %s9, %s16
    %p86 = scmp.eq.s32.totalorder %s85, 0
    %s88 = sadd.s32 %s87, 1
    %s89 = scalar_select %p86, %s87, %s88
    %p92 = pneg %p86
    %p93 = scmp.eq.s32.totalorder %s9, 1
    %p94 = por %p92, %p93
    %p95 = scmp.ne.s32.totalorder %s87, %s90
    %p96 = scmp.eq.s32.totalorder %s9, 0
    %p97 = por %p95, %p96
    %p98 = scmp.ne.s32.totalorder %s87, %s90
    %p99 = scmp.eq.s32.totalorder %s14, 1
    %p100 = por %p98, %p99
    %p101 = scmp.ne.s32.totalorder %s90, %s91
    %p102 = scmp.eq.s32.totalorder %s14, 0
    %p103 = por %p101, %p102
    %p104 = scmp.ne.s32.totalorder %s90, %s91
    %p105 = scmp.eq.s32.totalorder %s15, 1
    %p106 = por %p104, %p105
    %p108 = scmp.ne.s32.totalorder %s91, %s107
    %p109 = scmp.eq.s32.totalorder %s15, 0
    %p110 = por %p108, %p109
    %p111 = scmp.le.s32.totalorder 1, %s9
    %p112 = scmp.lt.s32.totalorder %s9, 3
    %p113 = pnand %p111, %p112
    %p114 = pneg %p113
    // Predicated region
    $region9: #{encoder_decoder_forward.9} parent=5 // pred_check
      _
    $region10: #{encoder_decoder_forward.9} parent=5 // pred_check_branch
      %116 = sbr.rel (%p113) target = $region12
    $region11: #{encoder_decoder_forward.9} parent=5 // pred_region
      %s117 = ssub.s32 %s9, 1
      // Predicated region
      $region13: #{encoder_decoder_forward.9} parent=11 // pred_check
        %p118 = pneg %p56
      $region14: #{encoder_decoder_forward.9} parent=11 // pred_check_branch
        %120 = sbr.rel (%p118) target = $region16
      $region15: #{encoder_decoder_forward.9} parent=11 // pred_region
        _
      $region16: #{encoder_decoder_forward.9} parent=11 // pred_fallthru
        _
      // Predicated region
      $region17: #{encoder_decoder_forward.9} parent=11 // pred_check
        %p121 = pneg %p77
      $region18: #{encoder_decoder_forward.9} parent=11 // pred_check_branch
        %123 = sbr.rel (%p121) target = $region20
      $region19: #{encoder_decoder_forward.9} parent=11 // pred_region
        _
      $region20: #{encoder_decoder_forward.9} parent=11 // pred_fallthru
        _
    $region12: #{encoder_decoder_forward.9} parent=5 // pred_fallthru
      _
    %p124 = scmp.lt.s32.totalorder %s9, 2
    // Predicated region
    $region21: #{encoder_decoder_forward.9} parent=5 // pred_check
      %p125 = pneg %p124
    $region22: #{encoder_decoder_forward.9} parent=5 // pred_check_branch
      %127 = sbr.rel (%p125) target = $region24
    $region23: #{encoder_decoder_forward.9} parent=5 // pred_region
      // Predicated region
      $region25: #{encoder_decoder_forward.9} parent=23 // pred_check
        %p128 = pneg %p29
      $region26: #{encoder_decoder_forward.9} parent=23 // pred_check_branch
        %130 = sbr.rel (%p128) target = $region28
      $region27: #{encoder_decoder_forward.9} parent=23 // pred_region
        %p131 = scmp.lt.s32.totalorder %s9, 1
        %s132 = scalar_select %p131, %s9, 1
        %s133 = smul.addr %s132, 37
        %s134 = smul.addr %s133, 4
        %s135 = scalar_lea.vmem %s0, %s134
      $region28: #{encoder_decoder_forward.9} parent=23 // pred_fallthru
        _
    $region24: #{encoder_decoder_forward.9} parent=5 // pred_fallthru
      _
    %p136 = scmp.le.s32.totalorder 1, %s9
    %p137 = scmp.lt.s32.totalorder %s9, 3
    %p138 = pnand %p136, %p137
    %p139 = pneg %p138
    // Predicated region
    $region29: #{encoder_decoder_forward.9} parent=5 // pred_check
      _
    $region30: #{encoder_decoder_forward.9} parent=5 // pred_check_branch
      %141 = sbr.rel (%p138) target = $region32
    $region31: #{encoder_decoder_forward.9} parent=5 // pred_region
      %s142 = ssub.s32 %s9, 1
      %p143 = scmp.lt.s32.totalorder %s14, 1
      %s144 = scalar_select %p143, %s14, 1
      %s145 = smul.addr %s144, 37
      %s146 = smul.addr %s145, 4
      %s147 = scalar_lea.vmem %s0, %s146
      %p148 = pneg %p35
      %p149 = pneg %p32
      %p150 = pneg %p56
      %p151 = pneg %p53
      %p152 = pneg %p77
      %p153 = pneg %p74
      %p154 = pneg %p103
      %p155 = pneg %p100
      %p156 = scmp.lt.s32.totalorder %s14, 1
      %s157 = scalar_select %p156, %s14, 1
      %s158 = smul.addr %s157, 37
      %s159 = smul.addr %s158, 4
      %s160 = scalar_lea.vmem %s3, %s159
      %p161 = scmp.lt.s32.totalorder %s14, 1
      %s162 = scalar_select %p161, %s14, 1
      %s163 = smul.addr %s162, 37
      %s164 = smul.addr %s163, 4
      %s165 = scalar_lea.vmem %s0, %s164
      %p166 = scmp.lt.s32.totalorder %s14, 1
      %s167 = scalar_select %p166, %s14, 1
      %s168 = smul.addr %s167, 37
      %s169 = smul.addr %s168, 4
      %s170 = scalar_lea.vmem %s3, %s169
      %v172 = vld [vmem:[%s165] sm:$0xf]
      %v173 = vld [vmem:[%s165 + $0x4] sm:$0xf]
      %v174 = vld [vmem:[%s165 + $0x8] sm:$0xf]
      %v175 = vld [vmem:[%s165 + $0xc] sm:$0xf]
      %v176 = vld [vmem:[%s165 + $0x10] sm:$0xf]
      %v177 = vld [vmem:[%s165 + $0x14] sm:$0xf]
      %v178 = vld [vmem:[%s165 + $0x18] sm:$0xf]
      %v179 = vld [vmem:[%s165 + $0x1c] sm:$0xf]
      %v180 = vld [vmem:[%s165 + $0x20] sm:$0xf]
      %v181 = vld [vmem:[%s165 + $0x24] sm:$0xf]
      %v182 = vld [vmem:[%s165 + $0x28] sm:$0xf]
      %v183 = vld [vmem:[%s165 + $0x2c] sm:$0xf]
      %v184 = vld [vmem:[%s165 + $0x30] sm:$0xf]
      %v185 = vld [vmem:[%s165 + $0x34] sm:$0xf]
      %v186 = vld [vmem:[%s165 + $0x38] sm:$0xf]
      %v187 = vld [vmem:[%s165 + $0x3c] sm:$0xf]
      %v188 = vld [vmem:[%s165 + $0x40] sm:$0xf]
      %v189 = vld [vmem:[%s165 + $0x44] sm:$0xf]
      %v190 = vld [vmem:[%s165 + $0x48] sm:$0xf]
      %v191 = vld [vmem:[%s165 + $0x4c] sm:$0xf]
      %v192 = vld [vmem:[%s165 + $0x50] sm:$0xf]
      %v193 = vld [vmem:[%s165 + $0x54] sm:$0xf]
      %v194 = vld [vmem:[%s165 + $0x58] sm:$0xf]
      %v195 = vld [vmem:[%s165 + $0x5c] sm:$0xf]
      %v196 = vld [vmem:[%s165 + $0x60] sm:$0xf]
      %v197 = vld [vmem:[%s165 + $0x64] sm:$0xf]
      %v198 = vld [vmem:[%s165 + $0x68] sm:$0xf]
      %v199 = vld [vmem:[%s165 + $0x6c] sm:$0xf]
      %v200 = vld [vmem:[%s165 + $0x70] sm:$0xf]
      %v201 = vld [vmem:[%s165 + $0x74] sm:$0xf]
      %v202 = vld [vmem:[%s165 + $0x78] sm:$0xf]
      %v203 = vld [vmem:[%s165 + $0x7c] sm:$0xf]
      %v204 = vld [vmem:[%s165 + $0x80] sm:$0xf]
      %v205 = vld [vmem:[%s165 + $0x84] sm:$0xf]
      %v206 = vld [vmem:[%s165 + $0x88] sm:$0xf]
      %v207 = vld [vmem:[%s165 + $0x8c] sm:$0xf]
      %v208 = vld [vmem:[%s165 + $0x90] sm:$0x1]
      %v209 = vld [vmem:[%s1] sm:$0xf]
      %v210 = vld [vmem:[%s1 + $0x4] sm:$0x3]
      %s211 = scalar_lea.vmem %s1, 8
      %v212 = vld [vmem:[%s211] sm:$0xf]
      %v213 = vld [vmem:[%s211 + $0x4] sm:$0x3]
      %v251 = vunpack.c.l.b16 %v172
      %v252 = vunpack.c.l.b16 %v173
      %v253 = vunpack.c.l.b16 %v174
      %v254 = vunpack.c.l.b16 %v175
      %v255 = vunpack.c.l.b16 %v176
      %v256 = vunpack.c.l.b16 %v177
      %v257 = vunpack.c.l.b16 %v178
      %v258 = vunpack.c.l.b16 %v179
      %v259 = vunpack.c.l.b16 %v180
      %v260 = vunpack.c.l.b16 %v181
      %v261 = vunpack.c.l.b16 %v182
      %v262 = vunpack.c.l.b16 %v183
      %v263 = vunpack.c.l.b16 %v184
      %v264 = vunpack.c.l.b16 %v185
      %v265 = vunpack.c.l.b16 %v186
      %v266 = vunpack.c.l.b16 %v187
      %v267 = vunpack.c.l.b16 %v188
      %v268 = vunpack.c.l.b16 %v189
      %v269 = vunpack.c.l.b16 %v190
      %v270 = vunpack.c.l.b16 %v191
      %v271 = vunpack.c.l.b16 %v192
      %v272 = vunpack.c.l.b16 %v193
      %v273 = vunpack.c.l.b16 %v194
      %v274 = vunpack.c.l.b16 %v195
      %v275 = vunpack.c.l.b16 %v196
      %v276 = vunpack.c.l.b16 %v197
      %v277 = vunpack.c.l.b16 %v198
      %v278 = vunpack.c.l.b16 %v199
      %v279 = vunpack.c.l.b16 %v200
      %v280 = vunpack.c.l.b16 %v201
      %v281 = vunpack.c.l.b16 %v202
      %v282 = vunpack.c.l.b16 %v203
      %v283 = vunpack.c.l.b16 %v204
      %v284 = vunpack.c.l.b16 %v205
      %v285 = vunpack.c.l.b16 %v206
      %v286 = vunpack.c.l.b16 %v207
      %v287 = vunpack.c.l.b16 %v208
      %v288 = vpack.c.b16 %v252, %v251
      %v289 = vpack.c.b16 %v254, %v253
      %v290 = vpack.c.b16 %v256, %v255
      %v291 = vpack.c.b16 %v258, %v257
      %v292 = vpack.c.b16 %v260, %v259
      %v293 = vpack.c.b16 %v262, %v261
      %v294 = vpack.c.b16 %v264, %v263
      %v295 = vpack.c.b16 %v266, %v265
      %v296 = vpack.c.b16 %v268, %v267
      %v297 = vpack.c.b16 %v270, %v269
      %v298 = vpack.c.b16 %v272, %v271
      %v299 = vpack.c.b16 %v274, %v273
      %v300 = vpack.c.b16 %v276, %v275
      %v301 = vpack.c.b16 %v278, %v277
      %v302 = vpack.c.b16 %v280, %v279
      %v303 = vpack.c.b16 %v282, %v281
      %v304 = vpack.c.b16 %v284, %v283
      %v305 = vpack.c.b16 %v286, %v285
      %v306 = vpack.c.b16 %v287, %v287
      %v309 = vunpack.c.l.b16 %v212
      %v310 = vunpack.c.l.b16 %v213
      %v311 = vpack.c.b16 %v310, %v309
      %vm312 = vcmask 97280
      %v314 = vsel %vm312, %v288, 0
      %v317 = vsel %vm312, %v289, 0
      %v320 = vsel %vm312, %v290, 0
      %v323 = vsel %vm312, %v291, 0
      %v326 = vsel %vm312, %v292, 0
      %v329 = vsel %vm312, %v293, 0
      %v332 = vsel %vm312, %v294, 0
      %v335 = vsel %vm312, %v295, 0
      %v338 = vsel %vm312, %v296, 0
      %v341 = vsel %vm312, %v297, 0
      %v344 = vsel %vm312, %v298, 0
      %v347 = vsel %vm312, %v299, 0
      %v350 = vsel %vm312, %v300, 0
      %v353 = vsel %vm312, %v301, 0
      %v356 = vsel %vm312, %v302, 0
      %v359 = vsel %vm312, %v303, 0
      %v362 = vsel %vm312, %v304, 0
      %v365 = vsel %vm312, %v305, 0
      %v368 = vsel %vm312, %v306, 0
      %vm370 = vcmask 1045504
      %v372 = vsel %vm370, %v311, 0
      %374 = vmatprep.subr.bf16.mxu0 0
      %375 = vmatpush1.bf16.msra.mxu0 %v372
      %376 = vmatprep.subr.bf16.mxu0 0
      %377 = vmatpush1.bf16.msra.mxu0 0
      %378 = vmatprep.subr.bf16.mxu0 0
      %379 = vmatpush1.bf16.msra.mxu0 0
      %380 = vmatprep.subr.bf16.mxu0 0
      %381 = vmatpush1.bf16.msra.mxu0 0
      %382 = vmatprep.subr.bf16.mxu0 0
      %383 = vmatpush1.bf16.msra.mxu0 0
      %384 = vmatprep.subr.bf16.mxu0 0
      %385 = vmatpush1.bf16.msra.mxu0 0
      %386 = vmatprep.subr.bf16.mxu0 0
      %387 = vmatpush1.bf16.msra.mxu0 0
      %388 = vmatprep.subr.bf16.mxu0 0
      %389 = vmatpush1.bf16.msra.mxu0 0
      %390 = vmatprep.subr.bf16.mxu0 0
      %391 = vmatpush1.bf16.msra.mxu0 0
      %392 = vmatprep.subr.bf16.mxu0 0
      %393 = vmatpush1.bf16.msra.mxu0 0
      %394 = vmatprep.subr.bf16.mxu0 0
      %395 = vmatpush1.bf16.msra.mxu0 0
      %396 = vmatprep.subr.bf16.mxu0 0
      %397 = vmatpush1.bf16.msra.mxu0 0
      %398 = vmatprep.subr.bf16.mxu0 0
      %399 = vmatpush1.bf16.msra.mxu0 0
      %400 = vmatprep.subr.bf16.mxu0 0
      %401 = vmatpush1.bf16.msra.mxu0 0
      %402 = vmatprep.subr.bf16.mxu0 0
      %403 = vmatpush1.bf16.msra.mxu0 0
      %404 = vmatprep.subr.bf16.mxu0 0
      %405 = vmatpush1.bf16.msra.mxu0 0
      %406 = vmatprep.mubr.bf16.mxu0 0
      %407 = vmatmul.mubr.bf16.gmra.mrb[0].mxu0 %v314
      %v408 = vpop.f32.mrb[0].mxu0
      %v409 = vadd.f32 0.0, %v408
      %v410 = vpop.f32.mrb[0].mxu0
      %v411 = vpop.f32.mrb[0].mxu0
      %v412 = vadd.f32 0.0, %v411
      %v413 = vpop.f32.mrb[0].mxu0
      %414 = vmatprep.mubr.bf16.mxu0 0
      %415 = vmatmul.mubr.bf16.gmra.mrb[0].mxu0 %v317
      %v416 = vpop.f32.mrb[0].mxu0
      %v417 = vadd.f32 0.0, %v416
      %v418 = vpop.f32.mrb[0].mxu0
      %v419 = vpop.f32.mrb[0].mxu0
      %v420 = vadd.f32 0.0, %v419
      %v421 = vpop.f32.mrb[0].mxu0
      %422 = vmatprep.mubr.bf16.mxu0 0
      %423 = vmatmul.mubr.bf16.gmra.mrb[0].mxu0 %v320
      %v424 = vpop.f32.mrb[0].mxu0
      %v425 = vadd.f32 0.0, %v424
      %v426 = vpop.f32.mrb[0].mxu0
      %v427 = vpop.f32.mrb[0].mxu0
      %v428 = vadd.f32 0.0, %v427
      %v429 = vpop.f32.mrb[0].mxu0
      %430 = vmatprep.mubr.bf16.mxu0 0
      %431 = vmatmul.mubr.bf16.gmra.mrb[0].mxu0 %v323
      %v432 = vpop.f32.mrb[0].mxu0
      %v433 = vadd.f32 0.0, %v432
      %v434 = vpop.f32.mrb[0].mxu0
      %v435 = vpop.f32.mrb[0].mxu0
      %v436 = vadd.f32 0.0, %v435
      %v437 = vpop.f32.mrb[0].mxu0
      %438 = vmatprep.mubr.bf16.mxu0 0
      %439 = vmatmul.mubr.bf16.gmra.mrb[0].mxu0 %v326
      %v440 = vpop.f32.mrb[0].mxu0
      %v441 = vadd.f32 0.0, %v440
      %v442 = vpop.f32.mrb[0].mxu0
      %v443 = vpop.f32.mrb[0].mxu0
      %v444 = vadd.f32 0.0, %v443
      %v445 = vpop.f32.mrb[0].mxu0
      %446 = vmatprep.mubr.bf16.mxu0 0
      %447 = vmatmul.mubr.bf16.gmra.mrb[0].mxu0 %v329
      %v448 = vpop.f32.mrb[0].mxu0
      %v449 = vadd.f32 0.0, %v448
      %v450 = vpop.f32.mrb[0].mxu0
      %v451 = vpop.f32.mrb[0].mxu0
      %v452 = vadd.f32 0.0, %v451
      %v453 = vpop.f32.mrb[0].mxu0
      %454 = vmatprep.mubr.bf16.mxu0 0
      %455 = vmatmul.mubr.bf16.gmra.mrb[0].mxu0 %v332
      %v456 = vpop.f32.mrb[0].mxu0
      %v457 = vadd.f32 0.0, %v456
      %v458 = vpop.f32.mrb[0].mxu0
      %v459 = vpop.f32.mrb[0].mxu0
      %v460 = vadd.f32 0.0, %v459
      %v461 = vpop.f32.mrb[0].mxu0
      %462 = vmatprep.mubr.bf16.mxu0 0
      %463 = vmatmul.mubr.bf16.gmra.mrb[0].mxu0 %v335
      %v464 = vpop.f32.mrb[0].mxu0
      %v465 = vadd.f32 0.0, %v464
      %v466 = vpop.f32.mrb[0].mxu0
      %v467 = vpop.f32.mrb[0].mxu0
      %v468 = vadd.f32 0.0, %v467
      %v469 = vpop.f32.mrb[0].mxu0
      %470 = vmatprep.mubr.bf16.mxu0 0
      %471 = vmatmul.mubr.bf16.gmra.mrb[0].mxu0 %v338
      %v472 = vpop.f32.mrb[0].mxu0
      %v473 = vadd.f32 0.0, %v472
      %v474 = vpop.f32.mrb[0].mxu0
      %v475 = vpop.f32.mrb[0].mxu0
      %v476 = vadd.f32 0.0, %v475
      %v477 = vpop.f32.mrb[0].mxu0
      %478 = vmatprep.mubr.bf16.mxu0 0
      %479 = vmatmul.mubr.bf16.gmra.mrb[0].mxu0 %v341
      %v480 = vpop.f32.mrb[0].mxu0
      %v481 = vadd.f32 0.0, %v480
      %v482 = vpop.f32.mrb[0].mxu0
      %v483 = vpop.f32.mrb[0].mxu0
      %v484 = vadd.f32 0.0, %v483
      %v485 = vpop.f32.mrb[0].mxu0
      %486 = vmatprep.mubr.bf16.mxu0 0
      %487 = vmatmul.mubr.bf16.gmra.mrb[0].mxu0 %v344
      %v488 = vpop.f32.mrb[0].mxu0
      %v489 = vadd.f32 0.0, %v488
      %v490 = vpop.f32.mrb[0].mxu0
      %v491 = vpop.f32.mrb[0].mxu0
      %v492 = vadd.f32 0.0, %v491
      %v493 = vpop.f32.mrb[0].mxu0
      %494 = vmatprep.mubr.bf16.mxu0 0
      %495 = vmatmul.mubr.bf16.gmra.mrb[0].mxu0 %v347
      %v496 = vpop.f32.mrb[0].mxu0
      %v497 = vadd.f32 0.0, %v496
      %v498 = vpop.f32.mrb[0].mxu0
      %v499 = vpop.f32.mrb[0].mxu0
      %v500 = vadd.f32 0.0, %v499
      %v501 = vpop.f32.mrb[0].mxu0
      %502 = vmatprep.mubr.bf16.mxu0 0
      %503 = vmatmul.mubr.bf16.gmra.mrb[0].mxu0 %v350
      %v504 = vpop.f32.mrb[0].mxu0
      %v505 = vadd.f32 0.0, %v504
      %v506 = vpop.f32.mrb[0].mxu0
      %v507 = vpop.f32.mrb[0].mxu0
      %v508 = vadd.f32 0.0, %v507
      %v509 = vpop.f32.mrb[0].mxu0
      %510 = vmatprep.mubr.bf16.mxu0 0
      %511 = vmatmul.mubr.bf16.gmra.mrb[0].mxu0 %v353
      %v512 = vpop.f32.mrb[0].mxu0
      %v513 = vadd.f32 0.0, %v512
      %v514 = vpop.f32.mrb[0].mxu0
      %v515 = vpop.f32.mrb[0].mxu0
      %v516 = vadd.f32 0.0, %v515
      %v517 = vpop.f32.mrb[0].mxu0
      %518 = vmatprep.mubr.bf16.mxu0 0
      %519 = vmatmul.mubr.bf16.gmra.mrb[0].mxu0 %v356
      %v520 = vpop.f32.mrb[0].mxu0
      %v521 = vadd.f32 0.0, %v520
      %v522 = vpop.f32.mrb[0].mxu0
      %v523 = vpop.f32.mrb[0].mxu0
      %v524 = vadd.f32 0.0, %v523
      %v525 = vpop.f32.mrb[0].mxu0
      %526 = vmatprep.mubr.bf16.mxu0 0
      %527 = vmatmul.mubr.bf16.gmra.mrb[0].mxu0 %v359
      %v528 = vpop.f32.mrb[0].mxu0
      %v529 = vadd.f32 0.0, %v528
      %v530 = vpop.f32.mrb[0].mxu0
      %v531 = vpop.f32.mrb[0].mxu0
      %v532 = vadd.f32 0.0, %v531
      %v533 = vpop.f32.mrb[0].mxu0
      %534 = vmatprep.mubr.bf16.mxu0 0
      %535 = vmatmul.mubr.bf16.gmra.mrb[0].mxu0 %v362
      %v536 = vpop.f32.mrb[0].mxu0
      %v537 = vadd.f32 0.0, %v536
      %v538 = vpop.f32.mrb[0].mxu0
      %v539 = vpop.f32.mrb[0].mxu0
      %v540 = vadd.f32 0.0, %v539
      %v541 = vpop.f32.mrb[0].mxu0
      %542 = vmatprep.mubr.bf16.mxu0 0
      %543 = vmatmul.mubr.bf16.gmra.mrb[0].mxu0 %v365
      %v544 = vpop.f32.mrb[0].mxu0
      %v545 = vadd.f32 0.0, %v544
      %v546 = vpop.f32.mrb[0].mxu0
      %v547 = vpop.f32.mrb[0].mxu0
      %v548 = vadd.f32 0.0, %v547
      %v549 = vpop.f32.mrb[0].mxu0
      %550 = vmatprep.mubr.bf16.mxu0 0
      %551 = vmatmul.mubr.bf16.gmra.mrb[0].mxu0 %v368
      %v552 = vpop.f32.mrb[0].mxu0
      %v553 = vadd.f32 0.0, %v552
      %v554 = vpop.f32.mrb[0].mxu0
      %v555 = vpop.f32.mrb[0].mxu0
      %v556 = vpop.f32.mrb[0].mxu0
      %557 = vdwg.mxu0
      %s558 = scalar_lea.vmem %s1, 16
      %v559 = vld [vmem:[%s558] sm:$0xf]
      %v560 = vld [vmem:[%s558 + $0x4] sm:$0x3]
      %v563 = vunpack.c.l.b16 %v559
      %v564 = vunpack.c.l.b16 %v560
      %v565 = vpack.c.b16 %v564, %v563
      %v567 = vsel %vm370, %v565, 0
      %569 = vmatprep.subr.bf16.mxu0 0
      %570 = vmatpush1.bf16.msra.mxu0 %v567
      %571 = vmatprep.subr.bf16.mxu0 0
      %572 = vmatpush1.bf16.msra.mxu0 0
      %573 = vmatprep.subr.bf16.mxu0 0
      %574 = vmatpush1.bf16.msra.mxu0 0
      %575 = vmatprep.subr.bf16.mxu0 0
      %576 = vmatpush1.bf16.msra.mxu0 0
      %577 = vmatprep.subr.bf16.mxu0 0
      %578 = vmatpush1.bf16.msra.mxu0 0
      %579 = vmatprep.subr.bf16.mxu0 0
      %580 = vmatpush1.bf16.msra.mxu0 0
      %581 = vmatprep.subr.bf16.mxu0 0
      %582 = vmatpush1.bf16.msra.mxu0 0
      %583 = vmatprep.subr.bf16.mxu0 0
      %584 = vmatpush1.bf16.msra.mxu0 0
      %585 = vmatprep.subr.bf16.mxu0 0
      %586 = vmatpush1.bf16.msra.mxu0 0
      %587 = vmatprep.subr.bf16.mxu0 0
      %588 = vmatpush1.bf16.msra.mxu0 0
      %589 = vmatprep.subr.bf16.mxu0 0
      %590 = vmatpush1.bf16.msra.mxu0 0
      %591 = vmatprep.subr.bf16.mxu0 0
      %592 = vmatpush1.bf16.msra.mxu0 0
      %593 = vmatprep.subr.bf16.mxu0 0
      %594 = vmatpush1.bf16.msra.mxu0 0
      %595 = vmatprep.subr.bf16.mxu0 0
      %596 = vmatpush1.bf16.msra.mxu0 0
      %597 = vmatprep.subr.bf16.mxu0 0
      %598 = vmatpush1.bf16.msra.mxu0 0
      %599 = vmatprep.subr.bf16.mxu0 0
      %600 = vmatpush1.bf16.msra.mxu0 0
      %601 = vmatprep.mubr.bf16.mxu0 0
      %602 = vmatmul.mubr.bf16.gmra.mrb[0].mxu0 %v314
      %v603 = vpop.f32.mrb[0].mxu0
      %v604 = vadd.f32 0.0, %v603
      %v605 = vpop.f32.mrb[0].mxu0
      %v606 = vpop.f32.mrb[0].mxu0
      %v607 = vadd.f32 0.0, %v606
      %v608 = vpop.f32.mrb[0].mxu0
      %609 = vmatprep.mubr.bf16.mxu0 0
      %610 = vmatmul.mubr.bf16.gmra.mrb[0].mxu0 %v317
      %v611 = vpop.f32.mrb[0].mxu0
      %v612 = vadd.f32 0.0, %v611
      %v613 = vpop.f32.mrb[0].mxu0
      %v614 = vpop.f32.mrb[0].mxu0
      %v615 = vadd.f32 0.0, %v614
      %v616 = vpop.f32.mrb[0].mxu0
      %617 = vmatprep.mubr.bf16.mxu0 0
      %618 = vmatmul.mubr.bf16.gmra.mrb[0].mxu0 %v320
      %v619 = vpop.f32.mrb[0].mxu0
      %v620 = vadd.f32 0.0, %v619
      %v621 = vpop.f32.mrb[0].mxu0
      %v622 = vpop.f32.mrb[0].mxu0
      %v623 = vadd.f32 0.0, %v622
      %v624 = vpop.f32.mrb[0].mxu0
      %625 = vmatprep.mubr.bf16.mxu0 0
      %626 = vmatmul.mubr.bf16.gmra.mrb[0].mxu0 %v323
      %v627 = vpop.f32.mrb[0].mxu0
      %v628 = vadd.f32 0.0, %v627
      %v629 = vpop.f32.mrb[0].mxu0
      %v630 = vpop.f32.mrb[0].mxu0
      %v631 = vadd.f32 0.0, %v630
      %v632 = vpop.f32.mrb[0].mxu0
      %633 = vmatprep.mubr.bf16.mxu0 0
      %634 = vmatmul.mubr.bf16.gmra.mrb[0].mxu0 %v326
      %v635 = vpop.f32.mrb[0].mxu0
      %v636 = vadd.f32 0.0, %v635
      %v637 = vpop.f32.mrb[0].mxu0
      %v638 = vpop.f32.mrb[0].mxu0
      %v639 = vadd.f32 0.0, %v638
      %v640 = vpop.f32.mrb[0].mxu0
      %641 = vmatprep.mubr.bf16.mxu0 0
      %642 = vmatmul.mubr.bf16.gmra.mrb[0].mxu0 %v329
      %v643 = vpop.f32.mrb[0].mxu0
      %v644 = vadd.f32 0.0, %v643
      %v645 = vpop.f32.mrb[0].mxu0
      %v646 = vpop.f32.mrb[0].mxu0
      %v647 = vadd.f32 0.0, %v646
      %v648 = vpop.f32.mrb[0].mxu0
      %649 = vmatprep.mubr.bf16.mxu0 0
      %650 = vmatmul.mubr.bf16.gmra.mrb[0].mxu0 %v332
      %v651 = vpop.f32.mrb[0].mxu0
      %v652 = vadd.f32 0.0, %v651
      %v653 = vpop.f32.mrb[0].mxu0
      %v654 = vpop.f32.mrb[0].mxu0
      %v655 = vadd.f32 0.0, %v654
      %v656 = vpop.f32.mrb[0].mxu0
      %657 = vmatprep.mubr.bf16.mxu0 0
      %658 = vmatmul.mubr.bf16.gmra.mrb[0].mxu0 %v335
      %v659 = vpop.f32.mrb[0].mxu0
      %v660 = vadd.f32 0.0, %v659
      %v661 = vpop.f32.mrb[0].mxu0
      %v662 = vpop.f32.mrb[0].mxu0
      %v663 = vadd.f32 0.0, %v662
      %v664 = vpop.f32.mrb[0].mxu0
      %665 = vmatprep.mubr.bf16.mxu0 0
      %666 = vmatmul.mubr.bf16.gmra.mrb[0].mxu0 %v338
      %v667 = vpop.f32.mrb[0].mxu0
      %v668 = vadd.f32 0.0, %v667
      %v669 = vpop.f32.mrb[0].mxu0
      %v670 = vpop.f32.mrb[0].mxu0
      %v671 = vadd.f32 0.0, %v670
      %v672 = vpop.f32.mrb[0].mxu0
      %673 = vmatprep.mubr.bf16.mxu0 0
      %674 = vmatmul.mubr.bf16.gmra.mrb[0].mxu0 %v341
      %v675 = vpop.f32.mrb[0].mxu0
      %v676 = vadd.f32 0.0, %v675
      %v677 = vpop.f32.mrb[0].mxu0
      %v678 = vpop.f32.mrb[0].mxu0
      %v679 = vadd.f32 0.0, %v678
      %v680 = vpop.f32.mrb[0].mxu0
      %681 = vmatprep.mubr.bf16.mxu0 0
      %682 = vmatmul.mubr.bf16.gmra.mrb[0].mxu0 %v344
      %v683 = vpop.f32.mrb[0].mxu0
      %v684 = vadd.f32 0.0, %v683
      %v685 = vpop.f32.mrb[0].mxu0
      %v686 = vpop.f32.mrb[0].mxu0
      %v687 = vadd.f32 0.0, %v686
      %v688 = vpop.f32.mrb[0].mxu0
      %689 = vmatprep.mubr.bf16.mxu0 0
      %690 = vmatmul.mubr.bf16.gmra.mrb[0].mxu0 %v347
      %v691 = vpop.f32.mrb[0].mxu0
      %v692 = vadd.f32 0.0, %v691
      %v693 = vpop.f32.mrb[0].mxu0
      %v694 = vpop.f32.mrb[0].mxu0
      %v695 = vadd.f32 0.0, %v694
      %v696 = vpop.f32.mrb[0].mxu0
      %697 = vmatprep.mubr.bf16.mxu0 0
      %698 = vmatmul.mubr.bf16.gmra.mrb[0].mxu0 %v350
      %v699 = vpop.f32.mrb[0].mxu0
      %v700 = vadd.f32 0.0, %v699
      %v701 = vpop.f32.mrb[0].mxu0
      %v702 = vpop.f32.mrb[0].mxu0
      %v703 = vadd.f32 0.0, %v702
      %v704 = vpop.f32.mrb[0].mxu0
      %705 = vmatprep.mubr.bf16.mxu0 0
      %706 = vmatmul.mubr.bf16.gmra.mrb[0].mxu0 %v353
      %v707 = vpop.f32.mrb[0].mxu0
      %v708 = vadd.f32 0.0, %v707
      %v709 = vpop.f32.mrb[0].mxu0
      %v710 = vpop.f32.mrb[0].mxu0
      %v711 = vadd.f32 0.0, %v710
      %v712 = vpop.f32.mrb[0].mxu0
      %713 = vmatprep.mubr.bf16.mxu0 0
      %714 = vmatmul.mubr.bf16.gmra.mrb[0].mxu0 %v356
      %v715 = vpop.f32.mrb[0].mxu0
      %v716 = vadd.f32 0.0, %v715
      %v717 = vpop.f32.mrb[0].mxu0
      %v718 = vpop.f32.mrb[0].mxu0
      %v719 = vadd.f32 0.0, %v718
      %v720 = vpop.f32.mrb[0].mxu0
      %721 = vmatprep.mubr.bf16.mxu0 0
      %722 = vmatmul.mubr.bf16.gmra.mrb[0].mxu0 %v359
      %v723 = vpop.f32.mrb[0].mxu0
      %v724 = vadd.f32 0.0, %v723
      %v725 = vpop.f32.mrb[0].mxu0
      %v726 = vpop.f32.mrb[0].mxu0
      %v727 = vadd.f32 0.0, %v726
      %v728 = vpop.f32.mrb[0].mxu0
      %729 = vmatprep.mubr.bf16.mxu0 0
      %730 = vmatmul.mubr.bf16.gmra.mrb[0].mxu0 %v362
      %v731 = vpop.f32.mrb[0].mxu0
      %v732 = vadd.f32 0.0, %v731
      %v733 = vpop.f32.mrb[0].mxu0
      %v734 = vpop.f32.mrb[0].mxu0
      %v735 = vadd.f32 0.0, %v734
      %v736 = vpop.f32.mrb[0].mxu0
      %737 = vmatprep.mubr.bf16.mxu0 0
      %738 = vmatmul.mubr.bf16.gmra.mrb[0].mxu0 %v365
      %v739 = vpop.f32.mrb[0].mxu0
      %v740 = vadd.f32 0.0, %v739
      %v741 = vpop.f32.mrb[0].mxu0
      %v742 = vpop.f32.mrb[0].mxu0
      %v743 = vadd.f32 0.0, %v742
      %v744 = vpop.f32.mrb[0].mxu0
      %745 = vmatprep.mubr.bf16.mxu0 0
      %746 = vmatmul.mubr.bf16.gmra.mrb[0].mxu0 %v368
      %v747 = vpop.f32.mrb[0].mxu0
      %v748 = vadd.f32 0.0, %v747
      %v749 = vpop.f32.mrb[0].mxu0
      %v750 = vpop.f32.mrb[0].mxu0
      %v751 = vpop.f32.mrb[0].mxu0
      %752 = vdwg.mxu0
      %s753 = scalar_lea.vmem %s1, 24
      %v754 = vld [vmem:[%s753] sm:$0xf]
      %v755 = vld [vmem:[%s753 + $0x4] sm:$0x3]
      %v758 = vunpack.c.l.b16 %v754
      %v759 = vunpack.c.l.b16 %v755
      %v760 = vpack.c.b16 %v759, %v758
      %v762 = vsel %vm370, %v760, 0
      %764 = vmatprep.subr.bf16.mxu0 0
      %765 = vmatpush1.bf16.msra.mxu0 %v762
      %766 = vmatprep.subr.bf16.mxu0 0
      %767 = vmatpush1.bf16.msra.mxu0 0
      %768 = vmatprep.subr.bf16.mxu0 0
      %769 = vmatpush1.bf16.msra.mxu0 0
      %770 = vmatprep.subr.bf16.mxu0 0
      %771 = vmatpush1.bf16.msra.mxu0 0
      %772 = vmatprep.subr.bf16.mxu0 0
      %773 = vmatpush1.bf16.msra.mxu0 0
      %774 = vmatprep.subr.bf16.mxu0 0
      %775 = vmatpush1.bf16.msra.mxu0 0
      %776 = vmatprep.subr.bf16.mxu0 0
      %777 = vmatpush1.bf16.msra.mxu0 0
      %778 = vmatprep.subr.bf16.mxu0 0
      %779 = vmatpush1.bf16.msra.mxu0 0
      %780 = vmatprep.subr.bf16.mxu0 0
      %781 = vmatpush1.bf16.msra.mxu0 0
      %782 = vmatprep.subr.bf16.mxu0 0
      %783 = vmatpush1.bf16.msra.mxu0 0
      %784 = vmatprep.subr.bf16.mxu0 0
      %785 = vmatpush1.bf16.msra.mxu0 0
      %786 = vmatprep.subr.bf16.mxu0 0
      %787 = vmatpush1.bf16.msra.mxu0 0
      %788 = vmatprep.subr.bf16.mxu0 0
      %789 = vmatpush1.bf16.msra.mxu0 0
      %790 = vmatprep.subr.bf16.mxu0 0
      %791 = vmatpush1.bf16.msra.mxu0 0
      %792 = vmatprep.subr.bf16.mxu0 0
      %793 = vmatpush1.bf16.msra.mxu0 0
      %794 = vmatprep.subr.bf16.mxu0 0
      %795 = vmatpush1.bf16.msra.mxu0 0
      %796 = vmatprep.mubr.bf16.mxu0 0
      %797 = vmatmul.mubr.bf16.gmra.mrb[0].mxu0 %v314
      %v798 = vpop.f32.mrb[0].mxu0
      %v799 = vadd.f32 0.0, %v798
      %v800 = vpop.f32.mrb[0].mxu0
      %v801 = vpop.f32.mrb[0].mxu0
      %v802 = vadd.f32 0.0, %v801
      %v803 = vpop.f32.mrb[0].mxu0
      %804 = vmatprep.mubr.bf16.mxu0 0
      %805 = vmatmul.mubr.bf16.gmra.mrb[0].mxu0 %v317
      %v806 = vpop.f32.mrb[0].mxu0
      %v807 = vadd.f32 0.0, %v806
      %v808 = vpop.f32.mrb[0].mxu0
      %v809 = vpop.f32.mrb[0].mxu0
      %v810 = vadd.f32 0.0, %v809
      %v811 = vpop.f32.mrb[0].mxu0
      %812 = vmatprep.mubr.bf16.mxu0 0
      %813 = vmatmul.mubr.bf16.gmra.mrb[0].mxu0 %v320
      %v814 = vpop.f32.mrb[0].mxu0
      %v815 = vadd.f32 0.0, %v814
      %v816 = vpop.f32.mrb[0].mxu0
      %v817 = vpop.f32.mrb[0].mxu0
      %v818 = vadd.f32 0.0, %v817
      %v819 = vpop.f32.mrb[0].mxu0
      %820 = vmatprep.mubr.bf16.mxu0 0
      %821 = vmatmul.mubr.bf16.gmra.mrb[0].mxu0 %v323
      %v822 = vpop.f32.mrb[0].mxu0
      %v823 = vadd.f32 0.0, %v822
      %v824 = vpop.f32.mrb[0].mxu0
      %v825 = vpop.f32.mrb[0].mxu0
      %v826 = vadd.f32 0.0, %v825
      %v827 = vpop.f32.mrb[0].mxu0
      %828 = vmatprep.mubr.bf16.mxu0 0
      %829 = vmatmul.mubr.bf16.gmra.mrb[0].mxu0 %v326
      %v830 = vpop.f32.mrb[0].mxu0
      %v831 = vadd.f32 0.0, %v830
      %v832 = vpop.f32.mrb[0].mxu0
      %v833 = vpop.f32.mrb[0].mxu0
      %v834 = vadd.f32 0.0, %v833
      %v835 = vpop.f32.mrb[0].mxu0
      %836 = vmatprep.mubr.bf16.mxu0 0
      %837 = vmatmul.mubr.bf16.gmra.mrb[0].mxu0 %v329
      %v838 = vpop.f32.mrb[0].mxu0
      %v839 = vadd.f32 0.0, %v838
      %v840 = vpop.f32.mrb[0].mxu0
      %v841 = vpop.f32.mrb[0].mxu0
      %v842 = vadd.f32 0.0, %v841
      %v843 = vpop.f32.mrb[0].mxu0
      %844 = vmatprep.mubr.bf16.mxu0 0
      %845 = vmatmul.mubr.bf16.gmra.mrb[0].mxu0 %v332
      %v846 = vpop.f32.mrb[0].mxu0
      %v847 = vadd.f32 0.0, %v846
      %v848 = vpop.f32.mrb[0].mxu0
      %v849 = vpop.f32.mrb[0].mxu0
      %v850 = vadd.f32 0.0, %v849
      %v851 = vpop.f32.mrb[0].mxu0
      %852 = vmatprep.mubr.bf16.mxu0 0
      %853 = vmatmul.mubr.bf16.gmra.mrb[0].mxu0 %v335
      %v854 = vpop.f32.mrb[0].mxu0
      %v855 = vadd.f32 0.0, %v854
      %v856 = vpop.f32.mrb[0].mxu0
      %v857 = vpop.f32.mrb[0].mxu0
      %v858 = vadd.f32 0.0, %v857
      %v859 = vpop.f32.mrb[0].mxu0
      %860 = vmatprep.mubr.bf16.mxu0 0
      %861 = vmatmul.mubr.bf16.gmra.mrb[0].mxu0 %v338
      %v862 = vpop.f32.mrb[0].mxu0
      %v863 = vadd.f32 0.0, %v862
      %v864 = vpop.f32.mrb[0].mxu0
      %v865 = vpop.f32.mrb[0].mxu0
      %v866 = vadd.f32 0.0, %v865
      %v867 = vpop.f32.mrb[0].mxu0
      %868 = vmatprep.mubr.bf16.mxu0 0
      %869 = vmatmul.mubr.bf16.gmra.mrb[0].mxu0 %v341
      %v870 = vpop.f32.mrb[0].mxu0
      %v871 = vadd.f32 0.0, %v870
      %v872 = vpop.f32.mrb[0].mxu0
      %v873 = vpop.f32.mrb[0].mxu0
      %v874 = vadd.f32 0.0, %v873
      %v875 = vpop.f32.mrb[0].mxu0
      %876 = vmatprep.mubr.bf16.mxu0 0
      %877 = vmatmul.mubr.bf16.gmra.mrb[0].mxu0 %v344
      %v878 = vpop.f32.mrb[0].mxu0
      %v879 = vadd.f32 0.0, %v878
      %v880 = vpop.f32.mrb[0].mxu0
      %v881 = vpop.f32.mrb[0].mxu0
      %v882 = vadd.f32 0.0, %v881
      %v883 = vpop.f32.mrb[0].mxu0
      %884 = vmatprep.mubr.bf16.mxu0 0
      %885 = vmatmul.mubr.bf16.gmra.mrb[0].mxu0 %v347
      %v886 = vpop.f32.mrb[0].mxu0
      %v887 = vadd.f32 0.0, %v886
      %v888 = vpop.f32.mrb[0].mxu0
      %v889 = vpop.f32.mrb[0].mxu0
      %v890 = vadd.f32 0.0, %v889
      %v891 = vpop.f32.mrb[0].mxu0
      %892 = vmatprep.mubr.bf16.mxu0 0
      %893 = vmatmul.mubr.bf16.gmra.mrb[0].mxu0 %v350
      %v894 = vpop.f32.mrb[0].mxu0
      %v895 = vadd.f32 0.0, %v894
      %v896 = vpop.f32.mrb[0].mxu0
      %v897 = vpop.f32.mrb[0].mxu0
      %v898 = vadd.f32 0.0, %v897
      %v899 = vpop.f32.mrb[0].mxu0
      %900 = vmatprep.mubr.bf16.mxu0 0
      %901 = vmatmul.mubr.bf16.gmra.mrb[0].mxu0 %v353
      %v902 = vpop.f32.mrb[0].mxu0
      %v903 = vadd.f32 0.0, %v902
      %v904 = vpop.f32.mrb[0].mxu0
      %v905 = vpop.f32.mrb[0].mxu0
      %v906 = vadd.f32 0.0, %v905
      %v907 = vpop.f32.mrb[0].mxu0
      %908 = vmatprep.mubr.bf16.mxu0 0
      %909 = vmatmul.mubr.bf16.gmra.mrb[0].mxu0 %v356
      %v910 = vpop.f32.mrb[0].mxu0
      %v911 = vadd.f32 0.0, %v910
      %v912 = vpop.f32.mrb[0].mxu0
      %v913 = vpop.f32.mrb[0].mxu0
      %v914 = vadd.f32 0.0, %v913
      %v915 = vpop.f32.mrb[0].mxu0
      %916 = vmatprep.mubr.bf16.mxu0 0
      %917 = vmatmul.mubr.bf16.gmra.mrb[0].mxu0 %v359
      %v918 = vpop.f32.mrb[0].mxu0
      %v919 = vadd.f32 0.0, %v918
      %v920 = vpop.f32.mrb[0].mxu0
      %v921 = vpop.f32.mrb[0].mxu0
      %v922 = vadd.f32 0.0, %v921
      %v923 = vpop.f32.mrb[0].mxu0
      %924 = vmatprep.mubr.bf16.mxu0 0
      %925 = vmatmul.mubr.bf16.gmra.mrb[0].mxu0 %v362
      %v926 = vpop.f32.mrb[0].mxu0
      %v927 = vadd.f32 0.0, %v926
      %v928 = vpop.f32.mrb[0].mxu0
      %v929 = vpop.f32.mrb[0].mxu0
      %v930 = vadd.f32 0.0, %v929
      %v931 = vpop.f32.mrb[0].mxu0
      %932 = vmatprep.mubr.bf16.mxu0 0
      %933 = vmatmul.mubr.bf16.gmra.mrb[0].mxu0 %v365
      %v934 = vpop.f32.mrb[0].mxu0
      %v935 = vadd.f32 0.0, %v934
      %v936 = vpop.f32.mrb[0].mxu0
      %v937 = vpop.f32.mrb[0].mxu0
      %v938 = vadd.f32 0.0, %v937
      %v939 = vpop.f32.mrb[0].mxu0
      %940 = vmatprep.mubr.bf16.mxu0 0
      %941 = vmatmul.mubr.bf16.gmra.mrb[0].mxu0 %v368
      %v942 = vpop.f32.mrb[0].mxu0
      %v943 = vadd.f32 0.0, %v942
      %v944 = vpop.f32.mrb[0].mxu0
      %v945 = vpop.f32.mrb[0].mxu0
      %v946 = vpop.f32.mrb[0].mxu0
      %947 = vdwg.mxu0
      %vm948 = vcmask 1047553
      %v949 = vrot.slane %v409, 7
      %v950 = vsel %vm948, %v949, %v553
      %v953 = vunpack.c.l.b16 %v209
      %v954 = vunpack.c.l.b16 %v210
      %v955 = vpack.c.b16 %v954, %v953
      %vm993 = vcmask 1046528
      %v994 = vrot.slane %v409, 1
      %v995 = vrot.slane %v412, 1
      %v996 = vsel %vm993, %v994, %v995
      %v997 = vrot.slane %v417, 1
      %v998 = vsel %vm993, %v995, %v997
      %v999 = vrot.slane %v420, 1
      %v1000 = vsel %vm993, %v997, %v999
      %v1001 = vrot.slane %v425, 1
      %v1002 = vsel %vm993, %v999, %v1001
      %v1003 = vrot.slane %v428, 1
      %v1004 = vsel %vm993, %v1001, %v1003
      %v1005 = vrot.slane %v433, 1
      %v1006 = vsel %vm993, %v1003, %v1005
      %v1007 = vrot.slane %v436, 1
      %v1008 = vsel %vm993, %v1005, %v1007
      %v1009 = vrot.slane %v441, 1
      %v1010 = vsel %vm993, %v1007, %v1009
      %v1011 = vrot.slane %v444, 1
      %v1012 = vsel %vm993, %v1009, %v1011
      %v1013 = vrot.slane %v449, 1
      %v1014 = vsel %vm993, %v1011, %v1013
      %v1015 = vrot.slane %v452, 1
      %v1016 = vsel %vm993, %v1013, %v1015
      %v1017 = vrot.slane %v457, 1
      %v1018 = vsel %vm993, %v1015, %v1017
      %v1019 = vrot.slane %v460, 1
      %v1020 = vsel %vm993, %v1017, %v1019
      %v1021 = vrot.slane %v465, 1
      %v1022 = vsel %vm993, %v1019, %v1021
      %v1023 = vrot.slane %v468, 1
      %v1024 = vsel %vm993, %v1021, %v1023
      %v1025 = vrot.slane %v473, 1
      %v1026 = vsel %vm993, %v1023, %v1025
      %v1027 = vrot.slane %v476, 1
      %v1028 = vsel %vm993, %v1025, %v1027
      %v1029 = vrot.slane %v481, 1
      %v1030 = vsel %vm993, %v1027, %v1029
      %v1031 = vrot.slane %v484, 1
      %v1032 = vsel %vm993, %v1029, %v1031
      %v1033 = vrot.slane %v489, 1
      %v1034 = vsel %vm993, %v1031, %v1033
      %v1035 = vrot.slane %v492, 1
      %v1036 = vsel %vm993, %v1033, %v1035
      %v1037 = vrot.slane %v497, 1
      %v1038 = vsel %vm993, %v1035, %v1037
      %v1039 = vrot.slane %v500, 1
      %v1040 = vsel %vm993, %v1037, %v1039
      %v1041 = vrot.slane %v505, 1
      %v1042 = vsel %vm993, %v1039, %v1041
      %v1043 = vrot.slane %v508, 1
      %v1044 = vsel %vm993, %v1041, %v1043
      %v1045 = vrot.slane %v513, 1
      %v1046 = vsel %vm993, %v1043, %v1045
      %v1047 = vrot.slane %v516, 1
      %v1048 = vsel %vm993, %v1045, %v1047
      %v1049 = vrot.slane %v521, 1
      %v1050 = vsel %vm993, %v1047, %v1049
      %v1051 = vrot.slane %v524, 1
      %v1052 = vsel %vm993, %v1049, %v1051
      %v1053 = vrot.slane %v529, 1
      %v1054 = vsel %vm993, %v1051, %v1053
      %v1055 = vrot.slane %v532, 1
      %v1056 = vsel %vm993, %v1053, %v1055
      %v1057 = vrot.slane %v537, 1
      %v1058 = vsel %vm993, %v1055, %v1057
      %v1059 = vrot.slane %v540, 1
      %v1060 = vsel %vm993, %v1057, %v1059
      %v1061 = vrot.slane %v545, 1
      %v1062 = vsel %vm993, %v1059, %v1061
      %v1063 = vrot.slane %v548, 1
      %v1064 = vsel %vm993, %v1061, %v1063
      %v1065 = vrot.slane %v950, 1
      %v1066 = vsel %vm993, %v1063, %v1065
      %v1105 = vsel %vm370, %v955, 0
      %1107 = vmatprep.subr.bf16.mxu0 0
      %1108 = vmatpush1.bf16.msra.mxu0 %v1105
      %1109 = vmatprep.subr.bf16.mxu0 0
      %1110 = vmatpush1.bf16.msra.mxu0 0
      %1111 = vmatprep.subr.bf16.mxu0 0
      %1112 = vmatpush1.bf16.msra.mxu0 0
      %1113 = vmatprep.subr.bf16.mxu0 0
      %1114 = vmatpush1.bf16.msra.mxu0 0
      %1115 = vmatprep.subr.bf16.mxu0 0
      %1116 = vmatpush1.bf16.msra.mxu0 0
      %1117 = vmatprep.subr.bf16.mxu0 0
      %1118 = vmatpush1.bf16.msra.mxu0 0
      %1119 = vmatprep.subr.bf16.mxu0 0
      %1120 = vmatpush1.bf16.msra.mxu0 0
      %1121 = vmatprep.subr.bf16.mxu0 0
      %1122 = vmatpush1.bf16.msra.mxu0 0
      %1123 = vmatprep.subr.bf16.mxu0 0
      %1124 = vmatpush1.bf16.msra.mxu0 0
      %1125 = vmatprep.subr.bf16.mxu0 0
      %1126 = vmatpush1.bf16.msra.mxu0 0
      %1127 = vmatprep.subr.bf16.mxu0 0
      %1128 = vmatpush1.bf16.msra.mxu0 0
      %1129 = vmatprep.subr.bf16.mxu0 0
      %1130 = vmatpush1.bf16.msra.mxu0 0
      %1131 = vmatprep.subr.bf16.mxu0 0
      %1132 = vmatpush1.bf16.msra.mxu0 0
      %1133 = vmatprep.subr.bf16.mxu0 0
      %1134 = vmatpush1.bf16.msra.mxu0 0
      %1135 = vmatprep.subr.bf16.mxu0 0
      %1136 = vmatpush1.bf16.msra.mxu0 0
      %1137 = vmatprep.subr.bf16.mxu0 0
      %1138 = vmatpush1.bf16.msra.mxu0 0
      %1139 = vmatprep.mubr.bf16.mxu0 0
      %1140 = vmatmul.mubr.bf16.gmra.mrb[0].mxu0 %v314
      %v1141 = vpop.f32.mrb[0].mxu0
      %v1142 = vadd.f32 %v996, %v1141
      %v1143 = vpop.f32.mrb[0].mxu0
      %v1144 = vpop.f32.mrb[0].mxu0
      %v1145 = vadd.f32 %v998, %v1144
      %v1146 = vpop.f32.mrb[0].mxu0
      %1147 = vmatprep.mubr.bf16.mxu0 0
      %1148 = vmatmul.mubr.bf16.gmra.mrb[0].mxu0 %v317
      %v1149 = vpop.f32.mrb[0].mxu0
      %v1150 = vadd.f32 %v1000, %v1149
      %v1151 = vpop.f32.mrb[0].mxu0
      %v1152 = vpop.f32.mrb[0].mxu0
      %v1153 = vadd.f32 %v1002, %v1152
      %v1154 = vpop.f32.mrb[0].mxu0
      %1155 = vmatprep.mubr.bf16.mxu0 0
      %1156 = vmatmul.mubr.bf16.gmra.mrb[0].mxu0 %v320
      %v1157 = vpop.f32.mrb[0].mxu0
      %v1158 = vadd.f32 %v1004, %v1157
      %v1159 = vpop.f32.mrb[0].mxu0
      %v1160 = vpop.f32.mrb[0].mxu0
      %v1161 = vadd.f32 %v1006, %v1160
      %v1162 = vpop.f32.mrb[0].mxu0
      %1163 = vmatprep.mubr.bf16.mxu0 0
      %1164 = vmatmul.mubr.bf16.gmra.mrb[0].mxu0 %v323
      %v1165 = vpop.f32.mrb[0].mxu0
      %v1166 = vadd.f32 %v1008, %v1165
      %v1167 = vpop.f32.mrb[0].mxu0
      %v1168 = vpop.f32.mrb[0].mxu0
      %v1169 = vadd.f32 %v1010, %v1168
      %v1170 = vpop.f32.mrb[0].mxu0
      %1171 = vmatprep.mubr.bf16.mxu0 0
      %1172 = vmatmul.mubr.bf16.gmra.mrb[0].mxu0 %v326
      %v1173 = vpop.f32.mrb[0].mxu0
      %v1174 = vadd.f32 %v1012, %v1173
      %v1175 = vpop.f32.mrb[0].mxu0
      %v1176 = vpop.f32.mrb[0].mxu0
      %v1177 = vadd.f32 %v1014, %v1176
      %v1178 = vpop.f32.mrb[0].mxu0
      %1179 = vmatprep.mubr.bf16.mxu0 0
      %1180 = vmatmul.mubr.bf16.gmra.mrb[0].mxu0 %v329
      %v1181 = vpop.f32.mrb[0].mxu0
      %v1182 = vadd.f32 %v1016, %v1181
      %v1183 = vpop.f32.mrb[0].mxu0
      %v1184 = vpop.f32.mrb[0].mxu0
      %v1185 = vadd.f32 %v1018, %v1184
      %v1186 = vpop.f32.mrb[0].mxu0
      %1187 = vmatprep.mubr.bf16.mxu0 0
      %1188 = vmatmul.mubr.bf16.gmra.mrb[0].mxu0 %v332
      %v1189 = vpop.f32.mrb[0].mxu0
      %v1190 = vadd.f32 %v1020, %v1189
      %v1191 = vpop.f32.mrb[0].mxu0
      %v1192 = vpop.f32.mrb[0].mxu0
      %v1193 = vadd.f32 %v1022, %v1192
      %v1194 = vpop.f32.mrb[0].mxu0
      %1195 = vmatprep.mubr.bf16.mxu0 0
      %1196 = vmatmul.mubr.bf16.gmra.mrb[0].mxu0 %v335
      %v1197 = vpop.f32.mrb[0].mxu0
      %v1198 = vadd.f32 %v1024, %v1197
      %v1199 = vpop.f32.mrb[0].mxu0
      %v1200 = vpop.f32.mrb[0].mxu0
      %v1201 = vadd.f32 %v1026, %v1200
      %v1202 = vpop.f32.mrb[0].mxu0
      %1203 = vmatprep.mubr.bf16.mxu0 0
      %1204 = vmatmul.mubr.bf16.gmra.mrb[0].mxu0 %v338
      %v1205 = vpop.f32.mrb[0].mxu0
      %v1206 = vadd.f32 %v1028, %v1205
      %v1207 = vpop.f32.mrb[0].mxu0
      %v1208 = vpop.f32.mrb[0].mxu0
      %v1209 = vadd.f32 %v1030, %v1208
      %v1210 = vpop.f32.mrb[0].mxu0
      %1211 = vmatprep.mubr.bf16.mxu0 0
      %1212 = vmatmul.mubr.bf16.gmra.mrb[0].mxu0 %v341
      %v1213 = vpop.f32.mrb[0].mxu0
      %v1214 = vadd.f32 %v1032, %v1213
      %v1215 = vpop.f32.mrb[0].mxu0
      %v1216 = vpop.f32.mrb[0].mxu0
      %v1217 = vadd.f32 %v1034, %v1216
      %v1218 = vpop.f32.mrb[0].mxu0
      %1219 = vmatprep.mubr.bf16.mxu0 0
      %1220 = vmatmul.mubr.bf16.gmra.mrb[0].mxu0 %v344
      %v1221 = vpop.f32.mrb[0].mxu0
      %v1222 = vadd.f32 %v1036, %v1221
      %v1223 = vpop.f32.mrb[0].mxu0
      %v1224 = vpop.f32.mrb[0].mxu0
      %v1225 = vadd.f32 %v1038, %v1224
      %v1226 = vpop.f32.mrb[0].mxu0
      %1227 = vmatprep.mubr.bf16.mxu0 0
      %1228 = vmatmul.mubr.bf16.gmra.mrb[0].mxu0 %v347
      %v1229 = vpop.f32.mrb[0].mxu0
      %v1230 = vadd.f32 %v1040, %v1229
      %v1231 = vpop.f32.mrb[0].mxu0
      %v1232 = vpop.f32.mrb[0].mxu0
      %v1233 = vadd.f32 %v1042, %v1232
      %v1234 = vpop.f32.mrb[0].mxu0
      %1235 = vmatprep.mubr.bf16.mxu0 0
      %1236 = vmatmul.mubr.bf16.gmra.mrb[0].mxu0 %v350
      %v1237 = vpop.f32.mrb[0].mxu0
      %v1238 = vadd.f32 %v1044, %v1237
      %v1239 = vpop.f32.mrb[0].mxu0
      %v1240 = vpop.f32.mrb[0].mxu0
      %v1241 = vadd.f32 %v1046, %v1240
      %v1242 = vpop.f32.mrb[0].mxu0
      %1243 = vmatprep.mubr.bf16.mxu0 0
      %1244 = vmatmul.mubr.bf16.gmra.mrb[0].mxu0 %v353
      %v1245 = vpop.f32.mrb[0].mxu0
      %v1246 = vadd.f32 %v1048, %v1245
      %v1247 = vpop.f32.mrb[0].mxu0
      %v1248 = vpop.f32.mrb[0].mxu0
      %v1249 = vadd.f32 %v1050, %v1248
      %v1250 = vpop.f32.mrb[0].mxu0
      %1251 = vmatprep.mubr.bf16.mxu0 0
      %1252 = vmatmul.mubr.bf16.gmra.mrb[0].mxu0 %v356
      %v1253 = vpop.f32.mrb[0].mxu0
      %v1254 = vadd.f32 %v1052, %v1253
      %v1255 = vpop.f32.mrb[0].mxu0
      %v1256 = vpop.f32.mrb[0].mxu0
      %v1257 = vadd.f32 %v1054, %v1256
      %v1258 = vpop.f32.mrb[0].mxu0
      %1259 = vmatprep.mubr.bf16.mxu0 0
      %1260 = vmatmul.mubr.bf16.gmra.mrb[0].mxu0 %v359
      %v1261 = vpop.f32.mrb[0].mxu0
      %v1262 = vadd.f32 %v1056, %v1261
      %v1263 = vpop.f32.mrb[0].mxu0
      %v1264 = vpop.f32.mrb[0].mxu0
      %v1265 = vadd.f32 %v1058, %v1264
      %v1266 = vpop.f32.mrb[0].mxu0
      %1267 = vmatprep.mubr.bf16.mxu0 0
      %1268 = vmatmul.mubr.bf16.gmra.mrb[0].mxu0 %v362
      %v1269 = vpop.f32.mrb[0].mxu0
      %v1270 = vadd.f32 %v1060, %v1269
      %v1271 = vpop.f32.mrb[0].mxu0
      %v1272 = vpop.f32.mrb[0].mxu0
      %v1273 = vadd.f32 %v1062, %v1272
      %v1274 = vpop.f32.mrb[0].mxu0
      %1275 = vmatprep.mubr.bf16.mxu0 0
      %1276 = vmatmul.mubr.bf16.gmra.mrb[0].mxu0 %v365
      %v1277 = vpop.f32.mrb[0].mxu0
      %v1278 = vadd.f32 %v1064, %v1277
      %v1279 = vpop.f32.mrb[0].mxu0
      %v1280 = vpop.f32.mrb[0].mxu0
      %v1281 = vadd.f32 %v1066, %v1280
      %v1282 = vpop.f32.mrb[0].mxu0
      %1283 = vmatprep.mubr.bf16.mxu0 0
      %1284 = vmatmul.mubr.bf16.gmra.mrb[0].mxu0 %v368
      %v1285 = vpop.f32.mrb[0].mxu0
      %v1286 = vadd.f32 %v1065, %v1285
      %v1287 = vpop.f32.mrb[0].mxu0
      %v1288 = vpop.f32.mrb[0].mxu0
      %v1289 = vpop.f32.mrb[0].mxu0
      %1290 = vdwg.mxu0
      %v1291 = vrot.slane %v604, 7
      %v1292 = vrot.slane %v607, 7
      %v1293 = vrot.slane %v612, 7
      %v1294 = vsel %vm948, %v1291, %v748
      %v1295 = vsel %vm948, %v1292, %v1291
      %v1296 = vsel %vm948, %v1293, %v1292
      %v1334 = vrot.slane %v612, 1
      %v1335 = vrot.slane %v615, 1
      %v1336 = vsel %vm993, %v1334, %v1335
      %v1337 = vrot.slane %v620, 1
      %v1338 = vsel %vm993, %v1335, %v1337
      %v1339 = vrot.slane %v623, 1
      %v1340 = vsel %vm993, %v1337, %v1339
      %v1341 = vrot.slane %v628, 1
      %v1342 = vsel %vm993, %v1339, %v1341
      %v1343 = vrot.slane %v631, 1
      %v1344 = vsel %vm993, %v1341, %v1343
      %v1345 = vrot.slane %v636, 1
      %v1346 = vsel %vm993, %v1343, %v1345
      %v1347 = vrot.slane %v639, 1
      %v1348 = vsel %vm993, %v1345, %v1347
      %v1349 = vrot.slane %v644, 1
      %v1350 = vsel %vm993, %v1347, %v1349
      %v1351 = vrot.slane %v647, 1
      %v1352 = vsel %vm993, %v1349, %v1351
      %v1353 = vrot.slane %v652, 1
      %v1354 = vsel %vm993, %v1351, %v1353
      %v1355 = vrot.slane %v655, 1
      %v1356 = vsel %vm993, %v1353, %v1355
      %v1357 = vrot.slane %v660, 1
      %v1358 = vsel %vm993, %v1355, %v1357
      %v1359 = vrot.slane %v663, 1
      %v1360 = vsel %vm993, %v1357, %v1359
      %v1361 = vrot.slane %v668, 1
      %v1362 = vsel %vm993, %v1359, %v1361
      %v1363 = vrot.slane %v671, 1
      %v1364 = vsel %vm993, %v1361, %v1363
      %v1365 = vrot.slane %v676, 1
      %v1366 = vsel %vm993, %v1363, %v1365
      %v1367 = vrot.slane %v679, 1
      %v1368 = vsel %vm993, %v1365, %v1367
      %v1369 = vrot.slane %v684, 1
      %v1370 = vsel %vm993, %v1367, %v1369
      %v1371 = vrot.slane %v687, 1
      %v1372 = vsel %vm993, %v1369, %v1371
      %v1373 = vrot.slane %v692, 1
      %v1374 = vsel %vm993, %v1371, %v1373
      %v1375 = vrot.slane %v695, 1
      %v1376 = vsel %vm993, %v1373, %v1375
      %v1377 = vrot.slane %v700, 1
      %v1378 = vsel %vm993, %v1375, %v1377
      %v1379 = vrot.slane %v703, 1
      %v1380 = vsel %vm993, %v1377, %v1379
      %v1381 = vrot.slane %v708, 1
      %v1382 = vsel %vm993, %v1379, %v1381
      %v1383 = vrot.slane %v711, 1
      %v1384 = vsel %vm993, %v1381, %v1383
      %v1385 = vrot.slane %v716, 1
      %v1386 = vsel %vm993, %v1383, %v1385
      %v1387 = vrot.slane %v719, 1
      %v1388 = vsel %vm993, %v1385, %v1387
      %v1389 = vrot.slane %v724, 1
      %v1390 = vsel %vm993, %v1387, %v1389
      %v1391 = vrot.slane %v727, 1
      %v1392 = vsel %vm993, %v1389, %v1391
      %v1393 = vrot.slane %v732, 1
      %v1394 = vsel %vm993, %v1391, %v1393
      %v1395 = vrot.slane %v735, 1
      %v1396 = vsel %vm993, %v1393, %v1395
      %v1397 = vrot.slane %v740, 1
      %v1398 = vsel %vm993, %v1395, %v1397
      %v1399 = vrot.slane %v743, 1
      %v1400 = vsel %vm993, %v1397, %v1399
      %v1401 = vrot.slane %v1294, 1
      %v1402 = vsel %vm993, %v1399, %v1401
      %v1403 = vrot.slane %v1295, 1
      %v1404 = vsel %vm993, %v1401, %v1403
      %v1405 = vrot.slane %v1296, 1
      %v1406 = vsel %vm993, %v1403, %v1405
      %v1444 = vadd.f32 %v1142, %v1336
      %v1445 = vadd.f32 %v1145, %v1338
      %v1446 = vadd.f32 %v1150, %v1340
      %v1447 = vadd.f32 %v1153, %v1342
      %v1448 = vadd.f32 %v1158, %v1344
      %v1449 = vadd.f32 %v1161, %v1346
      %v1450 = vadd.f32 %v1166, %v1348
      %v1451 = vadd.f32 %v1169, %v1350
      %v1452 = vadd.f32 %v1174, %v1352
      %v1453 = vadd.f32 %v1177, %v1354
      %v1454 = vadd.f32 %v1182, %v1356
      %v1455 = vadd.f32 %v1185, %v1358
      %v1456 = vadd.f32 %v1190, %v1360
      %v1457 = vadd.f32 %v1193, %v1362
      %v1458 = vadd.f32 %v1198, %v1364
      %v1459 = vadd.f32 %v1201, %v1366
      %v1460 = vadd.f32 %v1206, %v1368
      %v1461 = vadd.f32 %v1209, %v1370
      %v1462 = vadd.f32 %v1214, %v1372
      %v1463 = vadd.f32 %v1217, %v1374
      %v1464 = vadd.f32 %v1222, %v1376
      %v1465 = vadd.f32 %v1225, %v1378
      %v1466 = vadd.f32 %v1230, %v1380
      %v1467 = vadd.f32 %v1233, %v1382
      %v1468 = vadd.f32 %v1238, %v1384
      %v1469 = vadd.f32 %v1241, %v1386
      %v1470 = vadd.f32 %v1246, %v1388
      %v1471 = vadd.f32 %v1249, %v1390
      %v1472 = vadd.f32 %v1254, %v1392
      %v1473 = vadd.f32 %v1257, %v1394
      %v1474 = vadd.f32 %v1262, %v1396
      %v1475 = vadd.f32 %v1265, %v1398
      %v1476 = vadd.f32 %v1270, %v1400
      %v1477 = vadd.f32 %v1273, %v1402
      %v1478 = vadd.f32 %v1278, %v1404
      %v1479 = vadd.f32 %v1281, %v1406
      %v1480 = vadd.f32 %v1286, %v1405
      %v1481 = vrot.slane %v799, 7
      %v1482 = vrot.slane %v802, 7
      %v1483 = vrot.slane %v807, 7
      %v1484 = vsel %vm948, %v1481, %v943
      %v1485 = vsel %vm948, %v1482, %v1481
      %v1486 = vsel %vm948, %v1483, %v1482
      %v1524 = vrot.slane %v807, 2
      %v1525 = vrot.slane %v810, 2
      %v1526 = vsel %vm370, %v1524, %v1525
      %v1527 = vrot.slane %v815, 2
      %v1528 = vsel %vm370, %v1525, %v1527
      %v1529 = vrot.slane %v818, 2
      %v1530 = vsel %vm370, %v1527, %v1529
      %v1531 = vrot.slane %v823, 2
      %v1532 = vsel %vm370, %v1529, %v1531
      %v1533 = vrot.slane %v826, 2
      %v1534 = vsel %vm370, %v1531, %v1533
      %v1535 = vrot.slane %v831, 2
      %v1536 = vsel %vm370, %v1533, %v1535
      %v1537 = vrot.slane %v834, 2
      %v1538 = vsel %vm370, %v1535, %v1537
      %v1539 = vrot.slane %v839, 2
      %v1540 = vsel %vm370, %v1537, %v1539
      %v1541 = vrot.slane %v842, 2
      %v1542 = vsel %vm370, %v1539, %v1541
      %v1543 = vrot.slane %v847, 2
      %v1544 = vsel %vm370, %v1541, %v1543
      %v1545 = vrot.slane %v850, 2
      %v1546 = vsel %vm370, %v1543, %v1545
      %v1547 = vrot.slane %v855, 2
      %v1548 = vsel %vm370, %v1545, %v1547
      %v1549 = vrot.slane %v858, 2
      %v1550 = vsel %vm370, %v1547, %v1549
      %v1551 = vrot.slane %v863, 2
      %v1552 = vsel %vm370, %v1549, %v1551
      %v1553 = vrot.slane %v866, 2
      %v1554 = vsel %vm370, %v1551, %v1553
      %v1555 = vrot.slane %v871, 2
      %v1556 = vsel %vm370, %v1553, %v1555
      %v1557 = vrot.slane %v874, 2
      %v1558 = vsel %vm370, %v1555, %v1557
      %v1559 = vrot.slane %v879, 2
      %v1560 = vsel %vm370, %v1557, %v1559
      %v1561 = vrot.slane %v882, 2
      %v1562 = vsel %vm370, %v1559, %v1561
      %v1563 = vrot.slane %v887, 2
      %v1564 = vsel %vm370, %v1561, %v1563
      %v1565 = vrot.slane %v890, 2
      %v1566 = vsel %vm370, %v1563, %v1565
      %v1567 = vrot.slane %v895, 2
      %v1568 = vsel %vm370, %v1565, %v1567
      %v1569 = vrot.slane %v898, 2
      %v1570 = vsel %vm370, %v1567, %v1569
      %v1571 = vrot.slane %v903, 2
      %v1572 = vsel %vm370, %v1569, %v1571
      %v1573 = vrot.slane %v906, 2
      %v1574 = vsel %vm370, %v1571, %v1573
      %v1575 = vrot.slane %v911, 2
      %v1576 = vsel %vm370, %v1573, %v1575
      %v1577 = vrot.slane %v914, 2
      %v1578 = vsel %vm370, %v1575, %v1577
      %v1579 = vrot.slane %v919, 2
      %v1580 = vsel %vm370, %v1577, %v1579
      %v1581 = vrot.slane %v922, 2
      %v1582 = vsel %vm370, %v1579, %v1581
      %v1583 = vrot.slane %v927, 2
      %v1584 = vsel %vm370, %v1581, %v1583
      %v1585 = vrot.slane %v930, 2
      %v1586 = vsel %vm370, %v1583, %v1585
      %v1587 = vrot.slane %v935, 2
      %v1588 = vsel %vm370, %v1585, %v1587
      %v1589 = vrot.slane %v938, 2
      %v1590 = vsel %vm370, %v1587, %v1589
      %v1591 = vrot.slane %v1484, 2
      %v1592 = vsel %vm370, %v1589, %v1591
      %v1593 = vrot.slane %v1485, 2
      %v1594 = vsel %vm370, %v1591, %v1593
      %v1595 = vrot.slane %v1486, 2
      %v1596 = vsel %vm370, %v1593, %v1595
      %v1634 = vadd.f32 %v1444, %v1526
      %v1635 = vadd.f32 %v1445, %v1528
      %v1636 = vadd.f32 %v1446, %v1530
      %v1637 = vadd.f32 %v1447, %v1532
      %v1638 = vadd.f32 %v1448, %v1534
      %v1639 = vadd.f32 %v1449, %v1536
      %v1640 = vadd.f32 %v1450, %v1538
      %v1641 = vadd.f32 %v1451, %v1540
      %v1642 = vadd.f32 %v1452, %v1542
      %v1643 = vadd.f32 %v1453, %v1544
      %v1644 = vadd.f32 %v1454, %v1546
      %v1645 = vadd.f32 %v1455, %v1548
      %v1646 = vadd.f32 %v1456, %v1550
      %v1647 = vadd.f32 %v1457, %v1552
      %v1648 = vadd.f32 %v1458, %v1554
      %v1649 = vadd.f32 %v1459, %v1556
      %v1650 = vadd.f32 %v1460, %v1558
      %v1651 = vadd.f32 %v1461, %v1560
      %v1652 = vadd.f32 %v1462, %v1562
      %v1653 = vadd.f32 %v1463, %v1564
      %v1654 = vadd.f32 %v1464, %v1566
      %v1655 = vadd.f32 %v1465, %v1568
      %v1656 = vadd.f32 %v1466, %v1570
      %v1657 = vadd.f32 %v1467, %v1572
      %v1658 = vadd.f32 %v1468, %v1574
      %v1659 = vadd.f32 %v1469, %v1576
      %v1660 = vadd.f32 %v1470, %v1578
      %v1661 = vadd.f32 %v1471, %v1580
      %v1662 = vadd.f32 %v1472, %v1582
      %v1663 = vadd.f32 %v1473, %v1584
      %v1664 = vadd.f32 %v1474, %v1586
      %v1665 = vadd.f32 %v1475, %v1588
      %v1666 = vadd.f32 %v1476, %v1590
      %v1667 = vadd.f32 %v1477, %v1592
      %v1668 = vadd.f32 %v1478, %v1594
      %v1669 = vadd.f32 %v1479, %v1596
      %v1670 = vadd.f32 %v1480, %v1595
      %v1671 = vld [vmem:[%s2] sm:$0x1]
      %v1673 = vlaneseq
      %v1674 = vshrl.u32 %v1673, 7
      %v1675 = vsub.s32 0, %v1674
      %v1676 = vrot.slane %v1671, %v1675
      %v1678 = vadd.f32 %v1634, %v1676
      %v1679 = vadd.f32 %v1635, %v1676
      %v1680 = vadd.f32 %v1636, %v1676
      %v1681 = vadd.f32 %v1637, %v1676
      %v1682 = vadd.f32 %v1638, %v1676
      %v1683 = vadd.f32 %v1639, %v1676
      %v1684 = vadd.f32 %v1640, %v1676
      %v1685 = vadd.f32 %v1641, %v1676
      %v1686 = vadd.f32 %v1642, %v1676
      %v1687 = vadd.f32 %v1643, %v1676
      %v1688 = vadd.f32 %v1644, %v1676
      %v1689 = vadd.f32 %v1645, %v1676
      %v1690 = vadd.f32 %v1646, %v1676
      %v1691 = vadd.f32 %v1647, %v1676
      %v1692 = vadd.f32 %v1648, %v1676
      %v1693 = vadd.f32 %v1649, %v1676
      %v1694 = vadd.f32 %v1650, %v1676
      %v1695 = vadd.f32 %v1651, %v1676
      %v1696 = vadd.f32 %v1652, %v1676
      %v1697 = vadd.f32 %v1653, %v1676
      %v1698 = vadd.f32 %v1654, %v1676
      %v1699 = vadd.f32 %v1655, %v1676
      %v1700 = vadd.f32 %v1656, %v1676
      %v1701 = vadd.f32 %v1657, %v1676
      %v1702 = vadd.f32 %v1658, %v1676
      %v1703 = vadd.f32 %v1659, %v1676
      %v1704 = vadd.f32 %v1660, %v1676
      %v1705 = vadd.f32 %v1661, %v1676
      %v1706 = vadd.f32 %v1662, %v1676
      %v1707 = vadd.f32 %v1663, %v1676
      %v1708 = vadd.f32 %v1664, %v1676
      %v1709 = vadd.f32 %v1665, %v1676
      %v1710 = vadd.f32 %v1666, %v1676
      %v1711 = vadd.f32 %v1667, %v1676
      %v1712 = vadd.f32 %v1668, %v1676
      %v1713 = vadd.f32 %v1669, %v1676
      %v1714 = vadd.f32 %v1670, %v1676
      %v1715 = vmax.f32 %v1678, 0.0
      %v1716 = vmax.f32 %v1679, 0.0
      %v1717 = vmax.f32 %v1680, 0.0
      %v1718 = vmax.f32 %v1681, 0.0
      %v1719 = vmax.f32 %v1682, 0.0
      %v1720 = vmax.f32 %v1683, 0.0
      %v1721 = vmax.f32 %v1684, 0.0
      %v1722 = vmax.f32 %v1685, 0.0
      %v1723 = vmax.f32 %v1686, 0.0
      %v1724 = vmax.f32 %v1687, 0.0
      %v1725 = vmax.f32 %v1688, 0.0
      %v1726 = vmax.f32 %v1689, 0.0
      %v1727 = vmax.f32 %v1690, 0.0
      %v1728 = vmax.f32 %v1691, 0.0
      %v1729 = vmax.f32 %v1692, 0.0
      %v1730 = vmax.f32 %v1693, 0.0
      %v1731 = vmax.f32 %v1694, 0.0
      %v1732 = vmax.f32 %v1695, 0.0
      %v1733 = vmax.f32 %v1696, 0.0
      %v1734 = vmax.f32 %v1697, 0.0
      %v1735 = vmax.f32 %v1698, 0.0
      %v1736 = vmax.f32 %v1699, 0.0
      %v1737 = vmax.f32 %v1700, 0.0
      %v1738 = vmax.f32 %v1701, 0.0
      %v1739 = vmax.f32 %v1702, 0.0
      %v1740 = vmax.f32 %v1703, 0.0
      %v1741 = vmax.f32 %v1704, 0.0
      %v1742 = vmax.f32 %v1705, 0.0
      %v1743 = vmax.f32 %v1706, 0.0
      %v1744 = vmax.f32 %v1707, 0.0
      %v1745 = vmax.f32 %v1708, 0.0
      %v1746 = vmax.f32 %v1709, 0.0
      %v1747 = vmax.f32 %v1710, 0.0
      %v1748 = vmax.f32 %v1711, 0.0
      %v1749 = vmax.f32 %v1712, 0.0
      %v1750 = vmax.f32 %v1713, 0.0
      %v1751 = vmax.f32 %v1714, 0.0
      %v1752 = vpack.c.bf16 %v1716, %v1715
      %v1753 = vpack.c.bf16 %v1718, %v1717
      %v1754 = vpack.c.bf16 %v1720, %v1719
      %v1755 = vpack.c.bf16 %v1722, %v1721
      %v1756 = vpack.c.bf16 %v1724, %v1723
      %v1757 = vpack.c.bf16 %v1726, %v1725
      %v1758 = vpack.c.bf16 %v1728, %v1727
      %v1759 = vpack.c.bf16 %v1730, %v1729
      %v1760 = vpack.c.bf16 %v1732, %v1731
      %v1761 = vpack.c.bf16 %v1734, %v1733
      %v1762 = vpack.c.bf16 %v1736, %v1735
      %v1763 = vpack.c.bf16 %v1738, %v1737
      %v1764 = vpack.c.bf16 %v1740, %v1739
      %v1765 = vpack.c.bf16 %v1742, %v1741
      %v1766 = vpack.c.bf16 %v1744, %v1743
      %v1767 = vpack.c.bf16 %v1746, %v1745
      %v1768 = vpack.c.bf16 %v1748, %v1747
      %v1769 = vpack.c.bf16 %v1750, %v1749
      %v1770 = vpack.c.bf16 %v1751, %v1751
      %v1790 = vunpack.c.l.b16 %v1752
      %v1791 = vunpack.c.h.b16 %v1752
      %v1792 = vunpack.c.l.b16 %v1753
      %v1793 = vunpack.c.h.b16 %v1753
      %v1794 = vunpack.c.l.b16 %v1754
      %v1795 = vunpack.c.h.b16 %v1754
      %v1796 = vunpack.c.l.b16 %v1755
      %v1797 = vunpack.c.h.b16 %v1755
      %v1798 = vunpack.c.l.b16 %v1756
      %v1799 = vunpack.c.h.b16 %v1756
      %v1800 = vunpack.c.l.b16 %v1757
      %v1801 = vunpack.c.h.b16 %v1757
      %v1802 = vunpack.c.l.b16 %v1758
      %v1803 = vunpack.c.h.b16 %v1758
      %v1804 = vunpack.c.l.b16 %v1759
      %v1805 = vunpack.c.h.b16 %v1759
      %v1806 = vunpack.c.l.b16 %v1760
      %v1807 = vunpack.c.h.b16 %v1760
      %v1808 = vunpack.c.l.b16 %v1761
      %v1809 = vunpack.c.h.b16 %v1761
      %v1810 = vunpack.c.l.b16 %v1762
      %v1811 = vunpack.c.h.b16 %v1762
      %v1812 = vunpack.c.l.b16 %v1763
      %v1813 = vunpack.c.h.b16 %v1763
      %v1814 = vunpack.c.l.b16 %v1764
      %v1815 = vunpack.c.h.b16 %v1764
      %v1816 = vunpack.c.l.b16 %v1765
      %v1817 = vunpack.c.h.b16 %v1765
      %v1818 = vunpack.c.l.b16 %v1766
      %v1819 = vunpack.c.h.b16 %v1766
      %v1820 = vunpack.c.l.b16 %v1767
      %v1821 = vunpack.c.h.b16 %v1767
      %v1822 = vunpack.c.l.b16 %v1768
      %v1823 = vunpack.c.h.b16 %v1768
      %v1824 = vunpack.c.l.b16 %v1769
      %v1825 = vunpack.c.h.b16 %v1769
      %v1826 = vunpack.c.l.b16 %v1770
      %v1827 = vpack.c.b16 %v1790, %v1790
      %v1828 = vpack.c.b16 %v1791, %v1791
      %v1829 = vpack.c.b16 %v1792, %v1792
      %v1830 = vpack.c.b16 %v1793, %v1793
      %v1831 = vpack.c.b16 %v1794, %v1794
      %v1832 = vpack.c.b16 %v1795, %v1795
      %v1833 = vpack.c.b16 %v1796, %v1796
      %v1834 = vpack.c.b16 %v1797, %v1797
      %v1835 = vpack.c.b16 %v1798, %v1798
      %v1836 = vpack.c.b16 %v1799, %v1799
      %v1837 = vpack.c.b16 %v1800, %v1800
      %v1838 = vpack.c.b16 %v1801, %v1801
      %v1839 = vpack.c.b16 %v1802, %v1802
      %v1840 = vpack.c.b16 %v1803, %v1803
      %v1841 = vpack.c.b16 %v1804, %v1804
      %v1842 = vpack.c.b16 %v1805, %v1805
      %v1843 = vpack.c.b16 %v1806, %v1806
      %v1844 = vpack.c.b16 %v1807, %v1807
      %v1845 = vpack.c.b16 %v1808, %v1808
      %v1846 = vpack.c.b16 %v1809, %v1809
      %v1847 = vpack.c.b16 %v1810, %v1810
      %v1848 = vpack.c.b16 %v1811, %v1811
      %v1849 = vpack.c.b16 %v1812, %v1812
      %v1850 = vpack.c.b16 %v1813, %v1813
      %v1851 = vpack.c.b16 %v1814, %v1814
      %v1852 = vpack.c.b16 %v1815, %v1815
      %v1853 = vpack.c.b16 %v1816, %v1816
      %v1854 = vpack.c.b16 %v1817, %v1817
      %v1855 = vpack.c.b16 %v1818, %v1818
      %v1856 = vpack.c.b16 %v1819, %v1819
      %v1857 = vpack.c.b16 %v1820, %v1820
      %v1858 = vpack.c.b16 %v1821, %v1821
      %v1859 = vpack.c.b16 %v1822, %v1822
      %v1860 = vpack.c.b16 %v1823, %v1823
      %v1861 = vpack.c.b16 %v1824, %v1824
      %v1862 = vpack.c.b16 %v1825, %v1825
      %v1863 = vpack.c.b16 %v1826, %v1826
      %vm1901 = vcmask 125952
      %1902 = vst.msk [vmem:[%s170] sm:$0xf] %vm1901, %v1827
      %1903 = vst.msk [vmem:[%s170 + $0x4] sm:$0xf] %vm1901, %v1828
      %1904 = vst.msk [vmem:[%s170 + $0x8] sm:$0xf] %vm1901, %v1829
      %1905 = vst.msk [vmem:[%s170 + $0xc] sm:$0xf] %vm1901, %v1830
      %1906 = vst.msk [vmem:[%s170 + $0x10] sm:$0xf] %vm1901, %v1831
      %1907 = vst.msk [vmem:[%s170 + $0x14] sm:$0xf] %vm1901, %v1832
      %1908 = vst.msk [vmem:[%s170 + $0x18] sm:$0xf] %vm1901, %v1833
      %1909 = vst.msk [vmem:[%s170 + $0x1c] sm:$0xf] %vm1901, %v1834
      %1910 = vst.msk [vmem:[%s170 + $0x20] sm:$0xf] %vm1901, %v1835
      %1911 = vst.msk [vmem:[%s170 + $0x24] sm:$0xf] %vm1901, %v1836
      %1912 = vst.msk [vmem:[%s170 + $0x28] sm:$0xf] %vm1901, %v1837
      %1913 = vst.msk [vmem:[%s170 + $0x2c] sm:$0xf] %vm1901, %v1838
      %1914 = vst.msk [vmem:[%s170 + $0x30] sm:$0xf] %vm1901, %v1839
      %1915 = vst.msk [vmem:[%s170 + $0x34] sm:$0xf] %vm1901, %v1840
      %1916 = vst.msk [vmem:[%s170 + $0x38] sm:$0xf] %vm1901, %v1841
      %1917 = vst.msk [vmem:[%s170 + $0x3c] sm:$0xf] %vm1901, %v1842
      %1918 = vst.msk [vmem:[%s170 + $0x40] sm:$0xf] %vm1901, %v1843
      %1919 = vst.msk [vmem:[%s170 + $0x44] sm:$0xf] %vm1901, %v1844
      %1920 = vst.msk [vmem:[%s170 + $0x48] sm:$0xf] %vm1901, %v1845
      %1921 = vst.msk [vmem:[%s170 + $0x4c] sm:$0xf] %vm1901, %v1846
      %1922 = vst.msk [vmem:[%s170 + $0x50] sm:$0xf] %vm1901, %v1847
      %1923 = vst.msk [vmem:[%s170 + $0x54] sm:$0xf] %vm1901, %v1848
      %1924 = vst.msk [vmem:[%s170 + $0x58] sm:$0xf] %vm1901, %v1849
      %1925 = vst.msk [vmem:[%s170 + $0x5c] sm:$0xf] %vm1901, %v1850
      %1926 = vst.msk [vmem:[%s170 + $0x60] sm:$0xf] %vm1901, %v1851
      %1927 = vst.msk [vmem:[%s170 + $0x64] sm:$0xf] %vm1901, %v1852
      %1928 = vst.msk [vmem:[%s170 + $0x68] sm:$0xf] %vm1901, %v1853
      %1929 = vst.msk [vmem:[%s170 + $0x6c] sm:$0xf] %vm1901, %v1854
      %1930 = vst.msk [vmem:[%s170 + $0x70] sm:$0xf] %vm1901, %v1855
      %1931 = vst.msk [vmem:[%s170 + $0x74] sm:$0xf] %vm1901, %v1856
      %1932 = vst.msk [vmem:[%s170 + $0x78] sm:$0xf] %vm1901, %v1857
      %1933 = vst.msk [vmem:[%s170 + $0x7c] sm:$0xf] %vm1901, %v1858
      %1934 = vst.msk [vmem:[%s170 + $0x80] sm:$0xf] %vm1901, %v1859
      %1935 = vst.msk [vmem:[%s170 + $0x84] sm:$0xf] %vm1901, %v1860
      %1936 = vst.msk [vmem:[%s170 + $0x88] sm:$0xf] %vm1901, %v1861
      %1937 = vst.msk [vmem:[%s170 + $0x8c] sm:$0xf] %vm1901, %v1862
      %vm1938 = vcmask 122880
      %vm1939 = vsmask.f32 256
      %vm1940 = vmand %vm1938, %vm1939
      %v1941 = vld [vmem:[%s170 + $0x90] sm:$0x1]
      %v1942 = vsel %vm1940, %v1863, %v1941
      %1943 = vst [vmem:[%s170 + $0x90] sm:$0x1] %v1942
      %p1944 = scmp.lt.s32.totalorder %s14, 1
      %s1945 = scalar_select %p1944, %s14, 1
      %s1946 = smul.addr %s1945, 37
      %s1947 = smul.addr %s1946, 4
      %s1948 = scalar_lea.vmem %s3, %s1947
      // Predicated region
      $region33: #{encoder_decoder_forward.9} parent=31 // pred_check
        %p1949 = pneg %p100
      $region34: #{encoder_decoder_forward.9} parent=31 // pred_check_branch
        %1951 = sbr.rel (%p1949) target = $region36
      $region35: #{encoder_decoder_forward.9} parent=31 // pred_region
        _
      $region36: #{encoder_decoder_forward.9} parent=31 // pred_fallthru
        _
    $region32: #{encoder_decoder_forward.9} parent=5 // pred_fallthru
      _
    %p1952 = scmp.le.s32.totalorder 2, %s9
    // Predicated region
    $region37: #{encoder_decoder_forward.9} parent=5 // pred_check
      %p1953 = pneg %p1952
    $region38: #{encoder_decoder_forward.9} parent=5 // pred_check_branch
      %1955 = sbr.rel (%p1953) target = $region40
    $region39: #{encoder_decoder_forward.9} parent=5 // pred_region
      %s1956 = ssub.s32 %s9, 2
      // Predicated region
      $region41: #{encoder_decoder_forward.9} parent=39 // pred_check
        %p1957 = pneg %p106
      $region42: #{encoder_decoder_forward.9} parent=39 // pred_check_branch
        %1959 = sbr.rel (%p1957) target = $region44
      $region43: #{encoder_decoder_forward.9} parent=39 // pred_region
        %p1960 = scmp.lt.s32.totalorder %s15, 1
        %s1961 = scalar_select %p1960, %s15, 1
        %s1962 = smul.addr %s1961, 37
        %s1963 = smul.addr %s1962, 4
        %s1964 = scalar_lea.vmem %s3, %s1963
      $region44: #{encoder_decoder_forward.9} parent=39 // pred_fallthru
        _
    $region40: #{encoder_decoder_forward.9} parent=5 // pred_fallthru
      _
  $region6: #{encoder_decoder_forward.9} parent=0 // loop_footer
    %s13 = sadd.s32 1, %s9
  $region7: #{encoder_decoder_forward.9} parent=0 // loop_footer_branch
    %8 = sbr.rel target = $region3
  $region8: #{encoder_decoder_forward.9} parent=0 // loop_exit
    _

// kernel: encoder_decoder_forward.10
$region0: #{encoder_decoder_forward.10}
  #allocation0 [shape = 'u32[]', space=smem, size = 0x4, offset = 0x4, fixed_abs, tag = 'smem constant byte address 0x4 - core index']
  #allocation1 [shape = 'u32[144,128]{1,0:T(1,128)}', space=vmem, size = 0x12000, scoped, tag = 'internal scratch']
  %s0 = inlined_call_operand.vmem [shape: bf16[2,81,64], index: 0, kind: input, shape index: {}]
  %s1 = inlined_call_operand.vmem [shape: bf16[4,64,32], index: 1, kind: input, shape index: {}]
  %s2 = inlined_call_operand.vmem [shape: f32[1,32], index: 2, kind: input, shape index: {}]
  %s3 = inlined_call_operand.vmem [shape: bf16[2,81,32], index: 3, kind: output, shape index: {}]
  %s4 = sld [smem:[#allocation0]]
  $region45: #{encoder_decoder_forward.10} parent=0
    _
  %s6 = ssub.s32 1, %s4
  %s7 = scalar_select 0, %s6, %s4
  loop: start=0, step=1, limit=4
  $region2: #{encoder_decoder_forward.10} parent=0 // loop_pre_header
    _
  $region3: #{encoder_decoder_forward.10} parent=0 // loop_header
    %s9 = sphi 0, %s13
    %p10 = scmp.ge.s32.totalorder %s9, 4
    %s19 = sphi 0, %s21
    %s22 = sphi 0, %s19
    %s23 = sphi 0, %s22
    %s39 = sphi 0, %s23
    %s43 = sphi 0, %s43
    %s45 = sphi 0, %s43
    %s46 = sphi 0, %s45
    %s60 = sphi 0, %s46
    %s64 = sphi 0, %s64
    %s66 = sphi 0, %s64
    %s67 = sphi 0, %s66
    %s81 = sphi 0, %s67
    %s87 = sphi 0, %s89
    %s90 = sphi 0, %s87
    %s91 = sphi 0, %s90
    %s107 = sphi 0, %s91
  $region4: #{encoder_decoder_forward.10} parent=0 // loop_header_branch
    %12 = sbr.rel (%p10) target = $region8
  $region5: #{encoder_decoder_forward.10} parent=0 // loop_body
    %s14 = ssub.s32 %s9, 1
    %s15 = ssub.s32 %s9, 2
    %s16 = sadd.s32 %s9, 1
    %s17 = ssub.s32 %s9, %s16
    %p18 = scmp.eq.s32.totalorder %s17, 0
    %s20 = sadd.s32 %s19, 1
    %s21 = scalar_select %p18, %s19, %s20
    %p24 = pneg %p18
    %p25 = scmp.eq.s32.totalorder %s9, 1
    %p26 = por %p24, %p25
    %p27 = scmp.ne.s32.totalorder %s19, %s22
    %p28 = scmp.eq.s32.totalorder %s9, 0
    %p29 = por %p27, %p28
    %p30 = scmp.ne.s32.totalorder %s19, %s22
    %p31 = scmp.eq.s32.totalorder %s14, 1
    %p32 = por %p30, %p31
    %p33 = scmp.ne.s32.totalorder %s22, %s23
    %p34 = scmp.eq.s32.totalorder %s14, 0
    %p35 = por %p33, %p34
    %p36 = scmp.ne.s32.totalorder %s22, %s23
    %p37 = scmp.eq.s32.totalorder %s15, 1
    %p38 = por %p36, %p37
    %p40 = scmp.ne.s32.totalorder %s23, %s39
    %p41 = scmp.eq.s32.totalorder %s15, 0
    %p42 = por %p40, %p41
    %s44 = sadd.s32 %s43, 1
    %p47 = scmp.eq.s32.totalorder %s9, 1
    %p48 = scmp.ne.s32.totalorder %s43, %s45
    %p49 = scmp.eq.s32.totalorder %s9, 0
    %p50 = por %p48, %p49
    %p51 = scmp.ne.s32.totalorder %s43, %s45
    %p52 = scmp.eq.s32.totalorder %s14, 1
    %p53 = por %p51, %p52
    %p54 = scmp.ne.s32.totalorder %s45, %s46
    %p55 = scmp.eq.s32.totalorder %s14, 0
    %p56 = por %p54, %p55
    %p57 = scmp.ne.s32.totalorder %s45, %s46
    %p58 = scmp.eq.s32.totalorder %s15, 1
    %p59 = por %p57, %p58
    %p61 = scmp.ne.s32.totalorder %s46, %s60
    %p62 = scmp.eq.s32.totalorder %s15, 0
    %p63 = por %p61, %p62
    %s65 = sadd.s32 %s64, 1
    %p68 = scmp.eq.s32.totalorder %s9, 1
    %p69 = scmp.ne.s32.totalorder %s64, %s66
    %p70 = scmp.eq.s32.totalorder %s9, 0
    %p71 = por %p69, %p70
    %p72 = scmp.ne.s32.totalorder %s64, %s66
    %p73 = scmp.eq.s32.totalorder %s14, 1
    %p74 = por %p72, %p73
    %p75 = scmp.ne.s32.totalorder %s66, %s67
    %p76 = scmp.eq.s32.totalorder %s14, 0
    %p77 = por %p75, %p76
    %p78 = scmp.ne.s32.totalorder %s66, %s67
    %p79 = scmp.eq.s32.totalorder %s15, 1
    %p80 = por %p78, %p79
    %p82 = scmp.ne.s32.totalorder %s67, %s81
    %p83 = scmp.eq.s32.totalorder %s15, 0
    %p84 = por %p82, %p83
    %s85 = ssub.s32 %s9, %s16
    %p86 = scmp.eq.s32.totalorder %s85, 0
    %s88 = sadd.s32 %s87, 1
    %s89 = scalar_select %p86, %s87, %s88
    %p92 = pneg %p86
    %p93 = scmp.eq.s32.totalorder %s9, 1
    %p94 = por %p92, %p93
    %p95 = scmp.ne.s32.totalorder %s87, %s90
    %p96 = scmp.eq.s32.totalorder %s9, 0
    %p97 = por %p95, %p96
    %p98 = scmp.ne.s32.totalorder %s87, %s90
    %p99 = scmp.eq.s32.totalorder %s14, 1
    %p100 = por %p98, %p99
    %p101 = scmp.ne.s32.totalorder %s90, %s91
    %p102 = scmp.eq.s32.totalorder %s14, 0
    %p103 = por %p101, %p102
    %p104 = scmp.ne.s32.totalorder %s90, %s91
    %p105 = scmp.eq.s32.totalorder %s15, 1
    %p106 = por %p104, %p105
    %p108 = scmp.ne.s32.totalorder %s91, %s107
    %p109 = scmp.eq.s32.totalorder %s15, 0
    %p110 = por %p108, %p109
    %p111 = scmp.le.s32.totalorder 1, %s9
    %p112 = scmp.lt.s32.totalorder %s9, 3
    %p113 = pnand %p111, %p112
    %p114 = pneg %p113
    // Predicated region
    $region9: #{encoder_decoder_forward.10} parent=5 // pred_check
      _
    $region10: #{encoder_decoder_forward.10} parent=5 // pred_check_branch
      %116 = sbr.rel (%p113) target = $region12
    $region11: #{encoder_decoder_forward.10} parent=5 // pred_region
      %s117 = ssub.s32 %s9, 1
      // Predicated region
      $region13: #{encoder_decoder_forward.10} parent=11 // pred_check
        %p118 = pneg %p56
      $region14: #{encoder_decoder_forward.10} parent=11 // pred_check_branch
        %120 = sbr.rel (%p118) target = $region16
      $region15: #{encoder_decoder_forward.10} parent=11 // pred_region
        _
      $region16: #{encoder_decoder_forward.10} parent=11 // pred_fallthru
        _
      // Predicated region
      $region17: #{encoder_decoder_forward.10} parent=11 // pred_check
        %p121 = pneg %p77
      $region18: #{encoder_decoder_forward.10} parent=11 // pred_check_branch
        %123 = sbr.rel (%p121) target = $region20
      $region19: #{encoder_decoder_forward.10} parent=11 // pred_region
        _
      $region20: #{encoder_decoder_forward.10} parent=11 // pred_fallthru
        _
    $region12: #{encoder_decoder_forward.10} parent=5 // pred_fallthru
      _
    %p124 = scmp.lt.s32.totalorder %s9, 2
    // Predicated region
    $region21: #{encoder_decoder_forward.10} parent=5 // pred_check
      %p125 = pneg %p124
    $region22: #{encoder_decoder_forward.10} parent=5 // pred_check_branch
      %127 = sbr.rel (%p125) target = $region24
    $region23: #{encoder_decoder_forward.10} parent=5 // pred_region
      // Predicated region
      $region25: #{encoder_decoder_forward.10} parent=23 // pred_check
        %p128 = pneg %p29
      $region26: #{encoder_decoder_forward.10} parent=23 // pred_check_branch
        %130 = sbr.rel (%p128) target = $region28
      $region27: #{encoder_decoder_forward.10} parent=23 // pred_region
        %p131 = scmp.lt.s32.totalorder %s9, 1
        %s132 = scalar_select %p131, %s9, 1
        %s133 = smul.addr %s132, 11
        %s134 = smul.addr %s133, 4
        %s135 = scalar_lea.vmem %s0, %s134
      $region28: #{encoder_decoder_forward.10} parent=23 // pred_fallthru
        _
    $region24: #{encoder_decoder_forward.10} parent=5 // pred_fallthru
      _
    %p136 = scmp.le.s32.totalorder 1, %s9
    %p137 = scmp.lt.s32.totalorder %s9, 3
    %p138 = pnand %p136, %p137
    %p139 = pneg %p138
    // Predicated region
    $region29: #{encoder_decoder_forward.10} parent=5 // pred_check
      _
    $region30: #{encoder_decoder_forward.10} parent=5 // pred_check_branch
      %141 = sbr.rel (%p138) target = $region32
    $region31: #{encoder_decoder_forward.10} parent=5 // pred_region
      %s142 = ssub.s32 %s9, 1
      %p143 = scmp.lt.s32.totalorder %s14, 1
      %s144 = scalar_select %p143, %s14, 1
      %s145 = smul.addr %s144, 11
      %s146 = smul.addr %s145, 4
      %s147 = scalar_lea.vmem %s0, %s146
      %p148 = pneg %p35
      %p149 = pneg %p32
      %p150 = pneg %p56
      %p151 = pneg %p53
      %p152 = pneg %p77
      %p153 = pneg %p74
      %p154 = pneg %p103
      %p155 = pneg %p100
      %p156 = scmp.lt.s32.totalorder %s14, 1
      %s157 = scalar_select %p156, %s14, 1
      %s158 = smul.addr %s157, 11
      %s159 = smul.addr %s158, 4
      %s160 = scalar_lea.vmem %s3, %s159
      %p161 = scmp.lt.s32.totalorder %s14, 1
      %s162 = scalar_select %p161, %s14, 1
      %s163 = smul.addr %s162, 11
      %s164 = smul.addr %s163, 4
      %s165 = scalar_lea.vmem %s0, %s164
      %p166 = scmp.lt.s32.totalorder %s14, 1
      %s167 = scalar_select %p166, %s14, 1
      %s168 = smul.addr %s167, 11
      %s169 = smul.addr %s168, 4
      %s170 = scalar_lea.vmem %s3, %s169
      %v172 = vld [vmem:[%s165] sm:$0xf]
      %v173 = vld [vmem:[%s165 + $0x4] sm:$0xf]
      %v174 = vld [vmem:[%s165 + $0x8] sm:$0xf]
      %v175 = vld [vmem:[%s165 + $0xc] sm:$0xf]
      %v176 = vld [vmem:[%s165 + $0x10] sm:$0xf]
      %v177 = vld [vmem:[%s165 + $0x14] sm:$0xf]
      %v178 = vld [vmem:[%s165 + $0x18] sm:$0xf]
      %v179 = vld [vmem:[%s165 + $0x1c] sm:$0xf]
      %v180 = vld [vmem:[%s165 + $0x20] sm:$0xf]
      %v181 = vld [vmem:[%s165 + $0x24] sm:$0xf]
      %v182 = vld [vmem:[%s165 + $0x28] sm:$0x1]
      %v183 = vld [vmem:[%s1] sm:$0xf]
      %v184 = vld [vmem:[%s1 + $0x4] sm:$0xf]
      %v185 = vld [vmem:[%s1 + $0x8] sm:$0xf]
      %v186 = vld [vmem:[%s1 + $0xc] sm:$0xf]
      %v187 = vld [vmem:[%s1 + $0x10] sm:$0xf]
      %v188 = vld [vmem:[%s1 + $0x14] sm:$0xf]
      %v189 = vld [vmem:[%s1 + $0x18] sm:$0xf]
      %v190 = vld [vmem:[%s1 + $0x1c] sm:$0xf]
      %s191 = scalar_lea.vmem %s1, 32
      %v192 = vld [vmem:[%s191] sm:$0xf]
      %v193 = vld [vmem:[%s191 + $0x4] sm:$0xf]
      %v194 = vld [vmem:[%s191 + $0x8] sm:$0xf]
      %v195 = vld [vmem:[%s191 + $0xc] sm:$0xf]
      %v196 = vld [vmem:[%s191 + $0x10] sm:$0xf]
      %v197 = vld [vmem:[%s191 + $0x14] sm:$0xf]
      %v198 = vld [vmem:[%s191 + $0x18] sm:$0xf]
      %v199 = vld [vmem:[%s191 + $0x1c] sm:$0xf]
      %v211 = vunpack.c.l.b16 %v172
      %v212 = vunpack.c.l.b16 %v173
      %v213 = vunpack.c.l.b16 %v174
      %v214 = vunpack.c.l.b16 %v175
      %v215 = vunpack.c.l.b16 %v176
      %v216 = vunpack.c.l.b16 %v177
      %v217 = vunpack.c.l.b16 %v178
      %v218 = vunpack.c.l.b16 %v179
      %v219 = vunpack.c.l.b16 %v180
      %v220 = vunpack.c.l.b16 %v181
      %v221 = vunpack.c.l.b16 %v182
      %v222 = vpack.c.b16 %v212, %v211
      %v223 = vpack.c.b16 %v214, %v213
      %v224 = vpack.c.b16 %v216, %v215
      %v225 = vpack.c.b16 %v218, %v217
      %v226 = vpack.c.b16 %v220, %v219
      %v227 = vpack.c.b16 %v221, %v221
      %v236 = vunpack.c.l.b16 %v192
      %v237 = vunpack.c.l.b16 %v193
      %v238 = vunpack.c.l.b16 %v194
      %v239 = vunpack.c.l.b16 %v195
      %v240 = vunpack.c.l.b16 %v196
      %v241 = vunpack.c.l.b16 %v197
      %v242 = vunpack.c.l.b16 %v198
      %v243 = vunpack.c.l.b16 %v199
      %v244 = vpack.c.b16 %v237, %v236
      %v245 = vpack.c.b16 %v239, %v238
      %v246 = vpack.c.b16 %v241, %v240
      %v247 = vpack.c.b16 %v243, %v242
      %vm252 = vcmask 523264
      %v254 = vsel %vm252, %v222, 0
      %v257 = vsel %vm252, %v223, 0
      %v260 = vsel %vm252, %v224, 0
      %v263 = vsel %vm252, %v225, 0
      %v266 = vsel %vm252, %v226, 0
      %v269 = vsel %vm252, %v227, 0
      %271 = vmatprep.subr.bf16.mxu0 0
      %272 = vmatpush1.bf16.msra.mxu0 %v244
      %273 = vmatprep.subr.bf16.mxu0 0
      %274 = vmatpush1.bf16.msra.mxu0 %v245
      %275 = vmatprep.subr.bf16.mxu0 0
      %276 = vmatpush1.bf16.msra.mxu0 %v246
      %277 = vmatprep.subr.bf16.mxu0 0
      %278 = vmatpush1.bf16.msra.mxu0 %v247
      %279 = vmatprep.subr.bf16.mxu0 0
      %280 = vmatpush1.bf16.msra.mxu0 0
      %281 = vmatprep.subr.bf16.mxu0 0
      %282 = vmatpush1.bf16.msra.mxu0 0
      %283 = vmatprep.subr.bf16.mxu0 0
      %284 = vmatpush1.bf16.msra.mxu0 0
      %285 = vmatprep.subr.bf16.mxu0 0
      %286 = vmatpush1.bf16.msra.mxu0 0
      %287 = vmatprep.subr.bf16.mxu0 0
      %288 = vmatpush1.bf16.msra.mxu0 0
      %289 = vmatprep.subr.bf16.mxu0 0
      %290 = vmatpush1.bf16.msra.mxu0 0
      %291 = vmatprep.subr.bf16.mxu0 0
      %292 = vmatpush1.bf16.msra.mxu0 0
      %293 = vmatprep.subr.bf16.mxu0 0
      %294 = vmatpush1.bf16.msra.mxu0 0
      %295 = vmatprep.subr.bf16.mxu0 0
      %296 = vmatpush1.bf16.msra.mxu0 0
      %297 = vmatprep.subr.bf16.mxu0 0
      %298 = vmatpush1.bf16.msra.mxu0 0
      %299 = vmatprep.subr.bf16.mxu0 0
      %300 = vmatpush1.bf16.msra.mxu0 0
      %301 = vmatprep.subr.bf16.mxu0 0
      %302 = vmatpush1.bf16.msra.mxu0 0
      %303 = vmatprep.mubr.bf16.mxu0 0
      %304 = vmatmul.mubr.bf16.gmra.mrb[0].mxu0 %v254
      %v305 = vpop.f32.mrb[0].mxu0
      %v306 = vadd.f32 0.0, %v305
      %v307 = vpop.f32.mrb[0].mxu0
      %v308 = vpop.f32.mrb[0].mxu0
      %v309 = vadd.f32 0.0, %v308
      %v310 = vpop.f32.mrb[0].mxu0
      %311 = vmatprep.mubr.bf16.mxu0 0
      %312 = vmatmul.mubr.bf16.gmra.mrb[0].mxu0 %v257
      %v313 = vpop.f32.mrb[0].mxu0
      %v314 = vadd.f32 0.0, %v313
      %v315 = vpop.f32.mrb[0].mxu0
      %v316 = vpop.f32.mrb[0].mxu0
      %v317 = vadd.f32 0.0, %v316
      %v318 = vpop.f32.mrb[0].mxu0
      %319 = vmatprep.mubr.bf16.mxu0 0
      %320 = vmatmul.mubr.bf16.gmra.mrb[0].mxu0 %v260
      %v321 = vpop.f32.mrb[0].mxu0
      %v322 = vadd.f32 0.0, %v321
      %v323 = vpop.f32.mrb[0].mxu0
      %v324 = vpop.f32.mrb[0].mxu0
      %v325 = vadd.f32 0.0, %v324
      %v326 = vpop.f32.mrb[0].mxu0
      %327 = vmatprep.mubr.bf16.mxu0 0
      %328 = vmatmul.mubr.bf16.gmra.mrb[0].mxu0 %v263
      %v329 = vpop.f32.mrb[0].mxu0
      %v330 = vadd.f32 0.0, %v329
      %v331 = vpop.f32.mrb[0].mxu0
      %v332 = vpop.f32.mrb[0].mxu0
      %v333 = vadd.f32 0.0, %v332
      %v334 = vpop.f32.mrb[0].mxu0
      %335 = vmatprep.mubr.bf16.mxu0 0
      %336 = vmatmul.mubr.bf16.gmra.mrb[0].mxu0 %v266
      %v337 = vpop.f32.mrb[0].mxu0
      %v338 = vadd.f32 0.0, %v337
      %v339 = vpop.f32.mrb[0].mxu0
      %v340 = vpop.f32.mrb[0].mxu0
      %v341 = vadd.f32 0.0, %v340
      %v342 = vpop.f32.mrb[0].mxu0
      %343 = vmatprep.mubr.bf16.mxu0 0
      %344 = vmatmul.mubr.bf16.gmra.mrb[0].mxu0 %v269
      %v345 = vpop.f32.mrb[0].mxu0
      %v346 = vadd.f32 0.0, %v345
      %v347 = vpop.f32.mrb[0].mxu0
      %v348 = vpop.f32.mrb[0].mxu0
      %v349 = vpop.f32.mrb[0].mxu0
      %350 = vdwg.mxu0
      %s351 = scalar_lea.vmem %s1, 64
      %v352 = vld [vmem:[%s351] sm:$0xf]
      %v353 = vld [vmem:[%s351 + $0x4] sm:$0xf]
      %v354 = vld [vmem:[%s351 + $0x8] sm:$0xf]
      %v355 = vld [vmem:[%s351 + $0xc] sm:$0xf]
      %v356 = vld [vmem:[%s351 + $0x10] sm:$0xf]
      %v357 = vld [vmem:[%s351 + $0x14] sm:$0xf]
      %v358 = vld [vmem:[%s351 + $0x18] sm:$0xf]
      %v359 = vld [vmem:[%s351 + $0x1c] sm:$0xf]
      %v368 = vunpack.c.l.b16 %v352
      %v369 = vunpack.c.l.b16 %v353
      %v370 = vunpack.c.l.b16 %v354
      %v371 = vunpack.c.l.b16 %v355
      %v372 = vunpack.c.l.b16 %v356
      %v373 = vunpack.c.l.b16 %v357
      %v374 = vunpack.c.l.b16 %v358
      %v375 = vunpack.c.l.b16 %v359
      %v376 = vpack.c.b16 %v369, %v368
      %v377 = vpack.c.b16 %v371, %v370
      %v378 = vpack.c.b16 %v373, %v372
      %v379 = vpack.c.b16 %v375, %v374
      %384 = vmatprep.subr.bf16.mxu0 0
      %385 = vmatpush1.bf16.msra.mxu0 %v376
      %386 = vmatprep.subr.bf16.mxu0 0
      %387 = vmatpush1.bf16.msra.mxu0 %v377
      %388 = vmatprep.subr.bf16.mxu0 0
      %389 = vmatpush1.bf16.msra.mxu0 %v378
      %390 = vmatprep.subr.bf16.mxu0 0
      %391 = vmatpush1.bf16.msra.mxu0 %v379
      %392 = vmatprep.subr.bf16.mxu0 0
      %393 = vmatpush1.bf16.msra.mxu0 0
      %394 = vmatprep.subr.bf16.mxu0 0
      %395 = vmatpush1.bf16.msra.mxu0 0
      %396 = vmatprep.subr.bf16.mxu0 0
      %397 = vmatpush1.bf16.msra.mxu0 0
      %398 = vmatprep.subr.bf16.mxu0 0
      %399 = vmatpush1.bf16.msra.mxu0 0
      %400 = vmatprep.subr.bf16.mxu0 0
      %401 = vmatpush1.bf16.msra.mxu0 0
      %402 = vmatprep.subr.bf16.mxu0 0
      %403 = vmatpush1.bf16.msra.mxu0 0
      %404 = vmatprep.subr.bf16.mxu0 0
      %405 = vmatpush1.bf16.msra.mxu0 0
      %406 = vmatprep.subr.bf16.mxu0 0
      %407 = vmatpush1.bf16.msra.mxu0 0
      %408 = vmatprep.subr.bf16.mxu0 0
      %409 = vmatpush1.bf16.msra.mxu0 0
      %410 = vmatprep.subr.bf16.mxu0 0
      %411 = vmatpush1.bf16.msra.mxu0 0
      %412 = vmatprep.subr.bf16.mxu0 0
      %413 = vmatpush1.bf16.msra.mxu0 0
      %414 = vmatprep.subr.bf16.mxu0 0
      %415 = vmatpush1.bf16.msra.mxu0 0
      %416 = vmatprep.mubr.bf16.mxu0 0
      %417 = vmatmul.mubr.bf16.gmra.mrb[0].mxu0 %v254
      %v418 = vpop.f32.mrb[0].mxu0
      %v419 = vadd.f32 0.0, %v418
      %v420 = vpop.f32.mrb[0].mxu0
      %v421 = vpop.f32.mrb[0].mxu0
      %v422 = vadd.f32 0.0, %v421
      %v423 = vpop.f32.mrb[0].mxu0
      %424 = vmatprep.mubr.bf16.mxu0 0
      %425 = vmatmul.mubr.bf16.gmra.mrb[0].mxu0 %v257
      %v426 = vpop.f32.mrb[0].mxu0
      %v427 = vadd.f32 0.0, %v426
      %v428 = vpop.f32.mrb[0].mxu0
      %v429 = vpop.f32.mrb[0].mxu0
      %v430 = vadd.f32 0.0, %v429
      %v431 = vpop.f32.mrb[0].mxu0
      %432 = vmatprep.mubr.bf16.mxu0 0
      %433 = vmatmul.mubr.bf16.gmra.mrb[0].mxu0 %v260
      %v434 = vpop.f32.mrb[0].mxu0
      %v435 = vadd.f32 0.0, %v434
      %v436 = vpop.f32.mrb[0].mxu0
      %v437 = vpop.f32.mrb[0].mxu0
      %v438 = vadd.f32 0.0, %v437
      %v439 = vpop.f32.mrb[0].mxu0
      %440 = vmatprep.mubr.bf16.mxu0 0
      %441 = vmatmul.mubr.bf16.gmra.mrb[0].mxu0 %v263
      %v442 = vpop.f32.mrb[0].mxu0
      %v443 = vadd.f32 0.0, %v442
      %v444 = vpop.f32.mrb[0].mxu0
      %v445 = vpop.f32.mrb[0].mxu0
      %v446 = vadd.f32 0.0, %v445
      %v447 = vpop.f32.mrb[0].mxu0
      %448 = vmatprep.mubr.bf16.mxu0 0
      %449 = vmatmul.mubr.bf16.gmra.mrb[0].mxu0 %v266
      %v450 = vpop.f32.mrb[0].mxu0
      %v451 = vadd.f32 0.0, %v450
      %v452 = vpop.f32.mrb[0].mxu0
      %v453 = vpop.f32.mrb[0].mxu0
      %v454 = vadd.f32 0.0, %v453
      %v455 = vpop.f32.mrb[0].mxu0
      %456 = vmatprep.mubr.bf16.mxu0 0
      %457 = vmatmul.mubr.bf16.gmra.mrb[0].mxu0 %v269
      %v458 = vpop.f32.mrb[0].mxu0
      %v459 = vadd.f32 0.0, %v458
      %v460 = vpop.f32.mrb[0].mxu0
      %v461 = vpop.f32.mrb[0].mxu0
      %v462 = vpop.f32.mrb[0].mxu0
      %463 = vdwg.mxu0
      %s464 = scalar_lea.vmem %s1, 96
      %v465 = vld [vmem:[%s464] sm:$0xf]
      %v466 = vld [vmem:[%s464 + $0x4] sm:$0xf]
      %v467 = vld [vmem:[%s464 + $0x8] sm:$0xf]
      %v468 = vld [vmem:[%s464 + $0xc] sm:$0xf]
      %v469 = vld [vmem:[%s464 + $0x10] sm:$0xf]
      %v470 = vld [vmem:[%s464 + $0x14] sm:$0xf]
      %v471 = vld [vmem:[%s464 + $0x18] sm:$0xf]
      %v472 = vld [vmem:[%s464 + $0x1c] sm:$0xf]
      %v481 = vunpack.c.l.b16 %v465
      %v482 = vunpack.c.l.b16 %v466
      %v483 = vunpack.c.l.b16 %v467
      %v484 = vunpack.c.l.b16 %v468
      %v485 = vunpack.c.l.b16 %v469
      %v486 = vunpack.c.l.b16 %v470
      %v487 = vunpack.c.l.b16 %v471
      %v488 = vunpack.c.l.b16 %v472
      %v489 = vpack.c.b16 %v482, %v481
      %v490 = vpack.c.b16 %v484, %v483
      %v491 = vpack.c.b16 %v486, %v485
      %v492 = vpack.c.b16 %v488, %v487
      %497 = vmatprep.subr.bf16.mxu0 0
      %498 = vmatpush1.bf16.msra.mxu0 %v489
      %499 = vmatprep.subr.bf16.mxu0 0
      %500 = vmatpush1.bf16.msra.mxu0 %v490
      %501 = vmatprep.subr.bf16.mxu0 0
      %502 = vmatpush1.bf16.msra.mxu0 %v491
      %503 = vmatprep.subr.bf16.mxu0 0
      %504 = vmatpush1.bf16.msra.mxu0 %v492
      %505 = vmatprep.subr.bf16.mxu0 0
      %506 = vmatpush1.bf16.msra.mxu0 0
      %507 = vmatprep.subr.bf16.mxu0 0
      %508 = vmatpush1.bf16.msra.mxu0 0
      %509 = vmatprep.subr.bf16.mxu0 0
      %510 = vmatpush1.bf16.msra.mxu0 0
      %511 = vmatprep.subr.bf16.mxu0 0
      %512 = vmatpush1.bf16.msra.mxu0 0
      %513 = vmatprep.subr.bf16.mxu0 0
      %514 = vmatpush1.bf16.msra.mxu0 0
      %515 = vmatprep.subr.bf16.mxu0 0
      %516 = vmatpush1.bf16.msra.mxu0 0
      %517 = vmatprep.subr.bf16.mxu0 0
      %518 = vmatpush1.bf16.msra.mxu0 0
      %519 = vmatprep.subr.bf16.mxu0 0
      %520 = vmatpush1.bf16.msra.mxu0 0
      %521 = vmatprep.subr.bf16.mxu0 0
      %522 = vmatpush1.bf16.msra.mxu0 0
      %523 = vmatprep.subr.bf16.mxu0 0
      %524 = vmatpush1.bf16.msra.mxu0 0
      %525 = vmatprep.subr.bf16.mxu0 0
      %526 = vmatpush1.bf16.msra.mxu0 0
      %527 = vmatprep.subr.bf16.mxu0 0
      %528 = vmatpush1.bf16.msra.mxu0 0
      %529 = vmatprep.mubr.bf16.mxu0 0
      %530 = vmatmul.mubr.bf16.gmra.mrb[0].mxu0 %v254
      %v531 = vpop.f32.mrb[0].mxu0
      %v532 = vadd.f32 0.0, %v531
      %v533 = vpop.f32.mrb[0].mxu0
      %v534 = vpop.f32.mrb[0].mxu0
      %v535 = vadd.f32 0.0, %v534
      %v536 = vpop.f32.mrb[0].mxu0
      %537 = vmatprep.mubr.bf16.mxu0 0
      %538 = vmatmul.mubr.bf16.gmra.mrb[0].mxu0 %v257
      %v539 = vpop.f32.mrb[0].mxu0
      %v540 = vadd.f32 0.0, %v539
      %v541 = vpop.f32.mrb[0].mxu0
      %v542 = vpop.f32.mrb[0].mxu0
      %v543 = vadd.f32 0.0, %v542
      %v544 = vpop.f32.mrb[0].mxu0
      %545 = vmatprep.mubr.bf16.mxu0 0
      %546 = vmatmul.mubr.bf16.gmra.mrb[0].mxu0 %v260
      %v547 = vpop.f32.mrb[0].mxu0
      %v548 = vadd.f32 0.0, %v547
      %v549 = vpop.f32.mrb[0].mxu0
      %v550 = vpop.f32.mrb[0].mxu0
      %v551 = vadd.f32 0.0, %v550
      %v552 = vpop.f32.mrb[0].mxu0
      %553 = vmatprep.mubr.bf16.mxu0 0
      %554 = vmatmul.mubr.bf16.gmra.mrb[0].mxu0 %v263
      %v555 = vpop.f32.mrb[0].mxu0
      %v556 = vadd.f32 0.0, %v555
      %v557 = vpop.f32.mrb[0].mxu0
      %v558 = vpop.f32.mrb[0].mxu0
      %v559 = vadd.f32 0.0, %v558
      %v560 = vpop.f32.mrb[0].mxu0
      %561 = vmatprep.mubr.bf16.mxu0 0
      %562 = vmatmul.mubr.bf16.gmra.mrb[0].mxu0 %v266
      %v563 = vpop.f32.mrb[0].mxu0
      %v564 = vadd.f32 0.0, %v563
      %v565 = vpop.f32.mrb[0].mxu0
      %v566 = vpop.f32.mrb[0].mxu0
      %v567 = vadd.f32 0.0, %v566
      %v568 = vpop.f32.mrb[0].mxu0
      %569 = vmatprep.mubr.bf16.mxu0 0
      %570 = vmatmul.mubr.bf16.gmra.mrb[0].mxu0 %v269
      %v571 = vpop.f32.mrb[0].mxu0
      %v572 = vadd.f32 0.0, %v571
      %v573 = vpop.f32.mrb[0].mxu0
      %v574 = vpop.f32.mrb[0].mxu0
      %v575 = vpop.f32.mrb[0].mxu0
      %576 = vdwg.mxu0
      %vm577 = vcmask 1047553
      %v578 = vrot.slane %v306, 7
      %v579 = vsel %vm577, %v578, %v346
      %v588 = vunpack.c.l.b16 %v183
      %v589 = vunpack.c.l.b16 %v184
      %v590 = vunpack.c.l.b16 %v185
      %v591 = vunpack.c.l.b16 %v186
      %v592 = vunpack.c.l.b16 %v187
      %v593 = vunpack.c.l.b16 %v188
      %v594 = vunpack.c.l.b16 %v189
      %v595 = vunpack.c.l.b16 %v190
      %v596 = vpack.c.b16 %v589, %v588
      %v597 = vpack.c.b16 %v591, %v590
      %v598 = vpack.c.b16 %v593, %v592
      %v599 = vpack.c.b16 %v595, %v594
      %vm615 = vcmask 1046528
      %v616 = vrot.slane %v306, 1
      %v617 = vrot.slane %v309, 1
      %v618 = vsel %vm615, %v616, %v617
      %v619 = vrot.slane %v314, 1
      %v620 = vsel %vm615, %v617, %v619
      %v621 = vrot.slane %v317, 1
      %v622 = vsel %vm615, %v619, %v621
      %v623 = vrot.slane %v322, 1
      %v624 = vsel %vm615, %v621, %v623
      %v625 = vrot.slane %v325, 1
      %v626 = vsel %vm615, %v623, %v625
      %v627 = vrot.slane %v330, 1
      %v628 = vsel %vm615, %v625, %v627
      %v629 = vrot.slane %v333, 1
      %v630 = vsel %vm615, %v627, %v629
      %v631 = vrot.slane %v338, 1
      %v632 = vsel %vm615, %v629, %v631
      %v633 = vrot.slane %v341, 1
      %v634 = vsel %vm615, %v631, %v633
      %v635 = vrot.slane %v579, 1
      %v636 = vsel %vm615, %v633, %v635
      %648 = vmatprep.subr.bf16.mxu0 0
      %649 = vmatpush1.bf16.msra.mxu0 %v596
      %650 = vmatprep.subr.bf16.mxu0 0
      %651 = vmatpush1.bf16.msra.mxu0 %v597
      %652 = vmatprep.subr.bf16.mxu0 0
      %653 = vmatpush1.bf16.msra.mxu0 %v598
      %654 = vmatprep.subr.bf16.mxu0 0
      %655 = vmatpush1.bf16.msra.mxu0 %v599
      %656 = vmatprep.subr.bf16.mxu0 0
      %657 = vmatpush1.bf16.msra.mxu0 0
      %658 = vmatprep.subr.bf16.mxu0 0
      %659 = vmatpush1.bf16.msra.mxu0 0
      %660 = vmatprep.subr.bf16.mxu0 0
      %661 = vmatpush1.bf16.msra.mxu0 0
      %662 = vmatprep.subr.bf16.mxu0 0
      %663 = vmatpush1.bf16.msra.mxu0 0
      %664 = vmatprep.subr.bf16.mxu0 0
      %665 = vmatpush1.bf16.msra.mxu0 0
      %666 = vmatprep.subr.bf16.mxu0 0
      %667 = vmatpush1.bf16.msra.mxu0 0
      %668 = vmatprep.subr.bf16.mxu0 0
      %669 = vmatpush1.bf16.msra.mxu0 0
      %670 = vmatprep.subr.bf16.mxu0 0
      %671 = vmatpush1.bf16.msra.mxu0 0
      %672 = vmatprep.subr.bf16.mxu0 0
      %673 = vmatpush1.bf16.msra.mxu0 0
      %674 = vmatprep.subr.bf16.mxu0 0
      %675 = vmatpush1.bf16.msra.mxu0 0
      %676 = vmatprep.subr.bf16.mxu0 0
      %677 = vmatpush1.bf16.msra.mxu0 0
      %678 = vmatprep.subr.bf16.mxu0 0
      %679 = vmatpush1.bf16.msra.mxu0 0
      %680 = vmatprep.mubr.bf16.mxu0 0
      %681 = vmatmul.mubr.bf16.gmra.mrb[0].mxu0 %v254
      %v682 = vpop.f32.mrb[0].mxu0
      %v683 = vadd.f32 %v618, %v682
      %v684 = vpop.f32.mrb[0].mxu0
      %v685 = vpop.f32.mrb[0].mxu0
      %v686 = vadd.f32 %v620, %v685
      %v687 = vpop.f32.mrb[0].mxu0
      %688 = vmatprep.mubr.bf16.mxu0 0
      %689 = vmatmul.mubr.bf16.gmra.mrb[0].mxu0 %v257
      %v690 = vpop.f32.mrb[0].mxu0
      %v691 = vadd.f32 %v622, %v690
      %v692 = vpop.f32.mrb[0].mxu0
      %v693 = vpop.f32.mrb[0].mxu0
      %v694 = vadd.f32 %v624, %v693
      %v695 = vpop.f32.mrb[0].mxu0
      %696 = vmatprep.mubr.bf16.mxu0 0
      %697 = vmatmul.mubr.bf16.gmra.mrb[0].mxu0 %v260
      %v698 = vpop.f32.mrb[0].mxu0
      %v699 = vadd.f32 %v626, %v698
      %v700 = vpop.f32.mrb[0].mxu0
      %v701 = vpop.f32.mrb[0].mxu0
      %v702 = vadd.f32 %v628, %v701
      %v703 = vpop.f32.mrb[0].mxu0
      %704 = vmatprep.mubr.bf16.mxu0 0
      %705 = vmatmul.mubr.bf16.gmra.mrb[0].mxu0 %v263
      %v706 = vpop.f32.mrb[0].mxu0
      %v707 = vadd.f32 %v630, %v706
      %v708 = vpop.f32.mrb[0].mxu0
      %v709 = vpop.f32.mrb[0].mxu0
      %v710 = vadd.f32 %v632, %v709
      %v711 = vpop.f32.mrb[0].mxu0
      %712 = vmatprep.mubr.bf16.mxu0 0
      %713 = vmatmul.mubr.bf16.gmra.mrb[0].mxu0 %v266
      %v714 = vpop.f32.mrb[0].mxu0
      %v715 = vadd.f32 %v634, %v714
      %v716 = vpop.f32.mrb[0].mxu0
      %v717 = vpop.f32.mrb[0].mxu0
      %v718 = vadd.f32 %v636, %v717
      %v719 = vpop.f32.mrb[0].mxu0
      %720 = vmatprep.mubr.bf16.mxu0 0
      %721 = vmatmul.mubr.bf16.gmra.mrb[0].mxu0 %v269
      %v722 = vpop.f32.mrb[0].mxu0
      %v723 = vadd.f32 %v635, %v722
      %v724 = vpop.f32.mrb[0].mxu0
      %v725 = vpop.f32.mrb[0].mxu0
      %v726 = vpop.f32.mrb[0].mxu0
      %727 = vdwg.mxu0
      %v728 = vrot.slane %v419, 7
      %v729 = vrot.slane %v422, 7
      %v730 = vsel %vm577, %v728, %v459
      %v731 = vsel %vm577, %v729, %v728
      %v743 = vrot.slane %v422, 1
      %v744 = vrot.slane %v427, 1
      %v745 = vsel %vm615, %v743, %v744
      %v746 = vrot.slane %v430, 1
      %v747 = vsel %vm615, %v744, %v746
      %v748 = vrot.slane %v435, 1
      %v749 = vsel %vm615, %v746, %v748
      %v750 = vrot.slane %v438, 1
      %v751 = vsel %vm615, %v748, %v750
      %v752 = vrot.slane %v443, 1
      %v753 = vsel %vm615, %v750, %v752
      %v754 = vrot.slane %v446, 1
      %v755 = vsel %vm615, %v752, %v754
      %v756 = vrot.slane %v451, 1
      %v757 = vsel %vm615, %v754, %v756
      %v758 = vrot.slane %v454, 1
      %v759 = vsel %vm615, %v756, %v758
      %v760 = vrot.slane %v730, 1
      %v761 = vsel %vm615, %v758, %v760
      %v762 = vrot.slane %v731, 1
      %v763 = vsel %vm615, %v760, %v762
      %v775 = vadd.f32 %v683, %v745
      %v776 = vadd.f32 %v686, %v747
      %v777 = vadd.f32 %v691, %v749
      %v778 = vadd.f32 %v694, %v751
      %v779 = vadd.f32 %v699, %v753
      %v780 = vadd.f32 %v702, %v755
      %v781 = vadd.f32 %v707, %v757
      %v782 = vadd.f32 %v710, %v759
      %v783 = vadd.f32 %v715, %v761
      %v784 = vadd.f32 %v718, %v763
      %v785 = vadd.f32 %v723, %v762
      %v786 = vrot.slane %v532, 7
      %v787 = vrot.slane %v535, 7
      %v788 = vsel %vm577, %v786, %v572
      %v789 = vsel %vm577, %v787, %v786
      %vm801 = vcmask 1045504
      %v802 = vrot.slane %v535, 2
      %v803 = vrot.slane %v540, 2
      %v804 = vsel %vm801, %v802, %v803
      %v805 = vrot.slane %v543, 2
      %v806 = vsel %vm801, %v803, %v805
      %v807 = vrot.slane %v548, 2
      %v808 = vsel %vm801, %v805, %v807
      %v809 = vrot.slane %v551, 2
      %v810 = vsel %vm801, %v807, %v809
      %v811 = vrot.slane %v556, 2
      %v812 = vsel %vm801, %v809, %v811
      %v813 = vrot.slane %v559, 2
      %v814 = vsel %vm801, %v811, %v813
      %v815 = vrot.slane %v564, 2
      %v816 = vsel %vm801, %v813, %v815
      %v817 = vrot.slane %v567, 2
      %v818 = vsel %vm801, %v815, %v817
      %v819 = vrot.slane %v788, 2
      %v820 = vsel %vm801, %v817, %v819
      %v821 = vrot.slane %v789, 2
      %v822 = vsel %vm801, %v819, %v821
      %v834 = vadd.f32 %v775, %v804
      %v835 = vadd.f32 %v776, %v806
      %v836 = vadd.f32 %v777, %v808
      %v837 = vadd.f32 %v778, %v810
      %v838 = vadd.f32 %v779, %v812
      %v839 = vadd.f32 %v780, %v814
      %v840 = vadd.f32 %v781, %v816
      %v841 = vadd.f32 %v782, %v818
      %v842 = vadd.f32 %v783, %v820
      %v843 = vadd.f32 %v784, %v822
      %v844 = vadd.f32 %v785, %v821
      %v845 = vld [vmem:[%s2] sm:$0x1]
      %v847 = vlaneseq
      %v848 = vshrl.u32 %v847, 7
      %v849 = vsub.s32 0, %v848
      %v850 = vrot.slane %v845, %v849
      %v852 = vadd.f32 %v834, %v850
      %v853 = vadd.f32 %v835, %v850
      %v854 = vadd.f32 %v836, %v850
      %v855 = vadd.f32 %v837, %v850
      %v856 = vadd.f32 %v838, %v850
      %v857 = vadd.f32 %v839, %v850
      %v858 = vadd.f32 %v840, %v850
      %v859 = vadd.f32 %v841, %v850
      %v860 = vadd.f32 %v842, %v850
      %v861 = vadd.f32 %v843, %v850
      %v862 = vadd.f32 %v844, %v850
      %v863 = vmax.f32 %v852, 0.0
      %v864 = vmax.f32 %v853, 0.0
      %v865 = vmax.f32 %v854, 0.0
      %v866 = vmax.f32 %v855, 0.0
      %v867 = vmax.f32 %v856, 0.0
      %v868 = vmax.f32 %v857, 0.0
      %v869 = vmax.f32 %v858, 0.0
      %v870 = vmax.f32 %v859, 0.0
      %v871 = vmax.f32 %v860, 0.0
      %v872 = vmax.f32 %v861, 0.0
      %v873 = vmax.f32 %v862, 0.0
      %v874 = vpack.c.bf16 %v864, %v863
      %v875 = vpack.c.bf16 %v866, %v865
      %v876 = vpack.c.bf16 %v868, %v867
      %v877 = vpack.c.bf16 %v870, %v869
      %v878 = vpack.c.bf16 %v872, %v871
      %v879 = vpack.c.bf16 %v873, %v873
      %v886 = vunpack.c.l.b16 %v874
      %v887 = vunpack.c.h.b16 %v874
      %v888 = vunpack.c.l.b16 %v875
      %v889 = vunpack.c.h.b16 %v875
      %v890 = vunpack.c.l.b16 %v876
      %v891 = vunpack.c.h.b16 %v876
      %v892 = vunpack.c.l.b16 %v877
      %v893 = vunpack.c.h.b16 %v877
      %v894 = vunpack.c.l.b16 %v878
      %v895 = vunpack.c.h.b16 %v878
      %v896 = vunpack.c.l.b16 %v879
      %v897 = vpack.c.b16 %v886, %v886
      %v898 = vpack.c.b16 %v887, %v887
      %v899 = vpack.c.b16 %v888, %v888
      %v900 = vpack.c.b16 %v889, %v889
      %v901 = vpack.c.b16 %v890, %v890
      %v902 = vpack.c.b16 %v891, %v891
      %v903 = vpack.c.b16 %v892, %v892
      %v904 = vpack.c.b16 %v893, %v893
      %v905 = vpack.c.b16 %v894, %v894
      %v906 = vpack.c.b16 %v895, %v895
      %v907 = vpack.c.b16 %v896, %v896
      %vm919 = vcmask 257024
      %920 = vst.msk [vmem:[%s170] sm:$0xf] %vm919, %v897
      %921 = vst.msk [vmem:[%s170 + $0x4] sm:$0xf] %vm919, %v898
      %922 = vst.msk [vmem:[%s170 + $0x8] sm:$0xf] %vm919, %v899
      %923 = vst.msk [vmem:[%s170 + $0xc] sm:$0xf] %vm919, %v900
      %924 = vst.msk [vmem:[%s170 + $0x10] sm:$0xf] %vm919, %v901
      %925 = vst.msk [vmem:[%s170 + $0x14] sm:$0xf] %vm919, %v902
      %926 = vst.msk [vmem:[%s170 + $0x18] sm:$0xf] %vm919, %v903
      %927 = vst.msk [vmem:[%s170 + $0x1c] sm:$0xf] %vm919, %v904
      %928 = vst.msk [vmem:[%s170 + $0x20] sm:$0xf] %vm919, %v905
      %929 = vst.msk [vmem:[%s170 + $0x24] sm:$0xf] %vm919, %v906
      %vm930 = vcmask 253952
      %vm931 = vsmask.f32 256
      %vm932 = vmand %vm930, %vm931
      %v933 = vld [vmem:[%s170 + $0x28] sm:$0x1]
      %v934 = vsel %vm932, %v907, %v933
      %935 = vst [vmem:[%s170 + $0x28] sm:$0x1] %v934
      %p936 = scmp.lt.s32.totalorder %s14, 1
      %s937 = scalar_select %p936, %s14, 1
      %s938 = smul.addr %s937, 11
      %s939 = smul.addr %s938, 4
      %s940 = scalar_lea.vmem %s3, %s939
      // Predicated region
      $region33: #{encoder_decoder_forward.10} parent=31 // pred_check
        %p941 = pneg %p100
      $region34: #{encoder_decoder_forward.10} parent=31 // pred_check_branch
        %943 = sbr.rel (%p941) target = $region36
      $region35: #{encoder_decoder_forward.10} parent=31 // pred_region
        _
      $region36: #{encoder_decoder_forward.10} parent=31 // pred_fallthru
        _
    $region32: #{encoder_decoder_forward.10} parent=5 // pred_fallthru
      _
    %p944 = scmp.le.s32.totalorder 2, %s9
    // Predicated region
    $region37: #{encoder_decoder_forward.10} parent=5 // pred_check
      %p945 = pneg %p944
    $region38: #{encoder_decoder_forward.10} parent=5 // pred_check_branch
      %947 = sbr.rel (%p945) target = $region40
    $region39: #{encoder_decoder_forward.10} parent=5 // pred_region
      %s948 = ssub.s32 %s9, 2
      // Predicated region
      $region41: #{encoder_decoder_forward.10} parent=39 // pred_check
        %p949 = pneg %p106
      $region42: #{encoder_decoder_forward.10} parent=39 // pred_check_branch
        %951 = sbr.rel (%p949) target = $region44
      $region43: #{encoder_decoder_forward.10} parent=39 // pred_region
        %p952 = scmp.lt.s32.totalorder %s15, 1
        %s953 = scalar_select %p952, %s15, 1
        %s954 = smul.addr %s953, 11
        %s955 = smul.addr %s954, 4
        %s956 = scalar_lea.vmem %s3, %s955
      $region44: #{encoder_decoder_forward.10} parent=39 // pred_fallthru
        _
    $region40: #{encoder_decoder_forward.10} parent=5 // pred_fallthru
      _
  $region6: #{encoder_decoder_forward.10} parent=0 // loop_footer
    %s13 = sadd.s32 1, %s9
  $region7: #{encoder_decoder_forward.10} parent=0 // loop_footer_branch
    %8 = sbr.rel target = $region3
  $region8: #{encoder_decoder_forward.10} parent=0 // loop_exit
    _

// kernel: encoder_decoder_forward.11
$region0: #{encoder_decoder_forward.11}
  #allocation0 [shape = 'u32[]', space=smem, size = 0x4, offset = 0x4, fixed_abs, tag = 'smem constant byte address 0x4 - core index']
  #allocation1 [shape = 'u32[144,128]{1,0:T(1,128)}', space=vmem, size = 0x12000, scoped, tag = 'internal scratch']
  %s0 = inlined_call_operand.vmem [shape: bf16[2,25,128], index: 0, kind: input, shape index: {}]
  %s1 = inlined_call_operand.vmem [shape: bf16[4,128,64], index: 1, kind: input, shape index: {}]
  %s2 = inlined_call_operand.vmem [shape: f32[1,64], index: 2, kind: input, shape index: {}]
  %s3 = inlined_call_operand.vmem [shape: bf16[2,25,64], index: 3, kind: output, shape index: {}]
  %s4 = sld [smem:[#allocation0]]
  $region45: #{encoder_decoder_forward.11} parent=0
    _
  %s6 = ssub.s32 1, %s4
  %s7 = scalar_select 0, %s6, %s4
  loop: start=0, step=1, limit=4
  $region2: #{encoder_decoder_forward.11} parent=0 // loop_pre_header
    _
  $region3: #{encoder_decoder_forward.11} parent=0 // loop_header
    %s9 = sphi 0, %s13
    %p10 = scmp.ge.s32.totalorder %s9, 4
    %s19 = sphi 0, %s21
    %s22 = sphi 0, %s19
    %s23 = sphi 0, %s22
    %s39 = sphi 0, %s23
    %s43 = sphi 0, %s43
    %s45 = sphi 0, %s43
    %s46 = sphi 0, %s45
    %s60 = sphi 0, %s46
    %s64 = sphi 0, %s64
    %s66 = sphi 0, %s64
    %s67 = sphi 0, %s66
    %s81 = sphi 0, %s67
    %s87 = sphi 0, %s89
    %s90 = sphi 0, %s87
    %s91 = sphi 0, %s90
    %s107 = sphi 0, %s91
  $region4: #{encoder_decoder_forward.11} parent=0 // loop_header_branch
    %12 = sbr.rel (%p10) target = $region8
  $region5: #{encoder_decoder_forward.11} parent=0 // loop_body
    %s14 = ssub.s32 %s9, 1
    %s15 = ssub.s32 %s9, 2
    %s16 = sadd.s32 %s9, 1
    %s17 = ssub.s32 %s9, %s16
    %p18 = scmp.eq.s32.totalorder %s17, 0
    %s20 = sadd.s32 %s19, 1
    %s21 = scalar_select %p18, %s19, %s20
    %p24 = pneg %p18
    %p25 = scmp.eq.s32.totalorder %s9, 1
    %p26 = por %p24, %p25
    %p27 = scmp.ne.s32.totalorder %s19, %s22
    %p28 = scmp.eq.s32.totalorder %s9, 0
    %p29 = por %p27, %p28
    %p30 = scmp.ne.s32.totalorder %s19, %s22
    %p31 = scmp.eq.s32.totalorder %s14, 1
    %p32 = por %p30, %p31
    %p33 = scmp.ne.s32.totalorder %s22, %s23
    %p34 = scmp.eq.s32.totalorder %s14, 0
    %p35 = por %p33, %p34
    %p36 = scmp.ne.s32.totalorder %s22, %s23
    %p37 = scmp.eq.s32.totalorder %s15, 1
    %p38 = por %p36, %p37
    %p40 = scmp.ne.s32.totalorder %s23, %s39
    %p41 = scmp.eq.s32.totalorder %s15, 0
    %p42 = por %p40, %p41
    %s44 = sadd.s32 %s43, 1
    %p47 = scmp.eq.s32.totalorder %s9, 1
    %p48 = scmp.ne.s32.totalorder %s43, %s45
    %p49 = scmp.eq.s32.totalorder %s9, 0
    %p50 = por %p48, %p49
    %p51 = scmp.ne.s32.totalorder %s43, %s45
    %p52 = scmp.eq.s32.totalorder %s14, 1
    %p53 = por %p51, %p52
    %p54 = scmp.ne.s32.totalorder %s45, %s46
    %p55 = scmp.eq.s32.totalorder %s14, 0
    %p56 = por %p54, %p55
    %p57 = scmp.ne.s32.totalorder %s45, %s46
    %p58 = scmp.eq.s32.totalorder %s15, 1
    %p59 = por %p57, %p58
    %p61 = scmp.ne.s32.totalorder %s46, %s60
    %p62 = scmp.eq.s32.totalorder %s15, 0
    %p63 = por %p61, %p62
    %s65 = sadd.s32 %s64, 1
    %p68 = scmp.eq.s32.totalorder %s9, 1
    %p69 = scmp.ne.s32.totalorder %s64, %s66
    %p70 = scmp.eq.s32.totalorder %s9, 0
    %p71 = por %p69, %p70
    %p72 = scmp.ne.s32.totalorder %s64, %s66
    %p73 = scmp.eq.s32.totalorder %s14, 1
    %p74 = por %p72, %p73
    %p75 = scmp.ne.s32.totalorder %s66, %s67
    %p76 = scmp.eq.s32.totalorder %s14, 0
    %p77 = por %p75, %p76
    %p78 = scmp.ne.s32.totalorder %s66, %s67
    %p79 = scmp.eq.s32.totalorder %s15, 1
    %p80 = por %p78, %p79
    %p82 = scmp.ne.s32.totalorder %s67, %s81
    %p83 = scmp.eq.s32.totalorder %s15, 0
    %p84 = por %p82, %p83
    %s85 = ssub.s32 %s9, %s16
    %p86 = scmp.eq.s32.totalorder %s85, 0
    %s88 = sadd.s32 %s87, 1
    %s89 = scalar_select %p86, %s87, %s88
    %p92 = pneg %p86
    %p93 = scmp.eq.s32.totalorder %s9, 1
    %p94 = por %p92, %p93
    %p95 = scmp.ne.s32.totalorder %s87, %s90
    %p96 = scmp.eq.s32.totalorder %s9, 0
    %p97 = por %p95, %p96
    %p98 = scmp.ne.s32.totalorder %s87, %s90
    %p99 = scmp.eq.s32.totalorder %s14, 1
    %p100 = por %p98, %p99
    %p101 = scmp.ne.s32.totalorder %s90, %s91
    %p102 = scmp.eq.s32.totalorder %s14, 0
    %p103 = por %p101, %p102
    %p104 = scmp.ne.s32.totalorder %s90, %s91
    %p105 = scmp.eq.s32.totalorder %s15, 1
    %p106 = por %p104, %p105
    %p108 = scmp.ne.s32.totalorder %s91, %s107
    %p109 = scmp.eq.s32.totalorder %s15, 0
    %p110 = por %p108, %p109
    %p111 = scmp.le.s32.totalorder 1, %s9
    %p112 = scmp.lt.s32.totalorder %s9, 3
    %p113 = pnand %p111, %p112
    %p114 = pneg %p113
    // Predicated region
    $region9: #{encoder_decoder_forward.11} parent=5 // pred_check
      _
    $region10: #{encoder_decoder_forward.11} parent=5 // pred_check_branch
      %116 = sbr.rel (%p113) target = $region12
    $region11: #{encoder_decoder_forward.11} parent=5 // pred_region
      %s117 = ssub.s32 %s9, 1
      // Predicated region
      $region13: #{encoder_decoder_forward.11} parent=11 // pred_check
        %p118 = pneg %p56
      $region14: #{encoder_decoder_forward.11} parent=11 // pred_check_branch
        %120 = sbr.rel (%p118) target = $region16
      $region15: #{encoder_decoder_forward.11} parent=11 // pred_region
        _
      $region16: #{encoder_decoder_forward.11} parent=11 // pred_fallthru
        _
      // Predicated region
      $region17: #{encoder_decoder_forward.11} parent=11 // pred_check
        %p121 = pneg %p77
      $region18: #{encoder_decoder_forward.11} parent=11 // pred_check_branch
        %123 = sbr.rel (%p121) target = $region20
      $region19: #{encoder_decoder_forward.11} parent=11 // pred_region
        _
      $region20: #{encoder_decoder_forward.11} parent=11 // pred_fallthru
        _
    $region12: #{encoder_decoder_forward.11} parent=5 // pred_fallthru
      _
    %p124 = scmp.lt.s32.totalorder %s9, 2
    // Predicated region
    $region21: #{encoder_decoder_forward.11} parent=5 // pred_check
      %p125 = pneg %p124
    $region22: #{encoder_decoder_forward.11} parent=5 // pred_check_branch
      %127 = sbr.rel (%p125) target = $region24
    $region23: #{encoder_decoder_forward.11} parent=5 // pred_region
      // Predicated region
      $region25: #{encoder_decoder_forward.11} parent=23 // pred_check
        %p128 = pneg %p29
      $region26: #{encoder_decoder_forward.11} parent=23 // pred_check_branch
        %130 = sbr.rel (%p128) target = $region28
      $region27: #{encoder_decoder_forward.11} parent=23 // pred_region
        %p131 = scmp.lt.s32.totalorder %s9, 1
        %s132 = scalar_select %p131, %s9, 1
        %s133 = smul.addr %s132, 4
        %s134 = smul.addr %s133, 4
        %s135 = scalar_lea.vmem %s0, %s134
      $region28: #{encoder_decoder_forward.11} parent=23 // pred_fallthru
        _
    $region24: #{encoder_decoder_forward.11} parent=5 // pred_fallthru
      _
    %p136 = scmp.le.s32.totalorder 1, %s9
    %p137 = scmp.lt.s32.totalorder %s9, 3
    %p138 = pnand %p136, %p137
    %p139 = pneg %p138
    // Predicated region
    $region29: #{encoder_decoder_forward.11} parent=5 // pred_check
      _
    $region30: #{encoder_decoder_forward.11} parent=5 // pred_check_branch
      %141 = sbr.rel (%p138) target = $region32
    $region31: #{encoder_decoder_forward.11} parent=5 // pred_region
      %s142 = ssub.s32 %s9, 1
      %p143 = scmp.lt.s32.totalorder %s14, 1
      %s144 = scalar_select %p143, %s14, 1
      %s145 = smul.addr %s144, 4
      %s146 = smul.addr %s145, 4
      %s147 = scalar_lea.vmem %s0, %s146
      %p148 = pneg %p35
      %p149 = pneg %p32
      %p150 = pneg %p56
      %p151 = pneg %p53
      %p152 = pneg %p77
      %p153 = pneg %p74
      %p154 = pneg %p103
      %p155 = pneg %p100
      %p156 = scmp.lt.s32.totalorder %s14, 1
      %s157 = scalar_select %p156, %s14, 1
      %s158 = smul.addr %s157, 4
      %s159 = smul.addr %s158, 4
      %s160 = scalar_lea.vmem %s3, %s159
      %p161 = scmp.lt.s32.totalorder %s14, 1
      %s162 = scalar_select %p161, %s14, 1
      %s163 = smul.addr %s162, 4
      %s164 = smul.addr %s163, 4
      %s165 = scalar_lea.vmem %s0, %s164
      %p166 = scmp.lt.s32.totalorder %s14, 1
      %s167 = scalar_select %p166, %s14, 1
      %s168 = smul.addr %s167, 4
      %s169 = smul.addr %s168, 4
      %s170 = scalar_lea.vmem %s3, %s169
      %v172 = vld [vmem:[%s165] sm:$0xf]
      %v173 = vld [vmem:[%s165 + $0x4] sm:$0xf]
      %v174 = vld [vmem:[%s165 + $0x8] sm:$0xf]
      %v175 = vld [vmem:[%s165 + $0xc] sm:$0x1]
      %v176 = vld [vmem:[%s1] sm:$0xf]
      %v177 = vld [vmem:[%s1 + $0x4] sm:$0xf]
      %v178 = vld [vmem:[%s1 + $0x8] sm:$0xf]
      %v179 = vld [vmem:[%s1 + $0xc] sm:$0xf]
      %v180 = vld [vmem:[%s1 + $0x10] sm:$0xf]
      %v181 = vld [vmem:[%s1 + $0x14] sm:$0xf]
      %v182 = vld [vmem:[%s1 + $0x18] sm:$0xf]
      %v183 = vld [vmem:[%s1 + $0x1c] sm:$0xf]
      %v184 = vld [vmem:[%s1 + $0x20] sm:$0xf]
      %v185 = vld [vmem:[%s1 + $0x24] sm:$0xf]
      %v186 = vld [vmem:[%s1 + $0x28] sm:$0xf]
      %v187 = vld [vmem:[%s1 + $0x2c] sm:$0xf]
      %v188 = vld [vmem:[%s1 + $0x30] sm:$0xf]
      %v189 = vld [vmem:[%s1 + $0x34] sm:$0xf]
      %v190 = vld [vmem:[%s1 + $0x38] sm:$0xf]
      %v191 = vld [vmem:[%s1 + $0x3c] sm:$0xf]
      %s192 = scalar_lea.vmem %s1, 64
      %v193 = vld [vmem:[%s192] sm:$0xf]
      %v194 = vld [vmem:[%s192 + $0x4] sm:$0xf]
      %v195 = vld [vmem:[%s192 + $0x8] sm:$0xf]
      %v196 = vld [vmem:[%s192 + $0xc] sm:$0xf]
      %v197 = vld [vmem:[%s192 + $0x10] sm:$0xf]
      %v198 = vld [vmem:[%s192 + $0x14] sm:$0xf]
      %v199 = vld [vmem:[%s192 + $0x18] sm:$0xf]
      %v200 = vld [vmem:[%s192 + $0x1c] sm:$0xf]
      %v201 = vld [vmem:[%s192 + $0x20] sm:$0xf]
      %v202 = vld [vmem:[%s192 + $0x24] sm:$0xf]
      %v203 = vld [vmem:[%s192 + $0x28] sm:$0xf]
      %v204 = vld [vmem:[%s192 + $0x2c] sm:$0xf]
      %v205 = vld [vmem:[%s192 + $0x30] sm:$0xf]
      %v206 = vld [vmem:[%s192 + $0x34] sm:$0xf]
      %v207 = vld [vmem:[%s192 + $0x38] sm:$0xf]
      %v208 = vld [vmem:[%s192 + $0x3c] sm:$0xf]
      %v213 = vunpack.c.l.b16 %v172
      %v214 = vunpack.c.l.b16 %v173
      %v215 = vunpack.c.l.b16 %v174
      %v216 = vunpack.c.l.b16 %v175
      %v217 = vpack.c.b16 %v214, %v213
      %v218 = vpack.c.b16 %v216, %v215
      %v237 = vunpack.c.l.b16 %v193
      %v238 = vunpack.c.l.b16 %v194
      %v239 = vunpack.c.l.b16 %v195
      %v240 = vunpack.c.l.b16 %v196
      %v241 = vunpack.c.l.b16 %v197
      %v242 = vunpack.c.l.b16 %v198
      %v243 = vunpack.c.l.b16 %v199
      %v244 = vunpack.c.l.b16 %v200
      %v245 = vunpack.c.l.b16 %v201
      %v246 = vunpack.c.l.b16 %v202
      %v247 = vunpack.c.l.b16 %v203
      %v248 = vunpack.c.l.b16 %v204
      %v249 = vunpack.c.l.b16 %v205
      %v250 = vunpack.c.l.b16 %v206
      %v251 = vunpack.c.l.b16 %v207
      %v252 = vunpack.c.l.b16 %v208
      %v253 = vpack.c.b16 %v238, %v237
      %v254 = vpack.c.b16 %v240, %v239
      %v255 = vpack.c.b16 %v242, %v241
      %v256 = vpack.c.b16 %v244, %v243
      %v257 = vpack.c.b16 %v246, %v245
      %v258 = vpack.c.b16 %v248, %v247
      %v259 = vpack.c.b16 %v250, %v249
      %v260 = vpack.c.b16 %v252, %v251
      %269 = vmatprep.subr.bf16.mxu0 0
      %270 = vmatpush1.bf16.msra.mxu0 %v253
      %271 = vmatprep.subr.bf16.mxu0 0
      %272 = vmatpush1.bf16.msra.mxu0 %v254
      %273 = vmatprep.subr.bf16.mxu0 0
      %274 = vmatpush1.bf16.msra.mxu0 %v255
      %275 = vmatprep.subr.bf16.mxu0 0
      %276 = vmatpush1.bf16.msra.mxu0 %v256
      %277 = vmatprep.subr.bf16.mxu0 0
      %278 = vmatpush1.bf16.msra.mxu0 %v257
      %279 = vmatprep.subr.bf16.mxu0 0
      %280 = vmatpush1.bf16.msra.mxu0 %v258
      %281 = vmatprep.subr.bf16.mxu0 0
      %282 = vmatpush1.bf16.msra.mxu0 %v259
      %283 = vmatprep.subr.bf16.mxu0 0
      %284 = vmatpush1.bf16.msra.mxu0 %v260
      %285 = vmatprep.subr.bf16.mxu0 0
      %286 = vmatpush1.bf16.msra.mxu0 0
      %287 = vmatprep.subr.bf16.mxu0 0
      %288 = vmatpush1.bf16.msra.mxu0 0
      %289 = vmatprep.subr.bf16.mxu0 0
      %290 = vmatpush1.bf16.msra.mxu0 0
      %291 = vmatprep.subr.bf16.mxu0 0
      %292 = vmatpush1.bf16.msra.mxu0 0
      %293 = vmatprep.subr.bf16.mxu0 0
      %294 = vmatpush1.bf16.msra.mxu0 0
      %295 = vmatprep.subr.bf16.mxu0 0
      %296 = vmatpush1.bf16.msra.mxu0 0
      %297 = vmatprep.subr.bf16.mxu0 0
      %298 = vmatpush1.bf16.msra.mxu0 0
      %299 = vmatprep.subr.bf16.mxu0 0
      %300 = vmatpush1.bf16.msra.mxu0 0
      %301 = vmatprep.mubr.bf16.mxu0 0
      %302 = vmatmul.mubr.bf16.gmra.mrb[0].mxu0 %v217
      %v303 = vpop.f32.mrb[0].mxu0
      %v304 = vadd.f32 0.0, %v303
      %v305 = vpop.f32.mrb[0].mxu0
      %v306 = vpop.f32.mrb[0].mxu0
      %v307 = vadd.f32 0.0, %v306
      %v308 = vpop.f32.mrb[0].mxu0
      %309 = vmatprep.mubr.bf16.mxu0 0
      %310 = vmatmul.mubr.bf16.gmra.mrb[0].mxu0 %v218
      %v311 = vpop.f32.mrb[0].mxu0
      %v312 = vadd.f32 0.0, %v311
      %v313 = vpop.f32.mrb[0].mxu0
      %v314 = vpop.f32.mrb[0].mxu0
      %v315 = vadd.f32 0.0, %v314
      %v316 = vpop.f32.mrb[0].mxu0
      %317 = vdwg.mxu0
      %s318 = scalar_lea.vmem %s1, 128
      %v319 = vld [vmem:[%s318] sm:$0xf]
      %v320 = vld [vmem:[%s318 + $0x4] sm:$0xf]
      %v321 = vld [vmem:[%s318 + $0x8] sm:$0xf]
      %v322 = vld [vmem:[%s318 + $0xc] sm:$0xf]
      %v323 = vld [vmem:[%s318 + $0x10] sm:$0xf]
      %v324 = vld [vmem:[%s318 + $0x14] sm:$0xf]
      %v325 = vld [vmem:[%s318 + $0x18] sm:$0xf]
      %v326 = vld [vmem:[%s318 + $0x1c] sm:$0xf]
      %v327 = vld [vmem:[%s318 + $0x20] sm:$0xf]
      %v328 = vld [vmem:[%s318 + $0x24] sm:$0xf]
      %v329 = vld [vmem:[%s318 + $0x28] sm:$0xf]
      %v330 = vld [vmem:[%s318 + $0x2c] sm:$0xf]
      %v331 = vld [vmem:[%s318 + $0x30] sm:$0xf]
      %v332 = vld [vmem:[%s318 + $0x34] sm:$0xf]
      %v333 = vld [vmem:[%s318 + $0x38] sm:$0xf]
      %v334 = vld [vmem:[%s318 + $0x3c] sm:$0xf]
      %v351 = vunpack.c.l.b16 %v319
      %v352 = vunpack.c.l.b16 %v320
      %v353 = vunpack.c.l.b16 %v321
      %v354 = vunpack.c.l.b16 %v322
      %v355 = vunpack.c.l.b16 %v323
      %v356 = vunpack.c.l.b16 %v324
      %v357 = vunpack.c.l.b16 %v325
      %v358 = vunpack.c.l.b16 %v326
      %v359 = vunpack.c.l.b16 %v327
      %v360 = vunpack.c.l.b16 %v328
      %v361 = vunpack.c.l.b16 %v329
      %v362 = vunpack.c.l.b16 %v330
      %v363 = vunpack.c.l.b16 %v331
      %v364 = vunpack.c.l.b16 %v332
      %v365 = vunpack.c.l.b16 %v333
      %v366 = vunpack.c.l.b16 %v334
      %v367 = vpack.c.b16 %v352, %v351
      %v368 = vpack.c.b16 %v354, %v353
      %v369 = vpack.c.b16 %v356, %v355
      %v370 = vpack.c.b16 %v358, %v357
      %v371 = vpack.c.b16 %v360, %v359
      %v372 = vpack.c.b16 %v362, %v361
      %v373 = vpack.c.b16 %v364, %v363
      %v374 = vpack.c.b16 %v366, %v365
      %383 = vmatprep.subr.bf16.mxu0 0
      %384 = vmatpush1.bf16.msra.mxu0 %v367
      %385 = vmatprep.subr.bf16.mxu0 0
      %386 = vmatpush1.bf16.msra.mxu0 %v368
      %387 = vmatprep.subr.bf16.mxu0 0
      %388 = vmatpush1.bf16.msra.mxu0 %v369
      %389 = vmatprep.subr.bf16.mxu0 0
      %390 = vmatpush1.bf16.msra.mxu0 %v370
      %391 = vmatprep.subr.bf16.mxu0 0
      %392 = vmatpush1.bf16.msra.mxu0 %v371
      %393 = vmatprep.subr.bf16.mxu0 0
      %394 = vmatpush1.bf16.msra.mxu0 %v372
      %395 = vmatprep.subr.bf16.mxu0 0
      %396 = vmatpush1.bf16.msra.mxu0 %v373
      %397 = vmatprep.subr.bf16.mxu0 0
      %398 = vmatpush1.bf16.msra.mxu0 %v374
      %399 = vmatprep.subr.bf16.mxu0 0
      %400 = vmatpush1.bf16.msra.mxu0 0
      %401 = vmatprep.subr.bf16.mxu0 0
      %402 = vmatpush1.bf16.msra.mxu0 0
      %403 = vmatprep.subr.bf16.mxu0 0
      %404 = vmatpush1.bf16.msra.mxu0 0
      %405 = vmatprep.subr.bf16.mxu0 0
      %406 = vmatpush1.bf16.msra.mxu0 0
      %407 = vmatprep.subr.bf16.mxu0 0
      %408 = vmatpush1.bf16.msra.mxu0 0
      %409 = vmatprep.subr.bf16.mxu0 0
      %410 = vmatpush1.bf16.msra.mxu0 0
      %411 = vmatprep.subr.bf16.mxu0 0
      %412 = vmatpush1.bf16.msra.mxu0 0
      %413 = vmatprep.subr.bf16.mxu0 0
      %414 = vmatpush1.bf16.msra.mxu0 0
      %415 = vmatprep.mubr.bf16.mxu0 0
      %416 = vmatmul.mubr.bf16.gmra.mrb[0].mxu0 %v217
      %v417 = vpop.f32.mrb[0].mxu0
      %v418 = vadd.f32 0.0, %v417
      %v419 = vpop.f32.mrb[0].mxu0
      %v420 = vpop.f32.mrb[0].mxu0
      %v421 = vadd.f32 0.0, %v420
      %v422 = vpop.f32.mrb[0].mxu0
      %423 = vmatprep.mubr.bf16.mxu0 0
      %424 = vmatmul.mubr.bf16.gmra.mrb[0].mxu0 %v218
      %v425 = vpop.f32.mrb[0].mxu0
      %v426 = vadd.f32 0.0, %v425
      %v427 = vpop.f32.mrb[0].mxu0
      %v428 = vpop.f32.mrb[0].mxu0
      %v429 = vadd.f32 0.0, %v428
      %v430 = vpop.f32.mrb[0].mxu0
      %431 = vdwg.mxu0
      %s432 = scalar_lea.vmem %s1, 192
      %v433 = vld [vmem:[%s432] sm:$0xf]
      %v434 = vld [vmem:[%s432 + $0x4] sm:$0xf]
      %v435 = vld [vmem:[%s432 + $0x8] sm:$0xf]
      %v436 = vld [vmem:[%s432 + $0xc] sm:$0xf]
      %v437 = vld [vmem:[%s432 + $0x10] sm:$0xf]
      %v438 = vld [vmem:[%s432 + $0x14] sm:$0xf]
      %v439 = vld [vmem:[%s432 + $0x18] sm:$0xf]
      %v440 = vld [vmem:[%s432 + $0x1c] sm:$0xf]
      %v441 = vld [vmem:[%s432 + $0x20] sm:$0xf]
      %v442 = vld [vmem:[%s432 + $0x24] sm:$0xf]
      %v443 = vld [vmem:[%s432 + $0x28] sm:$0xf]
      %v444 = vld [vmem:[%s432 + $0x2c] sm:$0xf]
      %v445 = vld [vmem:[%s432 + $0x30] sm:$0xf]
      %v446 = vld [vmem:[%s432 + $0x34] sm:$0xf]
      %v447 = vld [vmem:[%s432 + $0x38] sm:$0xf]
      %v448 = vld [vmem:[%s432 + $0x3c] sm:$0xf]
      %v465 = vunpack.c.l.b16 %v433
      %v466 = vunpack.c.l.b16 %v434
      %v467 = vunpack.c.l.b16 %v435
      %v468 = vunpack.c.l.b16 %v436
      %v469 = vunpack.c.l.b16 %v437
      %v470 = vunpack.c.l.b16 %v438
      %v471 = vunpack.c.l.b16 %v439
      %v472 = vunpack.c.l.b16 %v440
      %v473 = vunpack.c.l.b16 %v441
      %v474 = vunpack.c.l.b16 %v442
      %v475 = vunpack.c.l.b16 %v443
      %v476 = vunpack.c.l.b16 %v444
      %v477 = vunpack.c.l.b16 %v445
      %v478 = vunpack.c.l.b16 %v446
      %v479 = vunpack.c.l.b16 %v447
      %v480 = vunpack.c.l.b16 %v448
      %v481 = vpack.c.b16 %v466, %v465
      %v482 = vpack.c.b16 %v468, %v467
      %v483 = vpack.c.b16 %v470, %v469
      %v484 = vpack.c.b16 %v472, %v471
      %v485 = vpack.c.b16 %v474, %v473
      %v486 = vpack.c.b16 %v476, %v475
      %v487 = vpack.c.b16 %v478, %v477
      %v488 = vpack.c.b16 %v480, %v479
      %497 = vmatprep.subr.bf16.mxu0 0
      %498 = vmatpush1.bf16.msra.mxu0 %v481
      %499 = vmatprep.subr.bf16.mxu0 0
      %500 = vmatpush1.bf16.msra.mxu0 %v482
      %501 = vmatprep.subr.bf16.mxu0 0
      %502 = vmatpush1.bf16.msra.mxu0 %v483
      %503 = vmatprep.subr.bf16.mxu0 0
      %504 = vmatpush1.bf16.msra.mxu0 %v484
      %505 = vmatprep.subr.bf16.mxu0 0
      %506 = vmatpush1.bf16.msra.mxu0 %v485
      %507 = vmatprep.subr.bf16.mxu0 0
      %508 = vmatpush1.bf16.msra.mxu0 %v486
      %509 = vmatprep.subr.bf16.mxu0 0
      %510 = vmatpush1.bf16.msra.mxu0 %v487
      %511 = vmatprep.subr.bf16.mxu0 0
      %512 = vmatpush1.bf16.msra.mxu0 %v488
      %513 = vmatprep.subr.bf16.mxu0 0
      %514 = vmatpush1.bf16.msra.mxu0 0
      %515 = vmatprep.subr.bf16.mxu0 0
      %516 = vmatpush1.bf16.msra.mxu0 0
      %517 = vmatprep.subr.bf16.mxu0 0
      %518 = vmatpush1.bf16.msra.mxu0 0
      %519 = vmatprep.subr.bf16.mxu0 0
      %520 = vmatpush1.bf16.msra.mxu0 0
      %521 = vmatprep.subr.bf16.mxu0 0
      %522 = vmatpush1.bf16.msra.mxu0 0
      %523 = vmatprep.subr.bf16.mxu0 0
      %524 = vmatpush1.bf16.msra.mxu0 0
      %525 = vmatprep.subr.bf16.mxu0 0
      %526 = vmatpush1.bf16.msra.mxu0 0
      %527 = vmatprep.subr.bf16.mxu0 0
      %528 = vmatpush1.bf16.msra.mxu0 0
      %529 = vmatprep.mubr.bf16.mxu0 0
      %530 = vmatmul.mubr.bf16.gmra.mrb[0].mxu0 %v217
      %v531 = vpop.f32.mrb[0].mxu0
      %v532 = vadd.f32 0.0, %v531
      %v533 = vpop.f32.mrb[0].mxu0
      %v534 = vpop.f32.mrb[0].mxu0
      %v535 = vadd.f32 0.0, %v534
      %v536 = vpop.f32.mrb[0].mxu0
      %537 = vmatprep.mubr.bf16.mxu0 0
      %538 = vmatmul.mubr.bf16.gmra.mrb[0].mxu0 %v218
      %v539 = vpop.f32.mrb[0].mxu0
      %v540 = vadd.f32 0.0, %v539
      %v541 = vpop.f32.mrb[0].mxu0
      %v542 = vpop.f32.mrb[0].mxu0
      %v543 = vadd.f32 0.0, %v542
      %v544 = vpop.f32.mrb[0].mxu0
      %545 = vdwg.mxu0
      %vm546 = vcmask 1047553
      %v547 = vrot.slane %v304, 7
      %v548 = vsel %vm546, %v547, %v315
      %v565 = vunpack.c.l.b16 %v176
      %v566 = vunpack.c.l.b16 %v177
      %v567 = vunpack.c.l.b16 %v178
      %v568 = vunpack.c.l.b16 %v179
      %v569 = vunpack.c.l.b16 %v180
      %v570 = vunpack.c.l.b16 %v181
      %v571 = vunpack.c.l.b16 %v182
      %v572 = vunpack.c.l.b16 %v183
      %v573 = vunpack.c.l.b16 %v184
      %v574 = vunpack.c.l.b16 %v185
      %v575 = vunpack.c.l.b16 %v186
      %v576 = vunpack.c.l.b16 %v187
      %v577 = vunpack.c.l.b16 %v188
      %v578 = vunpack.c.l.b16 %v189
      %v579 = vunpack.c.l.b16 %v190
      %v580 = vunpack.c.l.b16 %v191
      %v581 = vpack.c.b16 %v566, %v565
      %v582 = vpack.c.b16 %v568, %v567
      %v583 = vpack.c.b16 %v570, %v569
      %v584 = vpack.c.b16 %v572, %v571
      %v585 = vpack.c.b16 %v574, %v573
      %v586 = vpack.c.b16 %v576, %v575
      %v587 = vpack.c.b16 %v578, %v577
      %v588 = vpack.c.b16 %v580, %v579
      %vm601 = vcmask 1046528
      %v602 = vrot.slane %v304, 1
      %v603 = vrot.slane %v307, 1
      %v604 = vsel %vm601, %v602, %v603
      %v605 = vrot.slane %v312, 1
      %v606 = vsel %vm601, %v603, %v605
      %v607 = vrot.slane %v548, 1
      %v608 = vsel %vm601, %v605, %v607
      %613 = vmatprep.subr.bf16.mxu0 0
      %614 = vmatpush1.bf16.msra.mxu0 %v581
      %615 = vmatprep.subr.bf16.mxu0 0
      %616 = vmatpush1.bf16.msra.mxu0 %v582
      %617 = vmatprep.subr.bf16.mxu0 0
      %618 = vmatpush1.bf16.msra.mxu0 %v583
      %619 = vmatprep.subr.bf16.mxu0 0
      %620 = vmatpush1.bf16.msra.mxu0 %v584
      %621 = vmatprep.subr.bf16.mxu0 0
      %622 = vmatpush1.bf16.msra.mxu0 %v585
      %623 = vmatprep.subr.bf16.mxu0 0
      %624 = vmatpush1.bf16.msra.mxu0 %v586
      %625 = vmatprep.subr.bf16.mxu0 0
      %626 = vmatpush1.bf16.msra.mxu0 %v587
      %627 = vmatprep.subr.bf16.mxu0 0
      %628 = vmatpush1.bf16.msra.mxu0 %v588
      %629 = vmatprep.subr.bf16.mxu0 0
      %630 = vmatpush1.bf16.msra.mxu0 0
      %631 = vmatprep.subr.bf16.mxu0 0
      %632 = vmatpush1.bf16.msra.mxu0 0
      %633 = vmatprep.subr.bf16.mxu0 0
      %634 = vmatpush1.bf16.msra.mxu0 0
      %635 = vmatprep.subr.bf16.mxu0 0
      %636 = vmatpush1.bf16.msra.mxu0 0
      %637 = vmatprep.subr.bf16.mxu0 0
      %638 = vmatpush1.bf16.msra.mxu0 0
      %639 = vmatprep.subr.bf16.mxu0 0
      %640 = vmatpush1.bf16.msra.mxu0 0
      %641 = vmatprep.subr.bf16.mxu0 0
      %642 = vmatpush1.bf16.msra.mxu0 0
      %643 = vmatprep.subr.bf16.mxu0 0
      %644 = vmatpush1.bf16.msra.mxu0 0
      %645 = vmatprep.mubr.bf16.mxu0 0
      %646 = vmatmul.mubr.bf16.gmra.mrb[0].mxu0 %v217
      %v647 = vpop.f32.mrb[0].mxu0
      %v648 = vadd.f32 %v604, %v647
      %v649 = vpop.f32.mrb[0].mxu0
      %v650 = vpop.f32.mrb[0].mxu0
      %v651 = vadd.f32 %v606, %v650
      %v652 = vpop.f32.mrb[0].mxu0
      %653 = vmatprep.mubr.bf16.mxu0 0
      %654 = vmatmul.mubr.bf16.gmra.mrb[0].mxu0 %v218
      %v655 = vpop.f32.mrb[0].mxu0
      %v656 = vadd.f32 %v608, %v655
      %v657 = vpop.f32.mrb[0].mxu0
      %v658 = vpop.f32.mrb[0].mxu0
      %v659 = vadd.f32 %v607, %v658
      %v660 = vpop.f32.mrb[0].mxu0
      %661 = vdwg.mxu0
      %v662 = vrot.slane %v418, 7
      %v663 = vsel %vm546, %v662, %v429
      %vm668 = vcmask 1042432
      %v669 = vrot.slane %v418, 5
      %v670 = vrot.slane %v421, 5
      %v671 = vsel %vm668, %v669, %v670
      %v672 = vrot.slane %v426, 5
      %v673 = vsel %vm668, %v670, %v672
      %v674 = vrot.slane %v663, 5
      %v675 = vsel %vm668, %v672, %v674
      %v680 = vadd.f32 %v648, %v671
      %v681 = vadd.f32 %v651, %v673
      %v682 = vadd.f32 %v656, %v675
      %v683 = vadd.f32 %v659, %v674
      %v684 = vrot.slane %v532, 7
      %v685 = vsel %vm546, %v684, %v543
      %vm690 = vcmask 1041408
      %v691 = vrot.slane %v532, 6
      %v692 = vrot.slane %v535, 6
      %v693 = vsel %vm690, %v691, %v692
      %v694 = vrot.slane %v540, 6
      %v695 = vsel %vm690, %v692, %v694
      %v696 = vrot.slane %v685, 6
      %v697 = vsel %vm690, %v694, %v696
      %v702 = vadd.f32 %v680, %v693
      %v703 = vadd.f32 %v681, %v695
      %v704 = vadd.f32 %v682, %v697
      %v705 = vadd.f32 %v683, %v696
      %v706 = vld [vmem:[%s2] sm:$0x1]
      %v708 = vlaneseq
      %v709 = vshrl.u32 %v708, 7
      %v710 = vsub.s32 0, %v709
      %v711 = vrot.slane %v706, %v710
      %v713 = vadd.f32 %v702, %v711
      %v714 = vadd.f32 %v703, %v711
      %v715 = vadd.f32 %v704, %v711
      %v716 = vadd.f32 %v705, %v711
      %v717 = vmax.f32 %v713, 0.0
      %v718 = vmax.f32 %v714, 0.0
      %v719 = vmax.f32 %v715, 0.0
      %v720 = vmax.f32 %v716, 0.0
      %v721 = vpack.c.bf16 %v718, %v717
      %v722 = vpack.c.bf16 %v720, %v719
      %v725 = vunpack.c.l.b16 %v721
      %v726 = vunpack.c.h.b16 %v721
      %v727 = vunpack.c.l.b16 %v722
      %v728 = vunpack.c.h.b16 %v722
      %v729 = vpack.c.b16 %v725, %v725
      %v730 = vpack.c.b16 %v726, %v726
      %v731 = vpack.c.b16 %v727, %v727
      %v732 = vpack.c.b16 %v728, %v728
      %vm737 = vcmask 519168
      %738 = vst.msk [vmem:[%s170] sm:$0xf] %vm737, %v729
      %739 = vst.msk [vmem:[%s170 + $0x4] sm:$0xf] %vm737, %v730
      %740 = vst.msk [vmem:[%s170 + $0x8] sm:$0xf] %vm737, %v731
      %vm741 = vcmask 516096
      %vm742 = vsmask.f32 256
      %vm743 = vmand %vm741, %vm742
      %v744 = vld [vmem:[%s170 + $0xc] sm:$0x1]
      %v745 = vsel %vm743, %v732, %v744
      %746 = vst [vmem:[%s170 + $0xc] sm:$0x1] %v745
      %p747 = scmp.lt.s32.totalorder %s14, 1
      %s748 = scalar_select %p747, %s14, 1
      %s749 = smul.addr %s748, 4
      %s750 = smul.addr %s749, 4
      %s751 = scalar_lea.vmem %s3, %s750
      // Predicated region
      $region33: #{encoder_decoder_forward.11} parent=31 // pred_check
        %p752 = pneg %p100
      $region34: #{encoder_decoder_forward.11} parent=31 // pred_check_branch
        %754 = sbr.rel (%p752) target = $region36
      $region35: #{encoder_decoder_forward.11} parent=31 // pred_region
        _
      $region36: #{encoder_decoder_forward.11} parent=31 // pred_fallthru
        _
    $region32: #{encoder_decoder_forward.11} parent=5 // pred_fallthru
      _
    %p755 = scmp.le.s32.totalorder 2, %s9
    // Predicated region
    $region37: #{encoder_decoder_forward.11} parent=5 // pred_check
      %p756 = pneg %p755
    $region38: #{encoder_decoder_forward.11} parent=5 // pred_check_branch
      %758 = sbr.rel (%p756) target = $region40
    $region39: #{encoder_decoder_forward.11} parent=5 // pred_region
      %s759 = ssub.s32 %s9, 2
      // Predicated region
      $region41: #{encoder_decoder_forward.11} parent=39 // pred_check
        %p760 = pneg %p106
      $region42: #{encoder_decoder_forward.11} parent=39 // pred_check_branch
        %762 = sbr.rel (%p760) target = $region44
      $region43: #{encoder_decoder_forward.11} parent=39 // pred_region
        %p763 = scmp.lt.s32.totalorder %s15, 1
        %s764 = scalar_select %p763, %s15, 1
        %s765 = smul.addr %s764, 4
        %s766 = smul.addr %s765, 4
        %s767 = scalar_lea.vmem %s3, %s766
      $region44: #{encoder_decoder_forward.11} parent=39 // pred_fallthru
        _
    $region40: #{encoder_decoder_forward.11} parent=5 // pred_fallthru
      _
  $region6: #{encoder_decoder_forward.11} parent=0 // loop_footer
    %s13 = sadd.s32 1, %s9
  $region7: #{encoder_decoder_forward.11} parent=0 // loop_footer_branch
    %8 = sbr.rel target = $region3
  $region8: #{encoder_decoder_forward.11} parent=0 // loop_exit
    _

// kernel: encoder_decoder_forward.12
$region0: #{encoder_decoder_forward.12}
  #allocation0 [shape = 'u32[]', space=smem, size = 0x4, offset = 0x4, fixed_abs, tag = 'smem constant byte address 0x4 - core index']
  #allocation1 [shape = 'u32[144,128]{1,0:T(1,128)}', space=vmem, size = 0x12000, scoped, tag = 'internal scratch']
  %s0 = inlined_call_operand.vmem [shape: bf16[2,9,256], index: 0, kind: input, shape index: {}]
  %s1 = inlined_call_operand.vmem [shape: bf16[4,256,128], index: 1, kind: input, shape index: {}]
  %s2 = inlined_call_operand.vmem [shape: f32[1,128], index: 2, kind: input, shape index: {}]
  %s3 = inlined_call_operand.vmem [shape: bf16[2,9,128], index: 3, kind: output, shape index: {}]
  %s4 = sld [smem:[#allocation0]]
  $region45: #{encoder_decoder_forward.12} parent=0
    _
  %s6 = ssub.s32 1, %s4
  %s7 = scalar_select 0, %s6, %s4
  loop: start=0, step=1, limit=4
  $region2: #{encoder_decoder_forward.12} parent=0 // loop_pre_header
    _
  $region3: #{encoder_decoder_forward.12} parent=0 // loop_header
    %s9 = sphi 0, %s13
    %p10 = scmp.ge.s32.totalorder %s9, 4
    %s19 = sphi 0, %s21
    %s22 = sphi 0, %s19
    %s23 = sphi 0, %s22
    %s39 = sphi 0, %s23
    %s43 = sphi 0, %s43
    %s45 = sphi 0, %s43
    %s46 = sphi 0, %s45
    %s60 = sphi 0, %s46
    %s64 = sphi 0, %s64
    %s66 = sphi 0, %s64
    %s67 = sphi 0, %s66
    %s81 = sphi 0, %s67
    %s87 = sphi 0, %s89
    %s90 = sphi 0, %s87
    %s91 = sphi 0, %s90
    %s107 = sphi 0, %s91
  $region4: #{encoder_decoder_forward.12} parent=0 // loop_header_branch
    %12 = sbr.rel (%p10) target = $region8
  $region5: #{encoder_decoder_forward.12} parent=0 // loop_body
    %s14 = ssub.s32 %s9, 1
    %s15 = ssub.s32 %s9, 2
    %s16 = sadd.s32 %s9, 1
    %s17 = ssub.s32 %s9, %s16
    %p18 = scmp.eq.s32.totalorder %s17, 0
    %s20 = sadd.s32 %s19, 1
    %s21 = scalar_select %p18, %s19, %s20
    %p24 = pneg %p18
    %p25 = scmp.eq.s32.totalorder %s9, 1
    %p26 = por %p24, %p25
    %p27 = scmp.ne.s32.totalorder %s19, %s22
    %p28 = scmp.eq.s32.totalorder %s9, 0
    %p29 = por %p27, %p28
    %p30 = scmp.ne.s32.totalorder %s19, %s22
    %p31 = scmp.eq.s32.totalorder %s14, 1
    %p32 = por %p30, %p31
    %p33 = scmp.ne.s32.totalorder %s22, %s23
    %p34 = scmp.eq.s32.totalorder %s14, 0
    %p35 = por %p33, %p34
    %p36 = scmp.ne.s32.totalorder %s22, %s23
    %p37 = scmp.eq.s32.totalorder %s15, 1
    %p38 = por %p36, %p37
    %p40 = scmp.ne.s32.totalorder %s23, %s39
    %p41 = scmp.eq.s32.totalorder %s15, 0
    %p42 = por %p40, %p41
    %s44 = sadd.s32 %s43, 1
    %p47 = scmp.eq.s32.totalorder %s9, 1
    %p48 = scmp.ne.s32.totalorder %s43, %s45
    %p49 = scmp.eq.s32.totalorder %s9, 0
    %p50 = por %p48, %p49
    %p51 = scmp.ne.s32.totalorder %s43, %s45
    %p52 = scmp.eq.s32.totalorder %s14, 1
    %p53 = por %p51, %p52
    %p54 = scmp.ne.s32.totalorder %s45, %s46
    %p55 = scmp.eq.s32.totalorder %s14, 0
    %p56 = por %p54, %p55
    %p57 = scmp.ne.s32.totalorder %s45, %s46
    %p58 = scmp.eq.s32.totalorder %s15, 1
    %p59 = por %p57, %p58
    %p61 = scmp.ne.s32.totalorder %s46, %s60
    %p62 = scmp.eq.s32.totalorder %s15, 0
    %p63 = por %p61, %p62
    %s65 = sadd.s32 %s64, 1
    %p68 = scmp.eq.s32.totalorder %s9, 1
    %p69 = scmp.ne.s32.totalorder %s64, %s66
    %p70 = scmp.eq.s32.totalorder %s9, 0
    %p71 = por %p69, %p70
    %p72 = scmp.ne.s32.totalorder %s64, %s66
    %p73 = scmp.eq.s32.totalorder %s14, 1
    %p74 = por %p72, %p73
    %p75 = scmp.ne.s32.totalorder %s66, %s67
    %p76 = scmp.eq.s32.totalorder %s14, 0
    %p77 = por %p75, %p76
    %p78 = scmp.ne.s32.totalorder %s66, %s67
    %p79 = scmp.eq.s32.totalorder %s15, 1
    %p80 = por %p78, %p79
    %p82 = scmp.ne.s32.totalorder %s67, %s81
    %p83 = scmp.eq.s32.totalorder %s15, 0
    %p84 = por %p82, %p83
    %s85 = ssub.s32 %s9, %s16
    %p86 = scmp.eq.s32.totalorder %s85, 0
    %s88 = sadd.s32 %s87, 1
    %s89 = scalar_select %p86, %s87, %s88
    %p92 = pneg %p86
    %p93 = scmp.eq.s32.totalorder %s9, 1
    %p94 = por %p92, %p93
    %p95 = scmp.ne.s32.totalorder %s87, %s90
    %p96 = scmp.eq.s32.totalorder %s9, 0
    %p97 = por %p95, %p96
    %p98 = scmp.ne.s32.totalorder %s87, %s90
    %p99 = scmp.eq.s32.totalorder %s14, 1
    %p100 = por %p98, %p99
    %p101 = scmp.ne.s32.totalorder %s90, %s91
    %p102 = scmp.eq.s32.totalorder %s14, 0
    %p103 = por %p101, %p102
    %p104 = scmp.ne.s32.totalorder %s90, %s91
    %p105 = scmp.eq.s32.totalorder %s15, 1
    %p106 = por %p104, %p105
    %p108 = scmp.ne.s32.totalorder %s91, %s107
    %p109 = scmp.eq.s32.totalorder %s15, 0
    %p110 = por %p108, %p109
    %p111 = scmp.le.s32.totalorder 1, %s9
    %p112 = scmp.lt.s32.totalorder %s9, 3
    %p113 = pnand %p111, %p112
    %p114 = pneg %p113
    // Predicated region
    $region9: #{encoder_decoder_forward.12} parent=5 // pred_check
      _
    $region10: #{encoder_decoder_forward.12} parent=5 // pred_check_branch
      %116 = sbr.rel (%p113) target = $region12
    $region11: #{encoder_decoder_forward.12} parent=5 // pred_region
      %s117 = ssub.s32 %s9, 1
      // Predicated region
      $region13: #{encoder_decoder_forward.12} parent=11 // pred_check
        %p118 = pneg %p56
      $region14: #{encoder_decoder_forward.12} parent=11 // pred_check_branch
        %120 = sbr.rel (%p118) target = $region16
      $region15: #{encoder_decoder_forward.12} parent=11 // pred_region
        _
      $region16: #{encoder_decoder_forward.12} parent=11 // pred_fallthru
        _
      // Predicated region
      $region17: #{encoder_decoder_forward.12} parent=11 // pred_check
        %p121 = pneg %p77
      $region18: #{encoder_decoder_forward.12} parent=11 // pred_check_branch
        %123 = sbr.rel (%p121) target = $region20
      $region19: #{encoder_decoder_forward.12} parent=11 // pred_region
        _
      $region20: #{encoder_decoder_forward.12} parent=11 // pred_fallthru
        _
    $region12: #{encoder_decoder_forward.12} parent=5 // pred_fallthru
      _
    %p124 = scmp.lt.s32.totalorder %s9, 2
    // Predicated region
    $region21: #{encoder_decoder_forward.12} parent=5 // pred_check
      %p125 = pneg %p124
    $region22: #{encoder_decoder_forward.12} parent=5 // pred_check_branch
      %127 = sbr.rel (%p125) target = $region24
    $region23: #{encoder_decoder_forward.12} parent=5 // pred_region
      // Predicated region
      $region25: #{encoder_decoder_forward.12} parent=23 // pred_check
        %p128 = pneg %p29
      $region26: #{encoder_decoder_forward.12} parent=23 // pred_check_branch
        %130 = sbr.rel (%p128) target = $region28
      $region27: #{encoder_decoder_forward.12} parent=23 // pred_region
        %p131 = scmp.lt.s32.totalorder %s9, 1
        %s132 = scalar_select %p131, %s9, 1
        %s133 = smul.addr %s132, 4
        %s134 = smul.addr %s133, 4
        %s135 = scalar_lea.vmem %s0, %s134
      $region28: #{encoder_decoder_forward.12} parent=23 // pred_fallthru
        _
    $region24: #{encoder_decoder_forward.12} parent=5 // pred_fallthru
      _
    %p136 = scmp.le.s32.totalorder 1, %s9
    %p137 = scmp.lt.s32.totalorder %s9, 3
    %p138 = pnand %p136, %p137
    %p139 = pneg %p138
    // Predicated region
    $region29: #{encoder_decoder_forward.12} parent=5 // pred_check
      _
    $region30: #{encoder_decoder_forward.12} parent=5 // pred_check_branch
      %141 = sbr.rel (%p138) target = $region32
    $region31: #{encoder_decoder_forward.12} parent=5 // pred_region
      %s142 = ssub.s32 %s9, 1
      %p143 = scmp.lt.s32.totalorder %s14, 1
      %s144 = scalar_select %p143, %s14, 1
      %s145 = smul.addr %s144, 4
      %s146 = smul.addr %s145, 4
      %s147 = scalar_lea.vmem %s0, %s146
      %p148 = pneg %p35
      %p149 = pneg %p32
      %p150 = pneg %p56
      %p151 = pneg %p53
      %p152 = pneg %p77
      %p153 = pneg %p74
      %p154 = pneg %p103
      %p155 = pneg %p100
      %p156 = scmp.lt.s32.totalorder %s14, 1
      %s157 = scalar_select %p156, %s14, 1
      %s158 = smul.addr %s157, 2
      %s159 = smul.addr %s158, 4
      %s160 = scalar_lea.vmem %s3, %s159
      %p161 = scmp.lt.s32.totalorder %s14, 1
      %s162 = scalar_select %p161, %s14, 1
      %s163 = smul.addr %s162, 4
      %s164 = smul.addr %s163, 4
      %s165 = scalar_lea.vmem %s0, %s164
      %p166 = scmp.lt.s32.totalorder %s14, 1
      %s167 = scalar_select %p166, %s14, 1
      %s168 = smul.addr %s167, 2
      %s169 = smul.addr %s168, 4
      %s170 = scalar_lea.vmem %s3, %s169
      %v172 = vld [vmem:[%s165] sm:$0xff]
      %v173 = vld [vmem:[%s165 + $0x8] sm:$0x11]
      %v174 = vld [vmem:[%s1] sm:$0xf]
      %v175 = vld [vmem:[%s1 + $0x4] sm:$0xf]
      %v176 = vld [vmem:[%s1 + $0x8] sm:$0xf]
      %v177 = vld [vmem:[%s1 + $0xc] sm:$0xf]
      %v178 = vld [vmem:[%s1 + $0x10] sm:$0xf]
      %v179 = vld [vmem:[%s1 + $0x14] sm:$0xf]
      %v180 = vld [vmem:[%s1 + $0x18] sm:$0xf]
      %v181 = vld [vmem:[%s1 + $0x1c] sm:$0xf]
      %v182 = vld [vmem:[%s1 + $0x20] sm:$0xf]
      %v183 = vld [vmem:[%s1 + $0x24] sm:$0xf]
      %v184 = vld [vmem:[%s1 + $0x28] sm:$0xf]
      %v185 = vld [vmem:[%s1 + $0x2c] sm:$0xf]
      %v186 = vld [vmem:[%s1 + $0x30] sm:$0xf]
      %v187 = vld [vmem:[%s1 + $0x34] sm:$0xf]
      %v188 = vld [vmem:[%s1 + $0x38] sm:$0xf]
      %v189 = vld [vmem:[%s1 + $0x3c] sm:$0xf]
      %v190 = vld [vmem:[%s1 + $0x40] sm:$0xf]
      %v191 = vld [vmem:[%s1 + $0x44] sm:$0xf]
      %v192 = vld [vmem:[%s1 + $0x48] sm:$0xf]
      %v193 = vld [vmem:[%s1 + $0x4c] sm:$0xf]
      %v194 = vld [vmem:[%s1 + $0x50] sm:$0xf]
      %v195 = vld [vmem:[%s1 + $0x54] sm:$0xf]
      %v196 = vld [vmem:[%s1 + $0x58] sm:$0xf]
      %v197 = vld [vmem:[%s1 + $0x5c] sm:$0xf]
      %v198 = vld [vmem:[%s1 + $0x60] sm:$0xf]
      %v199 = vld [vmem:[%s1 + $0x64] sm:$0xf]
      %v200 = vld [vmem:[%s1 + $0x68] sm:$0xf]
      %v201 = vld [vmem:[%s1 + $0x6c] sm:$0xf]
      %v202 = vld [vmem:[%s1 + $0x70] sm:$0xf]
      %v203 = vld [vmem:[%s1 + $0x74] sm:$0xf]
      %v204 = vld [vmem:[%s1 + $0x78] sm:$0xf]
      %v205 = vld [vmem:[%s1 + $0x7c] sm:$0xf]
      %s206 = scalar_lea.vmem %s1, 128
      %v207 = vld [vmem:[%s206] sm:$0xf]
      %v208 = vld [vmem:[%s206 + $0x4] sm:$0xf]
      %v209 = vld [vmem:[%s206 + $0x8] sm:$0xf]
      %v210 = vld [vmem:[%s206 + $0xc] sm:$0xf]
      %v211 = vld [vmem:[%s206 + $0x10] sm:$0xf]
      %v212 = vld [vmem:[%s206 + $0x14] sm:$0xf]
      %v213 = vld [vmem:[%s206 + $0x18] sm:$0xf]
      %v214 = vld [vmem:[%s206 + $0x1c] sm:$0xf]
      %v215 = vld [vmem:[%s206 + $0x20] sm:$0xf]
      %v216 = vld [vmem:[%s206 + $0x24] sm:$0xf]
      %v217 = vld [vmem:[%s206 + $0x28] sm:$0xf]
      %v218 = vld [vmem:[%s206 + $0x2c] sm:$0xf]
      %v219 = vld [vmem:[%s206 + $0x30] sm:$0xf]
      %v220 = vld [vmem:[%s206 + $0x34] sm:$0xf]
      %v221 = vld [vmem:[%s206 + $0x38] sm:$0xf]
      %v222 = vld [vmem:[%s206 + $0x3c] sm:$0xf]
      %v223 = vld [vmem:[%s206 + $0x40] sm:$0xf]
      %v224 = vld [vmem:[%s206 + $0x44] sm:$0xf]
      %v225 = vld [vmem:[%s206 + $0x48] sm:$0xf]
      %v226 = vld [vmem:[%s206 + $0x4c] sm:$0xf]
      %v227 = vld [vmem:[%s206 + $0x50] sm:$0xf]
      %v228 = vld [vmem:[%s206 + $0x54] sm:$0xf]
      %v229 = vld [vmem:[%s206 + $0x58] sm:$0xf]
      %v230 = vld [vmem:[%s206 + $0x5c] sm:$0xf]
      %v231 = vld [vmem:[%s206 + $0x60] sm:$0xf]
      %v232 = vld [vmem:[%s206 + $0x64] sm:$0xf]
      %v233 = vld [vmem:[%s206 + $0x68] sm:$0xf]
      %v234 = vld [vmem:[%s206 + $0x6c] sm:$0xf]
      %v235 = vld [vmem:[%s206 + $0x70] sm:$0xf]
      %v236 = vld [vmem:[%s206 + $0x74] sm:$0xf]
      %v237 = vld [vmem:[%s206 + $0x78] sm:$0xf]
      %v238 = vld [vmem:[%s206 + $0x7c] sm:$0xf]
      %v241 = vunpack.c.l.b16 %v172
      %v242 = vunpack.c.h.b16 %v172
      %v243 = vunpack.c.l.b16 %v173
      %v244 = vunpack.c.h.b16 %v173
      %v245 = vpack.c.b16 %v243, %v241
      %v246 = vpack.c.b16 %v244, %v242
      %v281 = vunpack.c.l.b16 %v207
      %v282 = vunpack.c.l.b16 %v208
      %v283 = vunpack.c.l.b16 %v209
      %v284 = vunpack.c.l.b16 %v210
      %v285 = vunpack.c.l.b16 %v211
      %v286 = vunpack.c.l.b16 %v212
      %v287 = vunpack.c.l.b16 %v213
      %v288 = vunpack.c.l.b16 %v214
      %v289 = vunpack.c.l.b16 %v215
      %v290 = vunpack.c.l.b16 %v216
      %v291 = vunpack.c.l.b16 %v217
      %v292 = vunpack.c.l.b16 %v218
      %v293 = vunpack.c.l.b16 %v219
      %v294 = vunpack.c.l.b16 %v220
      %v295 = vunpack.c.l.b16 %v221
      %v296 = vunpack.c.l.b16 %v222
      %v297 = vunpack.c.l.b16 %v223
      %v298 = vunpack.c.l.b16 %v224
      %v299 = vunpack.c.l.b16 %v225
      %v300 = vunpack.c.l.b16 %v226
      %v301 = vunpack.c.l.b16 %v227
      %v302 = vunpack.c.l.b16 %v228
      %v303 = vunpack.c.l.b16 %v229
      %v304 = vunpack.c.l.b16 %v230
      %v305 = vunpack.c.l.b16 %v231
      %v306 = vunpack.c.l.b16 %v232
      %v307 = vunpack.c.l.b16 %v233
      %v308 = vunpack.c.l.b16 %v234
      %v309 = vunpack.c.l.b16 %v235
      %v310 = vunpack.c.l.b16 %v236
      %v311 = vunpack.c.l.b16 %v237
      %v312 = vunpack.c.l.b16 %v238
      %v313 = vpack.c.b16 %v282, %v281
      %v314 = vpack.c.b16 %v284, %v283
      %v315 = vpack.c.b16 %v286, %v285
      %v316 = vpack.c.b16 %v288, %v287
      %v317 = vpack.c.b16 %v290, %v289
      %v318 = vpack.c.b16 %v292, %v291
      %v319 = vpack.c.b16 %v294, %v293
      %v320 = vpack.c.b16 %v296, %v295
      %v321 = vpack.c.b16 %v298, %v297
      %v322 = vpack.c.b16 %v300, %v299
      %v323 = vpack.c.b16 %v302, %v301
      %v324 = vpack.c.b16 %v304, %v303
      %v325 = vpack.c.b16 %v306, %v305
      %v326 = vpack.c.b16 %v308, %v307
      %v327 = vpack.c.b16 %v310, %v309
      %v328 = vpack.c.b16 %v312, %v311
      %345 = vmatprep.subr.bf16.mxu0 0
      %346 = vmatpush1.bf16.msra.mxu0 %v313
      %347 = vmatprep.subr.bf16.mxu0 0
      %348 = vmatpush1.bf16.msra.mxu0 %v314
      %349 = vmatprep.subr.bf16.mxu0 0
      %350 = vmatpush1.bf16.msra.mxu0 %v315
      %351 = vmatprep.subr.bf16.mxu0 0
      %352 = vmatpush1.bf16.msra.mxu0 %v316
      %353 = vmatprep.subr.bf16.mxu0 0
      %354 = vmatpush1.bf16.msra.mxu0 %v317
      %355 = vmatprep.subr.bf16.mxu0 0
      %356 = vmatpush1.bf16.msra.mxu0 %v318
      %357 = vmatprep.subr.bf16.mxu0 0
      %358 = vmatpush1.bf16.msra.mxu0 %v319
      %359 = vmatprep.subr.bf16.mxu0 0
      %360 = vmatpush1.bf16.msra.mxu0 %v320
      %361 = vmatprep.subr.bf16.mxu0 0
      %362 = vmatpush1.bf16.msra.mxu0 %v321
      %363 = vmatprep.subr.bf16.mxu0 0
      %364 = vmatpush1.bf16.msra.mxu0 %v322
      %365 = vmatprep.subr.bf16.mxu0 0
      %366 = vmatpush1.bf16.msra.mxu0 %v323
      %367 = vmatprep.subr.bf16.mxu0 0
      %368 = vmatpush1.bf16.msra.mxu0 %v324
      %369 = vmatprep.subr.bf16.mxu0 0
      %370 = vmatpush1.bf16.msra.mxu0 %v325
      %371 = vmatprep.subr.bf16.mxu0 0
      %372 = vmatpush1.bf16.msra.mxu0 %v326
      %373 = vmatprep.subr.bf16.mxu0 0
      %374 = vmatpush1.bf16.msra.mxu0 %v327
      %375 = vmatprep.subr.bf16.mxu0 0
      %376 = vmatpush1.bf16.msra.mxu0 %v328
      %377 = vmatprep.mubr.bf16.mxu0 %v246
      %378 = vmatmul.mubr.bf16.gmra.mrb[0].mxu0 %v245
      %v379 = vpop.f32.mrb[0].mxu0
      %v380 = vadd.f32 0.0, %v379
      %v381 = vpop.f32.mrb[0].mxu0
      %v382 = vpop.f32.mrb[0].mxu0
      %v383 = vadd.f32 0.0, %v382
      %v384 = vpop.f32.mrb[0].mxu0
      %385 = vdwg.mxu0
      %s386 = scalar_lea.vmem %s1, 256
      %v387 = vld [vmem:[%s386] sm:$0xf]
      %v388 = vld [vmem:[%s386 + $0x4] sm:$0xf]
      %v389 = vld [vmem:[%s386 + $0x8] sm:$0xf]
      %v390 = vld [vmem:[%s386 + $0xc] sm:$0xf]
      %v391 = vld [vmem:[%s386 + $0x10] sm:$0xf]
      %v392 = vld [vmem:[%s386 + $0x14] sm:$0xf]
      %v393 = vld [vmem:[%s386 + $0x18] sm:$0xf]
      %v394 = vld [vmem:[%s386 + $0x1c] sm:$0xf]
      %v395 = vld [vmem:[%s386 + $0x20] sm:$0xf]
      %v396 = vld [vmem:[%s386 + $0x24] sm:$0xf]
      %v397 = vld [vmem:[%s386 + $0x28] sm:$0xf]
      %v398 = vld [vmem:[%s386 + $0x2c] sm:$0xf]
      %v399 = vld [vmem:[%s386 + $0x30] sm:$0xf]
      %v400 = vld [vmem:[%s386 + $0x34] sm:$0xf]
      %v401 = vld [vmem:[%s386 + $0x38] sm:$0xf]
      %v402 = vld [vmem:[%s386 + $0x3c] sm:$0xf]
      %v403 = vld [vmem:[%s386 + $0x40] sm:$0xf]
      %v404 = vld [vmem:[%s386 + $0x44] sm:$0xf]
      %v405 = vld [vmem:[%s386 + $0x48] sm:$0xf]
      %v406 = vld [vmem:[%s386 + $0x4c] sm:$0xf]
      %v407 = vld [vmem:[%s386 + $0x50] sm:$0xf]
      %v408 = vld [vmem:[%s386 + $0x54] sm:$0xf]
      %v409 = vld [vmem:[%s386 + $0x58] sm:$0xf]
      %v410 = vld [vmem:[%s386 + $0x5c] sm:$0xf]
      %v411 = vld [vmem:[%s386 + $0x60] sm:$0xf]
      %v412 = vld [vmem:[%s386 + $0x64] sm:$0xf]
      %v413 = vld [vmem:[%s386 + $0x68] sm:$0xf]
      %v414 = vld [vmem:[%s386 + $0x6c] sm:$0xf]
      %v415 = vld [vmem:[%s386 + $0x70] sm:$0xf]
      %v416 = vld [vmem:[%s386 + $0x74] sm:$0xf]
      %v417 = vld [vmem:[%s386 + $0x78] sm:$0xf]
      %v418 = vld [vmem:[%s386 + $0x7c] sm:$0xf]
      %v451 = vunpack.c.l.b16 %v387
      %v452 = vunpack.c.l.b16 %v388
      %v453 = vunpack.c.l.b16 %v389
      %v454 = vunpack.c.l.b16 %v390
      %v455 = vunpack.c.l.b16 %v391
      %v456 = vunpack.c.l.b16 %v392
      %v457 = vunpack.c.l.b16 %v393
      %v458 = vunpack.c.l.b16 %v394
      %v459 = vunpack.c.l.b16 %v395
      %v460 = vunpack.c.l.b16 %v396
      %v461 = vunpack.c.l.b16 %v397
      %v462 = vunpack.c.l.b16 %v398
      %v463 = vunpack.c.l.b16 %v399
      %v464 = vunpack.c.l.b16 %v400
      %v465 = vunpack.c.l.b16 %v401
      %v466 = vunpack.c.l.b16 %v402
      %v467 = vunpack.c.l.b16 %v403
      %v468 = vunpack.c.l.b16 %v404
      %v469 = vunpack.c.l.b16 %v405
      %v470 = vunpack.c.l.b16 %v406
      %v471 = vunpack.c.l.b16 %v407
      %v472 = vunpack.c.l.b16 %v408
      %v473 = vunpack.c.l.b16 %v409
      %v474 = vunpack.c.l.b16 %v410
      %v475 = vunpack.c.l.b16 %v411
      %v476 = vunpack.c.l.b16 %v412
      %v477 = vunpack.c.l.b16 %v413
      %v478 = vunpack.c.l.b16 %v414
      %v479 = vunpack.c.l.b16 %v415
      %v480 = vunpack.c.l.b16 %v416
      %v481 = vunpack.c.l.b16 %v417
      %v482 = vunpack.c.l.b16 %v418
      %v483 = vpack.c.b16 %v452, %v451
      %v484 = vpack.c.b16 %v454, %v453
      %v485 = vpack.c.b16 %v456, %v455
      %v486 = vpack.c.b16 %v458, %v457
      %v487 = vpack.c.b16 %v460, %v459
      %v488 = vpack.c.b16 %v462, %v461
      %v489 = vpack.c.b16 %v464, %v463
      %v490 = vpack.c.b16 %v466, %v465
      %v491 = vpack.c.b16 %v468, %v467
      %v492 = vpack.c.b16 %v470, %v469
      %v493 = vpack.c.b16 %v472, %v471
      %v494 = vpack.c.b16 %v474, %v473
      %v495 = vpack.c.b16 %v476, %v475
      %v496 = vpack.c.b16 %v478, %v477
      %v497 = vpack.c.b16 %v480, %v479
      %v498 = vpack.c.b16 %v482, %v481
      %515 = vmatprep.subr.bf16.mxu0 0
      %516 = vmatpush1.bf16.msra.mxu0 %v483
      %517 = vmatprep.subr.bf16.mxu0 0
      %518 = vmatpush1.bf16.msra.mxu0 %v484
      %519 = vmatprep.subr.bf16.mxu0 0
      %520 = vmatpush1.bf16.msra.mxu0 %v485
      %521 = vmatprep.subr.bf16.mxu0 0
      %522 = vmatpush1.bf16.msra.mxu0 %v486
      %523 = vmatprep.subr.bf16.mxu0 0
      %524 = vmatpush1.bf16.msra.mxu0 %v487
      %525 = vmatprep.subr.bf16.mxu0 0
      %526 = vmatpush1.bf16.msra.mxu0 %v488
      %527 = vmatprep.subr.bf16.mxu0 0
      %528 = vmatpush1.bf16.msra.mxu0 %v489
      %529 = vmatprep.subr.bf16.mxu0 0
      %530 = vmatpush1.bf16.msra.mxu0 %v490
      %531 = vmatprep.subr.bf16.mxu0 0
      %532 = vmatpush1.bf16.msra.mxu0 %v491
      %533 = vmatprep.subr.bf16.mxu0 0
      %534 = vmatpush1.bf16.msra.mxu0 %v492
      %535 = vmatprep.subr.bf16.mxu0 0
      %536 = vmatpush1.bf16.msra.mxu0 %v493
      %537 = vmatprep.subr.bf16.mxu0 0
      %538 = vmatpush1.bf16.msra.mxu0 %v494
      %539 = vmatprep.subr.bf16.mxu0 0
      %540 = vmatpush1.bf16.msra.mxu0 %v495
      %541 = vmatprep.subr.bf16.mxu0 0
      %542 = vmatpush1.bf16.msra.mxu0 %v496
      %543 = vmatprep.subr.bf16.mxu0 0
      %544 = vmatpush1.bf16.msra.mxu0 %v497
      %545 = vmatprep.subr.bf16.mxu0 0
      %546 = vmatpush1.bf16.msra.mxu0 %v498
      %547 = vmatprep.mubr.bf16.mxu0 %v246
      %548 = vmatmul.mubr.bf16.gmra.mrb[0].mxu0 %v245
      %v549 = vpop.f32.mrb[0].mxu0
      %v550 = vadd.f32 0.0, %v549
      %v551 = vpop.f32.mrb[0].mxu0
      %v552 = vpop.f32.mrb[0].mxu0
      %v553 = vadd.f32 0.0, %v552
      %v554 = vpop.f32.mrb[0].mxu0
      %555 = vdwg.mxu0
      %s556 = scalar_lea.vmem %s1, 384
      %v557 = vld [vmem:[%s556] sm:$0xf]
      %v558 = vld [vmem:[%s556 + $0x4] sm:$0xf]
      %v559 = vld [vmem:[%s556 + $0x8] sm:$0xf]
      %v560 = vld [vmem:[%s556 + $0xc] sm:$0xf]
      %v561 = vld [vmem:[%s556 + $0x10] sm:$0xf]
      %v562 = vld [vmem:[%s556 + $0x14] sm:$0xf]
      %v563 = vld [vmem:[%s556 + $0x18] sm:$0xf]
      %v564 = vld [vmem:[%s556 + $0x1c] sm:$0xf]
      %v565 = vld [vmem:[%s556 + $0x20] sm:$0xf]
      %v566 = vld [vmem:[%s556 + $0x24] sm:$0xf]
      %v567 = vld [vmem:[%s556 + $0x28] sm:$0xf]
      %v568 = vld [vmem:[%s556 + $0x2c] sm:$0xf]
      %v569 = vld [vmem:[%s556 + $0x30] sm:$0xf]
      %v570 = vld [vmem:[%s556 + $0x34] sm:$0xf]
      %v571 = vld [vmem:[%s556 + $0x38] sm:$0xf]
      %v572 = vld [vmem:[%s556 + $0x3c] sm:$0xf]
      %v573 = vld [vmem:[%s556 + $0x40] sm:$0xf]
      %v574 = vld [vmem:[%s556 + $0x44] sm:$0xf]
      %v575 = vld [vmem:[%s556 + $0x48] sm:$0xf]
      %v576 = vld [vmem:[%s556 + $0x4c] sm:$0xf]
      %v577 = vld [vmem:[%s556 + $0x50] sm:$0xf]
      %v578 = vld [vmem:[%s556 + $0x54] sm:$0xf]
      %v579 = vld [vmem:[%s556 + $0x58] sm:$0xf]
      %v580 = vld [vmem:[%s556 + $0x5c] sm:$0xf]
      %v581 = vld [vmem:[%s556 + $0x60] sm:$0xf]
      %v582 = vld [vmem:[%s556 + $0x64] sm:$0xf]
      %v583 = vld [vmem:[%s556 + $0x68] sm:$0xf]
      %v584 = vld [vmem:[%s556 + $0x6c] sm:$0xf]
      %v585 = vld [vmem:[%s556 + $0x70] sm:$0xf]
      %v586 = vld [vmem:[%s556 + $0x74] sm:$0xf]
      %v587 = vld [vmem:[%s556 + $0x78] sm:$0xf]
      %v588 = vld [vmem:[%s556 + $0x7c] sm:$0xf]
      %v621 = vunpack.c.l.b16 %v557
      %v622 = vunpack.c.l.b16 %v558
      %v623 = vunpack.c.l.b16 %v559
      %v624 = vunpack.c.l.b16 %v560
      %v625 = vunpack.c.l.b16 %v561
      %v626 = vunpack.c.l.b16 %v562
      %v627 = vunpack.c.l.b16 %v563
      %v628 = vunpack.c.l.b16 %v564
      %v629 = vunpack.c.l.b16 %v565
      %v630 = vunpack.c.l.b16 %v566
      %v631 = vunpack.c.l.b16 %v567
      %v632 = vunpack.c.l.b16 %v568
      %v633 = vunpack.c.l.b16 %v569
      %v634 = vunpack.c.l.b16 %v570
      %v635 = vunpack.c.l.b16 %v571
      %v636 = vunpack.c.l.b16 %v572
      %v637 = vunpack.c.l.b16 %v573
      %v638 = vunpack.c.l.b16 %v574
      %v639 = vunpack.c.l.b16 %v575
      %v640 = vunpack.c.l.b16 %v576
      %v641 = vunpack.c.l.b16 %v577
      %v642 = vunpack.c.l.b16 %v578
      %v643 = vunpack.c.l.b16 %v579
      %v644 = vunpack.c.l.b16 %v580
      %v645 = vunpack.c.l.b16 %v581
      %v646 = vunpack.c.l.b16 %v582
      %v647 = vunpack.c.l.b16 %v583
      %v648 = vunpack.c.l.b16 %v584
      %v649 = vunpack.c.l.b16 %v585
      %v650 = vunpack.c.l.b16 %v586
      %v651 = vunpack.c.l.b16 %v587
      %v652 = vunpack.c.l.b16 %v588
      %v653 = vpack.c.b16 %v622, %v621
      %v654 = vpack.c.b16 %v624, %v623
      %v655 = vpack.c.b16 %v626, %v625
      %v656 = vpack.c.b16 %v628, %v627
      %v657 = vpack.c.b16 %v630, %v629
      %v658 = vpack.c.b16 %v632, %v631
      %v659 = vpack.c.b16 %v634, %v633
      %v660 = vpack.c.b16 %v636, %v635
      %v661 = vpack.c.b16 %v638, %v637
      %v662 = vpack.c.b16 %v640, %v639
      %v663 = vpack.c.b16 %v642, %v641
      %v664 = vpack.c.b16 %v644, %v643
      %v665 = vpack.c.b16 %v646, %v645
      %v666 = vpack.c.b16 %v648, %v647
      %v667 = vpack.c.b16 %v650, %v649
      %v668 = vpack.c.b16 %v652, %v651
      %685 = vmatprep.subr.bf16.mxu0 0
      %686 = vmatpush1.bf16.msra.mxu0 %v653
      %687 = vmatprep.subr.bf16.mxu0 0
      %688 = vmatpush1.bf16.msra.mxu0 %v654
      %689 = vmatprep.subr.bf16.mxu0 0
      %690 = vmatpush1.bf16.msra.mxu0 %v655
      %691 = vmatprep.subr.bf16.mxu0 0
      %692 = vmatpush1.bf16.msra.mxu0 %v656
      %693 = vmatprep.subr.bf16.mxu0 0
      %694 = vmatpush1.bf16.msra.mxu0 %v657
      %695 = vmatprep.subr.bf16.mxu0 0
      %696 = vmatpush1.bf16.msra.mxu0 %v658
      %697 = vmatprep.subr.bf16.mxu0 0
      %698 = vmatpush1.bf16.msra.mxu0 %v659
      %699 = vmatprep.subr.bf16.mxu0 0
      %700 = vmatpush1.bf16.msra.mxu0 %v660
      %701 = vmatprep.subr.bf16.mxu0 0
      %702 = vmatpush1.bf16.msra.mxu0 %v661
      %703 = vmatprep.subr.bf16.mxu0 0
      %704 = vmatpush1.bf16.msra.mxu0 %v662
      %705 = vmatprep.subr.bf16.mxu0 0
      %706 = vmatpush1.bf16.msra.mxu0 %v663
      %707 = vmatprep.subr.bf16.mxu0 0
      %708 = vmatpush1.bf16.msra.mxu0 %v664
      %709 = vmatprep.subr.bf16.mxu0 0
      %710 = vmatpush1.bf16.msra.mxu0 %v665
      %711 = vmatprep.subr.bf16.mxu0 0
      %712 = vmatpush1.bf16.msra.mxu0 %v666
      %713 = vmatprep.subr.bf16.mxu0 0
      %714 = vmatpush1.bf16.msra.mxu0 %v667
      %715 = vmatprep.subr.bf16.mxu0 0
      %716 = vmatpush1.bf16.msra.mxu0 %v668
      %717 = vmatprep.mubr.bf16.mxu0 %v246
      %718 = vmatmul.mubr.bf16.gmra.mrb[0].mxu0 %v245
      %v719 = vpop.f32.mrb[0].mxu0
      %v720 = vadd.f32 0.0, %v719
      %v721 = vpop.f32.mrb[0].mxu0
      %v722 = vpop.f32.mrb[0].mxu0
      %v723 = vadd.f32 0.0, %v722
      %v724 = vpop.f32.mrb[0].mxu0
      %725 = vdwg.mxu0
      %vm726 = vcmask 1047553
      %v727 = vrot.slane %v380, 7
      %v728 = vsel %vm726, %v727, %v383
      %v761 = vunpack.c.l.b16 %v174
      %v762 = vunpack.c.l.b16 %v175
      %v763 = vunpack.c.l.b16 %v176
      %v764 = vunpack.c.l.b16 %v177
      %v765 = vunpack.c.l.b16 %v178
      %v766 = vunpack.c.l.b16 %v179
      %v767 = vunpack.c.l.b16 %v180
      %v768 = vunpack.c.l.b16 %v181
      %v769 = vunpack.c.l.b16 %v182
      %v770 = vunpack.c.l.b16 %v183
      %v771 = vunpack.c.l.b16 %v184
      %v772 = vunpack.c.l.b16 %v185
      %v773 = vunpack.c.l.b16 %v186
      %v774 = vunpack.c.l.b16 %v187
      %v775 = vunpack.c.l.b16 %v188
      %v776 = vunpack.c.l.b16 %v189
      %v777 = vunpack.c.l.b16 %v190
      %v778 = vunpack.c.l.b16 %v191
      %v779 = vunpack.c.l.b16 %v192
      %v780 = vunpack.c.l.b16 %v193
      %v781 = vunpack.c.l.b16 %v194
      %v782 = vunpack.c.l.b16 %v195
      %v783 = vunpack.c.l.b16 %v196
      %v784 = vunpack.c.l.b16 %v197
      %v785 = vunpack.c.l.b16 %v198
      %v786 = vunpack.c.l.b16 %v199
      %v787 = vunpack.c.l.b16 %v200
      %v788 = vunpack.c.l.b16 %v201
      %v789 = vunpack.c.l.b16 %v202
      %v790 = vunpack.c.l.b16 %v203
      %v791 = vunpack.c.l.b16 %v204
      %v792 = vunpack.c.l.b16 %v205
      %v793 = vpack.c.b16 %v762, %v761
      %v794 = vpack.c.b16 %v764, %v763
      %v795 = vpack.c.b16 %v766, %v765
      %v796 = vpack.c.b16 %v768, %v767
      %v797 = vpack.c.b16 %v770, %v769
      %v798 = vpack.c.b16 %v772, %v771
      %v799 = vpack.c.b16 %v774, %v773
      %v800 = vpack.c.b16 %v776, %v775
      %v801 = vpack.c.b16 %v778, %v777
      %v802 = vpack.c.b16 %v780, %v779
      %v803 = vpack.c.b16 %v782, %v781
      %v804 = vpack.c.b16 %v784, %v783
      %v805 = vpack.c.b16 %v786, %v785
      %v806 = vpack.c.b16 %v788, %v787
      %v807 = vpack.c.b16 %v790, %v789
      %v808 = vpack.c.b16 %v792, %v791
      %vm827 = vcmask 1046528
      %v828 = vrot.slane %v380, 1
      %v829 = vrot.slane %v728, 1
      %v830 = vsel %vm827, %v828, %v829
      %833 = vmatprep.subr.bf16.mxu0 0
      %834 = vmatpush1.bf16.msra.mxu0 %v793
      %835 = vmatprep.subr.bf16.mxu0 0
      %836 = vmatpush1.bf16.msra.mxu0 %v794
      %837 = vmatprep.subr.bf16.mxu0 0
      %838 = vmatpush1.bf16.msra.mxu0 %v795
      %839 = vmatprep.subr.bf16.mxu0 0
      %840 = vmatpush1.bf16.msra.mxu0 %v796
      %841 = vmatprep.subr.bf16.mxu0 0
      %842 = vmatpush1.bf16.msra.mxu0 %v797
      %843 = vmatprep.subr.bf16.mxu0 0
      %844 = vmatpush1.bf16.msra.mxu0 %v798
      %845 = vmatprep.subr.bf16.mxu0 0
      %846 = vmatpush1.bf16.msra.mxu0 %v799
      %847 = vmatprep.subr.bf16.mxu0 0
      %848 = vmatpush1.bf16.msra.mxu0 %v800
      %849 = vmatprep.subr.bf16.mxu0 0
      %850 = vmatpush1.bf16.msra.mxu0 %v801
      %851 = vmatprep.subr.bf16.mxu0 0
      %852 = vmatpush1.bf16.msra.mxu0 %v802
      %853 = vmatprep.subr.bf16.mxu0 0
      %854 = vmatpush1.bf16.msra.mxu0 %v803
      %855 = vmatprep.subr.bf16.mxu0 0
      %856 = vmatpush1.bf16.msra.mxu0 %v804
      %857 = vmatprep.subr.bf16.mxu0 0
      %858 = vmatpush1.bf16.msra.mxu0 %v805
      %859 = vmatprep.subr.bf16.mxu0 0
      %860 = vmatpush1.bf16.msra.mxu0 %v806
      %861 = vmatprep.subr.bf16.mxu0 0
      %862 = vmatpush1.bf16.msra.mxu0 %v807
      %863 = vmatprep.subr.bf16.mxu0 0
      %864 = vmatpush1.bf16.msra.mxu0 %v808
      %865 = vmatprep.mubr.bf16.mxu0 %v246
      %866 = vmatmul.mubr.bf16.gmra.mrb[0].mxu0 %v245
      %v867 = vpop.f32.mrb[0].mxu0
      %v868 = vadd.f32 %v830, %v867
      %v869 = vpop.f32.mrb[0].mxu0
      %v870 = vpop.f32.mrb[0].mxu0
      %v871 = vadd.f32 %v829, %v870
      %v872 = vpop.f32.mrb[0].mxu0
      %873 = vdwg.mxu0
      %v874 = vrot.slane %v550, 7
      %v875 = vsel %vm726, %v874, %v553
      %vm878 = vcmask 1044480
      %v879 = vrot.slane %v550, 3
      %v880 = vrot.slane %v875, 3
      %v881 = vsel %vm878, %v879, %v880
      %v884 = vadd.f32 %v868, %v881
      %v885 = vadd.f32 %v871, %v880
      %v886 = vrot.slane %v720, 7
      %v887 = vsel %vm726, %v886, %v723
      %vm890 = vcmask 1043456
      %v891 = vrot.slane %v720, 4
      %v892 = vrot.slane %v887, 4
      %v893 = vsel %vm890, %v891, %v892
      %v896 = vadd.f32 %v884, %v893
      %v897 = vadd.f32 %v885, %v892
      %v898 = vld [vmem:[%s2] sm:$0x1]
      %v900 = vlaneseq
      %v901 = vshrl.u32 %v900, 7
      %v902 = vsub.s32 0, %v901
      %v903 = vrot.slane %v898, %v902
      %v905 = vadd.f32 %v896, %v903
      %v906 = vadd.f32 %v897, %v903
      %v907 = vmax.f32 %v905, 0.0
      %v908 = vmax.f32 %v906, 0.0
      %v909 = vpack.c.bf16 %v908, %v907
      %v911 = vunpack.c.l.b16 %v909
      %v912 = vunpack.c.h.b16 %v909
      %v913 = vpack.c.b16 %v911, %v911
      %v914 = vpack.c.b16 %v912, %v912
      %917 = vst [vmem:[%s170] sm:$0xf] %v913
      %vm918 = vcmask 1040384
      %vm919 = vsmask.f32 256
      %vm920 = vmand %vm918, %vm919
      %v921 = vld [vmem:[%s170 + $0x4] sm:$0x1]
      %v922 = vsel %vm920, %v914, %v921
      %923 = vst [vmem:[%s170 + $0x4] sm:$0x1] %v922
      %p924 = scmp.lt.s32.totalorder %s14, 1
      %s925 = scalar_select %p924, %s14, 1
      %s926 = smul.addr %s925, 2
      %s927 = smul.addr %s926, 4
      %s928 = scalar_lea.vmem %s3, %s927
      // Predicated region
      $region33: #{encoder_decoder_forward.12} parent=31 // pred_check
        %p929 = pneg %p100
      $region34: #{encoder_decoder_forward.12} parent=31 // pred_check_branch
        %931 = sbr.rel (%p929) target = $region36
      $region35: #{encoder_decoder_forward.12} parent=31 // pred_region
        _
      $region36: #{encoder_decoder_forward.12} parent=31 // pred_fallthru
        _
    $region32: #{encoder_decoder_forward.12} parent=5 // pred_fallthru
      _
    %p932 = scmp.le.s32.totalorder 2, %s9
    // Predicated region
    $region37: #{encoder_decoder_forward.12} parent=5 // pred_check
      %p933 = pneg %p932
    $region38: #{encoder_decoder_forward.12} parent=5 // pred_check_branch
      %935 = sbr.rel (%p933) target = $region40
    $region39: #{encoder_decoder_forward.12} parent=5 // pred_region
      %s936 = ssub.s32 %s9, 2
      // Predicated region
      $region41: #{encoder_decoder_forward.12} parent=39 // pred_check
        %p937 = pneg %p106
      $region42: #{encoder_decoder_forward.12} parent=39 // pred_check_branch
        %939 = sbr.rel (%p937) target = $region44
      $region43: #{encoder_decoder_forward.12} parent=39 // pred_region
        %p940 = scmp.lt.s32.totalorder %s15, 1
        %s941 = scalar_select %p940, %s15, 1
        %s942 = smul.addr %s941, 2
        %s943 = smul.addr %s942, 4
        %s944 = scalar_lea.vmem %s3, %s943
      $region44: #{encoder_decoder_forward.12} parent=39 // pred_fallthru
        _
    $region40: #{encoder_decoder_forward.12} parent=5 // pred_fallthru
      _
  $region6: #{encoder_decoder_forward.12} parent=0 // loop_footer
    %s13 = sadd.s32 1, %s9
  $region7: #{encoder_decoder_forward.12} parent=0 // loop_footer_branch
    %8 = sbr.rel target = $region3
  $region8: #{encoder_decoder_forward.12} parent=0 // loop_exit
    _

// kernel: encoder_decoder_forward.13
$region0: #{encoder_decoder_forward.13}
  #allocation0 [shape = 'u32[]', space=smem, size = 0x4, offset = 0x4, fixed_abs, tag = 'smem constant byte address 0x4 - core index']
  #allocation1 [shape = 'u32[144,128]{1,0:T(1,128)}', space=vmem, size = 0x12000, scoped, tag = 'internal scratch']
  %s0 = inlined_call_operand.vmem [shape: bf16[8,128], index: 0, kind: input, shape index: {}]
  %s1 = inlined_call_operand.vmem [shape: bf16[128,64], index: 1, kind: input, shape index: {}]
  %s2 = inlined_call_operand.vmem [shape: f32[1,64], index: 2, kind: input, shape index: {}]
  %s3 = inlined_call_operand.vmem [shape: bf16[64,64], index: 3, kind: input, shape index: {}]
  %s4 = inlined_call_operand.vmem [shape: bf16[8,64], index: 4, kind: output, shape index: {}]
  %s5 = sld [smem:[#allocation0]]
  $region26: #{encoder_decoder_forward.13} parent=0
    _
  %s7 = ssub.s32 1, %s5
  %s8 = scalar_select 0, %s7, %s5
  // Predicated region
  $region2: #{encoder_decoder_forward.13} parent=0 // pred_check
    _
  $region3: #{encoder_decoder_forward.13} parent=0 // pred_check_branch
    %10 = sbr.rel (0) target = $region5
  $region4: #{encoder_decoder_forward.13} parent=0 // pred_region
    _
  $region5: #{encoder_decoder_forward.13} parent=0 // pred_fallthru
    _
  // Predicated region
  $region6: #{encoder_decoder_forward.13} parent=0 // pred_check
    _
  $region7: #{encoder_decoder_forward.13} parent=0 // pred_check_branch
    %12 = sbr.rel (0) target = $region9
  $region8: #{encoder_decoder_forward.13} parent=0 // pred_region
    _
  $region9: #{encoder_decoder_forward.13} parent=0 // pred_fallthru
    _
  // Predicated region
  $region10: #{encoder_decoder_forward.13} parent=0 // pred_check
    _
  $region11: #{encoder_decoder_forward.13} parent=0 // pred_check_branch
    %14 = sbr.rel (0) target = $region13
  $region12: #{encoder_decoder_forward.13} parent=0 // pred_region
    _
  $region13: #{encoder_decoder_forward.13} parent=0 // pred_fallthru
    _
  // Predicated region
  $region14: #{encoder_decoder_forward.13} parent=0 // pred_check
    _
  $region15: #{encoder_decoder_forward.13} parent=0 // pred_check_branch
    %16 = sbr.rel (0) target = $region17
  $region16: #{encoder_decoder_forward.13} parent=0 // pred_region
    _
  $region17: #{encoder_decoder_forward.13} parent=0 // pred_fallthru
    _
  %v18 = vld [vmem:[%s0] sm:$0xf]
  %v19 = vld [vmem:[%s1] sm:$0xf]
  %v20 = vld [vmem:[%s1 + $0x4] sm:$0xf]
  %v21 = vld [vmem:[%s1 + $0x8] sm:$0xf]
  %v22 = vld [vmem:[%s1 + $0xc] sm:$0xf]
  %v23 = vld [vmem:[%s1 + $0x10] sm:$0xf]
  %v24 = vld [vmem:[%s1 + $0x14] sm:$0xf]
  %v25 = vld [vmem:[%s1 + $0x18] sm:$0xf]
  %v26 = vld [vmem:[%s1 + $0x1c] sm:$0xf]
  %v27 = vld [vmem:[%s1 + $0x20] sm:$0xf]
  %v28 = vld [vmem:[%s1 + $0x24] sm:$0xf]
  %v29 = vld [vmem:[%s1 + $0x28] sm:$0xf]
  %v30 = vld [vmem:[%s1 + $0x2c] sm:$0xf]
  %v31 = vld [vmem:[%s1 + $0x30] sm:$0xf]
  %v32 = vld [vmem:[%s1 + $0x34] sm:$0xf]
  %v33 = vld [vmem:[%s1 + $0x38] sm:$0xf]
  %v34 = vld [vmem:[%s1 + $0x3c] sm:$0xf]
  %v35 = vld [vmem:[%s2] sm:$0x1]
  %v37 = vlaneseq
  %v38 = vshrl.u32 %v37, 7
  %v39 = vsub.s32 0, %v38
  %v40 = vrot.slane %v35, %v39
  %v58 = vunpack.c.l.b16 %v19
  %v59 = vunpack.c.l.b16 %v20
  %v60 = vunpack.c.l.b16 %v21
  %v61 = vunpack.c.l.b16 %v22
  %v62 = vunpack.c.l.b16 %v23
  %v63 = vunpack.c.l.b16 %v24
  %v64 = vunpack.c.l.b16 %v25
  %v65 = vunpack.c.l.b16 %v26
  %v66 = vunpack.c.l.b16 %v27
  %v67 = vunpack.c.l.b16 %v28
  %v68 = vunpack.c.l.b16 %v29
  %v69 = vunpack.c.l.b16 %v30
  %v70 = vunpack.c.l.b16 %v31
  %v71 = vunpack.c.l.b16 %v32
  %v72 = vunpack.c.l.b16 %v33
  %v73 = vunpack.c.l.b16 %v34
  %v74 = vpack.c.b16 %v59, %v58
  %v75 = vpack.c.b16 %v61, %v60
  %v76 = vpack.c.b16 %v63, %v62
  %v77 = vpack.c.b16 %v65, %v64
  %v78 = vpack.c.b16 %v67, %v66
  %v79 = vpack.c.b16 %v69, %v68
  %v80 = vpack.c.b16 %v71, %v70
  %v81 = vpack.c.b16 %v73, %v72
  %90 = vmatprep.subr.bf16.mxu0 0
  %91 = vmatpush1.bf16.msra.mxu0 %v74
  %92 = vmatprep.subr.bf16.mxu0 0
  %93 = vmatpush1.bf16.msra.mxu0 %v75
  %94 = vmatprep.subr.bf16.mxu0 0
  %95 = vmatpush1.bf16.msra.mxu0 %v76
  %96 = vmatprep.subr.bf16.mxu0 0
  %97 = vmatpush1.bf16.msra.mxu0 %v77
  %98 = vmatprep.subr.bf16.mxu0 0
  %99 = vmatpush1.bf16.msra.mxu0 %v78
  %100 = vmatprep.subr.bf16.mxu0 0
  %101 = vmatpush1.bf16.msra.mxu0 %v79
  %102 = vmatprep.subr.bf16.mxu0 0
  %103 = vmatpush1.bf16.msra.mxu0 %v80
  %104 = vmatprep.subr.bf16.mxu0 0
  %105 = vmatpush1.bf16.msra.mxu0 %v81
  %106 = vmatprep.subr.bf16.mxu0 0
  %107 = vmatpush1.bf16.msra.mxu0 0
  %108 = vmatprep.subr.bf16.mxu0 0
  %109 = vmatpush1.bf16.msra.mxu0 0
  %110 = vmatprep.subr.bf16.mxu0 0
  %111 = vmatpush1.bf16.msra.mxu0 0
  %112 = vmatprep.subr.bf16.mxu0 0
  %113 = vmatpush1.bf16.msra.mxu0 0
  %114 = vmatprep.subr.bf16.mxu0 0
  %115 = vmatpush1.bf16.msra.mxu0 0
  %116 = vmatprep.subr.bf16.mxu0 0
  %117 = vmatpush1.bf16.msra.mxu0 0
  %118 = vmatprep.subr.bf16.mxu0 0
  %119 = vmatpush1.bf16.msra.mxu0 0
  %120 = vmatprep.subr.bf16.mxu0 0
  %121 = vmatpush1.bf16.msra.mxu0 0
  %122 = vmatprep.mubr.bf16.mxu0 0
  %123 = vmatmul.mubr.bf16.gmra.mrb[0].mxu0 %v18
  %v124 = vpop.f32.mrb[0].mxu0
  %v125 = vadd.f32 %v40, %v124
  %v126 = vpop.f32.mrb[0].mxu0
  %v127 = vpop.f32.mrb[0].mxu0
  %v128 = vpop.f32.mrb[0].mxu0
  %129 = vdwg.mxu0
  %v130 = vmax.f32 %v125, 0.0
  %v131 = vpack.c.bf16 %v130, %v130
  %v132 = vld [vmem:[%s3] sm:$0xf]
  %v133 = vld [vmem:[%s3 + $0x4] sm:$0xf]
  %v134 = vld [vmem:[%s3 + $0x8] sm:$0xf]
  %v135 = vld [vmem:[%s3 + $0xc] sm:$0xf]
  %v136 = vld [vmem:[%s3 + $0x10] sm:$0xf]
  %v137 = vld [vmem:[%s3 + $0x14] sm:$0xf]
  %v138 = vld [vmem:[%s3 + $0x18] sm:$0xf]
  %v139 = vld [vmem:[%s3 + $0x1c] sm:$0xf]
  %v148 = vunpack.c.l.b16 %v132
  %v149 = vunpack.c.l.b16 %v133
  %v150 = vunpack.c.l.b16 %v134
  %v151 = vunpack.c.l.b16 %v135
  %v152 = vunpack.c.l.b16 %v136
  %v153 = vunpack.c.l.b16 %v137
  %v154 = vunpack.c.l.b16 %v138
  %v155 = vunpack.c.l.b16 %v139
  %v156 = vpack.c.b16 %v149, %v148
  %v157 = vpack.c.b16 %v151, %v150
  %v158 = vpack.c.b16 %v153, %v152
  %v159 = vpack.c.b16 %v155, %v154
  %vm164 = vcmask 523264
  %v166 = vsel %vm164, %v131, 0
  %168 = vmatprep.subr.bf16.mxu0 0
  %169 = vmatpush1.bf16.msra.mxu0 %v156
  %170 = vmatprep.subr.bf16.mxu0 0
  %171 = vmatpush1.bf16.msra.mxu0 %v157
  %172 = vmatprep.subr.bf16.mxu0 0
  %173 = vmatpush1.bf16.msra.mxu0 %v158
  %174 = vmatprep.subr.bf16.mxu0 0
  %175 = vmatpush1.bf16.msra.mxu0 %v159
  %176 = vmatprep.subr.bf16.mxu0 0
  %177 = vmatpush1.bf16.msra.mxu0 0
  %178 = vmatprep.subr.bf16.mxu0 0
  %179 = vmatpush1.bf16.msra.mxu0 0
  %180 = vmatprep.subr.bf16.mxu0 0
  %181 = vmatpush1.bf16.msra.mxu0 0
  %182 = vmatprep.subr.bf16.mxu0 0
  %183 = vmatpush1.bf16.msra.mxu0 0
  %184 = vmatprep.subr.bf16.mxu0 0
  %185 = vmatpush1.bf16.msra.mxu0 0
  %186 = vmatprep.subr.bf16.mxu0 0
  %187 = vmatpush1.bf16.msra.mxu0 0
  %188 = vmatprep.subr.bf16.mxu0 0
  %189 = vmatpush1.bf16.msra.mxu0 0
  %190 = vmatprep.subr.bf16.mxu0 0
  %191 = vmatpush1.bf16.msra.mxu0 0
  %192 = vmatprep.subr.bf16.mxu0 0
  %193 = vmatpush1.bf16.msra.mxu0 0
  %194 = vmatprep.subr.bf16.mxu0 0
  %195 = vmatpush1.bf16.msra.mxu0 0
  %196 = vmatprep.subr.bf16.mxu0 0
  %197 = vmatpush1.bf16.msra.mxu0 0
  %198 = vmatprep.subr.bf16.mxu0 0
  %199 = vmatpush1.bf16.msra.mxu0 0
  %200 = vmatprep.mubr.bf16.mxu0 0
  %201 = vmatmul.mubr.bf16.gmra.mrb[0].mxu0 %v166
  %v202 = vpop.f32.mrb[0].mxu0
  %v203 = vadd.f32 0.0, %v202
  %v204 = vpop.f32.mrb[0].mxu0
  %v205 = vpop.f32.mrb[0].mxu0
  %v206 = vpop.f32.mrb[0].mxu0
  %207 = vdwg.mxu0
  %v208 = vpack.c.bf16 %v203, %v203
  %vm209 = vcmask 519168
  %210 = vst.msk [vmem:[%s4] sm:$0xf] %vm209, %v208
  // Predicated region
  $region18: #{encoder_decoder_forward.13} parent=0 // pred_check
    _
  $region19: #{encoder_decoder_forward.13} parent=0 // pred_check_branch
    %212 = sbr.rel (0) target = $region21
  $region20: #{encoder_decoder_forward.13} parent=0 // pred_region
    _
  $region21: #{encoder_decoder_forward.13} parent=0 // pred_fallthru
    _
  // Predicated region
  $region22: #{encoder_decoder_forward.13} parent=0 // pred_check
    _
  $region23: #{encoder_decoder_forward.13} parent=0 // pred_check_branch
    %214 = sbr.rel (0) target = $region25
  $region24: #{encoder_decoder_forward.13} parent=0 // pred_region
    _
  $region25: #{encoder_decoder_forward.13} parent=0 // pred_fallthru
    _

// kernel: encoder_decoder_forward.14
$region0: #{encoder_decoder_forward.14}
  #allocation0 [shape = 'u32[]', space=smem, size = 0x4, offset = 0x4, fixed_abs, tag = 'smem constant byte address 0x4 - core index']
  #allocation1 [shape = 'u32[144,128]{1,0:T(1,128)}', space=vmem, size = 0x12000, scoped, tag = 'internal scratch']
  %s0 = inlined_call_operand.vmem [shape: bf16[2,2,4,64], index: 0, kind: input, shape index: {}]
  %s1 = inlined_call_operand.vmem [shape: bf16[2,4,4,64], index: 1, kind: input, shape index: {}]
  %s2 = inlined_call_operand.vmem [shape: bf16[64,64], index: 2, kind: input, shape index: {}]
  %s3 = inlined_call_operand.vmem [shape: f32[1,64], index: 3, kind: input, shape index: {}]
  %s4 = inlined_call_operand.vmem [shape: bf16[64,32], index: 4, kind: input, shape index: {}]
  %s5 = inlined_call_operand.vmem [shape: bf16[2,4,4,32], index: 5, kind: output, shape index: {}]
  %s6 = sld [smem:[#allocation0]]
  $region53: #{encoder_decoder_forward.14} parent=0
    _
  %s8 = ssub.s32 1, %s6
  %s9 = scalar_select 0, %s8, %s6
  loop: start=0, step=1, limit=4
  $region2: #{encoder_decoder_forward.14} parent=0 // loop_pre_header
    _
  $region3: #{encoder_decoder_forward.14} parent=0 // loop_header
    %s11 = sphi 0, %s15
    %p12 = scmp.ge.s32.totalorder %s11, 4
    %s18 = sphi 0, %s30
    %s19 = sphi 0, %s26
    %s20 = sphi 0, %s18
    %s21 = sphi 0, %s19
    %s22 = sphi 0, %s20
    %s23 = sphi 0, %s21
    %s35 = sphi 0, %s37
    %s38 = sphi 0, %s35
    %s39 = sphi 0, %s38
    %s55 = sphi 0, %s39
    %s63 = sphi 0, %s65
    %s66 = sphi 0, %s63
    %s67 = sphi 0, %s66
    %s83 = sphi 0, %s67
    %s87 = sphi 0, %s87
    %s89 = sphi 0, %s87
    %s90 = sphi 0, %s89
    %s104 = sphi 0, %s90
    %s108 = sphi 0, %s108
    %s110 = sphi 0, %s108
    %s111 = sphi 0, %s110
    %s125 = sphi 0, %s111
    %s129 = sphi 0, %s129
    %s131 = sphi 0, %s129
    %s132 = sphi 0, %s131
    %s146 = sphi 0, %s132
    %s154 = sphi 0, %s156
    %s157 = sphi 0, %s154
    %s158 = sphi 0, %s157
    %s174 = sphi 0, %s158
  $region4: #{encoder_decoder_forward.14} parent=0 // loop_header_branch
    %14 = sbr.rel (%p12) target = $region8
  $region5: #{encoder_decoder_forward.14} parent=0 // loop_body
    %s16 = ssub.s32 %s11, 1
    %s17 = ssub.s32 %s11, 2
    %s24 = sadd.s32 1, %s19
    %p25 = scmp.ge.s32.totalorder %s24, 1
    %s26 = scalar_select %p25, 0, %s24
    %s27 = sadd.s32 1, %s18
    %s28 = scalar_select %p25, %s27, %s18
    %p29 = scmp.ge.s32.totalorder %s28, 2
    %s30 = scalar_select %p29, 0, %s28
    %s31 = ssub.s32 %s18, %s30
    %s32 = ssub.s32 %s19, %s26
    %s33 = sor.u32 %s31, %s32
    %p34 = scmp.eq.s32.totalorder %s33, 0
    %s36 = sadd.s32 %s35, 1
    %s37 = scalar_select %p34, %s35, %s36
    %p40 = pneg %p34
    %p41 = scmp.eq.s32.totalorder %s11, 1
    %p42 = por %p40, %p41
    %p43 = scmp.ne.s32.totalorder %s35, %s38
    %p44 = scmp.eq.s32.totalorder %s11, 0
    %p45 = por %p43, %p44
    %p46 = scmp.ne.s32.totalorder %s35, %s38
    %p47 = scmp.eq.s32.totalorder %s16, 1
    %p48 = por %p46, %p47
    %p49 = scmp.ne.s32.totalorder %s38, %s39
    %p50 = scmp.eq.s32.totalorder %s16, 0
    %p51 = por %p49, %p50
    %p52 = scmp.ne.s32.totalorder %s38, %s39
    %p53 = scmp.eq.s32.totalorder %s17, 1
    %p54 = por %p52, %p53
    %p56 = scmp.ne.s32.totalorder %s39, %s55
    %p57 = scmp.eq.s32.totalorder %s17, 0
    %p58 = por %p56, %p57
    %s59 = ssub.s32 %s18, %s30
    %s60 = ssub.s32 %s19, %s26
    %s61 = sor.u32 %s59, %s60
    %p62 = scmp.eq.s32.totalorder %s61, 0
    %s64 = sadd.s32 %s63, 1
    %s65 = scalar_select %p62, %s63, %s64
    %p68 = pneg %p62
    %p69 = scmp.eq.s32.totalorder %s11, 1
    %p70 = por %p68, %p69
    %p71 = scmp.ne.s32.totalorder %s63, %s66
    %p72 = scmp.eq.s32.totalorder %s11, 0
    %p73 = por %p71, %p72
    %p74 = scmp.ne.s32.totalorder %s63, %s66
    %p75 = scmp.eq.s32.totalorder %s16, 1
    %p76 = por %p74, %p75
    %p77 = scmp.ne.s32.totalorder %s66, %s67
    %p78 = scmp.eq.s32.totalorder %s16, 0
    %p79 = por %p77, %p78
    %p80 = scmp.ne.s32.totalorder %s66, %s67
    %p81 = scmp.eq.s32.totalorder %s17, 1
    %p82 = por %p80, %p81
    %p84 = scmp.ne.s32.totalorder %s67, %s83
    %p85 = scmp.eq.s32.totalorder %s17, 0
    %p86 = por %p84, %p85
    %s88 = sadd.s32 %s87, 1
    %p91 = scmp.eq.s32.totalorder %s11, 1
    %p92 = scmp.ne.s32.totalorder %s87, %s89
    %p93 = scmp.eq.s32.totalorder %s11, 0
    %p94 = por %p92, %p93
    %p95 = scmp.ne.s32.totalorder %s87, %s89
    %p96 = scmp.eq.s32.totalorder %s16, 1
    %p97 = por %p95, %p96
    %p98 = scmp.ne.s32.totalorder %s89, %s90
    %p99 = scmp.eq.s32.totalorder %s16, 0
    %p100 = por %p98, %p99
    %p101 = scmp.ne.s32.totalorder %s89, %s90
    %p102 = scmp.eq.s32.totalorder %s17, 1
    %p103 = por %p101, %p102
    %p105 = scmp.ne.s32.totalorder %s90, %s104
    %p106 = scmp.eq.s32.totalorder %s17, 0
    %p107 = por %p105, %p106
    %s109 = sadd.s32 %s108, 1
    %p112 = scmp.eq.s32.totalorder %s11, 1
    %p113 = scmp.ne.s32.totalorder %s108, %s110
    %p114 = scmp.eq.s32.totalorder %s11, 0
    %p115 = por %p113, %p114
    %p116 = scmp.ne.s32.totalorder %s108, %s110
    %p117 = scmp.eq.s32.totalorder %s16, 1
    %p118 = por %p116, %p117
    %p119 = scmp.ne.s32.totalorder %s110, %s111
    %p120 = scmp.eq.s32.totalorder %s16, 0
    %p121 = por %p119, %p120
    %p122 = scmp.ne.s32.totalorder %s110, %s111
    %p123 = scmp.eq.s32.totalorder %s17, 1
    %p124 = por %p122, %p123
    %p126 = scmp.ne.s32.totalorder %s111, %s125
    %p127 = scmp.eq.s32.totalorder %s17, 0
    %p128 = por %p126, %p127
    %s130 = sadd.s32 %s129, 1
    %p133 = scmp.eq.s32.totalorder %s11, 1
    %p134 = scmp.ne.s32.totalorder %s129, %s131
    %p135 = scmp.eq.s32.totalorder %s11, 0
    %p136 = por %p134, %p135
    %p137 = scmp.ne.s32.totalorder %s129, %s131
    %p138 = scmp.eq.s32.totalorder %s16, 1
    %p139 = por %p137, %p138
    %p140 = scmp.ne.s32.totalorder %s131, %s132
    %p141 = scmp.eq.s32.totalorder %s16, 0
    %p142 = por %p140, %p141
    %p143 = scmp.ne.s32.totalorder %s131, %s132
    %p144 = scmp.eq.s32.totalorder %s17, 1
    %p145 = por %p143, %p144
    %p147 = scmp.ne.s32.totalorder %s132, %s146
    %p148 = scmp.eq.s32.totalorder %s17, 0
    %p149 = por %p147, %p148
    %s150 = ssub.s32 %s18, %s30
    %s151 = ssub.s32 %s19, %s26
    %s152 = sor.u32 %s150, %s151
    %p153 = scmp.eq.s32.totalorder %s152, 0
    %s155 = sadd.s32 %s154, 1
    %s156 = scalar_select %p153, %s154, %s155
    %p159 = pneg %p153
    %p160 = scmp.eq.s32.totalorder %s11, 1
    %p161 = por %p159, %p160
    %p162 = scmp.ne.s32.totalorder %s154, %s157
    %p163 = scmp.eq.s32.totalorder %s11, 0
    %p164 = por %p162, %p163
    %p165 = scmp.ne.s32.totalorder %s154, %s157
    %p166 = scmp.eq.s32.totalorder %s16, 1
    %p167 = por %p165, %p166
    %p168 = scmp.ne.s32.totalorder %s157, %s158
    %p169 = scmp.eq.s32.totalorder %s16, 0
    %p170 = por %p168, %p169
    %p171 = scmp.ne.s32.totalorder %s157, %s158
    %p172 = scmp.eq.s32.totalorder %s17, 1
    %p173 = por %p171, %p172
    %p175 = scmp.ne.s32.totalorder %s158, %s174
    %p176 = scmp.eq.s32.totalorder %s17, 0
    %p177 = por %p175, %p176
    %p178 = scmp.le.s32.totalorder 1, %s11
    %p179 = scmp.lt.s32.totalorder %s11, 3
    %p180 = pnand %p178, %p179
    %p181 = pneg %p180
    // Predicated region
    $region9: #{encoder_decoder_forward.14} parent=5 // pred_check
      _
    $region10: #{encoder_decoder_forward.14} parent=5 // pred_check_branch
      %183 = sbr.rel (%p180) target = $region12
    $region11: #{encoder_decoder_forward.14} parent=5 // pred_region
      %s184 = ssub.s32 %s11, 1
      // Predicated region
      $region13: #{encoder_decoder_forward.14} parent=11 // pred_check
        %p185 = pneg %p100
      $region14: #{encoder_decoder_forward.14} parent=11 // pred_check_branch
        %187 = sbr.rel (%p185) target = $region16
      $region15: #{encoder_decoder_forward.14} parent=11 // pred_region
        _
      $region16: #{encoder_decoder_forward.14} parent=11 // pred_fallthru
        _
      // Predicated region
      $region17: #{encoder_decoder_forward.14} parent=11 // pred_check
        %p188 = pneg %p121
      $region18: #{encoder_decoder_forward.14} parent=11 // pred_check_branch
        %190 = sbr.rel (%p188) target = $region20
      $region19: #{encoder_decoder_forward.14} parent=11 // pred_region
        _
      $region20: #{encoder_decoder_forward.14} parent=11 // pred_fallthru
        _
      // Predicated region
      $region21: #{encoder_decoder_forward.14} parent=11 // pred_check
        %p191 = pneg %p142
      $region22: #{encoder_decoder_forward.14} parent=11 // pred_check_branch
        %193 = sbr.rel (%p191) target = $region24
      $region23: #{encoder_decoder_forward.14} parent=11 // pred_region
        _
      $region24: #{encoder_decoder_forward.14} parent=11 // pred_fallthru
        _
    $region12: #{encoder_decoder_forward.14} parent=5 // pred_fallthru
      _
    %p194 = scmp.lt.s32.totalorder %s11, 2
    // Predicated region
    $region25: #{encoder_decoder_forward.14} parent=5 // pred_check
      %p195 = pneg %p194
    $region26: #{encoder_decoder_forward.14} parent=5 // pred_check_branch
      %197 = sbr.rel (%p195) target = $region28
    $region27: #{encoder_decoder_forward.14} parent=5 // pred_region
      // Predicated region
      $region29: #{encoder_decoder_forward.14} parent=27 // pred_check
        %p198 = pneg %p45
      $region30: #{encoder_decoder_forward.14} parent=27 // pred_check_branch
        %200 = sbr.rel (%p198) target = $region32
      $region31: #{encoder_decoder_forward.14} parent=27 // pred_region
        %s201 = smul.u32 2, %s19
        %p202 = scmp.lt.s32.totalorder %s18, 1
        %s203 = scalar_select %p202, %s18, 1
        %p204 = scmp.lt.s32.totalorder %s201, 1
        %s205 = scalar_select %p204, %s201, 1
        %s206 = smul.addr %s203, 2
        %s207 = sadd.s32 %s205, %s206
        %s208 = smul.addr %s207, 2
        %s209 = scalar_lea.vmem %s0, %s208
        %s210 = smul.u32 2, %s19
      $region32: #{encoder_decoder_forward.14} parent=27 // pred_fallthru
        _
      // Predicated region
      $region33: #{encoder_decoder_forward.14} parent=27 // pred_check
        %p211 = pneg %p73
      $region34: #{encoder_decoder_forward.14} parent=27 // pred_check_branch
        %213 = sbr.rel (%p211) target = $region36
      $region35: #{encoder_decoder_forward.14} parent=27 // pred_region
        %s214 = smul.u32 4, %s19
        %p215 = scmp.lt.s32.totalorder %s18, 1
        %s216 = scalar_select %p215, %s18, 1
        %p217 = scmp.lt.s32.totalorder %s214, 3
        %s218 = scalar_select %p217, %s214, 3
        %s219 = smul.addr %s216, 4
        %s220 = sadd.s32 %s218, %s219
        %s221 = smul.addr %s220, 2
        %s222 = scalar_lea.vmem %s1, %s221
        %s223 = smul.u32 4, %s19
      $region36: #{encoder_decoder_forward.14} parent=27 // pred_fallthru
        _
    $region28: #{encoder_decoder_forward.14} parent=5 // pred_fallthru
      _
    %p224 = scmp.le.s32.totalorder 1, %s11
    %p225 = scmp.lt.s32.totalorder %s11, 3
    %p226 = pnand %p224, %p225
    %p227 = pneg %p226
    // Predicated region
    $region37: #{encoder_decoder_forward.14} parent=5 // pred_check
      _
    $region38: #{encoder_decoder_forward.14} parent=5 // pred_check_branch
      %229 = sbr.rel (%p226) target = $region40
    $region39: #{encoder_decoder_forward.14} parent=5 // pred_region
      %s230 = ssub.s32 %s11, 1
      %s231 = smul.u32 2, %s21
      %p232 = scmp.lt.s32.totalorder %s20, 1
      %s233 = scalar_select %p232, %s20, 1
      %p234 = scmp.lt.s32.totalorder %s231, 1
      %s235 = scalar_select %p234, %s231, 1
      %s236 = smul.addr %s233, 2
      %s237 = sadd.s32 %s235, %s236
      %s238 = smul.addr %s237, 2
      %s239 = scalar_lea.vmem %s0, %s238
      %p240 = pneg %p51
      %p241 = pneg %p48
      %s242 = smul.u32 4, %s21
      %p243 = scmp.lt.s32.totalorder %s20, 1
      %s244 = scalar_select %p243, %s20, 1
      %p245 = scmp.lt.s32.totalorder %s242, 3
      %s246 = scalar_select %p245, %s242, 3
      %s247 = smul.addr %s244, 4
      %s248 = sadd.s32 %s246, %s247
      %s249 = smul.addr %s248, 2
      %s250 = scalar_lea.vmem %s1, %s249
      %p251 = pneg %p79
      %p252 = pneg %p76
      %p253 = pneg %p100
      %p254 = pneg %p97
      %p255 = pneg %p121
      %p256 = pneg %p118
      %p257 = pneg %p142
      %p258 = pneg %p139
      %p259 = pneg %p170
      %p260 = pneg %p167
      %s261 = smul.u32 4, %s21
      %p262 = scmp.lt.s32.totalorder %s20, 1
      %s263 = scalar_select %p262, %s20, 1
      %p264 = scmp.lt.s32.totalorder %s261, 3
      %s265 = scalar_select %p264, %s261, 3
      %s266 = smul.addr %s263, 4
      %s267 = sadd.s32 %s265, %s266
      %s268 = smul.addr %s267, 2
      %s269 = scalar_lea.vmem %s5, %s268
      %s270 = smul.u32 2, %s21
      %p271 = scmp.lt.s32.totalorder %s20, 1
      %s272 = scalar_select %p271, %s20, 1
      %p273 = scmp.lt.s32.totalorder %s270, 1
      %s274 = scalar_select %p273, %s270, 1
      %s275 = smul.addr %s272, 2
      %s276 = sadd.s32 %s274, %s275
      %s277 = smul.addr %s276, 2
      %s278 = scalar_lea.vmem %s0, %s277
      %s279 = smul.u32 2, %s21
      %s280 = smul.u32 4, %s21
      %p281 = scmp.lt.s32.totalorder %s20, 1
      %s282 = scalar_select %p281, %s20, 1
      %p283 = scmp.lt.s32.totalorder %s280, 3
      %s284 = scalar_select %p283, %s280, 3
      %s285 = smul.addr %s282, 4
      %s286 = sadd.s32 %s284, %s285
      %s287 = smul.addr %s286, 2
      %s288 = scalar_lea.vmem %s1, %s287
      %s289 = smul.u32 4, %s21
      %s290 = smul.u32 4, %s21
      %p291 = scmp.lt.s32.totalorder %s20, 1
      %s292 = scalar_select %p291, %s20, 1
      %p293 = scmp.lt.s32.totalorder %s290, 3
      %s294 = scalar_select %p293, %s290, 3
      %s295 = smul.addr %s292, 4
      %s296 = sadd.s32 %s294, %s295
      %s297 = smul.addr %s296, 2
      %s298 = scalar_lea.vmem %s5, %s297
      %s299 = smul.u32 4, %s21
      %v301 = vld [vmem:[%s2] sm:$0xf]
      %v302 = vld [vmem:[%s2 + $0x4] sm:$0xf]
      %v303 = vld [vmem:[%s2 + $0x8] sm:$0xf]
      %v304 = vld [vmem:[%s2 + $0xc] sm:$0xf]
      %v305 = vld [vmem:[%s2 + $0x10] sm:$0xf]
      %v306 = vld [vmem:[%s2 + $0x14] sm:$0xf]
      %v307 = vld [vmem:[%s2 + $0x18] sm:$0xf]
      %v308 = vld [vmem:[%s2 + $0x1c] sm:$0xf]
      %v309 = vld [vmem:[%s4] sm:$0xf]
      %v310 = vld [vmem:[%s4 + $0x4] sm:$0xf]
      %v311 = vld [vmem:[%s4 + $0x8] sm:$0xf]
      %v312 = vld [vmem:[%s4 + $0xc] sm:$0xf]
      %v313 = vld [vmem:[%s4 + $0x10] sm:$0xf]
      %v314 = vld [vmem:[%s4 + $0x14] sm:$0xf]
      %v315 = vld [vmem:[%s4 + $0x18] sm:$0xf]
      %v316 = vld [vmem:[%s4 + $0x1c] sm:$0xf]
      %v317 = vld [vmem:[%s3] sm:$0x1]
      %v318 = vld [vmem:[%s278] sm:$0x3]
      %v319 = vld [vmem:[%s288] sm:$0x3]
      %v320 = vunpack.c.l.bf16 %v318
      %v329 = vunpack.c.l.b16 %v301
      %v330 = vunpack.c.l.b16 %v302
      %v331 = vunpack.c.l.b16 %v303
      %v332 = vunpack.c.l.b16 %v304
      %v333 = vunpack.c.l.b16 %v305
      %v334 = vunpack.c.l.b16 %v306
      %v335 = vunpack.c.l.b16 %v307
      %v336 = vunpack.c.l.b16 %v308
      %v337 = vpack.c.b16 %v330, %v329
      %v338 = vpack.c.b16 %v332, %v331
      %v339 = vpack.c.b16 %v334, %v333
      %v340 = vpack.c.b16 %v336, %v335
      %vm345 = vcmask 523264
      %v347 = vsel %vm345, %v319, 0
      %349 = vmatprep.subr.bf16.mxu0 0
      %350 = vmatpush1.bf16.msra.mxu0 %v337
      %351 = vmatprep.subr.bf16.mxu0 0
      %352 = vmatpush1.bf16.msra.mxu0 %v338
      %353 = vmatprep.subr.bf16.mxu0 0
      %354 = vmatpush1.bf16.msra.mxu0 %v339
      %355 = vmatprep.subr.bf16.mxu0 0
      %356 = vmatpush1.bf16.msra.mxu0 %v340
      %357 = vmatprep.subr.bf16.mxu0 0
      %358 = vmatpush1.bf16.msra.mxu0 0
      %359 = vmatprep.subr.bf16.mxu0 0
      %360 = vmatpush1.bf16.msra.mxu0 0
      %361 = vmatprep.subr.bf16.mxu0 0
      %362 = vmatpush1.bf16.msra.mxu0 0
      %363 = vmatprep.subr.bf16.mxu0 0
      %364 = vmatpush1.bf16.msra.mxu0 0
      %365 = vmatprep.subr.bf16.mxu0 0
      %366 = vmatpush1.bf16.msra.mxu0 0
      %367 = vmatprep.subr.bf16.mxu0 0
      %368 = vmatpush1.bf16.msra.mxu0 0
      %369 = vmatprep.subr.bf16.mxu0 0
      %370 = vmatpush1.bf16.msra.mxu0 0
      %371 = vmatprep.subr.bf16.mxu0 0
      %372 = vmatpush1.bf16.msra.mxu0 0
      %373 = vmatprep.subr.bf16.mxu0 0
      %374 = vmatpush1.bf16.msra.mxu0 0
      %375 = vmatprep.subr.bf16.mxu0 0
      %376 = vmatpush1.bf16.msra.mxu0 0
      %377 = vmatprep.subr.bf16.mxu0 0
      %378 = vmatpush1.bf16.msra.mxu0 0
      %379 = vmatprep.subr.bf16.mxu0 0
      %380 = vmatpush1.bf16.msra.mxu0 0
      %381 = vmatprep.mubr.bf16.mxu0 0
      %382 = vmatmul.mubr.bf16.gmra.mrb[0].mxu0 %v347
      %v383 = vpop.f32.mrb[0].mxu0
      %v384 = vadd.f32 %v320, %v383
      %v385 = vpop.f32.mrb[0].mxu0
      %v386 = vpop.f32.mrb[0].mxu0
      %v387 = vpop.f32.mrb[0].mxu0
      %388 = vdwg.mxu0
      %v390 = vlaneseq
      %v391 = vshrl.u32 %v390, 7
      %v392 = vsub.s32 0, %v391
      %v393 = vrot.slane %v317, %v392
      %v395 = vadd.f32 %v384, %v393
      %v396 = vmax.f32 %v395, 0.0
      %v397 = vpack.c.bf16 %v396, %v396
      %v406 = vunpack.c.l.b16 %v309
      %v407 = vunpack.c.l.b16 %v310
      %v408 = vunpack.c.l.b16 %v311
      %v409 = vunpack.c.l.b16 %v312
      %v410 = vunpack.c.l.b16 %v313
      %v411 = vunpack.c.l.b16 %v314
      %v412 = vunpack.c.l.b16 %v315
      %v413 = vunpack.c.l.b16 %v316
      %v414 = vpack.c.b16 %v407, %v406
      %v415 = vpack.c.b16 %v409, %v408
      %v416 = vpack.c.b16 %v411, %v410
      %v417 = vpack.c.b16 %v413, %v412
      %v423 = vsel %vm345, %v397, 0
      %425 = vmatprep.subr.bf16.mxu0 0
      %426 = vmatpush1.bf16.msra.mxu0 %v414
      %427 = vmatprep.subr.bf16.mxu0 0
      %428 = vmatpush1.bf16.msra.mxu0 %v415
      %429 = vmatprep.subr.bf16.mxu0 0
      %430 = vmatpush1.bf16.msra.mxu0 %v416
      %431 = vmatprep.subr.bf16.mxu0 0
      %432 = vmatpush1.bf16.msra.mxu0 %v417
      %433 = vmatprep.subr.bf16.mxu0 0
      %434 = vmatpush1.bf16.msra.mxu0 0
      %435 = vmatprep.subr.bf16.mxu0 0
      %436 = vmatpush1.bf16.msra.mxu0 0
      %437 = vmatprep.subr.bf16.mxu0 0
      %438 = vmatpush1.bf16.msra.mxu0 0
      %439 = vmatprep.subr.bf16.mxu0 0
      %440 = vmatpush1.bf16.msra.mxu0 0
      %441 = vmatprep.subr.bf16.mxu0 0
      %442 = vmatpush1.bf16.msra.mxu0 0
      %443 = vmatprep.subr.bf16.mxu0 0
      %444 = vmatpush1.bf16.msra.mxu0 0
      %445 = vmatprep.subr.bf16.mxu0 0
      %446 = vmatpush1.bf16.msra.mxu0 0
      %447 = vmatprep.subr.bf16.mxu0 0
      %448 = vmatpush1.bf16.msra.mxu0 0
      %449 = vmatprep.subr.bf16.mxu0 0
      %450 = vmatpush1.bf16.msra.mxu0 0
      %451 = vmatprep.subr.bf16.mxu0 0
      %452 = vmatpush1.bf16.msra.mxu0 0
      %453 = vmatprep.subr.bf16.mxu0 0
      %454 = vmatpush1.bf16.msra.mxu0 0
      %455 = vmatprep.subr.bf16.mxu0 0
      %456 = vmatpush1.bf16.msra.mxu0 0
      %457 = vmatprep.mubr.bf16.mxu0 0
      %458 = vmatmul.mubr.bf16.gmra.mrb[0].mxu0 %v423
      %v459 = vpop.f32.mrb[0].mxu0
      %v460 = vadd.f32 0.0, %v459
      %v461 = vpop.f32.mrb[0].mxu0
      %v462 = vpop.f32.mrb[0].mxu0
      %v463 = vpop.f32.mrb[0].mxu0
      %464 = vdwg.mxu0
      %v465 = vpack.c.bf16 %v460, %v460
      %vm466 = vcmask 254976
      %467 = vst.msk [vmem:[%s298] sm:$0x3] %vm466, %v465
      %s468 = scalar_lea.vmem %s288, 2
      %v469 = vld [vmem:[%s468] sm:$0x3]
      %v471 = vsel %vm345, %v469, 0
      %473 = vmatprep.subr.bf16.mxu0 0
      %474 = vmatpush1.bf16.msra.mxu0 %v337
      %475 = vmatprep.subr.bf16.mxu0 0
      %476 = vmatpush1.bf16.msra.mxu0 %v338
      %477 = vmatprep.subr.bf16.mxu0 0
      %478 = vmatpush1.bf16.msra.mxu0 %v339
      %479 = vmatprep.subr.bf16.mxu0 0
      %480 = vmatpush1.bf16.msra.mxu0 %v340
      %481 = vmatprep.subr.bf16.mxu0 0
      %482 = vmatpush1.bf16.msra.mxu0 0
      %483 = vmatprep.subr.bf16.mxu0 0
      %484 = vmatpush1.bf16.msra.mxu0 0
      %485 = vmatprep.subr.bf16.mxu0 0
      %486 = vmatpush1.bf16.msra.mxu0 0
      %487 = vmatprep.subr.bf16.mxu0 0
      %488 = vmatpush1.bf16.msra.mxu0 0
      %489 = vmatprep.subr.bf16.mxu0 0
      %490 = vmatpush1.bf16.msra.mxu0 0
      %491 = vmatprep.subr.bf16.mxu0 0
      %492 = vmatpush1.bf16.msra.mxu0 0
      %493 = vmatprep.subr.bf16.mxu0 0
      %494 = vmatpush1.bf16.msra.mxu0 0
      %495 = vmatprep.subr.bf16.mxu0 0
      %496 = vmatpush1.bf16.msra.mxu0 0
      %497 = vmatprep.subr.bf16.mxu0 0
      %498 = vmatpush1.bf16.msra.mxu0 0
      %499 = vmatprep.subr.bf16.mxu0 0
      %500 = vmatpush1.bf16.msra.mxu0 0
      %501 = vmatprep.subr.bf16.mxu0 0
      %502 = vmatpush1.bf16.msra.mxu0 0
      %503 = vmatprep.subr.bf16.mxu0 0
      %504 = vmatpush1.bf16.msra.mxu0 0
      %505 = vmatprep.mubr.bf16.mxu0 0
      %506 = vmatmul.mubr.bf16.gmra.mrb[0].mxu0 %v471
      %v507 = vpop.f32.mrb[0].mxu0
      %v508 = vadd.f32 %v320, %v507
      %v509 = vpop.f32.mrb[0].mxu0
      %v510 = vpop.f32.mrb[0].mxu0
      %v511 = vpop.f32.mrb[0].mxu0
      %512 = vdwg.mxu0
      %v513 = vadd.f32 %v508, %v393
      %v514 = vmax.f32 %v513, 0.0
      %v515 = vpack.c.bf16 %v514, %v514
      %v517 = vsel %vm345, %v515, 0
      %519 = vmatprep.subr.bf16.mxu0 0
      %520 = vmatpush1.bf16.msra.mxu0 %v414
      %521 = vmatprep.subr.bf16.mxu0 0
      %522 = vmatpush1.bf16.msra.mxu0 %v415
      %523 = vmatprep.subr.bf16.mxu0 0
      %524 = vmatpush1.bf16.msra.mxu0 %v416
      %525 = vmatprep.subr.bf16.mxu0 0
      %526 = vmatpush1.bf16.msra.mxu0 %v417
      %527 = vmatprep.subr.bf16.mxu0 0
      %528 = vmatpush1.bf16.msra.mxu0 0
      %529 = vmatprep.subr.bf16.mxu0 0
      %530 = vmatpush1.bf16.msra.mxu0 0
      %531 = vmatprep.subr.bf16.mxu0 0
      %532 = vmatpush1.bf16.msra.mxu0 0
      %533 = vmatprep.subr.bf16.mxu0 0
      %534 = vmatpush1.bf16.msra.mxu0 0
      %535 = vmatprep.subr.bf16.mxu0 0
      %536 = vmatpush1.bf16.msra.mxu0 0
      %537 = vmatprep.subr.bf16.mxu0 0
      %538 = vmatpush1.bf16.msra.mxu0 0
      %539 = vmatprep.subr.bf16.mxu0 0
      %540 = vmatpush1.bf16.msra.mxu0 0
      %541 = vmatprep.subr.bf16.mxu0 0
      %542 = vmatpush1.bf16.msra.mxu0 0
      %543 = vmatprep.subr.bf16.mxu0 0
      %544 = vmatpush1.bf16.msra.mxu0 0
      %545 = vmatprep.subr.bf16.mxu0 0
      %546 = vmatpush1.bf16.msra.mxu0 0
      %547 = vmatprep.subr.bf16.mxu0 0
      %548 = vmatpush1.bf16.msra.mxu0 0
      %549 = vmatprep.subr.bf16.mxu0 0
      %550 = vmatpush1.bf16.msra.mxu0 0
      %551 = vmatprep.mubr.bf16.mxu0 0
      %552 = vmatmul.mubr.bf16.gmra.mrb[0].mxu0 %v517
      %v553 = vpop.f32.mrb[0].mxu0
      %v554 = vadd.f32 0.0, %v553
      %v555 = vpop.f32.mrb[0].mxu0
      %v556 = vpop.f32.mrb[0].mxu0
      %v557 = vpop.f32.mrb[0].mxu0
      %558 = vdwg.mxu0
      %v559 = vpack.c.bf16 %v554, %v554
      %s560 = scalar_lea.vmem %s298, 2
      %561 = vst.msk [vmem:[%s560] sm:$0x3] %vm466, %v559
      %s562 = scalar_lea.vmem %s278, 2
      %v563 = vld [vmem:[%s562] sm:$0x3]
      %s564 = scalar_lea.vmem %s288, 4
      %v565 = vld [vmem:[%s564] sm:$0x3]
      %v566 = vunpack.c.l.bf16 %v563
      %v568 = vsel %vm345, %v565, 0
      %570 = vmatprep.subr.bf16.mxu0 0
      %571 = vmatpush1.bf16.msra.mxu0 %v337
      %572 = vmatprep.subr.bf16.mxu0 0
      %573 = vmatpush1.bf16.msra.mxu0 %v338
      %574 = vmatprep.subr.bf16.mxu0 0
      %575 = vmatpush1.bf16.msra.mxu0 %v339
      %576 = vmatprep.subr.bf16.mxu0 0
      %577 = vmatpush1.bf16.msra.mxu0 %v340
      %578 = vmatprep.subr.bf16.mxu0 0
      %579 = vmatpush1.bf16.msra.mxu0 0
      %580 = vmatprep.subr.bf16.mxu0 0
      %581 = vmatpush1.bf16.msra.mxu0 0
      %582 = vmatprep.subr.bf16.mxu0 0
      %583 = vmatpush1.bf16.msra.mxu0 0
      %584 = vmatprep.subr.bf16.mxu0 0
      %585 = vmatpush1.bf16.msra.mxu0 0
      %586 = vmatprep.subr.bf16.mxu0 0
      %587 = vmatpush1.bf16.msra.mxu0 0
      %588 = vmatprep.subr.bf16.mxu0 0
      %589 = vmatpush1.bf16.msra.mxu0 0
      %590 = vmatprep.subr.bf16.mxu0 0
      %591 = vmatpush1.bf16.msra.mxu0 0
      %592 = vmatprep.subr.bf16.mxu0 0
      %593 = vmatpush1.bf16.msra.mxu0 0
      %594 = vmatprep.subr.bf16.mxu0 0
      %595 = vmatpush1.bf16.msra.mxu0 0
      %596 = vmatprep.subr.bf16.mxu0 0
      %597 = vmatpush1.bf16.msra.mxu0 0
      %598 = vmatprep.subr.bf16.mxu0 0
      %599 = vmatpush1.bf16.msra.mxu0 0
      %600 = vmatprep.subr.bf16.mxu0 0
      %601 = vmatpush1.bf16.msra.mxu0 0
      %602 = vmatprep.mubr.bf16.mxu0 0
      %603 = vmatmul.mubr.bf16.gmra.mrb[0].mxu0 %v568
      %v604 = vpop.f32.mrb[0].mxu0
      %v605 = vadd.f32 %v566, %v604
      %v606 = vpop.f32.mrb[0].mxu0
      %v607 = vpop.f32.mrb[0].mxu0
      %v608 = vpop.f32.mrb[0].mxu0
      %609 = vdwg.mxu0
      %v610 = vadd.f32 %v605, %v393
      %v611 = vmax.f32 %v610, 0.0
      %v612 = vpack.c.bf16 %v611, %v611
      %v614 = vsel %vm345, %v612, 0
      %616 = vmatprep.subr.bf16.mxu0 0
      %617 = vmatpush1.bf16.msra.mxu0 %v414
      %618 = vmatprep.subr.bf16.mxu0 0
      %619 = vmatpush1.bf16.msra.mxu0 %v415
      %620 = vmatprep.subr.bf16.mxu0 0
      %621 = vmatpush1.bf16.msra.mxu0 %v416
      %622 = vmatprep.subr.bf16.mxu0 0
      %623 = vmatpush1.bf16.msra.mxu0 %v417
      %624 = vmatprep.subr.bf16.mxu0 0
      %625 = vmatpush1.bf16.msra.mxu0 0
      %626 = vmatprep.subr.bf16.mxu0 0
      %627 = vmatpush1.bf16.msra.mxu0 0
      %628 = vmatprep.subr.bf16.mxu0 0
      %629 = vmatpush1.bf16.msra.mxu0 0
      %630 = vmatprep.subr.bf16.mxu0 0
      %631 = vmatpush1.bf16.msra.mxu0 0
      %632 = vmatprep.subr.bf16.mxu0 0
      %633 = vmatpush1.bf16.msra.mxu0 0
      %634 = vmatprep.subr.bf16.mxu0 0
      %635 = vmatpush1.bf16.msra.mxu0 0
      %636 = vmatprep.subr.bf16.mxu0 0
      %637 = vmatpush1.bf16.msra.mxu0 0
      %638 = vmatprep.subr.bf16.mxu0 0
      %639 = vmatpush1.bf16.msra.mxu0 0
      %640 = vmatprep.subr.bf16.mxu0 0
      %641 = vmatpush1.bf16.msra.mxu0 0
      %642 = vmatprep.subr.bf16.mxu0 0
      %643 = vmatpush1.bf16.msra.mxu0 0
      %644 = vmatprep.subr.bf16.mxu0 0
      %645 = vmatpush1.bf16.msra.mxu0 0
      %646 = vmatprep.subr.bf16.mxu0 0
      %647 = vmatpush1.bf16.msra.mxu0 0
      %648 = vmatprep.mubr.bf16.mxu0 0
      %649 = vmatmul.mubr.bf16.gmra.mrb[0].mxu0 %v614
      %v650 = vpop.f32.mrb[0].mxu0
      %v651 = vadd.f32 0.0, %v650
      %v652 = vpop.f32.mrb[0].mxu0
      %v653 = vpop.f32.mrb[0].mxu0
      %v654 = vpop.f32.mrb[0].mxu0
      %655 = vdwg.mxu0
      %v656 = vpack.c.bf16 %v651, %v651
      %s657 = scalar_lea.vmem %s298, 4
      %658 = vst.msk [vmem:[%s657] sm:$0x3] %vm466, %v656
      %s659 = scalar_lea.vmem %s288, 6
      %v660 = vld [vmem:[%s659] sm:$0x3]
      %v662 = vsel %vm345, %v660, 0
      %664 = vmatprep.subr.bf16.mxu0 0
      %665 = vmatpush1.bf16.msra.mxu0 %v337
      %666 = vmatprep.subr.bf16.mxu0 0
      %667 = vmatpush1.bf16.msra.mxu0 %v338
      %668 = vmatprep.subr.bf16.mxu0 0
      %669 = vmatpush1.bf16.msra.mxu0 %v339
      %670 = vmatprep.subr.bf16.mxu0 0
      %671 = vmatpush1.bf16.msra.mxu0 %v340
      %672 = vmatprep.subr.bf16.mxu0 0
      %673 = vmatpush1.bf16.msra.mxu0 0
      %674 = vmatprep.subr.bf16.mxu0 0
      %675 = vmatpush1.bf16.msra.mxu0 0
      %676 = vmatprep.subr.bf16.mxu0 0
      %677 = vmatpush1.bf16.msra.mxu0 0
      %678 = vmatprep.subr.bf16.mxu0 0
      %679 = vmatpush1.bf16.msra.mxu0 0
      %680 = vmatprep.subr.bf16.mxu0 0
      %681 = vmatpush1.bf16.msra.mxu0 0
      %682 = vmatprep.subr.bf16.mxu0 0
      %683 = vmatpush1.bf16.msra.mxu0 0
      %684 = vmatprep.subr.bf16.mxu0 0
      %685 = vmatpush1.bf16.msra.mxu0 0
      %686 = vmatprep.subr.bf16.mxu0 0
      %687 = vmatpush1.bf16.msra.mxu0 0
      %688 = vmatprep.subr.bf16.mxu0 0
      %689 = vmatpush1.bf16.msra.mxu0 0
      %690 = vmatprep.subr.bf16.mxu0 0
      %691 = vmatpush1.bf16.msra.mxu0 0
      %692 = vmatprep.subr.bf16.mxu0 0
      %693 = vmatpush1.bf16.msra.mxu0 0
      %694 = vmatprep.subr.bf16.mxu0 0
      %695 = vmatpush1.bf16.msra.mxu0 0
      %696 = vmatprep.mubr.bf16.mxu0 0
      %697 = vmatmul.mubr.bf16.gmra.mrb[0].mxu0 %v662
      %v698 = vpop.f32.mrb[0].mxu0
      %v699 = vadd.f32 %v566, %v698
      %v700 = vpop.f32.mrb[0].mxu0
      %v701 = vpop.f32.mrb[0].mxu0
      %v702 = vpop.f32.mrb[0].mxu0
      %703 = vdwg.mxu0
      %v704 = vadd.f32 %v699, %v393
      %v705 = vmax.f32 %v704, 0.0
      %v706 = vpack.c.bf16 %v705, %v705
      %v708 = vsel %vm345, %v706, 0
      %710 = vmatprep.subr.bf16.mxu0 0
      %711 = vmatpush1.bf16.msra.mxu0 %v414
      %712 = vmatprep.subr.bf16.mxu0 0
      %713 = vmatpush1.bf16.msra.mxu0 %v415
      %714 = vmatprep.subr.bf16.mxu0 0
      %715 = vmatpush1.bf16.msra.mxu0 %v416
      %716 = vmatprep.subr.bf16.mxu0 0
      %717 = vmatpush1.bf16.msra.mxu0 %v417
      %718 = vmatprep.subr.bf16.mxu0 0
      %719 = vmatpush1.bf16.msra.mxu0 0
      %720 = vmatprep.subr.bf16.mxu0 0
      %721 = vmatpush1.bf16.msra.mxu0 0
      %722 = vmatprep.subr.bf16.mxu0 0
      %723 = vmatpush1.bf16.msra.mxu0 0
      %724 = vmatprep.subr.bf16.mxu0 0
      %725 = vmatpush1.bf16.msra.mxu0 0
      %726 = vmatprep.subr.bf16.mxu0 0
      %727 = vmatpush1.bf16.msra.mxu0 0
      %728 = vmatprep.subr.bf16.mxu0 0
      %729 = vmatpush1.bf16.msra.mxu0 0
      %730 = vmatprep.subr.bf16.mxu0 0
      %731 = vmatpush1.bf16.msra.mxu0 0
      %732 = vmatprep.subr.bf16.mxu0 0
      %733 = vmatpush1.bf16.msra.mxu0 0
      %734 = vmatprep.subr.bf16.mxu0 0
      %735 = vmatpush1.bf16.msra.mxu0 0
      %736 = vmatprep.subr.bf16.mxu0 0
      %737 = vmatpush1.bf16.msra.mxu0 0
      %738 = vmatprep.subr.bf16.mxu0 0
      %739 = vmatpush1.bf16.msra.mxu0 0
      %740 = vmatprep.subr.bf16.mxu0 0
      %741 = vmatpush1.bf16.msra.mxu0 0
      %742 = vmatprep.mubr.bf16.mxu0 0
      %743 = vmatmul.mubr.bf16.gmra.mrb[0].mxu0 %v708
      %v744 = vpop.f32.mrb[0].mxu0
      %v745 = vadd.f32 0.0, %v744
      %v746 = vpop.f32.mrb[0].mxu0
      %v747 = vpop.f32.mrb[0].mxu0
      %v748 = vpop.f32.mrb[0].mxu0
      %749 = vdwg.mxu0
      %v750 = vpack.c.bf16 %v745, %v745
      %s751 = scalar_lea.vmem %s298, 6
      %752 = vst.msk [vmem:[%s751] sm:$0x3] %vm466, %v750
      %s753 = smul.u32 4, %s21
      %p754 = scmp.lt.s32.totalorder %s20, 1
      %s755 = scalar_select %p754, %s20, 1
      %p756 = scmp.lt.s32.totalorder %s753, 3
      %s757 = scalar_select %p756, %s753, 3
      %s758 = smul.addr %s755, 4
      %s759 = sadd.s32 %s757, %s758
      %s760 = smul.addr %s759, 2
      %s761 = scalar_lea.vmem %s5, %s760
      // Predicated region
      $region41: #{encoder_decoder_forward.14} parent=39 // pred_check
        %p762 = pneg %p167
      $region42: #{encoder_decoder_forward.14} parent=39 // pred_check_branch
        %764 = sbr.rel (%p762) target = $region44
      $region43: #{encoder_decoder_forward.14} parent=39 // pred_region
        %s765 = smul.u32 4, %s21
      $region44: #{encoder_decoder_forward.14} parent=39 // pred_fallthru
        _
    $region40: #{encoder_decoder_forward.14} parent=5 // pred_fallthru
      _
    %p766 = scmp.le.s32.totalorder 2, %s11
    // Predicated region
    $region45: #{encoder_decoder_forward.14} parent=5 // pred_check
      %p767 = pneg %p766
    $region46: #{encoder_decoder_forward.14} parent=5 // pred_check_branch
      %769 = sbr.rel (%p767) target = $region48
    $region47: #{encoder_decoder_forward.14} parent=5 // pred_region
      %s770 = ssub.s32 %s11, 2
      // Predicated region
      $region49: #{encoder_decoder_forward.14} parent=47 // pred_check
        %p771 = pneg %p173
      $region50: #{encoder_decoder_forward.14} parent=47 // pred_check_branch
        %773 = sbr.rel (%p771) target = $region52
      $region51: #{encoder_decoder_forward.14} parent=47 // pred_region
        %s774 = smul.u32 4, %s23
        %p775 = scmp.lt.s32.totalorder %s22, 1
        %s776 = scalar_select %p775, %s22, 1
        %p777 = scmp.lt.s32.totalorder %s774, 3
        %s778 = scalar_select %p777, %s774, 3
        %s779 = smul.addr %s776, 4
        %s780 = sadd.s32 %s778, %s779
        %s781 = smul.addr %s780, 2
        %s782 = scalar_lea.vmem %s5, %s781
      $region52: #{encoder_decoder_forward.14} parent=47 // pred_fallthru
        _
    $region48: #{encoder_decoder_forward.14} parent=5 // pred_fallthru
      _
  $region6: #{encoder_decoder_forward.14} parent=0 // loop_footer
    %s15 = sadd.s32 1, %s11
  $region7: #{encoder_decoder_forward.14} parent=0 // loop_footer_branch
    %10 = sbr.rel target = $region3
  $region8: #{encoder_decoder_forward.14} parent=0 // loop_exit
    _

// kernel: encoder_decoder_forward.15
$region0: #{encoder_decoder_forward.15}
  #allocation0 [shape = 'u32[]', space=smem, size = 0x4, offset = 0x4, fixed_abs, tag = 'smem constant byte address 0x4 - core index']
  #allocation1 [shape = 'u32[144,128]{1,0:T(1,128)}', space=vmem, size = 0x12000, scoped, tag = 'internal scratch']
  %s0 = inlined_call_operand.vmem [shape: bf16[2,4,8,32], index: 0, kind: input, shape index: {}]
  %s1 = inlined_call_operand.vmem [shape: bf16[2,8,8,32], index: 1, kind: input, shape index: {}]
  %s2 = inlined_call_operand.vmem [shape: bf16[32,32], index: 2, kind: input, shape index: {}]
  %s3 = inlined_call_operand.vmem [shape: f32[1,32], index: 3, kind: input, shape index: {}]
  %s4 = inlined_call_operand.vmem [shape: bf16[32,16], index: 4, kind: input, shape index: {}]
  %s5 = inlined_call_operand.vmem [shape: bf16[2,8,8,16], index: 5, kind: output, shape index: {}]
  %s6 = sld [smem:[#allocation0]]
  $region53: #{encoder_decoder_forward.15} parent=0
    _
  %s8 = ssub.s32 1, %s6
  %s9 = scalar_select 0, %s8, %s6
  loop: start=0, step=1, limit=4
  $region2: #{encoder_decoder_forward.15} parent=0 // loop_pre_header
    _
  $region3: #{encoder_decoder_forward.15} parent=0 // loop_header
    %s11 = sphi 0, %s15
    %p12 = scmp.ge.s32.totalorder %s11, 4
    %s18 = sphi 0, %s30
    %s19 = sphi 0, %s26
    %s20 = sphi 0, %s18
    %s21 = sphi 0, %s19
    %s22 = sphi 0, %s20
    %s23 = sphi 0, %s21
    %s35 = sphi 0, %s37
    %s38 = sphi 0, %s35
    %s39 = sphi 0, %s38
    %s55 = sphi 0, %s39
    %s63 = sphi 0, %s65
    %s66 = sphi 0, %s63
    %s67 = sphi 0, %s66
    %s83 = sphi 0, %s67
    %s87 = sphi 0, %s87
    %s89 = sphi 0, %s87
    %s90 = sphi 0, %s89
    %s104 = sphi 0, %s90
    %s108 = sphi 0, %s108
    %s110 = sphi 0, %s108
    %s111 = sphi 0, %s110
    %s125 = sphi 0, %s111
    %s129 = sphi 0, %s129
    %s131 = sphi 0, %s129
    %s132 = sphi 0, %s131
    %s146 = sphi 0, %s132
    %s154 = sphi 0, %s156
    %s157 = sphi 0, %s154
    %s158 = sphi 0, %s157
    %s174 = sphi 0, %s158
  $region4: #{encoder_decoder_forward.15} parent=0 // loop_header_branch
    %14 = sbr.rel (%p12) target = $region8
  $region5: #{encoder_decoder_forward.15} parent=0 // loop_body
    %s16 = ssub.s32 %s11, 1
    %s17 = ssub.s32 %s11, 2
    %s24 = sadd.s32 1, %s19
    %p25 = scmp.ge.s32.totalorder %s24, 1
    %s26 = scalar_select %p25, 0, %s24
    %s27 = sadd.s32 1, %s18
    %s28 = scalar_select %p25, %s27, %s18
    %p29 = scmp.ge.s32.totalorder %s28, 2
    %s30 = scalar_select %p29, 0, %s28
    %s31 = ssub.s32 %s18, %s30
    %s32 = ssub.s32 %s19, %s26
    %s33 = sor.u32 %s31, %s32
    %p34 = scmp.eq.s32.totalorder %s33, 0
    %s36 = sadd.s32 %s35, 1
    %s37 = scalar_select %p34, %s35, %s36
    %p40 = pneg %p34
    %p41 = scmp.eq.s32.totalorder %s11, 1
    %p42 = por %p40, %p41
    %p43 = scmp.ne.s32.totalorder %s35, %s38
    %p44 = scmp.eq.s32.totalorder %s11, 0
    %p45 = por %p43, %p44
    %p46 = scmp.ne.s32.totalorder %s35, %s38
    %p47 = scmp.eq.s32.totalorder %s16, 1
    %p48 = por %p46, %p47
    %p49 = scmp.ne.s32.totalorder %s38, %s39
    %p50 = scmp.eq.s32.totalorder %s16, 0
    %p51 = por %p49, %p50
    %p52 = scmp.ne.s32.totalorder %s38, %s39
    %p53 = scmp.eq.s32.totalorder %s17, 1
    %p54 = por %p52, %p53
    %p56 = scmp.ne.s32.totalorder %s39, %s55
    %p57 = scmp.eq.s32.totalorder %s17, 0
    %p58 = por %p56, %p57
    %s59 = ssub.s32 %s18, %s30
    %s60 = ssub.s32 %s19, %s26
    %s61 = sor.u32 %s59, %s60
    %p62 = scmp.eq.s32.totalorder %s61, 0
    %s64 = sadd.s32 %s63, 1
    %s65 = scalar_select %p62, %s63, %s64
    %p68 = pneg %p62
    %p69 = scmp.eq.s32.totalorder %s11, 1
    %p70 = por %p68, %p69
    %p71 = scmp.ne.s32.totalorder %s63, %s66
    %p72 = scmp.eq.s32.totalorder %s11, 0
    %p73 = por %p71, %p72
    %p74 = scmp.ne.s32.totalorder %s63, %s66
    %p75 = scmp.eq.s32.totalorder %s16, 1
    %p76 = por %p74, %p75
    %p77 = scmp.ne.s32.totalorder %s66, %s67
    %p78 = scmp.eq.s32.totalorder %s16, 0
    %p79 = por %p77, %p78
    %p80 = scmp.ne.s32.totalorder %s66, %s67
    %p81 = scmp.eq.s32.totalorder %s17, 1
    %p82 = por %p80, %p81
    %p84 = scmp.ne.s32.totalorder %s67, %s83
    %p85 = scmp.eq.s32.totalorder %s17, 0
    %p86 = por %p84, %p85
    %s88 = sadd.s32 %s87, 1
    %p91 = scmp.eq.s32.totalorder %s11, 1
    %p92 = scmp.ne.s32.totalorder %s87, %s89
    %p93 = scmp.eq.s32.totalorder %s11, 0
    %p94 = por %p92, %p93
    %p95 = scmp.ne.s32.totalorder %s87, %s89
    %p96 = scmp.eq.s32.totalorder %s16, 1
    %p97 = por %p95, %p96
    %p98 = scmp.ne.s32.totalorder %s89, %s90
    %p99 = scmp.eq.s32.totalorder %s16, 0
    %p100 = por %p98, %p99
    %p101 = scmp.ne.s32.totalorder %s89, %s90
    %p102 = scmp.eq.s32.totalorder %s17, 1
    %p103 = por %p101, %p102
    %p105 = scmp.ne.s32.totalorder %s90, %s104
    %p106 = scmp.eq.s32.totalorder %s17, 0
    %p107 = por %p105, %p106
    %s109 = sadd.s32 %s108, 1
    %p112 = scmp.eq.s32.totalorder %s11, 1
    %p113 = scmp.ne.s32.totalorder %s108, %s110
    %p114 = scmp.eq.s32.totalorder %s11, 0
    %p115 = por %p113, %p114
    %p116 = scmp.ne.s32.totalorder %s108, %s110
    %p117 = scmp.eq.s32.totalorder %s16, 1
    %p118 = por %p116, %p117
    %p119 = scmp.ne.s32.totalorder %s110, %s111
    %p120 = scmp.eq.s32.totalorder %s16, 0
    %p121 = por %p119, %p120
    %p122 = scmp.ne.s32.totalorder %s110, %s111
    %p123 = scmp.eq.s32.totalorder %s17, 1
    %p124 = por %p122, %p123
    %p126 = scmp.ne.s32.totalorder %s111, %s125
    %p127 = scmp.eq.s32.totalorder %s17, 0
    %p128 = por %p126, %p127
    %s130 = sadd.s32 %s129, 1
    %p133 = scmp.eq.s32.totalorder %s11, 1
    %p134 = scmp.ne.s32.totalorder %s129, %s131
    %p135 = scmp.eq.s32.totalorder %s11, 0
    %p136 = por %p134, %p135
    %p137 = scmp.ne.s32.totalorder %s129, %s131
    %p138 = scmp.eq.s32.totalorder %s16, 1
    %p139 = por %p137, %p138
    %p140 = scmp.ne.s32.totalorder %s131, %s132
    %p141 = scmp.eq.s32.totalorder %s16, 0
    %p142 = por %p140, %p141
    %p143 = scmp.ne.s32.totalorder %s131, %s132
    %p144 = scmp.eq.s32.totalorder %s17, 1
    %p145 = por %p143, %p144
    %p147 = scmp.ne.s32.totalorder %s132, %s146
    %p148 = scmp.eq.s32.totalorder %s17, 0
    %p149 = por %p147, %p148
    %s150 = ssub.s32 %s18, %s30
    %s151 = ssub.s32 %s19, %s26
    %s152 = sor.u32 %s150, %s151
    %p153 = scmp.eq.s32.totalorder %s152, 0
    %s155 = sadd.s32 %s154, 1
    %s156 = scalar_select %p153, %s154, %s155
    %p159 = pneg %p153
    %p160 = scmp.eq.s32.totalorder %s11, 1
    %p161 = por %p159, %p160
    %p162 = scmp.ne.s32.totalorder %s154, %s157
    %p163 = scmp.eq.s32.totalorder %s11, 0
    %p164 = por %p162, %p163
    %p165 = scmp.ne.s32.totalorder %s154, %s157
    %p166 = scmp.eq.s32.totalorder %s16, 1
    %p167 = por %p165, %p166
    %p168 = scmp.ne.s32.totalorder %s157, %s158
    %p169 = scmp.eq.s32.totalorder %s16, 0
    %p170 = por %p168, %p169
    %p171 = scmp.ne.s32.totalorder %s157, %s158
    %p172 = scmp.eq.s32.totalorder %s17, 1
    %p173 = por %p171, %p172
    %p175 = scmp.ne.s32.totalorder %s158, %s174
    %p176 = scmp.eq.s32.totalorder %s17, 0
    %p177 = por %p175, %p176
    %p178 = scmp.le.s32.totalorder 1, %s11
    %p179 = scmp.lt.s32.totalorder %s11, 3
    %p180 = pnand %p178, %p179
    %p181 = pneg %p180
    // Predicated region
    $region9: #{encoder_decoder_forward.15} parent=5 // pred_check
      _
    $region10: #{encoder_decoder_forward.15} parent=5 // pred_check_branch
      %183 = sbr.rel (%p180) target = $region12
    $region11: #{encoder_decoder_forward.15} parent=5 // pred_region
      %s184 = ssub.s32 %s11, 1
      // Predicated region
      $region13: #{encoder_decoder_forward.15} parent=11 // pred_check
        %p185 = pneg %p100
      $region14: #{encoder_decoder_forward.15} parent=11 // pred_check_branch
        %187 = sbr.rel (%p185) target = $region16
      $region15: #{encoder_decoder_forward.15} parent=11 // pred_region
        _
      $region16: #{encoder_decoder_forward.15} parent=11 // pred_fallthru
        _
      // Predicated region
      $region17: #{encoder_decoder_forward.15} parent=11 // pred_check
        %p188 = pneg %p121
      $region18: #{encoder_decoder_forward.15} parent=11 // pred_check_branch
        %190 = sbr.rel (%p188) target = $region20
      $region19: #{encoder_decoder_forward.15} parent=11 // pred_region
        _
      $region20: #{encoder_decoder_forward.15} parent=11 // pred_fallthru
        _
      // Predicated region
      $region21: #{encoder_decoder_forward.15} parent=11 // pred_check
        %p191 = pneg %p142
      $region22: #{encoder_decoder_forward.15} parent=11 // pred_check_branch
        %193 = sbr.rel (%p191) target = $region24
      $region23: #{encoder_decoder_forward.15} parent=11 // pred_region
        _
      $region24: #{encoder_decoder_forward.15} parent=11 // pred_fallthru
        _
    $region12: #{encoder_decoder_forward.15} parent=5 // pred_fallthru
      _
    %p194 = scmp.lt.s32.totalorder %s11, 2
    // Predicated region
    $region25: #{encoder_decoder_forward.15} parent=5 // pred_check
      %p195 = pneg %p194
    $region26: #{encoder_decoder_forward.15} parent=5 // pred_check_branch
      %197 = sbr.rel (%p195) target = $region28
    $region27: #{encoder_decoder_forward.15} parent=5 // pred_region
      // Predicated region
      $region29: #{encoder_decoder_forward.15} parent=27 // pred_check
        %p198 = pneg %p45
      $region30: #{encoder_decoder_forward.15} parent=27 // pred_check_branch
        %200 = sbr.rel (%p198) target = $region32
      $region31: #{encoder_decoder_forward.15} parent=27 // pred_region
        %s201 = smul.u32 4, %s19
        %p202 = scmp.lt.s32.totalorder %s18, 1
        %s203 = scalar_select %p202, %s18, 1
        %p204 = scmp.lt.s32.totalorder %s201, 3
        %s205 = scalar_select %p204, %s201, 3
        %s206 = smul.addr %s203, 4
        %s207 = sadd.s32 %s205, %s206
        %s208 = smul.addr %s207, 4
        %s209 = scalar_lea.vmem %s0, %s208
        %s210 = smul.u32 4, %s19
      $region32: #{encoder_decoder_forward.15} parent=27 // pred_fallthru
        _
      // Predicated region
      $region33: #{encoder_decoder_forward.15} parent=27 // pred_check
        %p211 = pneg %p73
      $region34: #{encoder_decoder_forward.15} parent=27 // pred_check_branch
        %213 = sbr.rel (%p211) target = $region36
      $region35: #{encoder_decoder_forward.15} parent=27 // pred_region
        %s214 = smul.u32 8, %s19
        %p215 = scmp.lt.s32.totalorder %s18, 1
        %s216 = scalar_select %p215, %s18, 1
        %p217 = scmp.lt.s32.totalorder %s214, 7
        %s218 = scalar_select %p217, %s214, 7
        %s219 = smul.addr %s216, 8
        %s220 = sadd.s32 %s218, %s219
        %s221 = smul.addr %s220, 4
        %s222 = scalar_lea.vmem %s1, %s221
        %s223 = smul.u32 8, %s19
      $region36: #{encoder_decoder_forward.15} parent=27 // pred_fallthru
        _
    $region28: #{encoder_decoder_forward.15} parent=5 // pred_fallthru
      _
    %p224 = scmp.le.s32.totalorder 1, %s11
    %p225 = scmp.lt.s32.totalorder %s11, 3
    %p226 = pnand %p224, %p225
    %p227 = pneg %p226
    // Predicated region
    $region37: #{encoder_decoder_forward.15} parent=5 // pred_check
      _
    $region38: #{encoder_decoder_forward.15} parent=5 // pred_check_branch
      %229 = sbr.rel (%p226) target = $region40
    $region39: #{encoder_decoder_forward.15} parent=5 // pred_region
      %s230 = ssub.s32 %s11, 1
      %s231 = smul.u32 4, %s21
      %p232 = scmp.lt.s32.totalorder %s20, 1
      %s233 = scalar_select %p232, %s20, 1
      %p234 = scmp.lt.s32.totalorder %s231, 3
      %s235 = scalar_select %p234, %s231, 3
      %s236 = smul.addr %s233, 4
      %s237 = sadd.s32 %s235, %s236
      %s238 = smul.addr %s237, 4
      %s239 = scalar_lea.vmem %s0, %s238
      %p240 = pneg %p51
      %p241 = pneg %p48
      %s242 = smul.u32 8, %s21
      %p243 = scmp.lt.s32.totalorder %s20, 1
      %s244 = scalar_select %p243, %s20, 1
      %p245 = scmp.lt.s32.totalorder %s242, 7
      %s246 = scalar_select %p245, %s242, 7
      %s247 = smul.addr %s244, 8
      %s248 = sadd.s32 %s246, %s247
      %s249 = smul.addr %s248, 4
      %s250 = scalar_lea.vmem %s1, %s249
      %p251 = pneg %p79
      %p252 = pneg %p76
      %p253 = pneg %p100
      %p254 = pneg %p97
      %p255 = pneg %p121
      %p256 = pneg %p118
      %p257 = pneg %p142
      %p258 = pneg %p139
      %p259 = pneg %p170
      %p260 = pneg %p167
      %s261 = smul.u32 8, %s21
      %p262 = scmp.lt.s32.totalorder %s20, 1
      %s263 = scalar_select %p262, %s20, 1
      %p264 = scmp.lt.s32.totalorder %s261, 7
      %s265 = scalar_select %p264, %s261, 7
      %s266 = smul.addr %s263, 8
      %s267 = sadd.s32 %s265, %s266
      %s268 = smul.addr %s267, 4
      %s269 = scalar_lea.vmem %s5, %s268
      %s270 = smul.u32 4, %s21
      %p271 = scmp.lt.s32.totalorder %s20, 1
      %s272 = scalar_select %p271, %s20, 1
      %p273 = scmp.lt.s32.totalorder %s270, 3
      %s274 = scalar_select %p273, %s270, 3
      %s275 = smul.addr %s272, 4
      %s276 = sadd.s32 %s274, %s275
      %s277 = smul.addr %s276, 4
      %s278 = scalar_lea.vmem %s0, %s277
      %s279 = smul.u32 4, %s21
      %s280 = smul.u32 8, %s21
      %p281 = scmp.lt.s32.totalorder %s20, 1
      %s282 = scalar_select %p281, %s20, 1
      %p283 = scmp.lt.s32.totalorder %s280, 7
      %s284 = scalar_select %p283, %s280, 7
      %s285 = smul.addr %s282, 8
      %s286 = sadd.s32 %s284, %s285
      %s287 = smul.addr %s286, 4
      %s288 = scalar_lea.vmem %s1, %s287
      %s289 = smul.u32 8, %s21
      %s290 = smul.u32 8, %s21
      %p291 = scmp.lt.s32.totalorder %s20, 1
      %s292 = scalar_select %p291, %s20, 1
      %p293 = scmp.lt.s32.totalorder %s290, 7
      %s294 = scalar_select %p293, %s290, 7
      %s295 = smul.addr %s292, 8
      %s296 = sadd.s32 %s294, %s295
      %s297 = smul.addr %s296, 4
      %s298 = scalar_lea.vmem %s5, %s297
      %s299 = smul.u32 8, %s21
      %v301 = vld [vmem:[%s2] sm:$0xf]
      %v302 = vld [vmem:[%s2 + $0x4] sm:$0xf]
      %v303 = vld [vmem:[%s2 + $0x8] sm:$0xf]
      %v304 = vld [vmem:[%s2 + $0xc] sm:$0xf]
      %v305 = vld [vmem:[%s4] sm:$0xf]
      %v306 = vld [vmem:[%s4 + $0x4] sm:$0xf]
      %v307 = vld [vmem:[%s4 + $0x8] sm:$0xf]
      %v308 = vld [vmem:[%s4 + $0xc] sm:$0xf]
      %v309 = vld [vmem:[%s3] sm:$0x1]
      %v310 = vld [vmem:[%s278] sm:$0xf]
      %v311 = vld [vmem:[%s288] sm:$0xf]
      %v312 = vunpack.c.l.bf16 %v310
      %v317 = vunpack.c.l.b16 %v301
      %v318 = vunpack.c.l.b16 %v302
      %v319 = vunpack.c.l.b16 %v303
      %v320 = vunpack.c.l.b16 %v304
      %v321 = vpack.c.b16 %v318, %v317
      %v322 = vpack.c.b16 %v320, %v319
      %vm325 = vcmask 261120
      %v327 = vsel %vm325, %v311, 0
      %329 = vmatprep.subr.bf16.mxu0 0
      %330 = vmatpush1.bf16.msra.mxu0 %v321
      %331 = vmatprep.subr.bf16.mxu0 0
      %332 = vmatpush1.bf16.msra.mxu0 %v322
      %333 = vmatprep.subr.bf16.mxu0 0
      %334 = vmatpush1.bf16.msra.mxu0 0
      %335 = vmatprep.subr.bf16.mxu0 0
      %336 = vmatpush1.bf16.msra.mxu0 0
      %337 = vmatprep.subr.bf16.mxu0 0
      %338 = vmatpush1.bf16.msra.mxu0 0
      %339 = vmatprep.subr.bf16.mxu0 0
      %340 = vmatpush1.bf16.msra.mxu0 0
      %341 = vmatprep.subr.bf16.mxu0 0
      %342 = vmatpush1.bf16.msra.mxu0 0
      %343 = vmatprep.subr.bf16.mxu0 0
      %344 = vmatpush1.bf16.msra.mxu0 0
      %345 = vmatprep.subr.bf16.mxu0 0
      %346 = vmatpush1.bf16.msra.mxu0 0
      %347 = vmatprep.subr.bf16.mxu0 0
      %348 = vmatpush1.bf16.msra.mxu0 0
      %349 = vmatprep.subr.bf16.mxu0 0
      %350 = vmatpush1.bf16.msra.mxu0 0
      %351 = vmatprep.subr.bf16.mxu0 0
      %352 = vmatpush1.bf16.msra.mxu0 0
      %353 = vmatprep.subr.bf16.mxu0 0
      %354 = vmatpush1.bf16.msra.mxu0 0
      %355 = vmatprep.subr.bf16.mxu0 0
      %356 = vmatpush1.bf16.msra.mxu0 0
      %357 = vmatprep.subr.bf16.mxu0 0
      %358 = vmatpush1.bf16.msra.mxu0 0
      %359 = vmatprep.subr.bf16.mxu0 0
      %360 = vmatpush1.bf16.msra.mxu0 0
      %361 = vmatprep.mubr.bf16.mxu0 0
      %362 = vmatmul.mubr.bf16.gmra.mrb[0].mxu0 %v327
      %v363 = vpop.f32.mrb[0].mxu0
      %v364 = vadd.f32 %v312, %v363
      %v365 = vpop.f32.mrb[0].mxu0
      %v366 = vpop.f32.mrb[0].mxu0
      %v367 = vpop.f32.mrb[0].mxu0
      %368 = vdwg.mxu0
      %v370 = vlaneseq
      %v371 = vshrl.u32 %v370, 7
      %v372 = vsub.s32 0, %v371
      %v373 = vrot.slane %v309, %v372
      %v375 = vadd.f32 %v364, %v373
      %v376 = vmax.f32 %v375, 0.0
      %v377 = vpack.c.bf16 %v376, %v376
      %v382 = vunpack.c.l.b16 %v305
      %v383 = vunpack.c.l.b16 %v306
      %v384 = vunpack.c.l.b16 %v307
      %v385 = vunpack.c.l.b16 %v308
      %v386 = vpack.c.b16 %v383, %v382
      %v387 = vpack.c.b16 %v385, %v384
      %v391 = vsel %vm325, %v377, 0
      %393 = vmatprep.subr.bf16.mxu0 0
      %394 = vmatpush1.bf16.msra.mxu0 %v386
      %395 = vmatprep.subr.bf16.mxu0 0
      %396 = vmatpush1.bf16.msra.mxu0 %v387
      %397 = vmatprep.subr.bf16.mxu0 0
      %398 = vmatpush1.bf16.msra.mxu0 0
      %399 = vmatprep.subr.bf16.mxu0 0
      %400 = vmatpush1.bf16.msra.mxu0 0
      %401 = vmatprep.subr.bf16.mxu0 0
      %402 = vmatpush1.bf16.msra.mxu0 0
      %403 = vmatprep.subr.bf16.mxu0 0
      %404 = vmatpush1.bf16.msra.mxu0 0
      %405 = vmatprep.subr.bf16.mxu0 0
      %406 = vmatpush1.bf16.msra.mxu0 0
      %407 = vmatprep.subr.bf16.mxu0 0
      %408 = vmatpush1.bf16.msra.mxu0 0
      %409 = vmatprep.subr.bf16.mxu0 0
      %410 = vmatpush1.bf16.msra.mxu0 0
      %411 = vmatprep.subr.bf16.mxu0 0
      %412 = vmatpush1.bf16.msra.mxu0 0
      %413 = vmatprep.subr.bf16.mxu0 0
      %414 = vmatpush1.bf16.msra.mxu0 0
      %415 = vmatprep.subr.bf16.mxu0 0
      %416 = vmatpush1.bf16.msra.mxu0 0
      %417 = vmatprep.subr.bf16.mxu0 0
      %418 = vmatpush1.bf16.msra.mxu0 0
      %419 = vmatprep.subr.bf16.mxu0 0
      %420 = vmatpush1.bf16.msra.mxu0 0
      %421 = vmatprep.subr.bf16.mxu0 0
      %422 = vmatpush1.bf16.msra.mxu0 0
      %423 = vmatprep.subr.bf16.mxu0 0
      %424 = vmatpush1.bf16.msra.mxu0 0
      %425 = vmatprep.mubr.bf16.mxu0 0
      %426 = vmatmul.mubr.bf16.gmra.mrb[0].mxu0 %v391
      %v427 = vpop.f32.mrb[0].mxu0
      %v428 = vadd.f32 0.0, %v427
      %v429 = vpop.f32.mrb[0].mxu0
      %v430 = vpop.f32.mrb[0].mxu0
      %v431 = vpop.f32.mrb[0].mxu0
      %432 = vdwg.mxu0
      %v433 = vpack.c.bf16 %v428, %v428
      %vm434 = vcmask 125952
      %435 = vst.msk [vmem:[%s298] sm:$0xf] %vm434, %v433
      %s436 = scalar_lea.vmem %s288, 4
      %v437 = vld [vmem:[%s436] sm:$0xf]
      %v439 = vsel %vm325, %v437, 0
      %441 = vmatprep.subr.bf16.mxu0 0
      %442 = vmatpush1.bf16.msra.mxu0 %v321
      %443 = vmatprep.subr.bf16.mxu0 0
      %444 = vmatpush1.bf16.msra.mxu0 %v322
      %445 = vmatprep.subr.bf16.mxu0 0
      %446 = vmatpush1.bf16.msra.mxu0 0
      %447 = vmatprep.subr.bf16.mxu0 0
      %448 = vmatpush1.bf16.msra.mxu0 0
      %449 = vmatprep.subr.bf16.mxu0 0
      %450 = vmatpush1.bf16.msra.mxu0 0
      %451 = vmatprep.subr.bf16.mxu0 0
      %452 = vmatpush1.bf16.msra.mxu0 0
      %453 = vmatprep.subr.bf16.mxu0 0
      %454 = vmatpush1.bf16.msra.mxu0 0
      %455 = vmatprep.subr.bf16.mxu0 0
      %456 = vmatpush1.bf16.msra.mxu0 0
      %457 = vmatprep.subr.bf16.mxu0 0
      %458 = vmatpush1.bf16.msra.mxu0 0
      %459 = vmatprep.subr.bf16.mxu0 0
      %460 = vmatpush1.bf16.msra.mxu0 0
      %461 = vmatprep.subr.bf16.mxu0 0
      %462 = vmatpush1.bf16.msra.mxu0 0
      %463 = vmatprep.subr.bf16.mxu0 0
      %464 = vmatpush1.bf16.msra.mxu0 0
      %465 = vmatprep.subr.bf16.mxu0 0
      %466 = vmatpush1.bf16.msra.mxu0 0
      %467 = vmatprep.subr.bf16.mxu0 0
      %468 = vmatpush1.bf16.msra.mxu0 0
      %469 = vmatprep.subr.bf16.mxu0 0
      %470 = vmatpush1.bf16.msra.mxu0 0
      %471 = vmatprep.subr.bf16.mxu0 0
      %472 = vmatpush1.bf16.msra.mxu0 0
      %473 = vmatprep.mubr.bf16.mxu0 0
      %474 = vmatmul.mubr.bf16.gmra.mrb[0].mxu0 %v439
      %v475 = vpop.f32.mrb[0].mxu0
      %v476 = vadd.f32 %v312, %v475
      %v477 = vpop.f32.mrb[0].mxu0
      %v478 = vpop.f32.mrb[0].mxu0
      %v479 = vpop.f32.mrb[0].mxu0
      %480 = vdwg.mxu0
      %v481 = vadd.f32 %v476, %v373
      %v482 = vmax.f32 %v481, 0.0
      %v483 = vpack.c.bf16 %v482, %v482
      %v485 = vsel %vm325, %v483, 0
      %487 = vmatprep.subr.bf16.mxu0 0
      %488 = vmatpush1.bf16.msra.mxu0 %v386
      %489 = vmatprep.subr.bf16.mxu0 0
      %490 = vmatpush1.bf16.msra.mxu0 %v387
      %491 = vmatprep.subr.bf16.mxu0 0
      %492 = vmatpush1.bf16.msra.mxu0 0
      %493 = vmatprep.subr.bf16.mxu0 0
      %494 = vmatpush1.bf16.msra.mxu0 0
      %495 = vmatprep.subr.bf16.mxu0 0
      %496 = vmatpush1.bf16.msra.mxu0 0
      %497 = vmatprep.subr.bf16.mxu0 0
      %498 = vmatpush1.bf16.msra.mxu0 0
      %499 = vmatprep.subr.bf16.mxu0 0
      %500 = vmatpush1.bf16.msra.mxu0 0
      %501 = vmatprep.subr.bf16.mxu0 0
      %502 = vmatpush1.bf16.msra.mxu0 0
      %503 = vmatprep.subr.bf16.mxu0 0
      %504 = vmatpush1.bf16.msra.mxu0 0
      %505 = vmatprep.subr.bf16.mxu0 0
      %506 = vmatpush1.bf16.msra.mxu0 0
      %507 = vmatprep.subr.bf16.mxu0 0
      %508 = vmatpush1.bf16.msra.mxu0 0
      %509 = vmatprep.subr.bf16.mxu0 0
      %510 = vmatpush1.bf16.msra.mxu0 0
      %511 = vmatprep.subr.bf16.mxu0 0
      %512 = vmatpush1.bf16.msra.mxu0 0
      %513 = vmatprep.subr.bf16.mxu0 0
      %514 = vmatpush1.bf16.msra.mxu0 0
      %515 = vmatprep.subr.bf16.mxu0 0
      %516 = vmatpush1.bf16.msra.mxu0 0
      %517 = vmatprep.subr.bf16.mxu0 0
      %518 = vmatpush1.bf16.msra.mxu0 0
      %519 = vmatprep.mubr.bf16.mxu0 0
      %520 = vmatmul.mubr.bf16.gmra.mrb[0].mxu0 %v485
      %v521 = vpop.f32.mrb[0].mxu0
      %v522 = vadd.f32 0.0, %v521
      %v523 = vpop.f32.mrb[0].mxu0
      %v524 = vpop.f32.mrb[0].mxu0
      %v525 = vpop.f32.mrb[0].mxu0
      %526 = vdwg.mxu0
      %v527 = vpack.c.bf16 %v522, %v522
      %s528 = scalar_lea.vmem %s298, 4
      %529 = vst.msk [vmem:[%s528] sm:$0xf] %vm434, %v527
      %s530 = scalar_lea.vmem %s278, 4
      %v531 = vld [vmem:[%s530] sm:$0xf]
      %s532 = scalar_lea.vmem %s288, 8
      %v533 = vld [vmem:[%s532] sm:$0xf]
      %v534 = vunpack.c.l.bf16 %v531
      %v536 = vsel %vm325, %v533, 0
      %538 = vmatprep.subr.bf16.mxu0 0
      %539 = vmatpush1.bf16.msra.mxu0 %v321
      %540 = vmatprep.subr.bf16.mxu0 0
      %541 = vmatpush1.bf16.msra.mxu0 %v322
      %542 = vmatprep.subr.bf16.mxu0 0
      %543 = vmatpush1.bf16.msra.mxu0 0
      %544 = vmatprep.subr.bf16.mxu0 0
      %545 = vmatpush1.bf16.msra.mxu0 0
      %546 = vmatprep.subr.bf16.mxu0 0
      %547 = vmatpush1.bf16.msra.mxu0 0
      %548 = vmatprep.subr.bf16.mxu0 0
      %549 = vmatpush1.bf16.msra.mxu0 0
      %550 = vmatprep.subr.bf16.mxu0 0
      %551 = vmatpush1.bf16.msra.mxu0 0
      %552 = vmatprep.subr.bf16.mxu0 0
      %553 = vmatpush1.bf16.msra.mxu0 0
      %554 = vmatprep.subr.bf16.mxu0 0
      %555 = vmatpush1.bf16.msra.mxu0 0
      %556 = vmatprep.subr.bf16.mxu0 0
      %557 = vmatpush1.bf16.msra.mxu0 0
      %558 = vmatprep.subr.bf16.mxu0 0
      %559 = vmatpush1.bf16.msra.mxu0 0
      %560 = vmatprep.subr.bf16.mxu0 0
      %561 = vmatpush1.bf16.msra.mxu0 0
      %562 = vmatprep.subr.bf16.mxu0 0
      %563 = vmatpush1.bf16.msra.mxu0 0
      %564 = vmatprep.subr.bf16.mxu0 0
      %565 = vmatpush1.bf16.msra.mxu0 0
      %566 = vmatprep.subr.bf16.mxu0 0
      %567 = vmatpush1.bf16.msra.mxu0 0
      %568 = vmatprep.subr.bf16.mxu0 0
      %569 = vmatpush1.bf16.msra.mxu0 0
      %570 = vmatprep.mubr.bf16.mxu0 0
      %571 = vmatmul.mubr.bf16.gmra.mrb[0].mxu0 %v536
      %v572 = vpop.f32.mrb[0].mxu0
      %v573 = vadd.f32 %v534, %v572
      %v574 = vpop.f32.mrb[0].mxu0
      %v575 = vpop.f32.mrb[0].mxu0
      %v576 = vpop.f32.mrb[0].mxu0
      %577 = vdwg.mxu0
      %v578 = vadd.f32 %v573, %v373
      %v579 = vmax.f32 %v578, 0.0
      %v580 = vpack.c.bf16 %v579, %v579
      %v582 = vsel %vm325, %v580, 0
      %584 = vmatprep.subr.bf16.mxu0 0
      %585 = vmatpush1.bf16.msra.mxu0 %v386
      %586 = vmatprep.subr.bf16.mxu0 0
      %587 = vmatpush1.bf16.msra.mxu0 %v387
      %588 = vmatprep.subr.bf16.mxu0 0
      %589 = vmatpush1.bf16.msra.mxu0 0
      %590 = vmatprep.subr.bf16.mxu0 0
      %591 = vmatpush1.bf16.msra.mxu0 0
      %592 = vmatprep.subr.bf16.mxu0 0
      %593 = vmatpush1.bf16.msra.mxu0 0
      %594 = vmatprep.subr.bf16.mxu0 0
      %595 = vmatpush1.bf16.msra.mxu0 0
      %596 = vmatprep.subr.bf16.mxu0 0
      %597 = vmatpush1.bf16.msra.mxu0 0
      %598 = vmatprep.subr.bf16.mxu0 0
      %599 = vmatpush1.bf16.msra.mxu0 0
      %600 = vmatprep.subr.bf16.mxu0 0
      %601 = vmatpush1.bf16.msra.mxu0 0
      %602 = vmatprep.subr.bf16.mxu0 0
      %603 = vmatpush1.bf16.msra.mxu0 0
      %604 = vmatprep.subr.bf16.mxu0 0
      %605 = vmatpush1.bf16.msra.mxu0 0
      %606 = vmatprep.subr.bf16.mxu0 0
      %607 = vmatpush1.bf16.msra.mxu0 0
      %608 = vmatprep.subr.bf16.mxu0 0
      %609 = vmatpush1.bf16.msra.mxu0 0
      %610 = vmatprep.subr.bf16.mxu0 0
      %611 = vmatpush1.bf16.msra.mxu0 0
      %612 = vmatprep.subr.bf16.mxu0 0
      %613 = vmatpush1.bf16.msra.mxu0 0
      %614 = vmatprep.subr.bf16.mxu0 0
      %615 = vmatpush1.bf16.msra.mxu0 0
      %616 = vmatprep.mubr.bf16.mxu0 0
      %617 = vmatmul.mubr.bf16.gmra.mrb[0].mxu0 %v582
      %v618 = vpop.f32.mrb[0].mxu0
      %v619 = vadd.f32 0.0, %v618
      %v620 = vpop.f32.mrb[0].mxu0
      %v621 = vpop.f32.mrb[0].mxu0
      %v622 = vpop.f32.mrb[0].mxu0
      %623 = vdwg.mxu0
      %v624 = vpack.c.bf16 %v619, %v619
      %s625 = scalar_lea.vmem %s298, 8
      %626 = vst.msk [vmem:[%s625] sm:$0xf] %vm434, %v624
      %s627 = scalar_lea.vmem %s288, 12
      %v628 = vld [vmem:[%s627] sm:$0xf]
      %v630 = vsel %vm325, %v628, 0
      %632 = vmatprep.subr.bf16.mxu0 0
      %633 = vmatpush1.bf16.msra.mxu0 %v321
      %634 = vmatprep.subr.bf16.mxu0 0
      %635 = vmatpush1.bf16.msra.mxu0 %v322
      %636 = vmatprep.subr.bf16.mxu0 0
      %637 = vmatpush1.bf16.msra.mxu0 0
      %638 = vmatprep.subr.bf16.mxu0 0
      %639 = vmatpush1.bf16.msra.mxu0 0
      %640 = vmatprep.subr.bf16.mxu0 0
      %641 = vmatpush1.bf16.msra.mxu0 0
      %642 = vmatprep.subr.bf16.mxu0 0
      %643 = vmatpush1.bf16.msra.mxu0 0
      %644 = vmatprep.subr.bf16.mxu0 0
      %645 = vmatpush1.bf16.msra.mxu0 0
      %646 = vmatprep.subr.bf16.mxu0 0
      %647 = vmatpush1.bf16.msra.mxu0 0
      %648 = vmatprep.subr.bf16.mxu0 0
      %649 = vmatpush1.bf16.msra.mxu0 0
      %650 = vmatprep.subr.bf16.mxu0 0
      %651 = vmatpush1.bf16.msra.mxu0 0
      %652 = vmatprep.subr.bf16.mxu0 0
      %653 = vmatpush1.bf16.msra.mxu0 0
      %654 = vmatprep.subr.bf16.mxu0 0
      %655 = vmatpush1.bf16.msra.mxu0 0
      %656 = vmatprep.subr.bf16.mxu0 0
      %657 = vmatpush1.bf16.msra.mxu0 0
      %658 = vmatprep.subr.bf16.mxu0 0
      %659 = vmatpush1.bf16.msra.mxu0 0
      %660 = vmatprep.subr.bf16.mxu0 0
      %661 = vmatpush1.bf16.msra.mxu0 0
      %662 = vmatprep.subr.bf16.mxu0 0
      %663 = vmatpush1.bf16.msra.mxu0 0
      %664 = vmatprep.mubr.bf16.mxu0 0
      %665 = vmatmul.mubr.bf16.gmra.mrb[0].mxu0 %v630
      %v666 = vpop.f32.mrb[0].mxu0
      %v667 = vadd.f32 %v534, %v666
      %v668 = vpop.f32.mrb[0].mxu0
      %v669 = vpop.f32.mrb[0].mxu0
      %v670 = vpop.f32.mrb[0].mxu0
      %671 = vdwg.mxu0
      %v672 = vadd.f32 %v667, %v373
      %v673 = vmax.f32 %v672, 0.0
      %v674 = vpack.c.bf16 %v673, %v673
      %v676 = vsel %vm325, %v674, 0
      %678 = vmatprep.subr.bf16.mxu0 0
      %679 = vmatpush1.bf16.msra.mxu0 %v386
      %680 = vmatprep.subr.bf16.mxu0 0
      %681 = vmatpush1.bf16.msra.mxu0 %v387
      %682 = vmatprep.subr.bf16.mxu0 0
      %683 = vmatpush1.bf16.msra.mxu0 0
      %684 = vmatprep.subr.bf16.mxu0 0
      %685 = vmatpush1.bf16.msra.mxu0 0
      %686 = vmatprep.subr.bf16.mxu0 0
      %687 = vmatpush1.bf16.msra.mxu0 0
      %688 = vmatprep.subr.bf16.mxu0 0
      %689 = vmatpush1.bf16.msra.mxu0 0
      %690 = vmatprep.subr.bf16.mxu0 0
      %691 = vmatpush1.bf16.msra.mxu0 0
      %692 = vmatprep.subr.bf16.mxu0 0
      %693 = vmatpush1.bf16.msra.mxu0 0
      %694 = vmatprep.subr.bf16.mxu0 0
      %695 = vmatpush1.bf16.msra.mxu0 0
      %696 = vmatprep.subr.bf16.mxu0 0
      %697 = vmatpush1.bf16.msra.mxu0 0
      %698 = vmatprep.subr.bf16.mxu0 0
      %699 = vmatpush1.bf16.msra.mxu0 0
      %700 = vmatprep.subr.bf16.mxu0 0
      %701 = vmatpush1.bf16.msra.mxu0 0
      %702 = vmatprep.subr.bf16.mxu0 0
      %703 = vmatpush1.bf16.msra.mxu0 0
      %704 = vmatprep.subr.bf16.mxu0 0
      %705 = vmatpush1.bf16.msra.mxu0 0
      %706 = vmatprep.subr.bf16.mxu0 0
      %707 = vmatpush1.bf16.msra.mxu0 0
      %708 = vmatprep.subr.bf16.mxu0 0
      %709 = vmatpush1.bf16.msra.mxu0 0
      %710 = vmatprep.mubr.bf16.mxu0 0
      %711 = vmatmul.mubr.bf16.gmra.mrb[0].mxu0 %v676
      %v712 = vpop.f32.mrb[0].mxu0
      %v713 = vadd.f32 0.0, %v712
      %v714 = vpop.f32.mrb[0].mxu0
      %v715 = vpop.f32.mrb[0].mxu0
      %v716 = vpop.f32.mrb[0].mxu0
      %717 = vdwg.mxu0
      %v718 = vpack.c.bf16 %v713, %v713
      %s719 = scalar_lea.vmem %s298, 12
      %720 = vst.msk [vmem:[%s719] sm:$0xf] %vm434, %v718
      %s721 = scalar_lea.vmem %s278, 8
      %v722 = vld [vmem:[%s721] sm:$0xf]
      %s723 = scalar_lea.vmem %s288, 16
      %v724 = vld [vmem:[%s723] sm:$0xf]
      %v725 = vunpack.c.l.bf16 %v722
      %v727 = vsel %vm325, %v724, 0
      %729 = vmatprep.subr.bf16.mxu0 0
      %730 = vmatpush1.bf16.msra.mxu0 %v321
      %731 = vmatprep.subr.bf16.mxu0 0
      %732 = vmatpush1.bf16.msra.mxu0 %v322
      %733 = vmatprep.subr.bf16.mxu0 0
      %734 = vmatpush1.bf16.msra.mxu0 0
      %735 = vmatprep.subr.bf16.mxu0 0
      %736 = vmatpush1.bf16.msra.mxu0 0
      %737 = vmatprep.subr.bf16.mxu0 0
      %738 = vmatpush1.bf16.msra.mxu0 0
      %739 = vmatprep.subr.bf16.mxu0 0
      %740 = vmatpush1.bf16.msra.mxu0 0
      %741 = vmatprep.subr.bf16.mxu0 0
      %742 = vmatpush1.bf16.msra.mxu0 0
      %743 = vmatprep.subr.bf16.mxu0 0
      %744 = vmatpush1.bf16.msra.mxu0 0
      %745 = vmatprep.subr.bf16.mxu0 0
      %746 = vmatpush1.bf16.msra.mxu0 0
      %747 = vmatprep.subr.bf16.mxu0 0
      %748 = vmatpush1.bf16.msra.mxu0 0
      %749 = vmatprep.subr.bf16.mxu0 0
      %750 = vmatpush1.bf16.msra.mxu0 0
      %751 = vmatprep.subr.bf16.mxu0 0
      %752 = vmatpush1.bf16.msra.mxu0 0
      %753 = vmatprep.subr.bf16.mxu0 0
      %754 = vmatpush1.bf16.msra.mxu0 0
      %755 = vmatprep.subr.bf16.mxu0 0
      %756 = vmatpush1.bf16.msra.mxu0 0
      %757 = vmatprep.subr.bf16.mxu0 0
      %758 = vmatpush1.bf16.msra.mxu0 0
      %759 = vmatprep.subr.bf16.mxu0 0
      %760 = vmatpush1.bf16.msra.mxu0 0
      %761 = vmatprep.mubr.bf16.mxu0 0
      %762 = vmatmul.mubr.bf16.gmra.mrb[0].mxu0 %v727
      %v763 = vpop.f32.mrb[0].mxu0
      %v764 = vadd.f32 %v725, %v763
      %v765 = vpop.f32.mrb[0].mxu0
      %v766 = vpop.f32.mrb[0].mxu0
      %v767 = vpop.f32.mrb[0].mxu0
      %768 = vdwg.mxu0
      %v769 = vadd.f32 %v764, %v373
      %v770 = vmax.f32 %v769, 0.0
      %v771 = vpack.c.bf16 %v770, %v770
      %v773 = vsel %vm325, %v771, 0
      %775 = vmatprep.subr.bf16.mxu0 0
      %776 = vmatpush1.bf16.msra.mxu0 %v386
      %777 = vmatprep.subr.bf16.mxu0 0
      %778 = vmatpush1.bf16.msra.mxu0 %v387
      %779 = vmatprep.subr.bf16.mxu0 0
      %780 = vmatpush1.bf16.msra.mxu0 0
      %781 = vmatprep.subr.bf16.mxu0 0
      %782 = vmatpush1.bf16.msra.mxu0 0
      %783 = vmatprep.subr.bf16.mxu0 0
      %784 = vmatpush1.bf16.msra.mxu0 0
      %785 = vmatprep.subr.bf16.mxu0 0
      %786 = vmatpush1.bf16.msra.mxu0 0
      %787 = vmatprep.subr.bf16.mxu0 0
      %788 = vmatpush1.bf16.msra.mxu0 0
      %789 = vmatprep.subr.bf16.mxu0 0
      %790 = vmatpush1.bf16.msra.mxu0 0
      %791 = vmatprep.subr.bf16.mxu0 0
      %792 = vmatpush1.bf16.msra.mxu0 0
      %793 = vmatprep.subr.bf16.mxu0 0
      %794 = vmatpush1.bf16.msra.mxu0 0
      %795 = vmatprep.subr.bf16.mxu0 0
      %796 = vmatpush1.bf16.msra.mxu0 0
      %797 = vmatprep.subr.bf16.mxu0 0
      %798 = vmatpush1.bf16.msra.mxu0 0
      %799 = vmatprep.subr.bf16.mxu0 0
      %800 = vmatpush1.bf16.msra.mxu0 0
      %801 = vmatprep.subr.bf16.mxu0 0
      %802 = vmatpush1.bf16.msra.mxu0 0
      %803 = vmatprep.subr.bf16.mxu0 0
      %804 = vmatpush1.bf16.msra.mxu0 0
      %805 = vmatprep.subr.bf16.mxu0 0
      %806 = vmatpush1.bf16.msra.mxu0 0
      %807 = vmatprep.mubr.bf16.mxu0 0
      %808 = vmatmul.mubr.bf16.gmra.mrb[0].mxu0 %v773
      %v809 = vpop.f32.mrb[0].mxu0
      %v810 = vadd.f32 0.0, %v809
      %v811 = vpop.f32.mrb[0].mxu0
      %v812 = vpop.f32.mrb[0].mxu0
      %v813 = vpop.f32.mrb[0].mxu0
      %814 = vdwg.mxu0
      %v815 = vpack.c.bf16 %v810, %v810
      %s816 = scalar_lea.vmem %s298, 16
      %817 = vst.msk [vmem:[%s816] sm:$0xf] %vm434, %v815
      %s818 = scalar_lea.vmem %s288, 20
      %v819 = vld [vmem:[%s818] sm:$0xf]
      %v821 = vsel %vm325, %v819, 0
      %823 = vmatprep.subr.bf16.mxu0 0
      %824 = vmatpush1.bf16.msra.mxu0 %v321
      %825 = vmatprep.subr.bf16.mxu0 0
      %826 = vmatpush1.bf16.msra.mxu0 %v322
      %827 = vmatprep.subr.bf16.mxu0 0
      %828 = vmatpush1.bf16.msra.mxu0 0
      %829 = vmatprep.subr.bf16.mxu0 0
      %830 = vmatpush1.bf16.msra.mxu0 0
      %831 = vmatprep.subr.bf16.mxu0 0
      %832 = vmatpush1.bf16.msra.mxu0 0
      %833 = vmatprep.subr.bf16.mxu0 0
      %834 = vmatpush1.bf16.msra.mxu0 0
      %835 = vmatprep.subr.bf16.mxu0 0
      %836 = vmatpush1.bf16.msra.mxu0 0
      %837 = vmatprep.subr.bf16.mxu0 0
      %838 = vmatpush1.bf16.msra.mxu0 0
      %839 = vmatprep.subr.bf16.mxu0 0
      %840 = vmatpush1.bf16.msra.mxu0 0
      %841 = vmatprep.subr.bf16.mxu0 0
      %842 = vmatpush1.bf16.msra.mxu0 0
      %843 = vmatprep.subr.bf16.mxu0 0
      %844 = vmatpush1.bf16.msra.mxu0 0
      %845 = vmatprep.subr.bf16.mxu0 0
      %846 = vmatpush1.bf16.msra.mxu0 0
      %847 = vmatprep.subr.bf16.mxu0 0
      %848 = vmatpush1.bf16.msra.mxu0 0
      %849 = vmatprep.subr.bf16.mxu0 0
      %850 = vmatpush1.bf16.msra.mxu0 0
      %851 = vmatprep.subr.bf16.mxu0 0
      %852 = vmatpush1.bf16.msra.mxu0 0
      %853 = vmatprep.subr.bf16.mxu0 0
      %854 = vmatpush1.bf16.msra.mxu0 0
      %855 = vmatprep.mubr.bf16.mxu0 0
      %856 = vmatmul.mubr.bf16.gmra.mrb[0].mxu0 %v821
      %v857 = vpop.f32.mrb[0].mxu0
      %v858 = vadd.f32 %v725, %v857
      %v859 = vpop.f32.mrb[0].mxu0
      %v860 = vpop.f32.mrb[0].mxu0
      %v861 = vpop.f32.mrb[0].mxu0
      %862 = vdwg.mxu0
      %v863 = vadd.f32 %v858, %v373
      %v864 = vmax.f32 %v863, 0.0
      %v865 = vpack.c.bf16 %v864, %v864
      %v867 = vsel %vm325, %v865, 0
      %869 = vmatprep.subr.bf16.mxu0 0
      %870 = vmatpush1.bf16.msra.mxu0 %v386
      %871 = vmatprep.subr.bf16.mxu0 0
      %872 = vmatpush1.bf16.msra.mxu0 %v387
      %873 = vmatprep.subr.bf16.mxu0 0
      %874 = vmatpush1.bf16.msra.mxu0 0
      %875 = vmatprep.subr.bf16.mxu0 0
      %876 = vmatpush1.bf16.msra.mxu0 0
      %877 = vmatprep.subr.bf16.mxu0 0
      %878 = vmatpush1.bf16.msra.mxu0 0
      %879 = vmatprep.subr.bf16.mxu0 0
      %880 = vmatpush1.bf16.msra.mxu0 0
      %881 = vmatprep.subr.bf16.mxu0 0
      %882 = vmatpush1.bf16.msra.mxu0 0
      %883 = vmatprep.subr.bf16.mxu0 0
      %884 = vmatpush1.bf16.msra.mxu0 0
      %885 = vmatprep.subr.bf16.mxu0 0
      %886 = vmatpush1.bf16.msra.mxu0 0
      %887 = vmatprep.subr.bf16.mxu0 0
      %888 = vmatpush1.bf16.msra.mxu0 0
      %889 = vmatprep.subr.bf16.mxu0 0
      %890 = vmatpush1.bf16.msra.mxu0 0
      %891 = vmatprep.subr.bf16.mxu0 0
      %892 = vmatpush1.bf16.msra.mxu0 0
      %893 = vmatprep.subr.bf16.mxu0 0
      %894 = vmatpush1.bf16.msra.mxu0 0
      %895 = vmatprep.subr.bf16.mxu0 0
      %896 = vmatpush1.bf16.msra.mxu0 0
      %897 = vmatprep.subr.bf16.mxu0 0
      %898 = vmatpush1.bf16.msra.mxu0 0
      %899 = vmatprep.subr.bf16.mxu0 0
      %900 = vmatpush1.bf16.msra.mxu0 0
      %901 = vmatprep.mubr.bf16.mxu0 0
      %902 = vmatmul.mubr.bf16.gmra.mrb[0].mxu0 %v867
      %v903 = vpop.f32.mrb[0].mxu0
      %v904 = vadd.f32 0.0, %v903
      %v905 = vpop.f32.mrb[0].mxu0
      %v906 = vpop.f32.mrb[0].mxu0
      %v907 = vpop.f32.mrb[0].mxu0
      %908 = vdwg.mxu0
      %v909 = vpack.c.bf16 %v904, %v904
      %s910 = scalar_lea.vmem %s298, 20
      %911 = vst.msk [vmem:[%s910] sm:$0xf] %vm434, %v909
      %s912 = scalar_lea.vmem %s278, 12
      %v913 = vld [vmem:[%s912] sm:$0xf]
      %s914 = scalar_lea.vmem %s288, 24
      %v915 = vld [vmem:[%s914] sm:$0xf]
      %v916 = vunpack.c.l.bf16 %v913
      %v918 = vsel %vm325, %v915, 0
      %920 = vmatprep.subr.bf16.mxu0 0
      %921 = vmatpush1.bf16.msra.mxu0 %v321
      %922 = vmatprep.subr.bf16.mxu0 0
      %923 = vmatpush1.bf16.msra.mxu0 %v322
      %924 = vmatprep.subr.bf16.mxu0 0
      %925 = vmatpush1.bf16.msra.mxu0 0
      %926 = vmatprep.subr.bf16.mxu0 0
      %927 = vmatpush1.bf16.msra.mxu0 0
      %928 = vmatprep.subr.bf16.mxu0 0
      %929 = vmatpush1.bf16.msra.mxu0 0
      %930 = vmatprep.subr.bf16.mxu0 0
      %931 = vmatpush1.bf16.msra.mxu0 0
      %932 = vmatprep.subr.bf16.mxu0 0
      %933 = vmatpush1.bf16.msra.mxu0 0
      %934 = vmatprep.subr.bf16.mxu0 0
      %935 = vmatpush1.bf16.msra.mxu0 0
      %936 = vmatprep.subr.bf16.mxu0 0
      %937 = vmatpush1.bf16.msra.mxu0 0
      %938 = vmatprep.subr.bf16.mxu0 0
      %939 = vmatpush1.bf16.msra.mxu0 0
      %940 = vmatprep.subr.bf16.mxu0 0
      %941 = vmatpush1.bf16.msra.mxu0 0
      %942 = vmatprep.subr.bf16.mxu0 0
      %943 = vmatpush1.bf16.msra.mxu0 0
      %944 = vmatprep.subr.bf16.mxu0 0
      %945 = vmatpush1.bf16.msra.mxu0 0
      %946 = vmatprep.subr.bf16.mxu0 0
      %947 = vmatpush1.bf16.msra.mxu0 0
      %948 = vmatprep.subr.bf16.mxu0 0
      %949 = vmatpush1.bf16.msra.mxu0 0
      %950 = vmatprep.subr.bf16.mxu0 0
      %951 = vmatpush1.bf16.msra.mxu0 0
      %952 = vmatprep.mubr.bf16.mxu0 0
      %953 = vmatmul.mubr.bf16.gmra.mrb[0].mxu0 %v918
      %v954 = vpop.f32.mrb[0].mxu0
      %v955 = vadd.f32 %v916, %v954
      %v956 = vpop.f32.mrb[0].mxu0
      %v957 = vpop.f32.mrb[0].mxu0
      %v958 = vpop.f32.mrb[0].mxu0
      %959 = vdwg.mxu0
      %v960 = vadd.f32 %v955, %v373
      %v961 = vmax.f32 %v960, 0.0
      %v962 = vpack.c.bf16 %v961, %v961
      %v964 = vsel %vm325, %v962, 0
      %966 = vmatprep.subr.bf16.mxu0 0
      %967 = vmatpush1.bf16.msra.mxu0 %v386
      %968 = vmatprep.subr.bf16.mxu0 0
      %969 = vmatpush1.bf16.msra.mxu0 %v387
      %970 = vmatprep.subr.bf16.mxu0 0
      %971 = vmatpush1.bf16.msra.mxu0 0
      %972 = vmatprep.subr.bf16.mxu0 0
      %973 = vmatpush1.bf16.msra.mxu0 0
      %974 = vmatprep.subr.bf16.mxu0 0
      %975 = vmatpush1.bf16.msra.mxu0 0
      %976 = vmatprep.subr.bf16.mxu0 0
      %977 = vmatpush1.bf16.msra.mxu0 0
      %978 = vmatprep.subr.bf16.mxu0 0
      %979 = vmatpush1.bf16.msra.mxu0 0
      %980 = vmatprep.subr.bf16.mxu0 0
      %981 = vmatpush1.bf16.msra.mxu0 0
      %982 = vmatprep.subr.bf16.mxu0 0
      %983 = vmatpush1.bf16.msra.mxu0 0
      %984 = vmatprep.subr.bf16.mxu0 0
      %985 = vmatpush1.bf16.msra.mxu0 0
      %986 = vmatprep.subr.bf16.mxu0 0
      %987 = vmatpush1.bf16.msra.mxu0 0
      %988 = vmatprep.subr.bf16.mxu0 0
      %989 = vmatpush1.bf16.msra.mxu0 0
      %990 = vmatprep.subr.bf16.mxu0 0
      %991 = vmatpush1.bf16.msra.mxu0 0
      %992 = vmatprep.subr.bf16.mxu0 0
      %993 = vmatpush1.bf16.msra.mxu0 0
      %994 = vmatprep.subr.bf16.mxu0 0
      %995 = vmatpush1.bf16.msra.mxu0 0
      %996 = vmatprep.subr.bf16.mxu0 0
      %997 = vmatpush1.bf16.msra.mxu0 0
      %998 = vmatprep.mubr.bf16.mxu0 0
      %999 = vmatmul.mubr.bf16.gmra.mrb[0].mxu0 %v964
      %v1000 = vpop.f32.mrb[0].mxu0
      %v1001 = vadd.f32 0.0, %v1000
      %v1002 = vpop.f32.mrb[0].mxu0
      %v1003 = vpop.f32.mrb[0].mxu0
      %v1004 = vpop.f32.mrb[0].mxu0
      %1005 = vdwg.mxu0
      %v1006 = vpack.c.bf16 %v1001, %v1001
      %s1007 = scalar_lea.vmem %s298, 24
      %1008 = vst.msk [vmem:[%s1007] sm:$0xf] %vm434, %v1006
      %s1009 = scalar_lea.vmem %s288, 28
      %v1010 = vld [vmem:[%s1009] sm:$0xf]
      %v1012 = vsel %vm325, %v1010, 0
      %1014 = vmatprep.subr.bf16.mxu0 0
      %1015 = vmatpush1.bf16.msra.mxu0 %v321
      %1016 = vmatprep.subr.bf16.mxu0 0
      %1017 = vmatpush1.bf16.msra.mxu0 %v322
      %1018 = vmatprep.subr.bf16.mxu0 0
      %1019 = vmatpush1.bf16.msra.mxu0 0
      %1020 = vmatprep.subr.bf16.mxu0 0
      %1021 = vmatpush1.bf16.msra.mxu0 0
      %1022 = vmatprep.subr.bf16.mxu0 0
      %1023 = vmatpush1.bf16.msra.mxu0 0
      %1024 = vmatprep.subr.bf16.mxu0 0
      %1025 = vmatpush1.bf16.msra.mxu0 0
      %1026 = vmatprep.subr.bf16.mxu0 0
      %1027 = vmatpush1.bf16.msra.mxu0 0
      %1028 = vmatprep.subr.bf16.mxu0 0
      %1029 = vmatpush1.bf16.msra.mxu0 0
      %1030 = vmatprep.subr.bf16.mxu0 0
      %1031 = vmatpush1.bf16.msra.mxu0 0
      %1032 = vmatprep.subr.bf16.mxu0 0
      %1033 = vmatpush1.bf16.msra.mxu0 0
      %1034 = vmatprep.subr.bf16.mxu0 0
      %1035 = vmatpush1.bf16.msra.mxu0 0
      %1036 = vmatprep.subr.bf16.mxu0 0
      %1037 = vmatpush1.bf16.msra.mxu0 0
      %1038 = vmatprep.subr.bf16.mxu0 0
      %1039 = vmatpush1.bf16.msra.mxu0 0
      %1040 = vmatprep.subr.bf16.mxu0 0
      %1041 = vmatpush1.bf16.msra.mxu0 0
      %1042 = vmatprep.subr.bf16.mxu0 0
      %1043 = vmatpush1.bf16.msra.mxu0 0
      %1044 = vmatprep.subr.bf16.mxu0 0
      %1045 = vmatpush1.bf16.msra.mxu0 0
      %1046 = vmatprep.mubr.bf16.mxu0 0
      %1047 = vmatmul.mubr.bf16.gmra.mrb[0].mxu0 %v1012
      %v1048 = vpop.f32.mrb[0].mxu0
      %v1049 = vadd.f32 %v916, %v1048
      %v1050 = vpop.f32.mrb[0].mxu0
      %v1051 = vpop.f32.mrb[0].mxu0
      %v1052 = vpop.f32.mrb[0].mxu0
      %1053 = vdwg.mxu0
      %v1054 = vadd.f32 %v1049, %v373
      %v1055 = vmax.f32 %v1054, 0.0
      %v1056 = vpack.c.bf16 %v1055, %v1055
      %v1058 = vsel %vm325, %v1056, 0
      %1060 = vmatprep.subr.bf16.mxu0 0
      %1061 = vmatpush1.bf16.msra.mxu0 %v386
      %1062 = vmatprep.subr.bf16.mxu0 0
      %1063 = vmatpush1.bf16.msra.mxu0 %v387
      %1064 = vmatprep.subr.bf16.mxu0 0
      %1065 = vmatpush1.bf16.msra.mxu0 0
      %1066 = vmatprep.subr.bf16.mxu0 0
      %1067 = vmatpush1.bf16.msra.mxu0 0
      %1068 = vmatprep.subr.bf16.mxu0 0
      %1069 = vmatpush1.bf16.msra.mxu0 0
      %1070 = vmatprep.subr.bf16.mxu0 0
      %1071 = vmatpush1.bf16.msra.mxu0 0
      %1072 = vmatprep.subr.bf16.mxu0 0
      %1073 = vmatpush1.bf16.msra.mxu0 0
      %1074 = vmatprep.subr.bf16.mxu0 0
      %1075 = vmatpush1.bf16.msra.mxu0 0
      %1076 = vmatprep.subr.bf16.mxu0 0
      %1077 = vmatpush1.bf16.msra.mxu0 0
      %1078 = vmatprep.subr.bf16.mxu0 0
      %1079 = vmatpush1.bf16.msra.mxu0 0
      %1080 = vmatprep.subr.bf16.mxu0 0
      %1081 = vmatpush1.bf16.msra.mxu0 0
      %1082 = vmatprep.subr.bf16.mxu0 0
      %1083 = vmatpush1.bf16.msra.mxu0 0
      %1084 = vmatprep.subr.bf16.mxu0 0
      %1085 = vmatpush1.bf16.msra.mxu0 0
      %1086 = vmatprep.subr.bf16.mxu0 0
      %1087 = vmatpush1.bf16.msra.mxu0 0
      %1088 = vmatprep.subr.bf16.mxu0 0
      %1089 = vmatpush1.bf16.msra.mxu0 0
      %1090 = vmatprep.subr.bf16.mxu0 0
      %1091 = vmatpush1.bf16.msra.mxu0 0
      %1092 = vmatprep.mubr.bf16.mxu0 0
      %1093 = vmatmul.mubr.bf16.gmra.mrb[0].mxu0 %v1058
      %v1094 = vpop.f32.mrb[0].mxu0
      %v1095 = vadd.f32 0.0, %v1094
      %v1096 = vpop.f32.mrb[0].mxu0
      %v1097 = vpop.f32.mrb[0].mxu0
      %v1098 = vpop.f32.mrb[0].mxu0
      %1099 = vdwg.mxu0
      %v1100 = vpack.c.bf16 %v1095, %v1095
      %s1101 = scalar_lea.vmem %s298, 28
      %1102 = vst.msk [vmem:[%s1101] sm:$0xf] %vm434, %v1100
      %s1103 = smul.u32 8, %s21
      %p1104 = scmp.lt.s32.totalorder %s20, 1
      %s1105 = scalar_select %p1104, %s20, 1
      %p1106 = scmp.lt.s32.totalorder %s1103, 7
      %s1107 = scalar_select %p1106, %s1103, 7
      %s1108 = smul.addr %s1105, 8
      %s1109 = sadd.s32 %s1107, %s1108
      %s1110 = smul.addr %s1109, 4
      %s1111 = scalar_lea.vmem %s5, %s1110
      // Predicated region
      $region41: #{encoder_decoder_forward.15} parent=39 // pred_check
        %p1112 = pneg %p167
      $region42: #{encoder_decoder_forward.15} parent=39 // pred_check_branch
        %1114 = sbr.rel (%p1112) target = $region44
      $region43: #{encoder_decoder_forward.15} parent=39 // pred_region
        %s1115 = smul.u32 8, %s21
      $region44: #{encoder_decoder_forward.15} parent=39 // pred_fallthru
        _
    $region40: #{encoder_decoder_forward.15} parent=5 // pred_fallthru
      _
    %p1116 = scmp.le.s32.totalorder 2, %s11
    // Predicated region
    $region45: #{encoder_decoder_forward.15} parent=5 // pred_check
      %p1117 = pneg %p1116
    $region46: #{encoder_decoder_forward.15} parent=5 // pred_check_branch
      %1119 = sbr.rel (%p1117) target = $region48
    $region47: #{encoder_decoder_forward.15} parent=5 // pred_region
      %s1120 = ssub.s32 %s11, 2
      // Predicated region
      $region49: #{encoder_decoder_forward.15} parent=47 // pred_check
        %p1121 = pneg %p173
      $region50: #{encoder_decoder_forward.15} parent=47 // pred_check_branch
        %1123 = sbr.rel (%p1121) target = $region52
      $region51: #{encoder_decoder_forward.15} parent=47 // pred_region
        %s1124 = smul.u32 8, %s23
        %p1125 = scmp.lt.s32.totalorder %s22, 1
        %s1126 = scalar_select %p1125, %s22, 1
        %p1127 = scmp.lt.s32.totalorder %s1124, 7
        %s1128 = scalar_select %p1127, %s1124, 7
        %s1129 = smul.addr %s1126, 8
        %s1130 = sadd.s32 %s1128, %s1129
        %s1131 = smul.addr %s1130, 4
        %s1132 = scalar_lea.vmem %s5, %s1131
      $region52: #{encoder_decoder_forward.15} parent=47 // pred_fallthru
        _
    $region48: #{encoder_decoder_forward.15} parent=5 // pred_fallthru
      _
  $region6: #{encoder_decoder_forward.15} parent=0 // loop_footer
    %s15 = sadd.s32 1, %s11
  $region7: #{encoder_decoder_forward.15} parent=0 // loop_footer_branch
    %10 = sbr.rel target = $region3
  $region8: #{encoder_decoder_forward.15} parent=0 // loop_exit
    _

// kernel: encoder_decoder_forward.17
$region0: #{encoder_decoder_forward.17}
  #allocation0 [shape = 'u32[]', space=smem, size = 0x4, offset = 0x4, fixed_abs, tag = 'smem constant byte address 0x4 - core index']
  #allocation1 [shape = 'u32[144,128]{1,0:T(1,128)}', space=vmem, size = 0x12000, scoped, tag = 'internal scratch']
  %s0 = inlined_call_operand.vmem [shape: bf16[2,16,256], index: 0, kind: input, shape index: {}]
  %s1 = inlined_call_operand.vmem [shape: f32[16,1], index: 1, kind: input, shape index: {}]
  %s2 = inlined_call_operand.vmem [shape: bf16[64,16], index: 2, kind: input, shape index: {}]
  %s3 = inlined_call_operand.vmem [shape: f32[64,1], index: 3, kind: input, shape index: {}]
  %s4 = inlined_call_operand.vmem [shape: f32[64,1], index: 4, kind: input, shape index: {}]
  %s5 = inlined_call_operand.vmem [shape: f32[2,64,256], index: 5, kind: output, shape index: {0}]
  %s6 = inlined_call_operand.vmem [shape: f32[2,1,256], index: 6, kind: output, shape index: {1}]
  %s7 = inlined_call_operand.vmem [shape: f32[2,1,256], index: 7, kind: output, shape index: {2}]
  %8 = xla_tuple %s5, %s6, %s7
  %s9 = sld [smem:[#allocation0]]
  $region69: #{encoder_decoder_forward.17} parent=0
    _
  %s11 = ssub.s32 1, %s9
  %s12 = scalar_select 0, %s11, %s9
  loop: start=0, step=1, limit=4
  $region2: #{encoder_decoder_forward.17} parent=0 // loop_pre_header
    _
  $region3: #{encoder_decoder_forward.17} parent=0 // loop_header
    %s14 = sphi 0, %s18
    %p15 = scmp.ge.s32.totalorder %s14, 4
    %s21 = sphi 0, %s33
    %s22 = sphi 0, %s29
    %s23 = sphi 0, %s21
    %s24 = sphi 0, %s22
    %s25 = sphi 0, %s23
    %s26 = sphi 0, %s24
    %s38 = sphi 0, %s40
    %s41 = sphi 0, %s38
    %s42 = sphi 0, %s41
    %s58 = sphi 0, %s42
    %s62 = sphi 0, %s62
    %s64 = sphi 0, %s62
    %s65 = sphi 0, %s64
    %s79 = sphi 0, %s65
    %s83 = sphi 0, %s83
    %s85 = sphi 0, %s83
    %s86 = sphi 0, %s85
    %s100 = sphi 0, %s86
    %s104 = sphi 0, %s104
    %s106 = sphi 0, %s104
    %s107 = sphi 0, %s106
    %s121 = sphi 0, %s107
    %s125 = sphi 0, %s125
    %s127 = sphi 0, %s125
    %s128 = sphi 0, %s127
    %s142 = sphi 0, %s128
    %s150 = sphi 0, %s152
    %s153 = sphi 0, %s150
    %s154 = sphi 0, %s153
    %s170 = sphi 0, %s154
    %s178 = sphi 0, %s180
    %s181 = sphi 0, %s178
    %s182 = sphi 0, %s181
    %s198 = sphi 0, %s182
    %s206 = sphi 0, %s208
    %s209 = sphi 0, %s206
    %s210 = sphi 0, %s209
    %s226 = sphi 0, %s210
  $region4: #{encoder_decoder_forward.17} parent=0 // loop_header_branch
    %17 = sbr.rel (%p15) target = $region8
  $region5: #{encoder_decoder_forward.17} parent=0 // loop_body
    %s19 = ssub.s32 %s14, 1
    %s20 = ssub.s32 %s14, 2
    %s27 = sadd.s32 1, %s22
    %p28 = scmp.ge.s32.totalorder %s27, 1
    %s29 = scalar_select %p28, 0, %s27
    %s30 = sadd.s32 1, %s21
    %s31 = scalar_select %p28, %s30, %s21
    %p32 = scmp.ge.s32.totalorder %s31, 2
    %s33 = scalar_select %p32, 0, %s31
    %s34 = ssub.s32 %s21, %s33
    %s35 = ssub.s32 %s22, %s29
    %s36 = sor.u32 %s34, %s35
    %p37 = scmp.eq.s32.totalorder %s36, 0
    %s39 = sadd.s32 %s38, 1
    %s40 = scalar_select %p37, %s38, %s39
    %p43 = pneg %p37
    %p44 = scmp.eq.s32.totalorder %s14, 1
    %p45 = por %p43, %p44
    %p46 = scmp.ne.s32.totalorder %s38, %s41
    %p47 = scmp.eq.s32.totalorder %s14, 0
    %p48 = por %p46, %p47
    %p49 = scmp.ne.s32.totalorder %s38, %s41
    %p50 = scmp.eq.s32.totalorder %s19, 1
    %p51 = por %p49, %p50
    %p52 = scmp.ne.s32.totalorder %s41, %s42
    %p53 = scmp.eq.s32.totalorder %s19, 0
    %p54 = por %p52, %p53
    %p55 = scmp.ne.s32.totalorder %s41, %s42
    %p56 = scmp.eq.s32.totalorder %s20, 1
    %p57 = por %p55, %p56
    %p59 = scmp.ne.s32.totalorder %s42, %s58
    %p60 = scmp.eq.s32.totalorder %s20, 0
    %p61 = por %p59, %p60
    %s63 = sadd.s32 %s62, 1
    %p66 = scmp.eq.s32.totalorder %s14, 1
    %p67 = scmp.ne.s32.totalorder %s62, %s64
    %p68 = scmp.eq.s32.totalorder %s14, 0
    %p69 = por %p67, %p68
    %p70 = scmp.ne.s32.totalorder %s62, %s64
    %p71 = scmp.eq.s32.totalorder %s19, 1
    %p72 = por %p70, %p71
    %p73 = scmp.ne.s32.totalorder %s64, %s65
    %p74 = scmp.eq.s32.totalorder %s19, 0
    %p75 = por %p73, %p74
    %p76 = scmp.ne.s32.totalorder %s64, %s65
    %p77 = scmp.eq.s32.totalorder %s20, 1
    %p78 = por %p76, %p77
    %p80 = scmp.ne.s32.totalorder %s65, %s79
    %p81 = scmp.eq.s32.totalorder %s20, 0
    %p82 = por %p80, %p81
    %s84 = sadd.s32 %s83, 1
    %p87 = scmp.eq.s32.totalorder %s14, 1
    %p88 = scmp.ne.s32.totalorder %s83, %s85
    %p89 = scmp.eq.s32.totalorder %s14, 0
    %p90 = por %p88, %p89
    %p91 = scmp.ne.s32.totalorder %s83, %s85
    %p92 = scmp.eq.s32.totalorder %s19, 1
    %p93 = por %p91, %p92
    %p94 = scmp.ne.s32.totalorder %s85, %s86
    %p95 = scmp.eq.s32.totalorder %s19, 0
    %p96 = por %p94, %p95
    %p97 = scmp.ne.s32.totalorder %s85, %s86
    %p98 = scmp.eq.s32.totalorder %s20, 1
    %p99 = por %p97, %p98
    %p101 = scmp.ne.s32.totalorder %s86, %s100
    %p102 = scmp.eq.s32.totalorder %s20, 0
    %p103 = por %p101, %p102
    %s105 = sadd.s32 %s104, 1
    %p108 = scmp.eq.s32.totalorder %s14, 1
    %p109 = scmp.ne.s32.totalorder %s104, %s106
    %p110 = scmp.eq.s32.totalorder %s14, 0
    %p111 = por %p109, %p110
    %p112 = scmp.ne.s32.totalorder %s104, %s106
    %p113 = scmp.eq.s32.totalorder %s19, 1
    %p114 = por %p112, %p113
    %p115 = scmp.ne.s32.totalorder %s106, %s107
    %p116 = scmp.eq.s32.totalorder %s19, 0
    %p117 = por %p115, %p116
    %p118 = scmp.ne.s32.totalorder %s106, %s107
    %p119 = scmp.eq.s32.totalorder %s20, 1
    %p120 = por %p118, %p119
    %p122 = scmp.ne.s32.totalorder %s107, %s121
    %p123 = scmp.eq.s32.totalorder %s20, 0
    %p124 = por %p122, %p123
    %s126 = sadd.s32 %s125, 1
    %p129 = scmp.eq.s32.totalorder %s14, 1
    %p130 = scmp.ne.s32.totalorder %s125, %s127
    %p131 = scmp.eq.s32.totalorder %s14, 0
    %p132 = por %p130, %p131
    %p133 = scmp.ne.s32.totalorder %s125, %s127
    %p134 = scmp.eq.s32.totalorder %s19, 1
    %p135 = por %p133, %p134
    %p136 = scmp.ne.s32.totalorder %s127, %s128
    %p137 = scmp.eq.s32.totalorder %s19, 0
    %p138 = por %p136, %p137
    %p139 = scmp.ne.s32.totalorder %s127, %s128
    %p140 = scmp.eq.s32.totalorder %s20, 1
    %p141 = por %p139, %p140
    %p143 = scmp.ne.s32.totalorder %s128, %s142
    %p144 = scmp.eq.s32.totalorder %s20, 0
    %p145 = por %p143, %p144
    %s146 = ssub.s32 %s21, %s33
    %s147 = ssub.s32 %s22, %s29
    %s148 = sor.u32 %s146, %s147
    %p149 = scmp.eq.s32.totalorder %s148, 0
    %s151 = sadd.s32 %s150, 1
    %s152 = scalar_select %p149, %s150, %s151
    %p155 = pneg %p149
    %p156 = scmp.eq.s32.totalorder %s14, 1
    %p157 = por %p155, %p156
    %p158 = scmp.ne.s32.totalorder %s150, %s153
    %p159 = scmp.eq.s32.totalorder %s14, 0
    %p160 = por %p158, %p159
    %p161 = scmp.ne.s32.totalorder %s150, %s153
    %p162 = scmp.eq.s32.totalorder %s19, 1
    %p163 = por %p161, %p162
    %p164 = scmp.ne.s32.totalorder %s153, %s154
    %p165 = scmp.eq.s32.totalorder %s19, 0
    %p166 = por %p164, %p165
    %p167 = scmp.ne.s32.totalorder %s153, %s154
    %p168 = scmp.eq.s32.totalorder %s20, 1
    %p169 = por %p167, %p168
    %p171 = scmp.ne.s32.totalorder %s154, %s170
    %p172 = scmp.eq.s32.totalorder %s20, 0
    %p173 = por %p171, %p172
    %s174 = ssub.s32 %s21, %s33
    %s175 = ssub.s32 %s22, %s29
    %s176 = sor.u32 %s174, %s175
    %p177 = scmp.eq.s32.totalorder %s176, 0
    %s179 = sadd.s32 %s178, 1
    %s180 = scalar_select %p177, %s178, %s179
    %p183 = pneg %p177
    %p184 = scmp.eq.s32.totalorder %s14, 1
    %p185 = por %p183, %p184
    %p186 = scmp.ne.s32.totalorder %s178, %s181
    %p187 = scmp.eq.s32.totalorder %s14, 0
    %p188 = por %p186, %p187
    %p189 = scmp.ne.s32.totalorder %s178, %s181
    %p190 = scmp.eq.s32.totalorder %s19, 1
    %p191 = por %p189, %p190
    %p192 = scmp.ne.s32.totalorder %s181, %s182
    %p193 = scmp.eq.s32.totalorder %s19, 0
    %p194 = por %p192, %p193
    %p195 = scmp.ne.s32.totalorder %s181, %s182
    %p196 = scmp.eq.s32.totalorder %s20, 1
    %p197 = por %p195, %p196
    %p199 = scmp.ne.s32.totalorder %s182, %s198
    %p200 = scmp.eq.s32.totalorder %s20, 0
    %p201 = por %p199, %p200
    %s202 = ssub.s32 %s21, %s33
    %s203 = ssub.s32 %s22, %s29
    %s204 = sor.u32 %s202, %s203
    %p205 = scmp.eq.s32.totalorder %s204, 0
    %s207 = sadd.s32 %s206, 1
    %s208 = scalar_select %p205, %s206, %s207
    %p211 = pneg %p205
    %p212 = scmp.eq.s32.totalorder %s14, 1
    %p213 = por %p211, %p212
    %p214 = scmp.ne.s32.totalorder %s206, %s209
    %p215 = scmp.eq.s32.totalorder %s14, 0
    %p216 = por %p214, %p215
    %p217 = scmp.ne.s32.totalorder %s206, %s209
    %p218 = scmp.eq.s32.totalorder %s19, 1
    %p219 = por %p217, %p218
    %p220 = scmp.ne.s32.totalorder %s209, %s210
    %p221 = scmp.eq.s32.totalorder %s19, 0
    %p222 = por %p220, %p221
    %p223 = scmp.ne.s32.totalorder %s209, %s210
    %p224 = scmp.eq.s32.totalorder %s20, 1
    %p225 = por %p223, %p224
    %p227 = scmp.ne.s32.totalorder %s210, %s226
    %p228 = scmp.eq.s32.totalorder %s20, 0
    %p229 = por %p227, %p228
    %p230 = scmp.le.s32.totalorder 1, %s14
    %p231 = scmp.lt.s32.totalorder %s14, 3
    %p232 = pnand %p230, %p231
    %p233 = pneg %p232
    // Predicated region
    $region9: #{encoder_decoder_forward.17} parent=5 // pred_check
      _
    $region10: #{encoder_decoder_forward.17} parent=5 // pred_check_branch
      %235 = sbr.rel (%p232) target = $region12
    $region11: #{encoder_decoder_forward.17} parent=5 // pred_region
      %s236 = ssub.s32 %s14, 1
      // Predicated region
      $region13: #{encoder_decoder_forward.17} parent=11 // pred_check
        %p237 = pneg %p75
      $region14: #{encoder_decoder_forward.17} parent=11 // pred_check_branch
        %239 = sbr.rel (%p237) target = $region16
      $region15: #{encoder_decoder_forward.17} parent=11 // pred_region
        _
      $region16: #{encoder_decoder_forward.17} parent=11 // pred_fallthru
        _
      // Predicated region
      $region17: #{encoder_decoder_forward.17} parent=11 // pred_check
        %p240 = pneg %p96
      $region18: #{encoder_decoder_forward.17} parent=11 // pred_check_branch
        %242 = sbr.rel (%p240) target = $region20
      $region19: #{encoder_decoder_forward.17} parent=11 // pred_region
        _
      $region20: #{encoder_decoder_forward.17} parent=11 // pred_fallthru
        _
      // Predicated region
      $region21: #{encoder_decoder_forward.17} parent=11 // pred_check
        %p243 = pneg %p117
      $region22: #{encoder_decoder_forward.17} parent=11 // pred_check_branch
        %245 = sbr.rel (%p243) target = $region24
      $region23: #{encoder_decoder_forward.17} parent=11 // pred_region
        _
      $region24: #{encoder_decoder_forward.17} parent=11 // pred_fallthru
        _
      // Predicated region
      $region25: #{encoder_decoder_forward.17} parent=11 // pred_check
        %p246 = pneg %p138
      $region26: #{encoder_decoder_forward.17} parent=11 // pred_check_branch
        %248 = sbr.rel (%p246) target = $region28
      $region27: #{encoder_decoder_forward.17} parent=11 // pred_region
        _
      $region28: #{encoder_decoder_forward.17} parent=11 // pred_fallthru
        _
    $region12: #{encoder_decoder_forward.17} parent=5 // pred_fallthru
      _
    %p249 = scmp.lt.s32.totalorder %s14, 2
    // Predicated region
    $region29: #{encoder_decoder_forward.17} parent=5 // pred_check
      %p250 = pneg %p249
    $region30: #{encoder_decoder_forward.17} parent=5 // pred_check_branch
      %252 = sbr.rel (%p250) target = $region32
    $region31: #{encoder_decoder_forward.17} parent=5 // pred_region
      // Predicated region
      $region33: #{encoder_decoder_forward.17} parent=31 // pred_check
        %p253 = pneg %p48
      $region34: #{encoder_decoder_forward.17} parent=31 // pred_check_branch
        %255 = sbr.rel (%p253) target = $region36
      $region35: #{encoder_decoder_forward.17} parent=31 // pred_region
        %s256 = smul.u32 2, %s22
        %p257 = scmp.lt.s32.totalorder %s21, 1
        %s258 = scalar_select %p257, %s21, 1
        %p259 = scmp.lt.s32.totalorder %s256, 1
        %s260 = scalar_select %p259, %s256, 1
        %s261 = smul.addr %s258, 4
        %s262 = sadd.s32 %s260, %s261
        %s263 = smul.addr %s262, 4
        %s264 = scalar_lea.vmem %s0, %s263
        %s265 = smul.u32 2, %s22
      $region36: #{encoder_decoder_forward.17} parent=31 // pred_fallthru
        _
    $region32: #{encoder_decoder_forward.17} parent=5 // pred_fallthru
      _
    %p266 = scmp.le.s32.totalorder 1, %s14
    %p267 = scmp.lt.s32.totalorder %s14, 3
    %p268 = pnand %p266, %p267
    %p269 = pneg %p268
    // Predicated region
    $region37: #{encoder_decoder_forward.17} parent=5 // pred_check
      _
    $region38: #{encoder_decoder_forward.17} parent=5 // pred_check_branch
      %271 = sbr.rel (%p268) target = $region40
    $region39: #{encoder_decoder_forward.17} parent=5 // pred_region
      %s272 = ssub.s32 %s14, 1
      %s273 = smul.u32 2, %s24
      %p274 = scmp.lt.s32.totalorder %s23, 1
      %s275 = scalar_select %p274, %s23, 1
      %p276 = scmp.lt.s32.totalorder %s273, 1
      %s277 = scalar_select %p276, %s273, 1
      %s278 = smul.addr %s275, 4
      %s279 = sadd.s32 %s277, %s278
      %s280 = smul.addr %s279, 4
      %s281 = scalar_lea.vmem %s0, %s280
      %p282 = pneg %p54
      %p283 = pneg %p51
      %p284 = pneg %p75
      %p285 = pneg %p72
      %p286 = pneg %p96
      %p287 = pneg %p93
      %p288 = pneg %p117
      %p289 = pneg %p114
      %p290 = pneg %p138
      %p291 = pneg %p135
      %p292 = pneg %p166
      %p293 = pneg %p163
      %s294 = smul.u32 2, %s24
      %p295 = scmp.lt.s32.totalorder %s23, 1
      %s296 = scalar_select %p295, %s23, 1
      %p297 = scmp.lt.s32.totalorder %s294, 1
      %s298 = scalar_select %p297, %s294, 1
      %s299 = smul.addr %s296, 16
      %s300 = sadd.s32 %s298, %s299
      %s301 = smul.addr %s300, 8
      %s302 = scalar_lea.vmem %s5, %s301
      %p303 = pneg %p194
      %p304 = pneg %p191
      %s305 = smul.u32 2, %s24
      %p306 = scmp.lt.s32.totalorder %s23, 1
      %s307 = scalar_select %p306, %s23, 1
      %p308 = scmp.lt.s32.totalorder %s305, 1
      %s309 = scalar_select %p308, %s305, 1
      %s310 = smul.addr %s307, 2
      %s311 = sadd.s32 %s309, %s310
      %s312 = scalar_lea.vmem %s6, %s311
      %p313 = pneg %p222
      %p314 = pneg %p219
      %s315 = smul.u32 2, %s24
      %p316 = scmp.lt.s32.totalorder %s23, 1
      %s317 = scalar_select %p316, %s23, 1
      %p318 = scmp.lt.s32.totalorder %s315, 1
      %s319 = scalar_select %p318, %s315, 1
      %s320 = smul.addr %s317, 2
      %s321 = sadd.s32 %s319, %s320
      %s322 = scalar_lea.vmem %s7, %s321
      %s323 = smul.u32 2, %s24
      %p324 = scmp.lt.s32.totalorder %s23, 1
      %s325 = scalar_select %p324, %s23, 1
      %p326 = scmp.lt.s32.totalorder %s323, 1
      %s327 = scalar_select %p326, %s323, 1
      %s328 = smul.addr %s325, 4
      %s329 = sadd.s32 %s327, %s328
      %s330 = smul.addr %s329, 4
      %s331 = scalar_lea.vmem %s0, %s330
      %s332 = smul.u32 2, %s24
      %s333 = smul.u32 2, %s24
      %p334 = scmp.lt.s32.totalorder %s23, 1
      %s335 = scalar_select %p334, %s23, 1
      %p336 = scmp.lt.s32.totalorder %s333, 1
      %s337 = scalar_select %p336, %s333, 1
      %s338 = smul.addr %s335, 16
      %s339 = sadd.s32 %s337, %s338
      %s340 = smul.addr %s339, 8
      %s341 = scalar_lea.vmem %s5, %s340
      %s342 = smul.u32 2, %s24
      %s343 = smul.u32 2, %s24
      %p344 = scmp.lt.s32.totalorder %s23, 1
      %s345 = scalar_select %p344, %s23, 1
      %p346 = scmp.lt.s32.totalorder %s343, 1
      %s347 = scalar_select %p346, %s343, 1
      %s348 = smul.addr %s345, 2
      %s349 = sadd.s32 %s347, %s348
      %s350 = scalar_lea.vmem %s6, %s349
      %s351 = smul.u32 2, %s24
      %s352 = smul.u32 2, %s24
      %p353 = scmp.lt.s32.totalorder %s23, 1
      %s354 = scalar_select %p353, %s23, 1
      %p355 = scmp.lt.s32.totalorder %s352, 1
      %s356 = scalar_select %p355, %s352, 1
      %s357 = smul.addr %s354, 2
      %s358 = sadd.s32 %s356, %s357
      %s359 = scalar_lea.vmem %s7, %s358
      %s360 = smul.u32 2, %s24
      %v362 = vld [vmem:[%s331] sm:$0xff]
      %v363 = vld [vmem:[%s331 + $0x8] sm:$0xff]
      %v364 = vunpack.c.l.bf16 %v362
      %v365 = vunpack.c.h.bf16 %v362
      %v366 = vunpack.c.l.bf16 %v363
      %v367 = vunpack.c.h.bf16 %v363
      %v368 = vld [vmem:[%s1] sm:$0xff]
      %v369 = vld [vmem:[%s1 + $0x8] sm:$0xff]
      %371 = vset.pattern.permute.xlu0 0
      %372 = vperm.xlu0 %371, %v368
      %v373 = vpop.permute.xlu0 %372
      %376 = vset.pattern.permute.xlu0 0
      %377 = vperm.xlu0 %376, %v369
      %v378 = vpop.permute.xlu0 %377
      %v380 = vadd.f32 %v364, %v373
      %v381 = vadd.f32 %v365, %v373
      %v382 = vadd.f32 %v366, %v378
      %v383 = vadd.f32 %v367, %v378
      %v384 = vmax.f32 %v380, 0.0
      %v385 = vmax.f32 %v381, 0.0
      %v386 = vmax.f32 %v382, 0.0
      %v387 = vmax.f32 %v383, 0.0
      %v388 = vld [vmem:[%s2] sm:$0xf]
      %v389 = vld [vmem:[%s2 + $0x4] sm:$0xf]
      %v390 = vld [vmem:[%s2 + $0x8] sm:$0xf]
      %v391 = vld [vmem:[%s2 + $0xc] sm:$0xf]
      %v392 = vld [vmem:[%s2 + $0x10] sm:$0xf]
      %v393 = vld [vmem:[%s2 + $0x14] sm:$0xf]
      %v394 = vld [vmem:[%s2 + $0x18] sm:$0xf]
      %v395 = vld [vmem:[%s2 + $0x1c] sm:$0xf]
      %v396 = vpack.c.bf16 %v386, %v384
      %v397 = vpack.c.bf16 %v387, %v385
      %v398 = vld [vmem:[%s3] sm:$0xff]
      %v399 = vld [vmem:[%s3 + $0x8] sm:$0xff]
      %v400 = vld [vmem:[%s3 + $0x10] sm:$0xff]
      %v401 = vld [vmem:[%s3 + $0x18] sm:$0xff]
      %v402 = vld [vmem:[%s3 + $0x20] sm:$0xff]
      %v403 = vld [vmem:[%s3 + $0x28] sm:$0xff]
      %v404 = vld [vmem:[%s3 + $0x30] sm:$0xff]
      %v405 = vld [vmem:[%s3 + $0x38] sm:$0xff]
      %407 = vset.pattern.permute.xlu0 0
      %408 = vperm.xlu0 %407, %v398
      %v409 = vpop.permute.xlu0 %408
      %412 = vset.pattern.permute.xlu0 0
      %413 = vperm.xlu0 %412, %v399
      %v414 = vpop.permute.xlu0 %413
      %417 = vset.pattern.permute.xlu0 0
      %418 = vperm.xlu0 %417, %v400
      %v419 = vpop.permute.xlu0 %418
      %422 = vset.pattern.permute.xlu0 0
      %423 = vperm.xlu0 %422, %v401
      %v424 = vpop.permute.xlu0 %423
      %427 = vset.pattern.permute.xlu0 0
      %428 = vperm.xlu0 %427, %v402
      %v429 = vpop.permute.xlu0 %428
      %432 = vset.pattern.permute.xlu0 0
      %433 = vperm.xlu0 %432, %v403
      %v434 = vpop.permute.xlu0 %433
      %437 = vset.pattern.permute.xlu0 0
      %438 = vperm.xlu0 %437, %v404
      %v439 = vpop.permute.xlu0 %438
      %442 = vset.pattern.permute.xlu0 0
      %443 = vperm.xlu0 %442, %v405
      %v444 = vpop.permute.xlu0 %443
      %v454 = vunpack.c.l.b16 %v388
      %v455 = vunpack.c.l.b16 %v389
      %v456 = vunpack.c.l.b16 %v390
      %v457 = vunpack.c.l.b16 %v391
      %v458 = vunpack.c.l.b16 %v392
      %v459 = vunpack.c.l.b16 %v393
      %v460 = vunpack.c.l.b16 %v394
      %v461 = vunpack.c.l.b16 %v395
      %v462 = vpack.c.b16 %v455, %v454
      %v463 = vpack.c.b16 %v457, %v456
      %v464 = vpack.c.b16 %v459, %v458
      %v465 = vpack.c.b16 %v461, %v460
      %vm466 = vcmask 130048
      %v468 = vsel %vm466, %v462, 0
      %v471 = vsel %vm466, %v463, 0
      %v474 = vsel %vm466, %v464, 0
      %v477 = vsel %vm466, %v465, 0
      %479 = vmatprep.subr.bf16.mxu0 %v397
      %480 = vmatpush1.bf16.msra.mxu0 %v396
      %481 = vmatprep.subr.bf16.mxu0 0
      %482 = vmatpush1.bf16.msra.mxu0 0
      %483 = vmatprep.subr.bf16.mxu0 0
      %484 = vmatpush1.bf16.msra.mxu0 0
      %485 = vmatprep.subr.bf16.mxu0 0
      %486 = vmatpush1.bf16.msra.mxu0 0
      %487 = vmatprep.subr.bf16.mxu0 0
      %488 = vmatpush1.bf16.msra.mxu0 0
      %489 = vmatprep.subr.bf16.mxu0 0
      %490 = vmatpush1.bf16.msra.mxu0 0
      %491 = vmatprep.subr.bf16.mxu0 0
      %492 = vmatpush1.bf16.msra.mxu0 0
      %493 = vmatprep.subr.bf16.mxu0 0
      %494 = vmatpush1.bf16.msra.mxu0 0
      %495 = vmatprep.subr.bf16.mxu0 0
      %496 = vmatpush1.bf16.msra.mxu0 0
      %497 = vmatprep.subr.bf16.mxu0 0
      %498 = vmatpush1.bf16.msra.mxu0 0
      %499 = vmatprep.subr.bf16.mxu0 0
      %500 = vmatpush1.bf16.msra.mxu0 0
      %501 = vmatprep.subr.bf16.mxu0 0
      %502 = vmatpush1.bf16.msra.mxu0 0
      %503 = vmatprep.subr.bf16.mxu0 0
      %504 = vmatpush1.bf16.msra.mxu0 0
      %505 = vmatprep.subr.bf16.mxu0 0
      %506 = vmatpush1.bf16.msra.mxu0 0
      %507 = vmatprep.subr.bf16.mxu0 0
      %508 = vmatpush1.bf16.msra.mxu0 0
      %509 = vmatprep.subr.bf16.mxu0 0
      %510 = vmatpush1.bf16.msra.mxu0 0
      %511 = vmatprep.mubr.bf16.mxu0 0
      %512 = vmatmul.mubr.bf16.gmra.mrb[0].mxu0 %v468
      %v513 = vpop.f32.mrb[0].mxu0
      %v514 = vadd.f32 %v409, %v513
      %v515 = vpop.f32.mrb[0].mxu0
      %v516 = vadd.f32 %v409, %v515
      %v517 = vpop.f32.mrb[0].mxu0
      %v518 = vadd.f32 %v414, %v517
      %v519 = vpop.f32.mrb[0].mxu0
      %v520 = vadd.f32 %v414, %v519
      %521 = vmatprep.mubr.bf16.mxu0 0
      %522 = vmatmul.mubr.bf16.gmra.mrb[0].mxu0 %v471
      %v523 = vpop.f32.mrb[0].mxu0
      %v524 = vadd.f32 %v419, %v523
      %v525 = vpop.f32.mrb[0].mxu0
      %v526 = vadd.f32 %v419, %v525
      %v527 = vpop.f32.mrb[0].mxu0
      %v528 = vadd.f32 %v424, %v527
      %v529 = vpop.f32.mrb[0].mxu0
      %v530 = vadd.f32 %v424, %v529
      %531 = vmatprep.mubr.bf16.mxu0 0
      %532 = vmatmul.mubr.bf16.gmra.mrb[0].mxu0 %v474
      %v533 = vpop.f32.mrb[0].mxu0
      %v534 = vadd.f32 %v429, %v533
      %v535 = vpop.f32.mrb[0].mxu0
      %v536 = vadd.f32 %v429, %v535
      %v537 = vpop.f32.mrb[0].mxu0
      %v538 = vadd.f32 %v434, %v537
      %v539 = vpop.f32.mrb[0].mxu0
      %v540 = vadd.f32 %v434, %v539
      %541 = vmatprep.mubr.bf16.mxu0 0
      %542 = vmatmul.mubr.bf16.gmra.mrb[0].mxu0 %v477
      %v543 = vpop.f32.mrb[0].mxu0
      %v544 = vadd.f32 %v439, %v543
      %v545 = vpop.f32.mrb[0].mxu0
      %v546 = vadd.f32 %v439, %v545
      %v547 = vpop.f32.mrb[0].mxu0
      %v548 = vadd.f32 %v444, %v547
      %v549 = vpop.f32.mrb[0].mxu0
      %v550 = vadd.f32 %v444, %v549
      %551 = vdwg.mxu0
      %552 = vst [vmem:[%s341] sm:$0xff] %v514
      %553 = vst [vmem:[%s341 + $0x8] sm:$0xff] %v516
      %554 = vst [vmem:[%s341 + $0x10] sm:$0xff] %v518
      %555 = vst [vmem:[%s341 + $0x18] sm:$0xff] %v520
      %556 = vst [vmem:[%s341 + $0x20] sm:$0xff] %v524
      %557 = vst [vmem:[%s341 + $0x28] sm:$0xff] %v526
      %558 = vst [vmem:[%s341 + $0x30] sm:$0xff] %v528
      %559 = vst [vmem:[%s341 + $0x38] sm:$0xff] %v530
      %560 = vst [vmem:[%s341 + $0x40] sm:$0xff] %v534
      %561 = vst [vmem:[%s341 + $0x48] sm:$0xff] %v536
      %562 = vst [vmem:[%s341 + $0x50] sm:$0xff] %v538
      %563 = vst [vmem:[%s341 + $0x58] sm:$0xff] %v540
      %564 = vst [vmem:[%s341 + $0x60] sm:$0xff] %v544
      %565 = vst [vmem:[%s341 + $0x68] sm:$0xff] %v546
      %566 = vst [vmem:[%s341 + $0x70] sm:$0xff] %v548
      %567 = vst [vmem:[%s341 + $0x78] sm:$0xff] %v550
      %v568 = vmax.f32 %v514, %v524
      %v569 = vmax.f32 %v518, %v528
      %v570 = vmax.f32 %v568, %v534
      %v571 = vmax.f32 %v569, %v538
      %v572 = vmax.f32 %v570, %v544
      %v573 = vmax.f32 %v571, %v548
      %v574 = vmax.f32 %v572, %v573
      %v575 = vrot.slane %v574, 4
      %v576 = vmax.f32 %v574, %v575
      %v577 = vrot.slane %v576, 2
      %v578 = vmax.f32 %v576, %v577
      %v579 = vrot.slane %v578, 1
      %v580 = vmax.f32 %v578, %v579
      %v581 = vmax.f32 %v516, %v526
      %v582 = vmax.f32 %v520, %v530
      %v583 = vmax.f32 %v581, %v536
      %v584 = vmax.f32 %v582, %v540
      %v585 = vmax.f32 %v583, %v546
      %v586 = vmax.f32 %v584, %v550
      %v587 = vmax.f32 %v585, %v586
      %v588 = vrot.slane %v587, 4
      %v589 = vmax.f32 %v587, %v588
      %v590 = vrot.slane %v589, 2
      %v591 = vmax.f32 %v589, %v590
      %v592 = vrot.slane %v591, 1
      %v593 = vmax.f32 %v591, %v592
      %v594 = vsub.f32 %v514, %v580
      %v595 = vsub.f32 %v516, %v593
      %v596 = vsub.f32 %v518, %v580
      %v597 = vsub.f32 %v520, %v593
      %v598 = vsub.f32 %v524, %v580
      %v599 = vsub.f32 %v526, %v593
      %v600 = vsub.f32 %v528, %v580
      %v601 = vsub.f32 %v530, %v593
      %v602 = vsub.f32 %v534, %v580
      %v603 = vsub.f32 %v536, %v593
      %v604 = vsub.f32 %v538, %v580
      %v605 = vsub.f32 %v540, %v593
      %v606 = vsub.f32 %v544, %v580
      %v607 = vsub.f32 %v546, %v593
      %v608 = vsub.f32 %v548, %v580
      %v609 = vsub.f32 %v550, %v593
      %v610 = vmul.f32 %v594, 1.442695
      %v611 = vpow.pop %v610
      %v612 = vmul.f32 %v595, 1.442695
      %v613 = vpow.pop %v612
      %v614 = vmul.f32 %v596, 1.442695
      %v615 = vpow.pop %v614
      %v616 = vmul.f32 %v597, 1.442695
      %v617 = vpow.pop %v616
      %v618 = vmul.f32 %v598, 1.442695
      %v619 = vpow.pop %v618
      %v620 = vmul.f32 %v599, 1.442695
      %v621 = vpow.pop %v620
      %v622 = vmul.f32 %v600, 1.442695
      %v623 = vpow.pop %v622
      %v624 = vmul.f32 %v601, 1.442695
      %v625 = vpow.pop %v624
      %v626 = vmul.f32 %v602, 1.442695
      %v627 = vpow.pop %v626
      %v628 = vmul.f32 %v603, 1.442695
      %v629 = vpow.pop %v628
      %v630 = vmul.f32 %v604, 1.442695
      %v631 = vpow.pop %v630
      %v632 = vmul.f32 %v605, 1.442695
      %v633 = vpow.pop %v632
      %v634 = vmul.f32 %v606, 1.442695
      %v635 = vpow.pop %v634
      %v636 = vmul.f32 %v607, 1.442695
      %v637 = vpow.pop %v636
      %v638 = vmul.f32 %v608, 1.442695
      %v639 = vpow.pop %v638
      %v640 = vmul.f32 %v609, 1.442695
      %v641 = vpow.pop %v640
      %v642 = vadd.f32 %v611, %v615
      %v643 = vadd.f32 %v642, %v619
      %v644 = vadd.f32 %v643, %v623
      %v645 = vadd.f32 %v644, %v627
      %v646 = vadd.f32 %v645, %v631
      %v647 = vadd.f32 %v646, %v635
      %v648 = vadd.f32 %v647, %v639
      %v649 = vrot.slane %v648, 4
      %v650 = vadd.f32 %v648, %v649
      %v651 = vrot.slane %v650, 2
      %v652 = vadd.f32 %v650, %v651
      %v653 = vrot.slane %v652, 1
      %v654 = vadd.f32 %v652, %v653
      %v655 = vadd.f32 %v613, %v617
      %v656 = vadd.f32 %v655, %v621
      %v657 = vadd.f32 %v656, %v625
      %v658 = vadd.f32 %v657, %v629
      %v659 = vadd.f32 %v658, %v633
      %v660 = vadd.f32 %v659, %v637
      %v661 = vadd.f32 %v660, %v641
      %v662 = vrot.slane %v661, 4
      %v663 = vadd.f32 %v661, %v662
      %v664 = vrot.slane %v663, 2
      %v665 = vadd.f32 %v663, %v664
      %v666 = vrot.slane %v665, 1
      %v667 = vadd.f32 %v665, %v666
      %v668 = vrcp.pop %v654
      %v669 = vmul.f32 1.0, %v668
      %v670 = vrcp.pop %v667
      %v671 = vmul.f32 1.0, %v670
      %v672 = vld [vmem:[%s4] sm:$0xff]
      %v673 = vld [vmem:[%s4 + $0x8] sm:$0xff]
      %v674 = vld [vmem:[%s4 + $0x10] sm:$0xff]
      %v675 = vld [vmem:[%s4 + $0x18] sm:$0xff]
      %v676 = vld [vmem:[%s4 + $0x20] sm:$0xff]
      %v677 = vld [vmem:[%s4 + $0x28] sm:$0xff]
      %v678 = vld [vmem:[%s4 + $0x30] sm:$0xff]
      %v679 = vld [vmem:[%s4 + $0x38] sm:$0xff]
      %681 = vset.pattern.permute.xlu0 0
      %682 = vperm.xlu0 %681, %v672
      %v683 = vpop.permute.xlu0 %682
      %686 = vset.pattern.permute.xlu0 0
      %687 = vperm.xlu0 %686, %v673
      %v688 = vpop.permute.xlu0 %687
      %691 = vset.pattern.permute.xlu0 0
      %692 = vperm.xlu0 %691, %v674
      %v693 = vpop.permute.xlu0 %692
      %696 = vset.pattern.permute.xlu0 0
      %697 = vperm.xlu0 %696, %v675
      %v698 = vpop.permute.xlu0 %697
      %701 = vset.pattern.permute.xlu0 0
      %702 = vperm.xlu0 %701, %v676
      %v703 = vpop.permute.xlu0 %702
      %706 = vset.pattern.permute.xlu0 0
      %707 = vperm.xlu0 %706, %v677
      %v708 = vpop.permute.xlu0 %707
      %711 = vset.pattern.permute.xlu0 0
      %712 = vperm.xlu0 %711, %v678
      %v713 = vpop.permute.xlu0 %712
      %716 = vset.pattern.permute.xlu0 0
      %717 = vperm.xlu0 %716, %v679
      %v718 = vpop.permute.xlu0 %717
      %v720 = vmul.f32 %v611, %v683
      %v721 = vmul.f32 %v613, %v683
      %v722 = vmul.f32 %v615, %v688
      %v723 = vmul.f32 %v617, %v688
      %v724 = vmul.f32 %v619, %v693
      %v725 = vmul.f32 %v621, %v693
      %v726 = vmul.f32 %v623, %v698
      %v727 = vmul.f32 %v625, %v698
      %v728 = vmul.f32 %v627, %v703
      %v729 = vmul.f32 %v629, %v703
      %v730 = vmul.f32 %v631, %v708
      %v731 = vmul.f32 %v633, %v708
      %v732 = vmul.f32 %v635, %v713
      %v733 = vmul.f32 %v637, %v713
      %v734 = vmul.f32 %v639, %v718
      %v735 = vmul.f32 %v641, %v718
      %v736 = vadd.f32 %v720, %v722
      %v737 = vadd.f32 %v736, %v724
      %v738 = vadd.f32 %v737, %v726
      %v739 = vadd.f32 %v738, %v728
      %v740 = vadd.f32 %v739, %v730
      %v741 = vadd.f32 %v740, %v732
      %v742 = vadd.f32 %v741, %v734
      %v743 = vrot.slane %v742, 4
      %v744 = vadd.f32 %v742, %v743
      %v745 = vrot.slane %v744, 2
      %v746 = vadd.f32 %v744, %v745
      %v747 = vrot.slane %v746, 1
      %v748 = vadd.f32 %v746, %v747
      %v749 = vadd.f32 %v721, %v723
      %v750 = vadd.f32 %v749, %v725
      %v751 = vadd.f32 %v750, %v727
      %v752 = vadd.f32 %v751, %v729
      %v753 = vadd.f32 %v752, %v731
      %v754 = vadd.f32 %v753, %v733
      %v755 = vadd.f32 %v754, %v735
      %v756 = vrot.slane %v755, 4
      %v757 = vadd.f32 %v755, %v756
      %v758 = vrot.slane %v757, 2
      %v759 = vadd.f32 %v757, %v758
      %v760 = vrot.slane %v759, 1
      %v761 = vadd.f32 %v759, %v760
      %v762 = vmul.f32 %v748, %v669
      %v763 = vmul.f32 %v761, %v671
      %v766 = vcombine.low %v762, %v763
      %v768 = vunpack.c.l.s4 1966171168
      %v769 = vunpack.c.0.s8 %v768
      %v770 = vlaneseq
      %v771 = vshrl.u32 %v770, 7
      %v772 = vsub.s32 %v769, %v771
      %v773 = vrot.slane %v766, %v772
      %v775 = vunpack.c.l.s4 1966171168
      %v776 = vunpack.c.0.s8 %v775
      %v777 = vlaneseq
      %v778 = vshrl.u32 %v777, 7
      %v779 = vsub.s32 %v776, %v778
      %v780 = vrot.slane %v773, %v779
      %v782 = vlaneseq
      %vm783 = vcmp.ge.s32.totalorder %v782, 0
      %vm784 = vcmp.lt.s32.totalorder %v782, 256
      %vm785 = vmand %vm783, %vm784
      %786 = vst.msk [vmem:[%s350] sm:$0x3] %vm785, %v780
      %v789 = vcombine.low %v669, %v671
      %v791 = vunpack.c.l.s4 1966171168
      %v792 = vunpack.c.0.s8 %v791
      %v793 = vlaneseq
      %v794 = vshrl.u32 %v793, 7
      %v795 = vsub.s32 %v792, %v794
      %v796 = vrot.slane %v789, %v795
      %v798 = vunpack.c.l.s4 1966171168
      %v799 = vunpack.c.0.s8 %v798
      %v800 = vlaneseq
      %v801 = vshrl.u32 %v800, 7
      %v802 = vsub.s32 %v799, %v801
      %v803 = vrot.slane %v796, %v802
      %805 = vst.msk [vmem:[%s359] sm:$0x3] %vm785, %v803
      %s806 = smul.u32 2, %s24
      %p807 = scmp.lt.s32.totalorder %s23, 1
      %s808 = scalar_select %p807, %s23, 1
      %p809 = scmp.lt.s32.totalorder %s806, 1
      %s810 = scalar_select %p809, %s806, 1
      %s811 = smul.addr %s808, 16
      %s812 = sadd.s32 %s810, %s811
      %s813 = smul.addr %s812, 8
      %s814 = scalar_lea.vmem %s5, %s813
      %s815 = smul.u32 2, %s24
      %p816 = scmp.lt.s32.totalorder %s23, 1
      %s817 = scalar_select %p816, %s23, 1
      %p818 = scmp.lt.s32.totalorder %s815, 1
      %s819 = scalar_select %p818, %s815, 1
      %s820 = smul.addr %s817, 2
      %s821 = sadd.s32 %s819, %s820
      %s822 = scalar_lea.vmem %s6, %s821
      %s823 = smul.u32 2, %s24
      %p824 = scmp.lt.s32.totalorder %s23, 1
      %s825 = scalar_select %p824, %s23, 1
      %p826 = scmp.lt.s32.totalorder %s823, 1
      %s827 = scalar_select %p826, %s823, 1
      %s828 = smul.addr %s825, 2
      %s829 = sadd.s32 %s827, %s828
      %s830 = scalar_lea.vmem %s7, %s829
      // Predicated region
      $region41: #{encoder_decoder_forward.17} parent=39 // pred_check
        %p831 = pneg %p163
      $region42: #{encoder_decoder_forward.17} parent=39 // pred_check_branch
        %833 = sbr.rel (%p831) target = $region44
      $region43: #{encoder_decoder_forward.17} parent=39 // pred_region
        %s834 = smul.u32 2, %s24
      $region44: #{encoder_decoder_forward.17} parent=39 // pred_fallthru
        _
      // Predicated region
      $region45: #{encoder_decoder_forward.17} parent=39 // pred_check
        %p835 = pneg %p191
      $region46: #{encoder_decoder_forward.17} parent=39 // pred_check_branch
        %837 = sbr.rel (%p835) target = $region48
      $region47: #{encoder_decoder_forward.17} parent=39 // pred_region
        %s838 = smul.u32 2, %s24
      $region48: #{encoder_decoder_forward.17} parent=39 // pred_fallthru
        _
      // Predicated region
      $region49: #{encoder_decoder_forward.17} parent=39 // pred_check
        %p839 = pneg %p219
      $region50: #{encoder_decoder_forward.17} parent=39 // pred_check_branch
        %841 = sbr.rel (%p839) target = $region52
      $region51: #{encoder_decoder_forward.17} parent=39 // pred_region
        %s842 = smul.u32 2, %s24
      $region52: #{encoder_decoder_forward.17} parent=39 // pred_fallthru
        _
    $region40: #{encoder_decoder_forward.17} parent=5 // pred_fallthru
      _
    %p843 = scmp.le.s32.totalorder 2, %s14
    // Predicated region
    $region53: #{encoder_decoder_forward.17} parent=5 // pred_check
      %p844 = pneg %p843
    $region54: #{encoder_decoder_forward.17} parent=5 // pred_check_branch
      %846 = sbr.rel (%p844) target = $region56
    $region55: #{encoder_decoder_forward.17} parent=5 // pred_region
      %s847 = ssub.s32 %s14, 2
      // Predicated region
      $region57: #{encoder_decoder_forward.17} parent=55 // pred_check
        %p848 = pneg %p169
      $region58: #{encoder_decoder_forward.17} parent=55 // pred_check_branch
        %850 = sbr.rel (%p848) target = $region60
      $region59: #{encoder_decoder_forward.17} parent=55 // pred_region
        %s851 = smul.u32 2, %s26
        %p852 = scmp.lt.s32.totalorder %s25, 1
        %s853 = scalar_select %p852, %s25, 1
        %p854 = scmp.lt.s32.totalorder %s851, 1
        %s855 = scalar_select %p854, %s851, 1
        %s856 = smul.addr %s853, 16
        %s857 = sadd.s32 %s855, %s856
        %s858 = smul.addr %s857, 8
        %s859 = scalar_lea.vmem %s5, %s858
      $region60: #{encoder_decoder_forward.17} parent=55 // pred_fallthru
        _
      // Predicated region
      $region61: #{encoder_decoder_forward.17} parent=55 // pred_check
        %p860 = pneg %p197
      $region62: #{encoder_decoder_forward.17} parent=55 // pred_check_branch
        %862 = sbr.rel (%p860) target = $region64
      $region63: #{encoder_decoder_forward.17} parent=55 // pred_region
        %s863 = smul.u32 2, %s26
        %p864 = scmp.lt.s32.totalorder %s25, 1
        %s865 = scalar_select %p864, %s25, 1
        %p866 = scmp.lt.s32.totalorder %s863, 1
        %s867 = scalar_select %p866, %s863, 1
        %s868 = smul.addr %s865, 2
        %s869 = sadd.s32 %s867, %s868
        %s870 = scalar_lea.vmem %s6, %s869
      $region64: #{encoder_decoder_forward.17} parent=55 // pred_fallthru
        _
      // Predicated region
      $region65: #{encoder_decoder_forward.17} parent=55 // pred_check
        %p871 = pneg %p225
      $region66: #{encoder_decoder_forward.17} parent=55 // pred_check_branch
        %873 = sbr.rel (%p871) target = $region68
      $region67: #{encoder_decoder_forward.17} parent=55 // pred_region
        %s874 = smul.u32 2, %s26
        %p875 = scmp.lt.s32.totalorder %s25, 1
        %s876 = scalar_select %p875, %s25, 1
        %p877 = scmp.lt.s32.totalorder %s874, 1
        %s878 = scalar_select %p877, %s874, 1
        %s879 = smul.addr %s876, 2
        %s880 = sadd.s32 %s878, %s879
        %s881 = scalar_lea.vmem %s7, %s880
      $region68: #{encoder_decoder_forward.17} parent=55 // pred_fallthru
        _
    $region56: #{encoder_decoder_forward.17} parent=5 // pred_fallthru
      _
  $region6: #{encoder_decoder_forward.17} parent=0 // loop_footer
    %s18 = sadd.s32 1, %s14
  $region7: #{encoder_decoder_forward.17} parent=0 // loop_footer_branch
    %13 = sbr.rel target = $region3
  $region8: #{encoder_decoder_forward.17} parent=0 // loop_exit
    _

// kernel: encoder_decoder_forward.16
$region0: #{encoder_decoder_forward.16}
  #allocation0 [shape = 'u32[]', space=smem, size = 0x4, offset = 0x4, fixed_abs, tag = 'smem constant byte address 0x4 - core index']
  #allocation1 [shape = 'u32[144,128]{1,0:T(1,128)}', space=vmem, size = 0x12000, scoped, tag = 'internal scratch']
  %s0 = inlined_call_operand.vmem [shape: bf16[2,8,16,16], index: 0, kind: input, shape index: {}]
  %s1 = inlined_call_operand.vmem [shape: bf16[2,16,16,16], index: 1, kind: input, shape index: {}]
  %s2 = inlined_call_operand.vmem [shape: bf16[16,16], index: 2, kind: input, shape index: {}]
  %s3 = inlined_call_operand.vmem [shape: f32[1,16], index: 3, kind: input, shape index: {}]
  %s4 = inlined_call_operand.vmem [shape: bf16[16,16], index: 4, kind: input, shape index: {}]
  %s5 = inlined_call_operand.vmem [shape: bf16[2,16,16,16], index: 5, kind: output, shape index: {}]
  %s6 = sld [smem:[#allocation0]]
  $region53: #{encoder_decoder_forward.16} parent=0
    _
  %s8 = ssub.s32 1, %s6
  %s9 = scalar_select 0, %s8, %s6
  loop: start=0, step=1, limit=4
  $region2: #{encoder_decoder_forward.16} parent=0 // loop_pre_header
    _
  $region3: #{encoder_decoder_forward.16} parent=0 // loop_header
    %s11 = sphi 0, %s15
    %p12 = scmp.ge.s32.totalorder %s11, 4
    %s18 = sphi 0, %s30
    %s19 = sphi 0, %s26
    %s20 = sphi 0, %s18
    %s21 = sphi 0, %s19
    %s22 = sphi 0, %s20
    %s23 = sphi 0, %s21
    %s35 = sphi 0, %s37
    %s38 = sphi 0, %s35
    %s39 = sphi 0, %s38
    %s55 = sphi 0, %s39
    %s63 = sphi 0, %s65
    %s66 = sphi 0, %s63
    %s67 = sphi 0, %s66
    %s83 = sphi 0, %s67
    %s87 = sphi 0, %s87
    %s89 = sphi 0, %s87
    %s90 = sphi 0, %s89
    %s104 = sphi 0, %s90
    %s108 = sphi 0, %s108
    %s110 = sphi 0, %s108
    %s111 = sphi 0, %s110
    %s125 = sphi 0, %s111
    %s129 = sphi 0, %s129
    %s131 = sphi 0, %s129
    %s132 = sphi 0, %s131
    %s146 = sphi 0, %s132
    %s154 = sphi 0, %s156
    %s157 = sphi 0, %s154
    %s158 = sphi 0, %s157
    %s174 = sphi 0, %s158
  $region4: #{encoder_decoder_forward.16} parent=0 // loop_header_branch
    %14 = sbr.rel (%p12) target = $region8
  $region5: #{encoder_decoder_forward.16} parent=0 // loop_body
    %s16 = ssub.s32 %s11, 1
    %s17 = ssub.s32 %s11, 2
    %s24 = sadd.s32 1, %s19
    %p25 = scmp.ge.s32.totalorder %s24, 1
    %s26 = scalar_select %p25, 0, %s24
    %s27 = sadd.s32 1, %s18
    %s28 = scalar_select %p25, %s27, %s18
    %p29 = scmp.ge.s32.totalorder %s28, 2
    %s30 = scalar_select %p29, 0, %s28
    %s31 = ssub.s32 %s18, %s30
    %s32 = ssub.s32 %s19, %s26
    %s33 = sor.u32 %s31, %s32
    %p34 = scmp.eq.s32.totalorder %s33, 0
    %s36 = sadd.s32 %s35, 1
    %s37 = scalar_select %p34, %s35, %s36
    %p40 = pneg %p34
    %p41 = scmp.eq.s32.totalorder %s11, 1
    %p42 = por %p40, %p41
    %p43 = scmp.ne.s32.totalorder %s35, %s38
    %p44 = scmp.eq.s32.totalorder %s11, 0
    %p45 = por %p43, %p44
    %p46 = scmp.ne.s32.totalorder %s35, %s38
    %p47 = scmp.eq.s32.totalorder %s16, 1
    %p48 = por %p46, %p47
    %p49 = scmp.ne.s32.totalorder %s38, %s39
    %p50 = scmp.eq.s32.totalorder %s16, 0
    %p51 = por %p49, %p50
    %p52 = scmp.ne.s32.totalorder %s38, %s39
    %p53 = scmp.eq.s32.totalorder %s17, 1
    %p54 = por %p52, %p53
    %p56 = scmp.ne.s32.totalorder %s39, %s55
    %p57 = scmp.eq.s32.totalorder %s17, 0
    %p58 = por %p56, %p57
    %s59 = ssub.s32 %s18, %s30
    %s60 = ssub.s32 %s19, %s26
    %s61 = sor.u32 %s59, %s60
    %p62 = scmp.eq.s32.totalorder %s61, 0
    %s64 = sadd.s32 %s63, 1
    %s65 = scalar_select %p62, %s63, %s64
    %p68 = pneg %p62
    %p69 = scmp.eq.s32.totalorder %s11, 1
    %p70 = por %p68, %p69
    %p71 = scmp.ne.s32.totalorder %s63, %s66
    %p72 = scmp.eq.s32.totalorder %s11, 0
    %p73 = por %p71, %p72
    %p74 = scmp.ne.s32.totalorder %s63, %s66
    %p75 = scmp.eq.s32.totalorder %s16, 1
    %p76 = por %p74, %p75
    %p77 = scmp.ne.s32.totalorder %s66, %s67
    %p78 = scmp.eq.s32.totalorder %s16, 0
    %p79 = por %p77, %p78
    %p80 = scmp.ne.s32.totalorder %s66, %s67
    %p81 = scmp.eq.s32.totalorder %s17, 1
    %p82 = por %p80, %p81
    %p84 = scmp.ne.s32.totalorder %s67, %s83
    %p85 = scmp.eq.s32.totalorder %s17, 0
    %p86 = por %p84, %p85
    %s88 = sadd.s32 %s87, 1
    %p91 = scmp.eq.s32.totalorder %s11, 1
    %p92 = scmp.ne.s32.totalorder %s87, %s89
    %p93 = scmp.eq.s32.totalorder %s11, 0
    %p94 = por %p92, %p93
    %p95 = scmp.ne.s32.totalorder %s87, %s89
    %p96 = scmp.eq.s32.totalorder %s16, 1
    %p97 = por %p95, %p96
    %p98 = scmp.ne.s32.totalorder %s89, %s90
    %p99 = scmp.eq.s32.totalorder %s16, 0
    %p100 = por %p98, %p99
    %p101 = scmp.ne.s32.totalorder %s89, %s90
    %p102 = scmp.eq.s32.totalorder %s17, 1
    %p103 = por %p101, %p102
    %p105 = scmp.ne.s32.totalorder %s90, %s104
    %p106 = scmp.eq.s32.totalorder %s17, 0
    %p107 = por %p105, %p106
    %s109 = sadd.s32 %s108, 1
    %p112 = scmp.eq.s32.totalorder %s11, 1
    %p113 = scmp.ne.s32.totalorder %s108, %s110
    %p114 = scmp.eq.s32.totalorder %s11, 0
    %p115 = por %p113, %p114
    %p116 = scmp.ne.s32.totalorder %s108, %s110
    %p117 = scmp.eq.s32.totalorder %s16, 1
    %p118 = por %p116, %p117
    %p119 = scmp.ne.s32.totalorder %s110, %s111
    %p120 = scmp.eq.s32.totalorder %s16, 0
    %p121 = por %p119, %p120
    %p122 = scmp.ne.s32.totalorder %s110, %s111
    %p123 = scmp.eq.s32.totalorder %s17, 1
    %p124 = por %p122, %p123
    %p126 = scmp.ne.s32.totalorder %s111, %s125
    %p127 = scmp.eq.s32.totalorder %s17, 0
    %p128 = por %p126, %p127
    %s130 = sadd.s32 %s129, 1
    %p133 = scmp.eq.s32.totalorder %s11, 1
    %p134 = scmp.ne.s32.totalorder %s129, %s131
    %p135 = scmp.eq.s32.totalorder %s11, 0
    %p136 = por %p134, %p135
    %p137 = scmp.ne.s32.totalorder %s129, %s131
    %p138 = scmp.eq.s32.totalorder %s16, 1
    %p139 = por %p137, %p138
    %p140 = scmp.ne.s32.totalorder %s131, %s132
    %p141 = scmp.eq.s32.totalorder %s16, 0
    %p142 = por %p140, %p141
    %p143 = scmp.ne.s32.totalorder %s131, %s132
    %p144 = scmp.eq.s32.totalorder %s17, 1
    %p145 = por %p143, %p144
    %p147 = scmp.ne.s32.totalorder %s132, %s146
    %p148 = scmp.eq.s32.totalorder %s17, 0
    %p149 = por %p147, %p148
    %s150 = ssub.s32 %s18, %s30
    %s151 = ssub.s32 %s19, %s26
    %s152 = sor.u32 %s150, %s151
    %p153 = scmp.eq.s32.totalorder %s152, 0
    %s155 = sadd.s32 %s154, 1
    %s156 = scalar_select %p153, %s154, %s155
    %p159 = pneg %p153
    %p160 = scmp.eq.s32.totalorder %s11, 1
    %p161 = por %p159, %p160
    %p162 = scmp.ne.s32.totalorder %s154, %s157
    %p163 = scmp.eq.s32.totalorder %s11, 0
    %p164 = por %p162, %p163
    %p165 = scmp.ne.s32.totalorder %s154, %s157
    %p166 = scmp.eq.s32.totalorder %s16, 1
    %p167 = por %p165, %p166
    %p168 = scmp.ne.s32.totalorder %s157, %s158
    %p169 = scmp.eq.s32.totalorder %s16, 0
    %p170 = por %p168, %p169
    %p171 = scmp.ne.s32.totalorder %s157, %s158
    %p172 = scmp.eq.s32.totalorder %s17, 1
    %p173 = por %p171, %p172
    %p175 = scmp.ne.s32.totalorder %s158, %s174
    %p176 = scmp.eq.s32.totalorder %s17, 0
    %p177 = por %p175, %p176
    %p178 = scmp.le.s32.totalorder 1, %s11
    %p179 = scmp.lt.s32.totalorder %s11, 3
    %p180 = pnand %p178, %p179
    %p181 = pneg %p180
    // Predicated region
    $region9: #{encoder_decoder_forward.16} parent=5 // pred_check
      _
    $region10: #{encoder_decoder_forward.16} parent=5 // pred_check_branch
      %183 = sbr.rel (%p180) target = $region12
    $region11: #{encoder_decoder_forward.16} parent=5 // pred_region
      %s184 = ssub.s32 %s11, 1
      // Predicated region
      $region13: #{encoder_decoder_forward.16} parent=11 // pred_check
        %p185 = pneg %p100
      $region14: #{encoder_decoder_forward.16} parent=11 // pred_check_branch
        %187 = sbr.rel (%p185) target = $region16
      $region15: #{encoder_decoder_forward.16} parent=11 // pred_region
        _
      $region16: #{encoder_decoder_forward.16} parent=11 // pred_fallthru
        _
      // Predicated region
      $region17: #{encoder_decoder_forward.16} parent=11 // pred_check
        %p188 = pneg %p121
      $region18: #{encoder_decoder_forward.16} parent=11 // pred_check_branch
        %190 = sbr.rel (%p188) target = $region20
      $region19: #{encoder_decoder_forward.16} parent=11 // pred_region
        _
      $region20: #{encoder_decoder_forward.16} parent=11 // pred_fallthru
        _
      // Predicated region
      $region21: #{encoder_decoder_forward.16} parent=11 // pred_check
        %p191 = pneg %p142
      $region22: #{encoder_decoder_forward.16} parent=11 // pred_check_branch
        %193 = sbr.rel (%p191) target = $region24
      $region23: #{encoder_decoder_forward.16} parent=11 // pred_region
        _
      $region24: #{encoder_decoder_forward.16} parent=11 // pred_fallthru
        _
    $region12: #{encoder_decoder_forward.16} parent=5 // pred_fallthru
      _
    %p194 = scmp.lt.s32.totalorder %s11, 2
    // Predicated region
    $region25: #{encoder_decoder_forward.16} parent=5 // pred_check
      %p195 = pneg %p194
    $region26: #{encoder_decoder_forward.16} parent=5 // pred_check_branch
      %197 = sbr.rel (%p195) target = $region28
    $region27: #{encoder_decoder_forward.16} parent=5 // pred_region
      // Predicated region
      $region29: #{encoder_decoder_forward.16} parent=27 // pred_check
        %p198 = pneg %p45
      $region30: #{encoder_decoder_forward.16} parent=27 // pred_check_branch
        %200 = sbr.rel (%p198) target = $region32
      $region31: #{encoder_decoder_forward.16} parent=27 // pred_region
        %s201 = smul.u32 8, %s19
        %p202 = scmp.lt.s32.totalorder %s18, 1
        %s203 = scalar_select %p202, %s18, 1
        %p204 = scmp.lt.s32.totalorder %s201, 7
        %s205 = scalar_select %p204, %s201, 7
        %s206 = smul.addr %s205, 2
        %s207 = smul.addr %s203, 16
        %s208 = sadd.s32 %s206, %s207
        %s209 = smul.addr %s208, 4
        %s210 = scalar_lea.vmem %s0, %s209
        %s211 = smul.u32 8, %s19
      $region32: #{encoder_decoder_forward.16} parent=27 // pred_fallthru
        _
      // Predicated region
      $region33: #{encoder_decoder_forward.16} parent=27 // pred_check
        %p212 = pneg %p73
      $region34: #{encoder_decoder_forward.16} parent=27 // pred_check_branch
        %214 = sbr.rel (%p212) target = $region36
      $region35: #{encoder_decoder_forward.16} parent=27 // pred_region
        %s215 = smul.u32 16, %s19
        %p216 = scmp.lt.s32.totalorder %s18, 1
        %s217 = scalar_select %p216, %s18, 1
        %p218 = scmp.lt.s32.totalorder %s215, 15
        %s219 = scalar_select %p218, %s215, 15
        %s220 = smul.addr %s219, 2
        %s221 = smul.addr %s217, 32
        %s222 = sadd.s32 %s220, %s221
        %s223 = smul.addr %s222, 4
        %s224 = scalar_lea.vmem %s1, %s223
        %s225 = smul.u32 16, %s19
      $region36: #{encoder_decoder_forward.16} parent=27 // pred_fallthru
        _
    $region28: #{encoder_decoder_forward.16} parent=5 // pred_fallthru
      _
    %p226 = scmp.le.s32.totalorder 1, %s11
    %p227 = scmp.lt.s32.totalorder %s11, 3
    %p228 = pnand %p226, %p227
    %p229 = pneg %p228
    // Predicated region
    $region37: #{encoder_decoder_forward.16} parent=5 // pred_check
      _
    $region38: #{encoder_decoder_forward.16} parent=5 // pred_check_branch
      %231 = sbr.rel (%p228) target = $region40
    $region39: #{encoder_decoder_forward.16} parent=5 // pred_region
      %s232 = ssub.s32 %s11, 1
      %s233 = smul.u32 8, %s21
      %p234 = scmp.lt.s32.totalorder %s20, 1
      %s235 = scalar_select %p234, %s20, 1
      %p236 = scmp.lt.s32.totalorder %s233, 7
      %s237 = scalar_select %p236, %s233, 7
      %s238 = smul.addr %s237, 2
      %s239 = smul.addr %s235, 16
      %s240 = sadd.s32 %s238, %s239
      %s241 = smul.addr %s240, 4
      %s242 = scalar_lea.vmem %s0, %s241
      %p243 = pneg %p51
      %p244 = pneg %p48
      %s245 = smul.u32 16, %s21
      %p246 = scmp.lt.s32.totalorder %s20, 1
      %s247 = scalar_select %p246, %s20, 1
      %p248 = scmp.lt.s32.totalorder %s245, 15
      %s249 = scalar_select %p248, %s245, 15
      %s250 = smul.addr %s249, 2
      %s251 = smul.addr %s247, 32
      %s252 = sadd.s32 %s250, %s251
      %s253 = smul.addr %s252, 4
      %s254 = scalar_lea.vmem %s1, %s253
      %p255 = pneg %p79
      %p256 = pneg %p76
      %p257 = pneg %p100
      %p258 = pneg %p97
      %p259 = pneg %p121
      %p260 = pneg %p118
      %p261 = pneg %p142
      %p262 = pneg %p139
      %p263 = pneg %p170
      %p264 = pneg %p167
      %s265 = smul.u32 16, %s21
      %p266 = scmp.lt.s32.totalorder %s20, 1
      %s267 = scalar_select %p266, %s20, 1
      %p268 = scmp.lt.s32.totalorder %s265, 15
      %s269 = scalar_select %p268, %s265, 15
      %s270 = smul.addr %s269, 2
      %s271 = smul.addr %s267, 32
      %s272 = sadd.s32 %s270, %s271
      %s273 = smul.addr %s272, 4
      %s274 = scalar_lea.vmem %s5, %s273
      %s275 = smul.u32 8, %s21
      %p276 = scmp.lt.s32.totalorder %s20, 1
      %s277 = scalar_select %p276, %s20, 1
      %p278 = scmp.lt.s32.totalorder %s275, 7
      %s279 = scalar_select %p278, %s275, 7
      %s280 = smul.addr %s279, 2
      %s281 = smul.addr %s277, 16
      %s282 = sadd.s32 %s280, %s281
      %s283 = smul.addr %s282, 4
      %s284 = scalar_lea.vmem %s0, %s283
      %s285 = smul.u32 8, %s21
      %s286 = smul.u32 16, %s21
      %p287 = scmp.lt.s32.totalorder %s20, 1
      %s288 = scalar_select %p287, %s20, 1
      %p289 = scmp.lt.s32.totalorder %s286, 15
      %s290 = scalar_select %p289, %s286, 15
      %s291 = smul.addr %s290, 2
      %s292 = smul.addr %s288, 32
      %s293 = sadd.s32 %s291, %s292
      %s294 = smul.addr %s293, 4
      %s295 = scalar_lea.vmem %s1, %s294
      %s296 = smul.u32 16, %s21
      %s297 = smul.u32 16, %s21
      %p298 = scmp.lt.s32.totalorder %s20, 1
      %s299 = scalar_select %p298, %s20, 1
      %p300 = scmp.lt.s32.totalorder %s297, 15
      %s301 = scalar_select %p300, %s297, 15
      %s302 = smul.addr %s301, 2
      %s303 = smul.addr %s299, 32
      %s304 = sadd.s32 %s302, %s303
      %s305 = smul.addr %s304, 4
      %s306 = scalar_lea.vmem %s5, %s305
      %s307 = smul.u32 16, %s21
      %v309 = vld [vmem:[%s2] sm:$0xf]
      %v310 = vld [vmem:[%s2 + $0x4] sm:$0xf]
      %v311 = vld [vmem:[%s4] sm:$0xf]
      %v312 = vld [vmem:[%s4 + $0x4] sm:$0xf]
      %v313 = vld [vmem:[%s3] sm:$0x1]
      %v314 = vld [vmem:[%s284] sm:$0xf]
      %v315 = vld [vmem:[%s284 + $0x4] sm:$0xf]
      %v316 = vld [vmem:[%s295] sm:$0xf]
      %v317 = vld [vmem:[%s295 + $0x4] sm:$0xf]
      %v318 = vunpack.c.l.bf16 %v314
      %v319 = vunpack.c.l.bf16 %v315
      %v322 = vunpack.c.l.b16 %v316
      %v323 = vunpack.c.l.b16 %v317
      %v324 = vpack.c.b16 %v323, %v322
      %v327 = vunpack.c.l.b16 %v309
      %v328 = vunpack.c.l.b16 %v310
      %v329 = vpack.c.b16 %v328, %v327
      %vm331 = vcmask 130048
      %v333 = vsel %vm331, %v324, 0
      %335 = vmatprep.subr.bf16.mxu0 0
      %336 = vmatpush1.bf16.msra.mxu0 %v329
      %337 = vmatprep.subr.bf16.mxu0 0
      %338 = vmatpush1.bf16.msra.mxu0 0
      %339 = vmatprep.subr.bf16.mxu0 0
      %340 = vmatpush1.bf16.msra.mxu0 0
      %341 = vmatprep.subr.bf16.mxu0 0
      %342 = vmatpush1.bf16.msra.mxu0 0
      %343 = vmatprep.subr.bf16.mxu0 0
      %344 = vmatpush1.bf16.msra.mxu0 0
      %345 = vmatprep.subr.bf16.mxu0 0
      %346 = vmatpush1.bf16.msra.mxu0 0
      %347 = vmatprep.subr.bf16.mxu0 0
      %348 = vmatpush1.bf16.msra.mxu0 0
      %349 = vmatprep.subr.bf16.mxu0 0
      %350 = vmatpush1.bf16.msra.mxu0 0
      %351 = vmatprep.subr.bf16.mxu0 0
      %352 = vmatpush1.bf16.msra.mxu0 0
      %353 = vmatprep.subr.bf16.mxu0 0
      %354 = vmatpush1.bf16.msra.mxu0 0
      %355 = vmatprep.subr.bf16.mxu0 0
      %356 = vmatpush1.bf16.msra.mxu0 0
      %357 = vmatprep.subr.bf16.mxu0 0
      %358 = vmatpush1.bf16.msra.mxu0 0
      %359 = vmatprep.subr.bf16.mxu0 0
      %360 = vmatpush1.bf16.msra.mxu0 0
      %361 = vmatprep.subr.bf16.mxu0 0
      %362 = vmatpush1.bf16.msra.mxu0 0
      %363 = vmatprep.subr.bf16.mxu0 0
      %364 = vmatpush1.bf16.msra.mxu0 0
      %365 = vmatprep.subr.bf16.mxu0 0
      %366 = vmatpush1.bf16.msra.mxu0 0
      %367 = vmatprep.mubr.bf16.mxu0 0
      %368 = vmatmul.mubr.bf16.gmra.mrb[0].mxu0 %v333
      %v369 = vpop.f32.mrb[0].mxu0
      %v370 = vadd.f32 %v318, %v369
      %v371 = vpop.f32.mrb[0].mxu0
      %v372 = vpop.f32.mrb[0].mxu0
      %v373 = vadd.f32 %v319, %v372
      %v374 = vpop.f32.mrb[0].mxu0
      %375 = vdwg.mxu0
      %v377 = vlaneseq
      %v378 = vshrl.u32 %v377, 7
      %v379 = vsub.s32 0, %v378
      %v380 = vrot.slane %v313, %v379
      %v382 = vadd.f32 %v370, %v380
      %v383 = vadd.f32 %v373, %v380
      %v384 = vmax.f32 %v382, 0.0
      %v385 = vmax.f32 %v383, 0.0
      %v386 = vpack.c.bf16 %v385, %v384
      %v389 = vunpack.c.l.b16 %v311
      %v390 = vunpack.c.l.b16 %v312
      %v391 = vpack.c.b16 %v390, %v389
      %v394 = vsel %vm331, %v386, 0
      %396 = vmatprep.subr.bf16.mxu0 0
      %397 = vmatpush1.bf16.msra.mxu0 %v391
      %398 = vmatprep.subr.bf16.mxu0 0
      %399 = vmatpush1.bf16.msra.mxu0 0
      %400 = vmatprep.subr.bf16.mxu0 0
      %401 = vmatpush1.bf16.msra.mxu0 0
      %402 = vmatprep.subr.bf16.mxu0 0
      %403 = vmatpush1.bf16.msra.mxu0 0
      %404 = vmatprep.subr.bf16.mxu0 0
      %405 = vmatpush1.bf16.msra.mxu0 0
      %406 = vmatprep.subr.bf16.mxu0 0
      %407 = vmatpush1.bf16.msra.mxu0 0
      %408 = vmatprep.subr.bf16.mxu0 0
      %409 = vmatpush1.bf16.msra.mxu0 0
      %410 = vmatprep.subr.bf16.mxu0 0
      %411 = vmatpush1.bf16.msra.mxu0 0
      %412 = vmatprep.subr.bf16.mxu0 0
      %413 = vmatpush1.bf16.msra.mxu0 0
      %414 = vmatprep.subr.bf16.mxu0 0
      %415 = vmatpush1.bf16.msra.mxu0 0
      %416 = vmatprep.subr.bf16.mxu0 0
      %417 = vmatpush1.bf16.msra.mxu0 0
      %418 = vmatprep.subr.bf16.mxu0 0
      %419 = vmatpush1.bf16.msra.mxu0 0
      %420 = vmatprep.subr.bf16.mxu0 0
      %421 = vmatpush1.bf16.msra.mxu0 0
      %422 = vmatprep.subr.bf16.mxu0 0
      %423 = vmatpush1.bf16.msra.mxu0 0
      %424 = vmatprep.subr.bf16.mxu0 0
      %425 = vmatpush1.bf16.msra.mxu0 0
      %426 = vmatprep.subr.bf16.mxu0 0
      %427 = vmatpush1.bf16.msra.mxu0 0
      %428 = vmatprep.mubr.bf16.mxu0 0
      %429 = vmatmul.mubr.bf16.gmra.mrb[0].mxu0 %v394
      %v430 = vpop.f32.mrb[0].mxu0
      %v431 = vadd.f32 0.0, %v430
      %v432 = vpop.f32.mrb[0].mxu0
      %v433 = vpop.f32.mrb[0].mxu0
      %v434 = vadd.f32 0.0, %v433
      %v435 = vpop.f32.mrb[0].mxu0
      %436 = vdwg.mxu0
      %v437 = vpack.c.bf16 %v434, %v431
      %v439 = vunpack.c.l.b16 %v437
      %v440 = vunpack.c.h.b16 %v437
      %v441 = vpack.c.b16 %v439, %v439
      %v442 = vpack.c.b16 %v440, %v440
      %vm445 = vcmask 125952
      %446 = vst.msk [vmem:[%s306] sm:$0xf] %vm445, %v441
      %447 = vst.msk [vmem:[%s306 + $0x4] sm:$0xf] %vm445, %v442
      %s448 = scalar_lea.vmem %s295, 8
      %v449 = vld [vmem:[%s448] sm:$0xf]
      %v450 = vld [vmem:[%s448 + $0x4] sm:$0xf]
      %v453 = vunpack.c.l.b16 %v449
      %v454 = vunpack.c.l.b16 %v450
      %v455 = vpack.c.b16 %v454, %v453
      %v457 = vsel %vm331, %v455, 0
      %459 = vmatprep.subr.bf16.mxu0 0
      %460 = vmatpush1.bf16.msra.mxu0 %v329
      %461 = vmatprep.subr.bf16.mxu0 0
      %462 = vmatpush1.bf16.msra.mxu0 0
      %463 = vmatprep.subr.bf16.mxu0 0
      %464 = vmatpush1.bf16.msra.mxu0 0
      %465 = vmatprep.subr.bf16.mxu0 0
      %466 = vmatpush1.bf16.msra.mxu0 0
      %467 = vmatprep.subr.bf16.mxu0 0
      %468 = vmatpush1.bf16.msra.mxu0 0
      %469 = vmatprep.subr.bf16.mxu0 0
      %470 = vmatpush1.bf16.msra.mxu0 0
      %471 = vmatprep.subr.bf16.mxu0 0
      %472 = vmatpush1.bf16.msra.mxu0 0
      %473 = vmatprep.subr.bf16.mxu0 0
      %474 = vmatpush1.bf16.msra.mxu0 0
      %475 = vmatprep.subr.bf16.mxu0 0
      %476 = vmatpush1.bf16.msra.mxu0 0
      %477 = vmatprep.subr.bf16.mxu0 0
      %478 = vmatpush1.bf16.msra.mxu0 0
      %479 = vmatprep.subr.bf16.mxu0 0
      %480 = vmatpush1.bf16.msra.mxu0 0
      %481 = vmatprep.subr.bf16.mxu0 0
      %482 = vmatpush1.bf16.msra.mxu0 0
      %483 = vmatprep.subr.bf16.mxu0 0
      %484 = vmatpush1.bf16.msra.mxu0 0
      %485 = vmatprep.subr.bf16.mxu0 0
      %486 = vmatpush1.bf16.msra.mxu0 0
      %487 = vmatprep.subr.bf16.mxu0 0
      %488 = vmatpush1.bf16.msra.mxu0 0
      %489 = vmatprep.subr.bf16.mxu0 0
      %490 = vmatpush1.bf16.msra.mxu0 0
      %491 = vmatprep.mubr.bf16.mxu0 0
      %492 = vmatmul.mubr.bf16.gmra.mrb[0].mxu0 %v457
      %v493 = vpop.f32.mrb[0].mxu0
      %v494 = vadd.f32 %v318, %v493
      %v495 = vpop.f32.mrb[0].mxu0
      %v496 = vpop.f32.mrb[0].mxu0
      %v497 = vadd.f32 %v319, %v496
      %v498 = vpop.f32.mrb[0].mxu0
      %499 = vdwg.mxu0
      %v500 = vadd.f32 %v494, %v380
      %v501 = vadd.f32 %v497, %v380
      %v502 = vmax.f32 %v500, 0.0
      %v503 = vmax.f32 %v501, 0.0
      %v504 = vpack.c.bf16 %v503, %v502
      %v506 = vsel %vm331, %v504, 0
      %508 = vmatprep.subr.bf16.mxu0 0
      %509 = vmatpush1.bf16.msra.mxu0 %v391
      %510 = vmatprep.subr.bf16.mxu0 0
      %511 = vmatpush1.bf16.msra.mxu0 0
      %512 = vmatprep.subr.bf16.mxu0 0
      %513 = vmatpush1.bf16.msra.mxu0 0
      %514 = vmatprep.subr.bf16.mxu0 0
      %515 = vmatpush1.bf16.msra.mxu0 0
      %516 = vmatprep.subr.bf16.mxu0 0
      %517 = vmatpush1.bf16.msra.mxu0 0
      %518 = vmatprep.subr.bf16.mxu0 0
      %519 = vmatpush1.bf16.msra.mxu0 0
      %520 = vmatprep.subr.bf16.mxu0 0
      %521 = vmatpush1.bf16.msra.mxu0 0
      %522 = vmatprep.subr.bf16.mxu0 0
      %523 = vmatpush1.bf16.msra.mxu0 0
      %524 = vmatprep.subr.bf16.mxu0 0
      %525 = vmatpush1.bf16.msra.mxu0 0
      %526 = vmatprep.subr.bf16.mxu0 0
      %527 = vmatpush1.bf16.msra.mxu0 0
      %528 = vmatprep.subr.bf16.mxu0 0
      %529 = vmatpush1.bf16.msra.mxu0 0
      %530 = vmatprep.subr.bf16.mxu0 0
      %531 = vmatpush1.bf16.msra.mxu0 0
      %532 = vmatprep.subr.bf16.mxu0 0
      %533 = vmatpush1.bf16.msra.mxu0 0
      %534 = vmatprep.subr.bf16.mxu0 0
      %535 = vmatpush1.bf16.msra.mxu0 0
      %536 = vmatprep.subr.bf16.mxu0 0
      %537 = vmatpush1.bf16.msra.mxu0 0
      %538 = vmatprep.subr.bf16.mxu0 0
      %539 = vmatpush1.bf16.msra.mxu0 0
      %540 = vmatprep.mubr.bf16.mxu0 0
      %541 = vmatmul.mubr.bf16.gmra.mrb[0].mxu0 %v506
      %v542 = vpop.f32.mrb[0].mxu0
      %v543 = vadd.f32 0.0, %v542
      %v544 = vpop.f32.mrb[0].mxu0
      %v545 = vpop.f32.mrb[0].mxu0
      %v546 = vadd.f32 0.0, %v545
      %v547 = vpop.f32.mrb[0].mxu0
      %548 = vdwg.mxu0
      %v549 = vpack.c.bf16 %v546, %v543
      %v551 = vunpack.c.l.b16 %v549
      %v552 = vunpack.c.h.b16 %v549
      %v553 = vpack.c.b16 %v551, %v551
      %v554 = vpack.c.b16 %v552, %v552
      %s557 = scalar_lea.vmem %s306, 8
      %558 = vst.msk [vmem:[%s557] sm:$0xf] %vm445, %v553
      %559 = vst.msk [vmem:[%s557 + $0x4] sm:$0xf] %vm445, %v554
      %s560 = scalar_lea.vmem %s284, 8
      %v561 = vld [vmem:[%s560] sm:$0xf]
      %v562 = vld [vmem:[%s560 + $0x4] sm:$0xf]
      %s563 = scalar_lea.vmem %s295, 16
      %v564 = vld [vmem:[%s563] sm:$0xf]
      %v565 = vld [vmem:[%s563 + $0x4] sm:$0xf]
      %v566 = vunpack.c.l.bf16 %v561
      %v567 = vunpack.c.l.bf16 %v562
      %v570 = vunpack.c.l.b16 %v564
      %v571 = vunpack.c.l.b16 %v565
      %v572 = vpack.c.b16 %v571, %v570
      %v574 = vsel %vm331, %v572, 0
      %576 = vmatprep.subr.bf16.mxu0 0
      %577 = vmatpush1.bf16.msra.mxu0 %v329
      %578 = vmatprep.subr.bf16.mxu0 0
      %579 = vmatpush1.bf16.msra.mxu0 0
      %580 = vmatprep.subr.bf16.mxu0 0
      %581 = vmatpush1.bf16.msra.mxu0 0
      %582 = vmatprep.subr.bf16.mxu0 0
      %583 = vmatpush1.bf16.msra.mxu0 0
      %584 = vmatprep.subr.bf16.mxu0 0
      %585 = vmatpush1.bf16.msra.mxu0 0
      %586 = vmatprep.subr.bf16.mxu0 0
      %587 = vmatpush1.bf16.msra.mxu0 0
      %588 = vmatprep.subr.bf16.mxu0 0
      %589 = vmatpush1.bf16.msra.mxu0 0
      %590 = vmatprep.subr.bf16.mxu0 0
      %591 = vmatpush1.bf16.msra.mxu0 0
      %592 = vmatprep.subr.bf16.mxu0 0
      %593 = vmatpush1.bf16.msra.mxu0 0
      %594 = vmatprep.subr.bf16.mxu0 0
      %595 = vmatpush1.bf16.msra.mxu0 0
      %596 = vmatprep.subr.bf16.mxu0 0
      %597 = vmatpush1.bf16.msra.mxu0 0
      %598 = vmatprep.subr.bf16.mxu0 0
      %599 = vmatpush1.bf16.msra.mxu0 0
      %600 = vmatprep.subr.bf16.mxu0 0
      %601 = vmatpush1.bf16.msra.mxu0 0
      %602 = vmatprep.subr.bf16.mxu0 0
      %603 = vmatpush1.bf16.msra.mxu0 0
      %604 = vmatprep.subr.bf16.mxu0 0
      %605 = vmatpush1.bf16.msra.mxu0 0
      %606 = vmatprep.subr.bf16.mxu0 0
      %607 = vmatpush1.bf16.msra.mxu0 0
      %608 = vmatprep.mubr.bf16.mxu0 0
      %609 = vmatmul.mubr.bf16.gmra.mrb[0].mxu0 %v574
      %v610 = vpop.f32.mrb[0].mxu0
      %v611 = vadd.f32 %v566, %v610
      %v612 = vpop.f32.mrb[0].mxu0
      %v613 = vpop.f32.mrb[0].mxu0
      %v614 = vadd.f32 %v567, %v613
      %v615 = vpop.f32.mrb[0].mxu0
      %616 = vdwg.mxu0
      %v617 = vadd.f32 %v611, %v380
      %v618 = vadd.f32 %v614, %v380
      %v619 = vmax.f32 %v617, 0.0
      %v620 = vmax.f32 %v618, 0.0
      %v621 = vpack.c.bf16 %v620, %v619
      %v623 = vsel %vm331, %v621, 0
      %625 = vmatprep.subr.bf16.mxu0 0
      %626 = vmatpush1.bf16.msra.mxu0 %v391
      %627 = vmatprep.subr.bf16.mxu0 0
      %628 = vmatpush1.bf16.msra.mxu0 0
      %629 = vmatprep.subr.bf16.mxu0 0
      %630 = vmatpush1.bf16.msra.mxu0 0
      %631 = vmatprep.subr.bf16.mxu0 0
      %632 = vmatpush1.bf16.msra.mxu0 0
      %633 = vmatprep.subr.bf16.mxu0 0
      %634 = vmatpush1.bf16.msra.mxu0 0
      %635 = vmatprep.subr.bf16.mxu0 0
      %636 = vmatpush1.bf16.msra.mxu0 0
      %637 = vmatprep.subr.bf16.mxu0 0
      %638 = vmatpush1.bf16.msra.mxu0 0
      %639 = vmatprep.subr.bf16.mxu0 0
      %640 = vmatpush1.bf16.msra.mxu0 0
      %641 = vmatprep.subr.bf16.mxu0 0
      %642 = vmatpush1.bf16.msra.mxu0 0
      %643 = vmatprep.subr.bf16.mxu0 0
      %644 = vmatpush1.bf16.msra.mxu0 0
      %645 = vmatprep.subr.bf16.mxu0 0
      %646 = vmatpush1.bf16.msra.mxu0 0
      %647 = vmatprep.subr.bf16.mxu0 0
      %648 = vmatpush1.bf16.msra.mxu0 0
      %649 = vmatprep.subr.bf16.mxu0 0
      %650 = vmatpush1.bf16.msra.mxu0 0
      %651 = vmatprep.subr.bf16.mxu0 0
      %652 = vmatpush1.bf16.msra.mxu0 0
      %653 = vmatprep.subr.bf16.mxu0 0
      %654 = vmatpush1.bf16.msra.mxu0 0
      %655 = vmatprep.subr.bf16.mxu0 0
      %656 = vmatpush1.bf16.msra.mxu0 0
      %657 = vmatprep.mubr.bf16.mxu0 0
      %658 = vmatmul.mubr.bf16.gmra.mrb[0].mxu0 %v623
      %v659 = vpop.f32.mrb[0].mxu0
      %v660 = vadd.f32 0.0, %v659
      %v661 = vpop.f32.mrb[0].mxu0
      %v662 = vpop.f32.mrb[0].mxu0
      %v663 = vadd.f32 0.0, %v662
      %v664 = vpop.f32.mrb[0].mxu0
      %665 = vdwg.mxu0
      %v666 = vpack.c.bf16 %v663, %v660
      %v668 = vunpack.c.l.b16 %v666
      %v669 = vunpack.c.h.b16 %v666
      %v670 = vpack.c.b16 %v668, %v668
      %v671 = vpack.c.b16 %v669, %v669
      %s674 = scalar_lea.vmem %s306, 16
      %675 = vst.msk [vmem:[%s674] sm:$0xf] %vm445, %v670
      %676 = vst.msk [vmem:[%s674 + $0x4] sm:$0xf] %vm445, %v671
      %s677 = scalar_lea.vmem %s295, 24
      %v678 = vld [vmem:[%s677] sm:$0xf]
      %v679 = vld [vmem:[%s677 + $0x4] sm:$0xf]
      %v682 = vunpack.c.l.b16 %v678
      %v683 = vunpack.c.l.b16 %v679
      %v684 = vpack.c.b16 %v683, %v682
      %v686 = vsel %vm331, %v684, 0
      %688 = vmatprep.subr.bf16.mxu0 0
      %689 = vmatpush1.bf16.msra.mxu0 %v329
      %690 = vmatprep.subr.bf16.mxu0 0
      %691 = vmatpush1.bf16.msra.mxu0 0
      %692 = vmatprep.subr.bf16.mxu0 0
      %693 = vmatpush1.bf16.msra.mxu0 0
      %694 = vmatprep.subr.bf16.mxu0 0
      %695 = vmatpush1.bf16.msra.mxu0 0
      %696 = vmatprep.subr.bf16.mxu0 0
      %697 = vmatpush1.bf16.msra.mxu0 0
      %698 = vmatprep.subr.bf16.mxu0 0
      %699 = vmatpush1.bf16.msra.mxu0 0
      %700 = vmatprep.subr.bf16.mxu0 0
      %701 = vmatpush1.bf16.msra.mxu0 0
      %702 = vmatprep.subr.bf16.mxu0 0
      %703 = vmatpush1.bf16.msra.mxu0 0
      %704 = vmatprep.subr.bf16.mxu0 0
      %705 = vmatpush1.bf16.msra.mxu0 0
      %706 = vmatprep.subr.bf16.mxu0 0
      %707 = vmatpush1.bf16.msra.mxu0 0
      %708 = vmatprep.subr.bf16.mxu0 0
      %709 = vmatpush1.bf16.msra.mxu0 0
      %710 = vmatprep.subr.bf16.mxu0 0
      %711 = vmatpush1.bf16.msra.mxu0 0
      %712 = vmatprep.subr.bf16.mxu0 0
      %713 = vmatpush1.bf16.msra.mxu0 0
      %714 = vmatprep.subr.bf16.mxu0 0
      %715 = vmatpush1.bf16.msra.mxu0 0
      %716 = vmatprep.subr.bf16.mxu0 0
      %717 = vmatpush1.bf16.msra.mxu0 0
      %718 = vmatprep.subr.bf16.mxu0 0
      %719 = vmatpush1.bf16.msra.mxu0 0
      %720 = vmatprep.mubr.bf16.mxu0 0
      %721 = vmatmul.mubr.bf16.gmra.mrb[0].mxu0 %v686
      %v722 = vpop.f32.mrb[0].mxu0
      %v723 = vadd.f32 %v566, %v722
      %v724 = vpop.f32.mrb[0].mxu0
      %v725 = vpop.f32.mrb[0].mxu0
      %v726 = vadd.f32 %v567, %v725
      %v727 = vpop.f32.mrb[0].mxu0
      %728 = vdwg.mxu0
      %v729 = vadd.f32 %v723, %v380
      %v730 = vadd.f32 %v726, %v380
      %v731 = vmax.f32 %v729, 0.0
      %v732 = vmax.f32 %v730, 0.0
      %v733 = vpack.c.bf16 %v732, %v731
      %v735 = vsel %vm331, %v733, 0
      %737 = vmatprep.subr.bf16.mxu0 0
      %738 = vmatpush1.bf16.msra.mxu0 %v391
      %739 = vmatprep.subr.bf16.mxu0 0
      %740 = vmatpush1.bf16.msra.mxu0 0
      %741 = vmatprep.subr.bf16.mxu0 0
      %742 = vmatpush1.bf16.msra.mxu0 0
      %743 = vmatprep.subr.bf16.mxu0 0
      %744 = vmatpush1.bf16.msra.mxu0 0
      %745 = vmatprep.subr.bf16.mxu0 0
      %746 = vmatpush1.bf16.msra.mxu0 0
      %747 = vmatprep.subr.bf16.mxu0 0
      %748 = vmatpush1.bf16.msra.mxu0 0
      %749 = vmatprep.subr.bf16.mxu0 0
      %750 = vmatpush1.bf16.msra.mxu0 0
      %751 = vmatprep.subr.bf16.mxu0 0
      %752 = vmatpush1.bf16.msra.mxu0 0
      %753 = vmatprep.subr.bf16.mxu0 0
      %754 = vmatpush1.bf16.msra.mxu0 0
      %755 = vmatprep.subr.bf16.mxu0 0
      %756 = vmatpush1.bf16.msra.mxu0 0
      %757 = vmatprep.subr.bf16.mxu0 0
      %758 = vmatpush1.bf16.msra.mxu0 0
      %759 = vmatprep.subr.bf16.mxu0 0
      %760 = vmatpush1.bf16.msra.mxu0 0
      %761 = vmatprep.subr.bf16.mxu0 0
      %762 = vmatpush1.bf16.msra.mxu0 0
      %763 = vmatprep.subr.bf16.mxu0 0
      %764 = vmatpush1.bf16.msra.mxu0 0
      %765 = vmatprep.subr.bf16.mxu0 0
      %766 = vmatpush1.bf16.msra.mxu0 0
      %767 = vmatprep.subr.bf16.mxu0 0
      %768 = vmatpush1.bf16.msra.mxu0 0
      %769 = vmatprep.mubr.bf16.mxu0 0
      %770 = vmatmul.mubr.bf16.gmra.mrb[0].mxu0 %v735
      %v771 = vpop.f32.mrb[0].mxu0
      %v772 = vadd.f32 0.0, %v771
      %v773 = vpop.f32.mrb[0].mxu0
      %v774 = vpop.f32.mrb[0].mxu0
      %v775 = vadd.f32 0.0, %v774
      %v776 = vpop.f32.mrb[0].mxu0
      %777 = vdwg.mxu0
      %v778 = vpack.c.bf16 %v775, %v772
      %v780 = vunpack.c.l.b16 %v778
      %v781 = vunpack.c.h.b16 %v778
      %v782 = vpack.c.b16 %v780, %v780
      %v783 = vpack.c.b16 %v781, %v781
      %s786 = scalar_lea.vmem %s306, 24
      %787 = vst.msk [vmem:[%s786] sm:$0xf] %vm445, %v782
      %788 = vst.msk [vmem:[%s786 + $0x4] sm:$0xf] %vm445, %v783
      %s789 = scalar_lea.vmem %s284, 16
      %v790 = vld [vmem:[%s789] sm:$0xf]
      %v791 = vld [vmem:[%s789 + $0x4] sm:$0xf]
      %s792 = scalar_lea.vmem %s295, 32
      %v793 = vld [vmem:[%s792] sm:$0xf]
      %v794 = vld [vmem:[%s792 + $0x4] sm:$0xf]
      %v795 = vunpack.c.l.bf16 %v790
      %v796 = vunpack.c.l.bf16 %v791
      %v799 = vunpack.c.l.b16 %v793
      %v800 = vunpack.c.l.b16 %v794
      %v801 = vpack.c.b16 %v800, %v799
      %v803 = vsel %vm331, %v801, 0
      %805 = vmatprep.subr.bf16.mxu0 0
      %806 = vmatpush1.bf16.msra.mxu0 %v329
      %807 = vmatprep.subr.bf16.mxu0 0
      %808 = vmatpush1.bf16.msra.mxu0 0
      %809 = vmatprep.subr.bf16.mxu0 0
      %810 = vmatpush1.bf16.msra.mxu0 0
      %811 = vmatprep.subr.bf16.mxu0 0
      %812 = vmatpush1.bf16.msra.mxu0 0
      %813 = vmatprep.subr.bf16.mxu0 0
      %814 = vmatpush1.bf16.msra.mxu0 0
      %815 = vmatprep.subr.bf16.mxu0 0
      %816 = vmatpush1.bf16.msra.mxu0 0
      %817 = vmatprep.subr.bf16.mxu0 0
      %818 = vmatpush1.bf16.msra.mxu0 0
      %819 = vmatprep.subr.bf16.mxu0 0
      %820 = vmatpush1.bf16.msra.mxu0 0
      %821 = vmatprep.subr.bf16.mxu0 0
      %822 = vmatpush1.bf16.msra.mxu0 0
      %823 = vmatprep.subr.bf16.mxu0 0
      %824 = vmatpush1.bf16.msra.mxu0 0
      %825 = vmatprep.subr.bf16.mxu0 0
      %826 = vmatpush1.bf16.msra.mxu0 0
      %827 = vmatprep.subr.bf16.mxu0 0
      %828 = vmatpush1.bf16.msra.mxu0 0
      %829 = vmatprep.subr.bf16.mxu0 0
      %830 = vmatpush1.bf16.msra.mxu0 0
      %831 = vmatprep.subr.bf16.mxu0 0
      %832 = vmatpush1.bf16.msra.mxu0 0
      %833 = vmatprep.subr.bf16.mxu0 0
      %834 = vmatpush1.bf16.msra.mxu0 0
      %835 = vmatprep.subr.bf16.mxu0 0
      %836 = vmatpush1.bf16.msra.mxu0 0
      %837 = vmatprep.mubr.bf16.mxu0 0
      %838 = vmatmul.mubr.bf16.gmra.mrb[0].mxu0 %v803
      %v839 = vpop.f32.mrb[0].mxu0
      %v840 = vadd.f32 %v795, %v839
      %v841 = vpop.f32.mrb[0].mxu0
      %v842 = vpop.f32.mrb[0].mxu0
      %v843 = vadd.f32 %v796, %v842
      %v844 = vpop.f32.mrb[0].mxu0
      %845 = vdwg.mxu0
      %v846 = vadd.f32 %v840, %v380
      %v847 = vadd.f32 %v843, %v380
      %v848 = vmax.f32 %v846, 0.0
      %v849 = vmax.f32 %v847, 0.0
      %v850 = vpack.c.bf16 %v849, %v848
      %v852 = vsel %vm331, %v850, 0
      %854 = vmatprep.subr.bf16.mxu0 0
      %855 = vmatpush1.bf16.msra.mxu0 %v391
      %856 = vmatprep.subr.bf16.mxu0 0
      %857 = vmatpush1.bf16.msra.mxu0 0
      %858 = vmatprep.subr.bf16.mxu0 0
      %859 = vmatpush1.bf16.msra.mxu0 0
      %860 = vmatprep.subr.bf16.mxu0 0
      %861 = vmatpush1.bf16.msra.mxu0 0
      %862 = vmatprep.subr.bf16.mxu0 0
      %863 = vmatpush1.bf16.msra.mxu0 0
      %864 = vmatprep.subr.bf16.mxu0 0
      %865 = vmatpush1.bf16.msra.mxu0 0
      %866 = vmatprep.subr.bf16.mxu0 0
      %867 = vmatpush1.bf16.msra.mxu0 0
      %868 = vmatprep.subr.bf16.mxu0 0
      %869 = vmatpush1.bf16.msra.mxu0 0
      %870 = vmatprep.subr.bf16.mxu0 0
      %871 = vmatpush1.bf16.msra.mxu0 0
      %872 = vmatprep.subr.bf16.mxu0 0
      %873 = vmatpush1.bf16.msra.mxu0 0
      %874 = vmatprep.subr.bf16.mxu0 0
      %875 = vmatpush1.bf16.msra.mxu0 0
      %876 = vmatprep.subr.bf16.mxu0 0
      %877 = vmatpush1.bf16.msra.mxu0 0
      %878 = vmatprep.subr.bf16.mxu0 0
      %879 = vmatpush1.bf16.msra.mxu0 0
      %880 = vmatprep.subr.bf16.mxu0 0
      %881 = vmatpush1.bf16.msra.mxu0 0
      %882 = vmatprep.subr.bf16.mxu0 0
      %883 = vmatpush1.bf16.msra.mxu0 0
      %884 = vmatprep.subr.bf16.mxu0 0
      %885 = vmatpush1.bf16.msra.mxu0 0
      %886 = vmatprep.mubr.bf16.mxu0 0
      %887 = vmatmul.mubr.bf16.gmra.mrb[0].mxu0 %v852
      %v888 = vpop.f32.mrb[0].mxu0
      %v889 = vadd.f32 0.0, %v888
      %v890 = vpop.f32.mrb[0].mxu0
      %v891 = vpop.f32.mrb[0].mxu0
      %v892 = vadd.f32 0.0, %v891
      %v893 = vpop.f32.mrb[0].mxu0
      %894 = vdwg.mxu0
      %v895 = vpack.c.bf16 %v892, %v889
      %v897 = vunpack.c.l.b16 %v895
      %v898 = vunpack.c.h.b16 %v895
      %v899 = vpack.c.b16 %v897, %v897
      %v900 = vpack.c.b16 %v898, %v898
      %s903 = scalar_lea.vmem %s306, 32
      %904 = vst.msk [vmem:[%s903] sm:$0xf] %vm445, %v899
      %905 = vst.msk [vmem:[%s903 + $0x4] sm:$0xf] %vm445, %v900
      %s906 = scalar_lea.vmem %s295, 40
      %v907 = vld [vmem:[%s906] sm:$0xf]
      %v908 = vld [vmem:[%s906 + $0x4] sm:$0xf]
      %v911 = vunpack.c.l.b16 %v907
      %v912 = vunpack.c.l.b16 %v908
      %v913 = vpack.c.b16 %v912, %v911
      %v915 = vsel %vm331, %v913, 0
      %917 = vmatprep.subr.bf16.mxu0 0
      %918 = vmatpush1.bf16.msra.mxu0 %v329
      %919 = vmatprep.subr.bf16.mxu0 0
      %920 = vmatpush1.bf16.msra.mxu0 0
      %921 = vmatprep.subr.bf16.mxu0 0
      %922 = vmatpush1.bf16.msra.mxu0 0
      %923 = vmatprep.subr.bf16.mxu0 0
      %924 = vmatpush1.bf16.msra.mxu0 0
      %925 = vmatprep.subr.bf16.mxu0 0
      %926 = vmatpush1.bf16.msra.mxu0 0
      %927 = vmatprep.subr.bf16.mxu0 0
      %928 = vmatpush1.bf16.msra.mxu0 0
      %929 = vmatprep.subr.bf16.mxu0 0
      %930 = vmatpush1.bf16.msra.mxu0 0
      %931 = vmatprep.subr.bf16.mxu0 0
      %932 = vmatpush1.bf16.msra.mxu0 0
      %933 = vmatprep.subr.bf16.mxu0 0
      %934 = vmatpush1.bf16.msra.mxu0 0
      %935 = vmatprep.subr.bf16.mxu0 0
      %936 = vmatpush1.bf16.msra.mxu0 0
      %937 = vmatprep.subr.bf16.mxu0 0
      %938 = vmatpush1.bf16.msra.mxu0 0
      %939 = vmatprep.subr.bf16.mxu0 0
      %940 = vmatpush1.bf16.msra.mxu0 0
      %941 = vmatprep.subr.bf16.mxu0 0
      %942 = vmatpush1.bf16.msra.mxu0 0
      %943 = vmatprep.subr.bf16.mxu0 0
      %944 = vmatpush1.bf16.msra.mxu0 0
      %945 = vmatprep.subr.bf16.mxu0 0
      %946 = vmatpush1.bf16.msra.mxu0 0
      %947 = vmatprep.subr.bf16.mxu0 0
      %948 = vmatpush1.bf16.msra.mxu0 0
      %949 = vmatprep.mubr.bf16.mxu0 0
      %950 = vmatmul.mubr.bf16.gmra.mrb[0].mxu0 %v915
      %v951 = vpop.f32.mrb[0].mxu0
      %v952 = vadd.f32 %v795, %v951
      %v953 = vpop.f32.mrb[0].mxu0
      %v954 = vpop.f32.mrb[0].mxu0
      %v955 = vadd.f32 %v796, %v954
      %v956 = vpop.f32.mrb[0].mxu0
      %957 = vdwg.mxu0
      %v958 = vadd.f32 %v952, %v380
      %v959 = vadd.f32 %v955, %v380
      %v960 = vmax.f32 %v958, 0.0
      %v961 = vmax.f32 %v959, 0.0
      %v962 = vpack.c.bf16 %v961, %v960
      %v964 = vsel %vm331, %v962, 0
      %966 = vmatprep.subr.bf16.mxu0 0
      %967 = vmatpush1.bf16.msra.mxu0 %v391
      %968 = vmatprep.subr.bf16.mxu0 0
      %969 = vmatpush1.bf16.msra.mxu0 0
      %970 = vmatprep.subr.bf16.mxu0 0
      %971 = vmatpush1.bf16.msra.mxu0 0
      %972 = vmatprep.subr.bf16.mxu0 0
      %973 = vmatpush1.bf16.msra.mxu0 0
      %974 = vmatprep.subr.bf16.mxu0 0
      %975 = vmatpush1.bf16.msra.mxu0 0
      %976 = vmatprep.subr.bf16.mxu0 0
      %977 = vmatpush1.bf16.msra.mxu0 0
      %978 = vmatprep.subr.bf16.mxu0 0
      %979 = vmatpush1.bf16.msra.mxu0 0
      %980 = vmatprep.subr.bf16.mxu0 0
      %981 = vmatpush1.bf16.msra.mxu0 0
      %982 = vmatprep.subr.bf16.mxu0 0
      %983 = vmatpush1.bf16.msra.mxu0 0
      %984 = vmatprep.subr.bf16.mxu0 0
      %985 = vmatpush1.bf16.msra.mxu0 0
      %986 = vmatprep.subr.bf16.mxu0 0
      %987 = vmatpush1.bf16.msra.mxu0 0
      %988 = vmatprep.subr.bf16.mxu0 0
      %989 = vmatpush1.bf16.msra.mxu0 0
      %990 = vmatprep.subr.bf16.mxu0 0
      %991 = vmatpush1.bf16.msra.mxu0 0
      %992 = vmatprep.subr.bf16.mxu0 0
      %993 = vmatpush1.bf16.msra.mxu0 0
      %994 = vmatprep.subr.bf16.mxu0 0
      %995 = vmatpush1.bf16.msra.mxu0 0
      %996 = vmatprep.subr.bf16.mxu0 0
      %997 = vmatpush1.bf16.msra.mxu0 0
      %998 = vmatprep.mubr.bf16.mxu0 0
      %999 = vmatmul.mubr.bf16.gmra.mrb[0].mxu0 %v964
      %v1000 = vpop.f32.mrb[0].mxu0
      %v1001 = vadd.f32 0.0, %v1000
      %v1002 = vpop.f32.mrb[0].mxu0
      %v1003 = vpop.f32.mrb[0].mxu0
      %v1004 = vadd.f32 0.0, %v1003
      %v1005 = vpop.f32.mrb[0].mxu0
      %1006 = vdwg.mxu0
      %v1007 = vpack.c.bf16 %v1004, %v1001
      %v1009 = vunpack.c.l.b16 %v1007
      %v1010 = vunpack.c.h.b16 %v1007
      %v1011 = vpack.c.b16 %v1009, %v1009
      %v1012 = vpack.c.b16 %v1010, %v1010
      %s1015 = scalar_lea.vmem %s306, 40
      %1016 = vst.msk [vmem:[%s1015] sm:$0xf] %vm445, %v1011
      %1017 = vst.msk [vmem:[%s1015 + $0x4] sm:$0xf] %vm445, %v1012
      %s1018 = scalar_lea.vmem %s284, 24
      %v1019 = vld [vmem:[%s1018] sm:$0xf]
      %v1020 = vld [vmem:[%s1018 + $0x4] sm:$0xf]
      %s1021 = scalar_lea.vmem %s295, 48
      %v1022 = vld [vmem:[%s1021] sm:$0xf]
      %v1023 = vld [vmem:[%s1021 + $0x4] sm:$0xf]
      %v1024 = vunpack.c.l.bf16 %v1019
      %v1025 = vunpack.c.l.bf16 %v1020
      %v1028 = vunpack.c.l.b16 %v1022
      %v1029 = vunpack.c.l.b16 %v1023
      %v1030 = vpack.c.b16 %v1029, %v1028
      %v1032 = vsel %vm331, %v1030, 0
      %1034 = vmatprep.subr.bf16.mxu0 0
      %1035 = vmatpush1.bf16.msra.mxu0 %v329
      %1036 = vmatprep.subr.bf16.mxu0 0
      %1037 = vmatpush1.bf16.msra.mxu0 0
      %1038 = vmatprep.subr.bf16.mxu0 0
      %1039 = vmatpush1.bf16.msra.mxu0 0
      %1040 = vmatprep.subr.bf16.mxu0 0
      %1041 = vmatpush1.bf16.msra.mxu0 0
      %1042 = vmatprep.subr.bf16.mxu0 0
      %1043 = vmatpush1.bf16.msra.mxu0 0
      %1044 = vmatprep.subr.bf16.mxu0 0
      %1045 = vmatpush1.bf16.msra.mxu0 0
      %1046 = vmatprep.subr.bf16.mxu0 0
      %1047 = vmatpush1.bf16.msra.mxu0 0
      %1048 = vmatprep.subr.bf16.mxu0 0
      %1049 = vmatpush1.bf16.msra.mxu0 0
      %1050 = vmatprep.subr.bf16.mxu0 0
      %1051 = vmatpush1.bf16.msra.mxu0 0
      %1052 = vmatprep.subr.bf16.mxu0 0
      %1053 = vmatpush1.bf16.msra.mxu0 0
      %1054 = vmatprep.subr.bf16.mxu0 0
      %1055 = vmatpush1.bf16.msra.mxu0 0
      %1056 = vmatprep.subr.bf16.mxu0 0
      %1057 = vmatpush1.bf16.msra.mxu0 0
      %1058 = vmatprep.subr.bf16.mxu0 0
      %1059 = vmatpush1.bf16.msra.mxu0 0
      %1060 = vmatprep.subr.bf16.mxu0 0
      %1061 = vmatpush1.bf16.msra.mxu0 0
      %1062 = vmatprep.subr.bf16.mxu0 0
      %1063 = vmatpush1.bf16.msra.mxu0 0
      %1064 = vmatprep.subr.bf16.mxu0 0
      %1065 = vmatpush1.bf16.msra.mxu0 0
      %1066 = vmatprep.mubr.bf16.mxu0 0
      %1067 = vmatmul.mubr.bf16.gmra.mrb[0].mxu0 %v1032
      %v1068 = vpop.f32.mrb[0].mxu0
      %v1069 = vadd.f32 %v1024, %v1068
      %v1070 = vpop.f32.mrb[0].mxu0
      %v1071 = vpop.f32.mrb[0].mxu0
      %v1072 = vadd.f32 %v1025, %v1071
      %v1073 = vpop.f32.mrb[0].mxu0
      %1074 = vdwg.mxu0
      %v1075 = vadd.f32 %v1069, %v380
      %v1076 = vadd.f32 %v1072, %v380
      %v1077 = vmax.f32 %v1075, 0.0
      %v1078 = vmax.f32 %v1076, 0.0
      %v1079 = vpack.c.bf16 %v1078, %v1077
      %v1081 = vsel %vm331, %v1079, 0
      %1083 = vmatprep.subr.bf16.mxu0 0
      %1084 = vmatpush1.bf16.msra.mxu0 %v391
      %1085 = vmatprep.subr.bf16.mxu0 0
      %1086 = vmatpush1.bf16.msra.mxu0 0
      %1087 = vmatprep.subr.bf16.mxu0 0
      %1088 = vmatpush1.bf16.msra.mxu0 0
      %1089 = vmatprep.subr.bf16.mxu0 0
      %1090 = vmatpush1.bf16.msra.mxu0 0
      %1091 = vmatprep.subr.bf16.mxu0 0
      %1092 = vmatpush1.bf16.msra.mxu0 0
      %1093 = vmatprep.subr.bf16.mxu0 0
      %1094 = vmatpush1.bf16.msra.mxu0 0
      %1095 = vmatprep.subr.bf16.mxu0 0
      %1096 = vmatpush1.bf16.msra.mxu0 0
      %1097 = vmatprep.subr.bf16.mxu0 0
      %1098 = vmatpush1.bf16.msra.mxu0 0
      %1099 = vmatprep.subr.bf16.mxu0 0
      %1100 = vmatpush1.bf16.msra.mxu0 0
      %1101 = vmatprep.subr.bf16.mxu0 0
      %1102 = vmatpush1.bf16.msra.mxu0 0
      %1103 = vmatprep.subr.bf16.mxu0 0
      %1104 = vmatpush1.bf16.msra.mxu0 0
      %1105 = vmatprep.subr.bf16.mxu0 0
      %1106 = vmatpush1.bf16.msra.mxu0 0
      %1107 = vmatprep.subr.bf16.mxu0 0
      %1108 = vmatpush1.bf16.msra.mxu0 0
      %1109 = vmatprep.subr.bf16.mxu0 0
      %1110 = vmatpush1.bf16.msra.mxu0 0
      %1111 = vmatprep.subr.bf16.mxu0 0
      %1112 = vmatpush1.bf16.msra.mxu0 0
      %1113 = vmatprep.subr.bf16.mxu0 0
      %1114 = vmatpush1.bf16.msra.mxu0 0
      %1115 = vmatprep.mubr.bf16.mxu0 0
      %1116 = vmatmul.mubr.bf16.gmra.mrb[0].mxu0 %v1081
      %v1117 = vpop.f32.mrb[0].mxu0
      %v1118 = vadd.f32 0.0, %v1117
      %v1119 = vpop.f32.mrb[0].mxu0
      %v1120 = vpop.f32.mrb[0].mxu0
      %v1121 = vadd.f32 0.0, %v1120
      %v1122 = vpop.f32.mrb[0].mxu0
      %1123 = vdwg.mxu0
      %v1124 = vpack.c.bf16 %v1121, %v1118
      %v1126 = vunpack.c.l.b16 %v1124
      %v1127 = vunpack.c.h.b16 %v1124
      %v1128 = vpack.c.b16 %v1126, %v1126
      %v1129 = vpack.c.b16 %v1127, %v1127
      %s1132 = scalar_lea.vmem %s306, 48
      %1133 = vst.msk [vmem:[%s1132] sm:$0xf] %vm445, %v1128
      %1134 = vst.msk [vmem:[%s1132 + $0x4] sm:$0xf] %vm445, %v1129
      %s1135 = scalar_lea.vmem %s295, 56
      %v1136 = vld [vmem:[%s1135] sm:$0xf]
      %v1137 = vld [vmem:[%s1135 + $0x4] sm:$0xf]
      %v1140 = vunpack.c.l.b16 %v1136
      %v1141 = vunpack.c.l.b16 %v1137
      %v1142 = vpack.c.b16 %v1141, %v1140
      %v1144 = vsel %vm331, %v1142, 0
      %1146 = vmatprep.subr.bf16.mxu0 0
      %1147 = vmatpush1.bf16.msra.mxu0 %v329
      %1148 = vmatprep.subr.bf16.mxu0 0
      %1149 = vmatpush1.bf16.msra.mxu0 0
      %1150 = vmatprep.subr.bf16.mxu0 0
      %1151 = vmatpush1.bf16.msra.mxu0 0
      %1152 = vmatprep.subr.bf16.mxu0 0
      %1153 = vmatpush1.bf16.msra.mxu0 0
      %1154 = vmatprep.subr.bf16.mxu0 0
      %1155 = vmatpush1.bf16.msra.mxu0 0
      %1156 = vmatprep.subr.bf16.mxu0 0
      %1157 = vmatpush1.bf16.msra.mxu0 0
      %1158 = vmatprep.subr.bf16.mxu0 0
      %1159 = vmatpush1.bf16.msra.mxu0 0
      %1160 = vmatprep.subr.bf16.mxu0 0
      %1161 = vmatpush1.bf16.msra.mxu0 0
      %1162 = vmatprep.subr.bf16.mxu0 0
      %1163 = vmatpush1.bf16.msra.mxu0 0
      %1164 = vmatprep.subr.bf16.mxu0 0
      %1165 = vmatpush1.bf16.msra.mxu0 0
      %1166 = vmatprep.subr.bf16.mxu0 0
      %1167 = vmatpush1.bf16.msra.mxu0 0
      %1168 = vmatprep.subr.bf16.mxu0 0
      %1169 = vmatpush1.bf16.msra.mxu0 0
      %1170 = vmatprep.subr.bf16.mxu0 0
      %1171 = vmatpush1.bf16.msra.mxu0 0
      %1172 = vmatprep.subr.bf16.mxu0 0
      %1173 = vmatpush1.bf16.msra.mxu0 0
      %1174 = vmatprep.subr.bf16.mxu0 0
      %1175 = vmatpush1.bf16.msra.mxu0 0
      %1176 = vmatprep.subr.bf16.mxu0 0
      %1177 = vmatpush1.bf16.msra.mxu0 0
      %1178 = vmatprep.mubr.bf16.mxu0 0
      %1179 = vmatmul.mubr.bf16.gmra.mrb[0].mxu0 %v1144
      %v1180 = vpop.f32.mrb[0].mxu0
      %v1181 = vadd.f32 %v1024, %v1180
      %v1182 = vpop.f32.mrb[0].mxu0
      %v1183 = vpop.f32.mrb[0].mxu0
      %v1184 = vadd.f32 %v1025, %v1183
      %v1185 = vpop.f32.mrb[0].mxu0
      %1186 = vdwg.mxu0
      %v1187 = vadd.f32 %v1181, %v380
      %v1188 = vadd.f32 %v1184, %v380
      %v1189 = vmax.f32 %v1187, 0.0
      %v1190 = vmax.f32 %v1188, 0.0
      %v1191 = vpack.c.bf16 %v1190, %v1189
      %v1193 = vsel %vm331, %v1191, 0
      %1195 = vmatprep.subr.bf16.mxu0 0
      %1196 = vmatpush1.bf16.msra.mxu0 %v391
      %1197 = vmatprep.subr.bf16.mxu0 0
      %1198 = vmatpush1.bf16.msra.mxu0 0
      %1199 = vmatprep.subr.bf16.mxu0 0
      %1200 = vmatpush1.bf16.msra.mxu0 0
      %1201 = vmatprep.subr.bf16.mxu0 0
      %1202 = vmatpush1.bf16.msra.mxu0 0
      %1203 = vmatprep.subr.bf16.mxu0 0
      %1204 = vmatpush1.bf16.msra.mxu0 0
      %1205 = vmatprep.subr.bf16.mxu0 0
      %1206 = vmatpush1.bf16.msra.mxu0 0
      %1207 = vmatprep.subr.bf16.mxu0 0
      %1208 = vmatpush1.bf16.msra.mxu0 0
      %1209 = vmatprep.subr.bf16.mxu0 0
      %1210 = vmatpush1.bf16.msra.mxu0 0
      %1211 = vmatprep.subr.bf16.mxu0 0
      %1212 = vmatpush1.bf16.msra.mxu0 0
      %1213 = vmatprep.subr.bf16.mxu0 0
      %1214 = vmatpush1.bf16.msra.mxu0 0
      %1215 = vmatprep.subr.bf16.mxu0 0
      %1216 = vmatpush1.bf16.msra.mxu0 0
      %1217 = vmatprep.subr.bf16.mxu0 0
      %1218 = vmatpush1.bf16.msra.mxu0 0
      %1219 = vmatprep.subr.bf16.mxu0 0
      %1220 = vmatpush1.bf16.msra.mxu0 0
      %1221 = vmatprep.subr.bf16.mxu0 0
      %1222 = vmatpush1.bf16.msra.mxu0 0
      %1223 = vmatprep.subr.bf16.mxu0 0
      %1224 = vmatpush1.bf16.msra.mxu0 0
      %1225 = vmatprep.subr.bf16.mxu0 0
      %1226 = vmatpush1.bf16.msra.mxu0 0
      %1227 = vmatprep.mubr.bf16.mxu0 0
      %1228 = vmatmul.mubr.bf16.gmra.mrb[0].mxu0 %v1193
      %v1229 = vpop.f32.mrb[0].mxu0
      %v1230 = vadd.f32 0.0, %v1229
      %v1231 = vpop.f32.mrb[0].mxu0
      %v1232 = vpop.f32.mrb[0].mxu0
      %v1233 = vadd.f32 0.0, %v1232
      %v1234 = vpop.f32.mrb[0].mxu0
      %1235 = vdwg.mxu0
      %v1236 = vpack.c.bf16 %v1233, %v1230
      %v1238 = vunpack.c.l.b16 %v1236
      %v1239 = vunpack.c.h.b16 %v1236
      %v1240 = vpack.c.b16 %v1238, %v1238
      %v1241 = vpack.c.b16 %v1239, %v1239
      %s1244 = scalar_lea.vmem %s306, 56
      %1245 = vst.msk [vmem:[%s1244] sm:$0xf] %vm445, %v1240
      %1246 = vst.msk [vmem:[%s1244 + $0x4] sm:$0xf] %vm445, %v1241
      %s1247 = scalar_lea.vmem %s284, 32
      %v1248 = vld [vmem:[%s1247] sm:$0xf]
      %v1249 = vld [vmem:[%s1247 + $0x4] sm:$0xf]
      %s1250 = scalar_lea.vmem %s295, 64
      %v1251 = vld [vmem:[%s1250] sm:$0xf]
      %v1252 = vld [vmem:[%s1250 + $0x4] sm:$0xf]
      %v1253 = vunpack.c.l.bf16 %v1248
      %v1254 = vunpack.c.l.bf16 %v1249
      %v1257 = vunpack.c.l.b16 %v1251
      %v1258 = vunpack.c.l.b16 %v1252
      %v1259 = vpack.c.b16 %v1258, %v1257
      %v1261 = vsel %vm331, %v1259, 0
      %1263 = vmatprep.subr.bf16.mxu0 0
      %1264 = vmatpush1.bf16.msra.mxu0 %v329
      %1265 = vmatprep.subr.bf16.mxu0 0
      %1266 = vmatpush1.bf16.msra.mxu0 0
      %1267 = vmatprep.subr.bf16.mxu0 0
      %1268 = vmatpush1.bf16.msra.mxu0 0
      %1269 = vmatprep.subr.bf16.mxu0 0
      %1270 = vmatpush1.bf16.msra.mxu0 0
      %1271 = vmatprep.subr.bf16.mxu0 0
      %1272 = vmatpush1.bf16.msra.mxu0 0
      %1273 = vmatprep.subr.bf16.mxu0 0
      %1274 = vmatpush1.bf16.msra.mxu0 0
      %1275 = vmatprep.subr.bf16.mxu0 0
      %1276 = vmatpush1.bf16.msra.mxu0 0
      %1277 = vmatprep.subr.bf16.mxu0 0
      %1278 = vmatpush1.bf16.msra.mxu0 0
      %1279 = vmatprep.subr.bf16.mxu0 0
      %1280 = vmatpush1.bf16.msra.mxu0 0
      %1281 = vmatprep.subr.bf16.mxu0 0
      %1282 = vmatpush1.bf16.msra.mxu0 0
      %1283 = vmatprep.subr.bf16.mxu0 0
      %1284 = vmatpush1.bf16.msra.mxu0 0
      %1285 = vmatprep.subr.bf16.mxu0 0
      %1286 = vmatpush1.bf16.msra.mxu0 0
      %1287 = vmatprep.subr.bf16.mxu0 0
      %1288 = vmatpush1.bf16.msra.mxu0 0
      %1289 = vmatprep.subr.bf16.mxu0 0
      %1290 = vmatpush1.bf16.msra.mxu0 0
      %1291 = vmatprep.subr.bf16.mxu0 0
      %1292 = vmatpush1.bf16.msra.mxu0 0
      %1293 = vmatprep.subr.bf16.mxu0 0
      %1294 = vmatpush1.bf16.msra.mxu0 0
      %1295 = vmatprep.mubr.bf16.mxu0 0
      %1296 = vmatmul.mubr.bf16.gmra.mrb[0].mxu0 %v1261
      %v1297 = vpop.f32.mrb[0].mxu0
      %v1298 = vadd.f32 %v1253, %v1297
      %v1299 = vpop.f32.mrb[0].mxu0
      %v1300 = vpop.f32.mrb[0].mxu0
      %v1301 = vadd.f32 %v1254, %v1300
      %v1302 = vpop.f32.mrb[0].mxu0
      %1303 = vdwg.mxu0
      %v1304 = vadd.f32 %v1298, %v380
      %v1305 = vadd.f32 %v1301, %v380
      %v1306 = vmax.f32 %v1304, 0.0
      %v1307 = vmax.f32 %v1305, 0.0
      %v1308 = vpack.c.bf16 %v1307, %v1306
      %v1310 = vsel %vm331, %v1308, 0
      %1312 = vmatprep.subr.bf16.mxu0 0
      %1313 = vmatpush1.bf16.msra.mxu0 %v391
      %1314 = vmatprep.subr.bf16.mxu0 0
      %1315 = vmatpush1.bf16.msra.mxu0 0
      %1316 = vmatprep.subr.bf16.mxu0 0
      %1317 = vmatpush1.bf16.msra.mxu0 0
      %1318 = vmatprep.subr.bf16.mxu0 0
      %1319 = vmatpush1.bf16.msra.mxu0 0
      %1320 = vmatprep.subr.bf16.mxu0 0
      %1321 = vmatpush1.bf16.msra.mxu0 0
      %1322 = vmatprep.subr.bf16.mxu0 0
      %1323 = vmatpush1.bf16.msra.mxu0 0
      %1324 = vmatprep.subr.bf16.mxu0 0
      %1325 = vmatpush1.bf16.msra.mxu0 0
      %1326 = vmatprep.subr.bf16.mxu0 0
      %1327 = vmatpush1.bf16.msra.mxu0 0
      %1328 = vmatprep.subr.bf16.mxu0 0
      %1329 = vmatpush1.bf16.msra.mxu0 0
      %1330 = vmatprep.subr.bf16.mxu0 0
      %1331 = vmatpush1.bf16.msra.mxu0 0
      %1332 = vmatprep.subr.bf16.mxu0 0
      %1333 = vmatpush1.bf16.msra.mxu0 0
      %1334 = vmatprep.subr.bf16.mxu0 0
      %1335 = vmatpush1.bf16.msra.mxu0 0
      %1336 = vmatprep.subr.bf16.mxu0 0
      %1337 = vmatpush1.bf16.msra.mxu0 0
      %1338 = vmatprep.subr.bf16.mxu0 0
      %1339 = vmatpush1.bf16.msra.mxu0 0
      %1340 = vmatprep.subr.bf16.mxu0 0
      %1341 = vmatpush1.bf16.msra.mxu0 0
      %1342 = vmatprep.subr.bf16.mxu0 0
      %1343 = vmatpush1.bf16.msra.mxu0 0
      %1344 = vmatprep.mubr.bf16.mxu0 0
      %1345 = vmatmul.mubr.bf16.gmra.mrb[0].mxu0 %v1310
      %v1346 = vpop.f32.mrb[0].mxu0
      %v1347 = vadd.f32 0.0, %v1346
      %v1348 = vpop.f32.mrb[0].mxu0
      %v1349 = vpop.f32.mrb[0].mxu0
      %v1350 = vadd.f32 0.0, %v1349
      %v1351 = vpop.f32.mrb[0].mxu0
      %1352 = vdwg.mxu0
      %v1353 = vpack.c.bf16 %v1350, %v1347
      %v1355 = vunpack.c.l.b16 %v1353
      %v1356 = vunpack.c.h.b16 %v1353
      %v1357 = vpack.c.b16 %v1355, %v1355
      %v1358 = vpack.c.b16 %v1356, %v1356
      %s1361 = scalar_lea.vmem %s306, 64
      %1362 = vst.msk [vmem:[%s1361] sm:$0xf] %vm445, %v1357
      %1363 = vst.msk [vmem:[%s1361 + $0x4] sm:$0xf] %vm445, %v1358
      %s1364 = scalar_lea.vmem %s295, 72
      %v1365 = vld [vmem:[%s1364] sm:$0xf]
      %v1366 = vld [vmem:[%s1364 + $0x4] sm:$0xf]
      %v1369 = vunpack.c.l.b16 %v1365
      %v1370 = vunpack.c.l.b16 %v1366
      %v1371 = vpack.c.b16 %v1370, %v1369
      %v1373 = vsel %vm331, %v1371, 0
      %1375 = vmatprep.subr.bf16.mxu0 0
      %1376 = vmatpush1.bf16.msra.mxu0 %v329
      %1377 = vmatprep.subr.bf16.mxu0 0
      %1378 = vmatpush1.bf16.msra.mxu0 0
      %1379 = vmatprep.subr.bf16.mxu0 0
      %1380 = vmatpush1.bf16.msra.mxu0 0
      %1381 = vmatprep.subr.bf16.mxu0 0
      %1382 = vmatpush1.bf16.msra.mxu0 0
      %1383 = vmatprep.subr.bf16.mxu0 0
      %1384 = vmatpush1.bf16.msra.mxu0 0
      %1385 = vmatprep.subr.bf16.mxu0 0
      %1386 = vmatpush1.bf16.msra.mxu0 0
      %1387 = vmatprep.subr.bf16.mxu0 0
      %1388 = vmatpush1.bf16.msra.mxu0 0
      %1389 = vmatprep.subr.bf16.mxu0 0
      %1390 = vmatpush1.bf16.msra.mxu0 0
      %1391 = vmatprep.subr.bf16.mxu0 0
      %1392 = vmatpush1.bf16.msra.mxu0 0
      %1393 = vmatprep.subr.bf16.mxu0 0
      %1394 = vmatpush1.bf16.msra.mxu0 0
      %1395 = vmatprep.subr.bf16.mxu0 0
      %1396 = vmatpush1.bf16.msra.mxu0 0
      %1397 = vmatprep.subr.bf16.mxu0 0
      %1398 = vmatpush1.bf16.msra.mxu0 0
      %1399 = vmatprep.subr.bf16.mxu0 0
      %1400 = vmatpush1.bf16.msra.mxu0 0
      %1401 = vmatprep.subr.bf16.mxu0 0
      %1402 = vmatpush1.bf16.msra.mxu0 0
      %1403 = vmatprep.subr.bf16.mxu0 0
      %1404 = vmatpush1.bf16.msra.mxu0 0
      %1405 = vmatprep.subr.bf16.mxu0 0
      %1406 = vmatpush1.bf16.msra.mxu0 0
      %1407 = vmatprep.mubr.bf16.mxu0 0
      %1408 = vmatmul.mubr.bf16.gmra.mrb[0].mxu0 %v1373
      %v1409 = vpop.f32.mrb[0].mxu0
      %v1410 = vadd.f32 %v1253, %v1409
      %v1411 = vpop.f32.mrb[0].mxu0
      %v1412 = vpop.f32.mrb[0].mxu0
      %v1413 = vadd.f32 %v1254, %v1412
      %v1414 = vpop.f32.mrb[0].mxu0
      %1415 = vdwg.mxu0
      %v1416 = vadd.f32 %v1410, %v380
      %v1417 = vadd.f32 %v1413, %v380
      %v1418 = vmax.f32 %v1416, 0.0
      %v1419 = vmax.f32 %v1417, 0.0
      %v1420 = vpack.c.bf16 %v1419, %v1418
      %v1422 = vsel %vm331, %v1420, 0
      %1424 = vmatprep.subr.bf16.mxu0 0
      %1425 = vmatpush1.bf16.msra.mxu0 %v391
      %1426 = vmatprep.subr.bf16.mxu0 0
      %1427 = vmatpush1.bf16.msra.mxu0 0
      %1428 = vmatprep.subr.bf16.mxu0 0
      %1429 = vmatpush1.bf16.msra.mxu0 0
      %1430 = vmatprep.subr.bf16.mxu0 0
      %1431 = vmatpush1.bf16.msra.mxu0 0
      %1432 = vmatprep.subr.bf16.mxu0 0
      %1433 = vmatpush1.bf16.msra.mxu0 0
      %1434 = vmatprep.subr.bf16.mxu0 0
      %1435 = vmatpush1.bf16.msra.mxu0 0
      %1436 = vmatprep.subr.bf16.mxu0 0
      %1437 = vmatpush1.bf16.msra.mxu0 0
      %1438 = vmatprep.subr.bf16.mxu0 0
      %1439 = vmatpush1.bf16.msra.mxu0 0
      %1440 = vmatprep.subr.bf16.mxu0 0
      %1441 = vmatpush1.bf16.msra.mxu0 0
      %1442 = vmatprep.subr.bf16.mxu0 0
      %1443 = vmatpush1.bf16.msra.mxu0 0
      %1444 = vmatprep.subr.bf16.mxu0 0
      %1445 = vmatpush1.bf16.msra.mxu0 0
      %1446 = vmatprep.subr.bf16.mxu0 0
      %1447 = vmatpush1.bf16.msra.mxu0 0
      %1448 = vmatprep.subr.bf16.mxu0 0
      %1449 = vmatpush1.bf16.msra.mxu0 0
      %1450 = vmatprep.subr.bf16.mxu0 0
      %1451 = vmatpush1.bf16.msra.mxu0 0
      %1452 = vmatprep.subr.bf16.mxu0 0
      %1453 = vmatpush1.bf16.msra.mxu0 0
      %1454 = vmatprep.subr.bf16.mxu0 0
      %1455 = vmatpush1.bf16.msra.mxu0 0
      %1456 = vmatprep.mubr.bf16.mxu0 0
      %1457 = vmatmul.mubr.bf16.gmra.mrb[0].mxu0 %v1422
      %v1458 = vpop.f32.mrb[0].mxu0
      %v1459 = vadd.f32 0.0, %v1458
      %v1460 = vpop.f32.mrb[0].mxu0
      %v1461 = vpop.f32.mrb[0].mxu0
      %v1462 = vadd.f32 0.0, %v1461
      %v1463 = vpop.f32.mrb[0].mxu0
      %1464 = vdwg.mxu0
      %v1465 = vpack.c.bf16 %v1462, %v1459
      %v1467 = vunpack.c.l.b16 %v1465
      %v1468 = vunpack.c.h.b16 %v1465
      %v1469 = vpack.c.b16 %v1467, %v1467
      %v1470 = vpack.c.b16 %v1468, %v1468
      %s1473 = scalar_lea.vmem %s306, 72
      %1474 = vst.msk [vmem:[%s1473] sm:$0xf] %vm445, %v1469
      %1475 = vst.msk [vmem:[%s1473 + $0x4] sm:$0xf] %vm445, %v1470
      %s1476 = scalar_lea.vmem %s284, 40
      %v1477 = vld [vmem:[%s1476] sm:$0xf]
      %v1478 = vld [vmem:[%s1476 + $0x4] sm:$0xf]
      %s1479 = scalar_lea.vmem %s295, 80
      %v1480 = vld [vmem:[%s1479] sm:$0xf]
      %v1481 = vld [vmem:[%s1479 + $0x4] sm:$0xf]
      %v1482 = vunpack.c.l.bf16 %v1477
      %v1483 = vunpack.c.l.bf16 %v1478
      %v1486 = vunpack.c.l.b16 %v1480
      %v1487 = vunpack.c.l.b16 %v1481
      %v1488 = vpack.c.b16 %v1487, %v1486
      %v1490 = vsel %vm331, %v1488, 0
      %1492 = vmatprep.subr.bf16.mxu0 0
      %1493 = vmatpush1.bf16.msra.mxu0 %v329
      %1494 = vmatprep.subr.bf16.mxu0 0
      %1495 = vmatpush1.bf16.msra.mxu0 0
      %1496 = vmatprep.subr.bf16.mxu0 0
      %1497 = vmatpush1.bf16.msra.mxu0 0
      %1498 = vmatprep.subr.bf16.mxu0 0
      %1499 = vmatpush1.bf16.msra.mxu0 0
      %1500 = vmatprep.subr.bf16.mxu0 0
      %1501 = vmatpush1.bf16.msra.mxu0 0
      %1502 = vmatprep.subr.bf16.mxu0 0
      %1503 = vmatpush1.bf16.msra.mxu0 0
      %1504 = vmatprep.subr.bf16.mxu0 0
      %1505 = vmatpush1.bf16.msra.mxu0 0
      %1506 = vmatprep.subr.bf16.mxu0 0
      %1507 = vmatpush1.bf16.msra.mxu0 0
      %1508 = vmatprep.subr.bf16.mxu0 0
      %1509 = vmatpush1.bf16.msra.mxu0 0
      %1510 = vmatprep.subr.bf16.mxu0 0
      %1511 = vmatpush1.bf16.msra.mxu0 0
      %1512 = vmatprep.subr.bf16.mxu0 0
      %1513 = vmatpush1.bf16.msra.mxu0 0
      %1514 = vmatprep.subr.bf16.mxu0 0
      %1515 = vmatpush1.bf16.msra.mxu0 0
      %1516 = vmatprep.subr.bf16.mxu0 0
      %1517 = vmatpush1.bf16.msra.mxu0 0
      %1518 = vmatprep.subr.bf16.mxu0 0
      %1519 = vmatpush1.bf16.msra.mxu0 0
      %1520 = vmatprep.subr.bf16.mxu0 0
      %1521 = vmatpush1.bf16.msra.mxu0 0
      %1522 = vmatprep.subr.bf16.mxu0 0
      %1523 = vmatpush1.bf16.msra.mxu0 0
      %1524 = vmatprep.mubr.bf16.mxu0 0
      %1525 = vmatmul.mubr.bf16.gmra.mrb[0].mxu0 %v1490
      %v1526 = vpop.f32.mrb[0].mxu0
      %v1527 = vadd.f32 %v1482, %v1526
      %v1528 = vpop.f32.mrb[0].mxu0
      %v1529 = vpop.f32.mrb[0].mxu0
      %v1530 = vadd.f32 %v1483, %v1529
      %v1531 = vpop.f32.mrb[0].mxu0
      %1532 = vdwg.mxu0
      %v1533 = vadd.f32 %v1527, %v380
      %v1534 = vadd.f32 %v1530, %v380
      %v1535 = vmax.f32 %v1533, 0.0
      %v1536 = vmax.f32 %v1534, 0.0
      %v1537 = vpack.c.bf16 %v1536, %v1535
      %v1539 = vsel %vm331, %v1537, 0
      %1541 = vmatprep.subr.bf16.mxu0 0
      %1542 = vmatpush1.bf16.msra.mxu0 %v391
      %1543 = vmatprep.subr.bf16.mxu0 0
      %1544 = vmatpush1.bf16.msra.mxu0 0
      %1545 = vmatprep.subr.bf16.mxu0 0
      %1546 = vmatpush1.bf16.msra.mxu0 0
      %1547 = vmatprep.subr.bf16.mxu0 0
      %1548 = vmatpush1.bf16.msra.mxu0 0
      %1549 = vmatprep.subr.bf16.mxu0 0
      %1550 = vmatpush1.bf16.msra.mxu0 0
      %1551 = vmatprep.subr.bf16.mxu0 0
      %1552 = vmatpush1.bf16.msra.mxu0 0
      %1553 = vmatprep.subr.bf16.mxu0 0
      %1554 = vmatpush1.bf16.msra.mxu0 0
      %1555 = vmatprep.subr.bf16.mxu0 0
      %1556 = vmatpush1.bf16.msra.mxu0 0
      %1557 = vmatprep.subr.bf16.mxu0 0
      %1558 = vmatpush1.bf16.msra.mxu0 0
      %1559 = vmatprep.subr.bf16.mxu0 0
      %1560 = vmatpush1.bf16.msra.mxu0 0
      %1561 = vmatprep.subr.bf16.mxu0 0
      %1562 = vmatpush1.bf16.msra.mxu0 0
      %1563 = vmatprep.subr.bf16.mxu0 0
      %1564 = vmatpush1.bf16.msra.mxu0 0
      %1565 = vmatprep.subr.bf16.mxu0 0
      %1566 = vmatpush1.bf16.msra.mxu0 0
      %1567 = vmatprep.subr.bf16.mxu0 0
      %1568 = vmatpush1.bf16.msra.mxu0 0
      %1569 = vmatprep.subr.bf16.mxu0 0
      %1570 = vmatpush1.bf16.msra.mxu0 0
      %1571 = vmatprep.subr.bf16.mxu0 0
      %1572 = vmatpush1.bf16.msra.mxu0 0
      %1573 = vmatprep.mubr.bf16.mxu0 0
      %1574 = vmatmul.mubr.bf16.gmra.mrb[0].mxu0 %v1539
      %v1575 = vpop.f32.mrb[0].mxu0
      %v1576 = vadd.f32 0.0, %v1575
      %v1577 = vpop.f32.mrb[0].mxu0
      %v1578 = vpop.f32.mrb[0].mxu0
      %v1579 = vadd.f32 0.0, %v1578
      %v1580 = vpop.f32.mrb[0].mxu0
      %1581 = vdwg.mxu0
      %v1582 = vpack.c.bf16 %v1579, %v1576
      %v1584 = vunpack.c.l.b16 %v1582
      %v1585 = vunpack.c.h.b16 %v1582
      %v1586 = vpack.c.b16 %v1584, %v1584
      %v1587 = vpack.c.b16 %v1585, %v1585
      %s1590 = scalar_lea.vmem %s306, 80
      %1591 = vst.msk [vmem:[%s1590] sm:$0xf] %vm445, %v1586
      %1592 = vst.msk [vmem:[%s1590 + $0x4] sm:$0xf] %vm445, %v1587
      %s1593 = scalar_lea.vmem %s295, 88
      %v1594 = vld [vmem:[%s1593] sm:$0xf]
      %v1595 = vld [vmem:[%s1593 + $0x4] sm:$0xf]
      %v1598 = vunpack.c.l.b16 %v1594
      %v1599 = vunpack.c.l.b16 %v1595
      %v1600 = vpack.c.b16 %v1599, %v1598
      %v1602 = vsel %vm331, %v1600, 0
      %1604 = vmatprep.subr.bf16.mxu0 0
      %1605 = vmatpush1.bf16.msra.mxu0 %v329
      %1606 = vmatprep.subr.bf16.mxu0 0
      %1607 = vmatpush1.bf16.msra.mxu0 0
      %1608 = vmatprep.subr.bf16.mxu0 0
      %1609 = vmatpush1.bf16.msra.mxu0 0
      %1610 = vmatprep.subr.bf16.mxu0 0
      %1611 = vmatpush1.bf16.msra.mxu0 0
      %1612 = vmatprep.subr.bf16.mxu0 0
      %1613 = vmatpush1.bf16.msra.mxu0 0
      %1614 = vmatprep.subr.bf16.mxu0 0
      %1615 = vmatpush1.bf16.msra.mxu0 0
      %1616 = vmatprep.subr.bf16.mxu0 0
      %1617 = vmatpush1.bf16.msra.mxu0 0
      %1618 = vmatprep.subr.bf16.mxu0 0
      %1619 = vmatpush1.bf16.msra.mxu0 0
      %1620 = vmatprep.subr.bf16.mxu0 0
      %1621 = vmatpush1.bf16.msra.mxu0 0
      %1622 = vmatprep.subr.bf16.mxu0 0
      %1623 = vmatpush1.bf16.msra.mxu0 0
      %1624 = vmatprep.subr.bf16.mxu0 0
      %1625 = vmatpush1.bf16.msra.mxu0 0
      %1626 = vmatprep.subr.bf16.mxu0 0
      %1627 = vmatpush1.bf16.msra.mxu0 0
      %1628 = vmatprep.subr.bf16.mxu0 0
      %1629 = vmatpush1.bf16.msra.mxu0 0
      %1630 = vmatprep.subr.bf16.mxu0 0
      %1631 = vmatpush1.bf16.msra.mxu0 0
      %1632 = vmatprep.subr.bf16.mxu0 0
      %1633 = vmatpush1.bf16.msra.mxu0 0
      %1634 = vmatprep.subr.bf16.mxu0 0
      %1635 = vmatpush1.bf16.msra.mxu0 0
      %1636 = vmatprep.mubr.bf16.mxu0 0
      %1637 = vmatmul.mubr.bf16.gmra.mrb[0].mxu0 %v1602
      %v1638 = vpop.f32.mrb[0].mxu0
      %v1639 = vadd.f32 %v1482, %v1638
      %v1640 = vpop.f32.mrb[0].mxu0
      %v1641 = vpop.f32.mrb[0].mxu0
      %v1642 = vadd.f32 %v1483, %v1641
      %v1643 = vpop.f32.mrb[0].mxu0
      %1644 = vdwg.mxu0
      %v1645 = vadd.f32 %v1639, %v380
      %v1646 = vadd.f32 %v1642, %v380
      %v1647 = vmax.f32 %v1645, 0.0
      %v1648 = vmax.f32 %v1646, 0.0
      %v1649 = vpack.c.bf16 %v1648, %v1647
      %v1651 = vsel %vm331, %v1649, 0
      %1653 = vmatprep.subr.bf16.mxu0 0
      %1654 = vmatpush1.bf16.msra.mxu0 %v391
      %1655 = vmatprep.subr.bf16.mxu0 0
      %1656 = vmatpush1.bf16.msra.mxu0 0
      %1657 = vmatprep.subr.bf16.mxu0 0
      %1658 = vmatpush1.bf16.msra.mxu0 0
      %1659 = vmatprep.subr.bf16.mxu0 0
      %1660 = vmatpush1.bf16.msra.mxu0 0
      %1661 = vmatprep.subr.bf16.mxu0 0
      %1662 = vmatpush1.bf16.msra.mxu0 0
      %1663 = vmatprep.subr.bf16.mxu0 0
      %1664 = vmatpush1.bf16.msra.mxu0 0
      %1665 = vmatprep.subr.bf16.mxu0 0
      %1666 = vmatpush1.bf16.msra.mxu0 0
      %1667 = vmatprep.subr.bf16.mxu0 0
      %1668 = vmatpush1.bf16.msra.mxu0 0
      %1669 = vmatprep.subr.bf16.mxu0 0
      %1670 = vmatpush1.bf16.msra.mxu0 0
      %1671 = vmatprep.subr.bf16.mxu0 0
      %1672 = vmatpush1.bf16.msra.mxu0 0
      %1673 = vmatprep.subr.bf16.mxu0 0
      %1674 = vmatpush1.bf16.msra.mxu0 0
      %1675 = vmatprep.subr.bf16.mxu0 0
      %1676 = vmatpush1.bf16.msra.mxu0 0
      %1677 = vmatprep.subr.bf16.mxu0 0
      %1678 = vmatpush1.bf16.msra.mxu0 0
      %1679 = vmatprep.subr.bf16.mxu0 0
      %1680 = vmatpush1.bf16.msra.mxu0 0
      %1681 = vmatprep.subr.bf16.mxu0 0
      %1682 = vmatpush1.bf16.msra.mxu0 0
      %1683 = vmatprep.subr.bf16.mxu0 0
      %1684 = vmatpush1.bf16.msra.mxu0 0
      %1685 = vmatprep.mubr.bf16.mxu0 0
      %1686 = vmatmul.mubr.bf16.gmra.mrb[0].mxu0 %v1651
      %v1687 = vpop.f32.mrb[0].mxu0
      %v1688 = vadd.f32 0.0, %v1687
      %v1689 = vpop.f32.mrb[0].mxu0
      %v1690 = vpop.f32.mrb[0].mxu0
      %v1691 = vadd.f32 0.0, %v1690
      %v1692 = vpop.f32.mrb[0].mxu0
      %1693 = vdwg.mxu0
      %v1694 = vpack.c.bf16 %v1691, %v1688
      %v1696 = vunpack.c.l.b16 %v1694
      %v1697 = vunpack.c.h.b16 %v1694
      %v1698 = vpack.c.b16 %v1696, %v1696
      %v1699 = vpack.c.b16 %v1697, %v1697
      %s1702 = scalar_lea.vmem %s306, 88
      %1703 = vst.msk [vmem:[%s1702] sm:$0xf] %vm445, %v1698
      %1704 = vst.msk [vmem:[%s1702 + $0x4] sm:$0xf] %vm445, %v1699
      %s1705 = scalar_lea.vmem %s284, 48
      %v1706 = vld [vmem:[%s1705] sm:$0xf]
      %v1707 = vld [vmem:[%s1705 + $0x4] sm:$0xf]
      %s1708 = scalar_lea.vmem %s295, 96
      %v1709 = vld [vmem:[%s1708] sm:$0xf]
      %v1710 = vld [vmem:[%s1708 + $0x4] sm:$0xf]
      %v1711 = vunpack.c.l.bf16 %v1706
      %v1712 = vunpack.c.l.bf16 %v1707
      %v1715 = vunpack.c.l.b16 %v1709
      %v1716 = vunpack.c.l.b16 %v1710
      %v1717 = vpack.c.b16 %v1716, %v1715
      %v1719 = vsel %vm331, %v1717, 0
      %1721 = vmatprep.subr.bf16.mxu0 0
      %1722 = vmatpush1.bf16.msra.mxu0 %v329
      %1723 = vmatprep.subr.bf16.mxu0 0
      %1724 = vmatpush1.bf16.msra.mxu0 0
      %1725 = vmatprep.subr.bf16.mxu0 0
      %1726 = vmatpush1.bf16.msra.mxu0 0
      %1727 = vmatprep.subr.bf16.mxu0 0
      %1728 = vmatpush1.bf16.msra.mxu0 0
      %1729 = vmatprep.subr.bf16.mxu0 0
      %1730 = vmatpush1.bf16.msra.mxu0 0
      %1731 = vmatprep.subr.bf16.mxu0 0
      %1732 = vmatpush1.bf16.msra.mxu0 0
      %1733 = vmatprep.subr.bf16.mxu0 0
      %1734 = vmatpush1.bf16.msra.mxu0 0
      %1735 = vmatprep.subr.bf16.mxu0 0
      %1736 = vmatpush1.bf16.msra.mxu0 0
      %1737 = vmatprep.subr.bf16.mxu0 0
      %1738 = vmatpush1.bf16.msra.mxu0 0
      %1739 = vmatprep.subr.bf16.mxu0 0
      %1740 = vmatpush1.bf16.msra.mxu0 0
      %1741 = vmatprep.subr.bf16.mxu0 0
      %1742 = vmatpush1.bf16.msra.mxu0 0
      %1743 = vmatprep.subr.bf16.mxu0 0
      %1744 = vmatpush1.bf16.msra.mxu0 0
      %1745 = vmatprep.subr.bf16.mxu0 0
      %1746 = vmatpush1.bf16.msra.mxu0 0
      %1747 = vmatprep.subr.bf16.mxu0 0
      %1748 = vmatpush1.bf16.msra.mxu0 0
      %1749 = vmatprep.subr.bf16.mxu0 0
      %1750 = vmatpush1.bf16.msra.mxu0 0
      %1751 = vmatprep.subr.bf16.mxu0 0
      %1752 = vmatpush1.bf16.msra.mxu0 0
      %1753 = vmatprep.mubr.bf16.mxu0 0
      %1754 = vmatmul.mubr.bf16.gmra.mrb[0].mxu0 %v1719
      %v1755 = vpop.f32.mrb[0].mxu0
      %v1756 = vadd.f32 %v1711, %v1755
      %v1757 = vpop.f32.mrb[0].mxu0
      %v1758 = vpop.f32.mrb[0].mxu0
      %v1759 = vadd.f32 %v1712, %v1758
      %v1760 = vpop.f32.mrb[0].mxu0
      %1761 = vdwg.mxu0
      %v1762 = vadd.f32 %v1756, %v380
      %v1763 = vadd.f32 %v1759, %v380
      %v1764 = vmax.f32 %v1762, 0.0
      %v1765 = vmax.f32 %v1763, 0.0
      %v1766 = vpack.c.bf16 %v1765, %v1764
      %v1768 = vsel %vm331, %v1766, 0
      %1770 = vmatprep.subr.bf16.mxu0 0
      %1771 = vmatpush1.bf16.msra.mxu0 %v391
      %1772 = vmatprep.subr.bf16.mxu0 0
      %1773 = vmatpush1.bf16.msra.mxu0 0
      %1774 = vmatprep.subr.bf16.mxu0 0
      %1775 = vmatpush1.bf16.msra.mxu0 0
      %1776 = vmatprep.subr.bf16.mxu0 0
      %1777 = vmatpush1.bf16.msra.mxu0 0
      %1778 = vmatprep.subr.bf16.mxu0 0
      %1779 = vmatpush1.bf16.msra.mxu0 0
      %1780 = vmatprep.subr.bf16.mxu0 0
      %1781 = vmatpush1.bf16.msra.mxu0 0
      %1782 = vmatprep.subr.bf16.mxu0 0
      %1783 = vmatpush1.bf16.msra.mxu0 0
      %1784 = vmatprep.subr.bf16.mxu0 0
      %1785 = vmatpush1.bf16.msra.mxu0 0
      %1786 = vmatprep.subr.bf16.mxu0 0
      %1787 = vmatpush1.bf16.msra.mxu0 0
      %1788 = vmatprep.subr.bf16.mxu0 0
      %1789 = vmatpush1.bf16.msra.mxu0 0
      %1790 = vmatprep.subr.bf16.mxu0 0
      %1791 = vmatpush1.bf16.msra.mxu0 0
      %1792 = vmatprep.subr.bf16.mxu0 0
      %1793 = vmatpush1.bf16.msra.mxu0 0
      %1794 = vmatprep.subr.bf16.mxu0 0
      %1795 = vmatpush1.bf16.msra.mxu0 0
      %1796 = vmatprep.subr.bf16.mxu0 0
      %1797 = vmatpush1.bf16.msra.mxu0 0
      %1798 = vmatprep.subr.bf16.mxu0 0
      %1799 = vmatpush1.bf16.msra.mxu0 0
      %1800 = vmatprep.subr.bf16.mxu0 0
      %1801 = vmatpush1.bf16.msra.mxu0 0
      %1802 = vmatprep.mubr.bf16.mxu0 0
      %1803 = vmatmul.mubr.bf16.gmra.mrb[0].mxu0 %v1768
      %v1804 = vpop.f32.mrb[0].mxu0
      %v1805 = vadd.f32 0.0, %v1804
      %v1806 = vpop.f32.mrb[0].mxu0
      %v1807 = vpop.f32.mrb[0].mxu0
      %v1808 = vadd.f32 0.0, %v1807
      %v1809 = vpop.f32.mrb[0].mxu0
      %1810 = vdwg.mxu0
      %v1811 = vpack.c.bf16 %v1808, %v1805
      %v1813 = vunpack.c.l.b16 %v1811
      %v1814 = vunpack.c.h.b16 %v1811
      %v1815 = vpack.c.b16 %v1813, %v1813
      %v1816 = vpack.c.b16 %v1814, %v1814
      %s1819 = scalar_lea.vmem %s306, 96
      %1820 = vst.msk [vmem:[%s1819] sm:$0xf] %vm445, %v1815
      %1821 = vst.msk [vmem:[%s1819 + $0x4] sm:$0xf] %vm445, %v1816
      %s1822 = scalar_lea.vmem %s295, 104
      %v1823 = vld [vmem:[%s1822] sm:$0xf]
      %v1824 = vld [vmem:[%s1822 + $0x4] sm:$0xf]
      %v1827 = vunpack.c.l.b16 %v1823
      %v1828 = vunpack.c.l.b16 %v1824
      %v1829 = vpack.c.b16 %v1828, %v1827
      %v1831 = vsel %vm331, %v1829, 0
      %1833 = vmatprep.subr.bf16.mxu0 0
      %1834 = vmatpush1.bf16.msra.mxu0 %v329
      %1835 = vmatprep.subr.bf16.mxu0 0
      %1836 = vmatpush1.bf16.msra.mxu0 0
      %1837 = vmatprep.subr.bf16.mxu0 0
      %1838 = vmatpush1.bf16.msra.mxu0 0
      %1839 = vmatprep.subr.bf16.mxu0 0
      %1840 = vmatpush1.bf16.msra.mxu0 0
      %1841 = vmatprep.subr.bf16.mxu0 0
      %1842 = vmatpush1.bf16.msra.mxu0 0
      %1843 = vmatprep.subr.bf16.mxu0 0
      %1844 = vmatpush1.bf16.msra.mxu0 0
      %1845 = vmatprep.subr.bf16.mxu0 0
      %1846 = vmatpush1.bf16.msra.mxu0 0
      %1847 = vmatprep.subr.bf16.mxu0 0
      %1848 = vmatpush1.bf16.msra.mxu0 0
      %1849 = vmatprep.subr.bf16.mxu0 0
      %1850 = vmatpush1.bf16.msra.mxu0 0
      %1851 = vmatprep.subr.bf16.mxu0 0
      %1852 = vmatpush1.bf16.msra.mxu0 0
      %1853 = vmatprep.subr.bf16.mxu0 0
      %1854 = vmatpush1.bf16.msra.mxu0 0
      %1855 = vmatprep.subr.bf16.mxu0 0
      %1856 = vmatpush1.bf16.msra.mxu0 0
      %1857 = vmatprep.subr.bf16.mxu0 0
      %1858 = vmatpush1.bf16.msra.mxu0 0
      %1859 = vmatprep.subr.bf16.mxu0 0
      %1860 = vmatpush1.bf16.msra.mxu0 0
      %1861 = vmatprep.subr.bf16.mxu0 0
      %1862 = vmatpush1.bf16.msra.mxu0 0
      %1863 = vmatprep.subr.bf16.mxu0 0
      %1864 = vmatpush1.bf16.msra.mxu0 0
      %1865 = vmatprep.mubr.bf16.mxu0 0
      %1866 = vmatmul.mubr.bf16.gmra.mrb[0].mxu0 %v1831
      %v1867 = vpop.f32.mrb[0].mxu0
      %v1868 = vadd.f32 %v1711, %v1867
      %v1869 = vpop.f32.mrb[0].mxu0
      %v1870 = vpop.f32.mrb[0].mxu0
      %v1871 = vadd.f32 %v1712, %v1870
      %v1872 = vpop.f32.mrb[0].mxu0
      %1873 = vdwg.mxu0
      %v1874 = vadd.f32 %v1868, %v380
      %v1875 = vadd.f32 %v1871, %v380
      %v1876 = vmax.f32 %v1874, 0.0
      %v1877 = vmax.f32 %v1875, 0.0
      %v1878 = vpack.c.bf16 %v1877, %v1876
      %v1880 = vsel %vm331, %v1878, 0
      %1882 = vmatprep.subr.bf16.mxu0 0
      %1883 = vmatpush1.bf16.msra.mxu0 %v391
      %1884 = vmatprep.subr.bf16.mxu0 0
      %1885 = vmatpush1.bf16.msra.mxu0 0
      %1886 = vmatprep.subr.bf16.mxu0 0
      %1887 = vmatpush1.bf16.msra.mxu0 0
      %1888 = vmatprep.subr.bf16.mxu0 0
      %1889 = vmatpush1.bf16.msra.mxu0 0
      %1890 = vmatprep.subr.bf16.mxu0 0
      %1891 = vmatpush1.bf16.msra.mxu0 0
      %1892 = vmatprep.subr.bf16.mxu0 0
      %1893 = vmatpush1.bf16.msra.mxu0 0
      %1894 = vmatprep.subr.bf16.mxu0 0
      %1895 = vmatpush1.bf16.msra.mxu0 0
      %1896 = vmatprep.subr.bf16.mxu0 0
      %1897 = vmatpush1.bf16.msra.mxu0 0
      %1898 = vmatprep.subr.bf16.mxu0 0
      %1899 = vmatpush1.bf16.msra.mxu0 0
      %1900 = vmatprep.subr.bf16.mxu0 0
      %1901 = vmatpush1.bf16.msra.mxu0 0
      %1902 = vmatprep.subr.bf16.mxu0 0
      %1903 = vmatpush1.bf16.msra.mxu0 0
      %1904 = vmatprep.subr.bf16.mxu0 0
      %1905 = vmatpush1.bf16.msra.mxu0 0
      %1906 = vmatprep.subr.bf16.mxu0 0
      %1907 = vmatpush1.bf16.msra.mxu0 0
      %1908 = vmatprep.subr.bf16.mxu0 0
      %1909 = vmatpush1.bf16.msra.mxu0 0
      %1910 = vmatprep.subr.bf16.mxu0 0
      %1911 = vmatpush1.bf16.msra.mxu0 0
      %1912 = vmatprep.subr.bf16.mxu0 0
      %1913 = vmatpush1.bf16.msra.mxu0 0
      %1914 = vmatprep.mubr.bf16.mxu0 0
      %1915 = vmatmul.mubr.bf16.gmra.mrb[0].mxu0 %v1880
      %v1916 = vpop.f32.mrb[0].mxu0
      %v1917 = vadd.f32 0.0, %v1916
      %v1918 = vpop.f32.mrb[0].mxu0
      %v1919 = vpop.f32.mrb[0].mxu0
      %v1920 = vadd.f32 0.0, %v1919
      %v1921 = vpop.f32.mrb[0].mxu0
      %1922 = vdwg.mxu0
      %v1923 = vpack.c.bf16 %v1920, %v1917
      %v1925 = vunpack.c.l.b16 %v1923
      %v1926 = vunpack.c.h.b16 %v1923
      %v1927 = vpack.c.b16 %v1925, %v1925
      %v1928 = vpack.c.b16 %v1926, %v1926
      %s1931 = scalar_lea.vmem %s306, 104
      %1932 = vst.msk [vmem:[%s1931] sm:$0xf] %vm445, %v1927
      %1933 = vst.msk [vmem:[%s1931 + $0x4] sm:$0xf] %vm445, %v1928
      %s1934 = scalar_lea.vmem %s284, 56
      %v1935 = vld [vmem:[%s1934] sm:$0xf]
      %v1936 = vld [vmem:[%s1934 + $0x4] sm:$0xf]
      %s1937 = scalar_lea.vmem %s295, 112
      %v1938 = vld [vmem:[%s1937] sm:$0xf]
      %v1939 = vld [vmem:[%s1937 + $0x4] sm:$0xf]
      %v1940 = vunpack.c.l.bf16 %v1935
      %v1941 = vunpack.c.l.bf16 %v1936
      %v1944 = vunpack.c.l.b16 %v1938
      %v1945 = vunpack.c.l.b16 %v1939
      %v1946 = vpack.c.b16 %v1945, %v1944
      %v1948 = vsel %vm331, %v1946, 0
      %1950 = vmatprep.subr.bf16.mxu0 0
      %1951 = vmatpush1.bf16.msra.mxu0 %v329
      %1952 = vmatprep.subr.bf16.mxu0 0
      %1953 = vmatpush1.bf16.msra.mxu0 0
      %1954 = vmatprep.subr.bf16.mxu0 0
      %1955 = vmatpush1.bf16.msra.mxu0 0
      %1956 = vmatprep.subr.bf16.mxu0 0
      %1957 = vmatpush1.bf16.msra.mxu0 0
      %1958 = vmatprep.subr.bf16.mxu0 0
      %1959 = vmatpush1.bf16.msra.mxu0 0
      %1960 = vmatprep.subr.bf16.mxu0 0
      %1961 = vmatpush1.bf16.msra.mxu0 0
      %1962 = vmatprep.subr.bf16.mxu0 0
      %1963 = vmatpush1.bf16.msra.mxu0 0
      %1964 = vmatprep.subr.bf16.mxu0 0
      %1965 = vmatpush1.bf16.msra.mxu0 0
      %1966 = vmatprep.subr.bf16.mxu0 0
      %1967 = vmatpush1.bf16.msra.mxu0 0
      %1968 = vmatprep.subr.bf16.mxu0 0
      %1969 = vmatpush1.bf16.msra.mxu0 0
      %1970 = vmatprep.subr.bf16.mxu0 0
      %1971 = vmatpush1.bf16.msra.mxu0 0
      %1972 = vmatprep.subr.bf16.mxu0 0
      %1973 = vmatpush1.bf16.msra.mxu0 0
      %1974 = vmatprep.subr.bf16.mxu0 0
      %1975 = vmatpush1.bf16.msra.mxu0 0
      %1976 = vmatprep.subr.bf16.mxu0 0
      %1977 = vmatpush1.bf16.msra.mxu0 0
      %1978 = vmatprep.subr.bf16.mxu0 0
      %1979 = vmatpush1.bf16.msra.mxu0 0
      %1980 = vmatprep.subr.bf16.mxu0 0
      %1981 = vmatpush1.bf16.msra.mxu0 0
      %1982 = vmatprep.mubr.bf16.mxu0 0
      %1983 = vmatmul.mubr.bf16.gmra.mrb[0].mxu0 %v1948
      %v1984 = vpop.f32.mrb[0].mxu0
      %v1985 = vadd.f32 %v1940, %v1984
      %v1986 = vpop.f32.mrb[0].mxu0
      %v1987 = vpop.f32.mrb[0].mxu0
      %v1988 = vadd.f32 %v1941, %v1987
      %v1989 = vpop.f32.mrb[0].mxu0
      %1990 = vdwg.mxu0
      %v1991 = vadd.f32 %v1985, %v380
      %v1992 = vadd.f32 %v1988, %v380
      %v1993 = vmax.f32 %v1991, 0.0
      %v1994 = vmax.f32 %v1992, 0.0
      %v1995 = vpack.c.bf16 %v1994, %v1993
      %v1997 = vsel %vm331, %v1995, 0
      %1999 = vmatprep.subr.bf16.mxu0 0
      %2000 = vmatpush1.bf16.msra.mxu0 %v391
      %2001 = vmatprep.subr.bf16.mxu0 0
      %2002 = vmatpush1.bf16.msra.mxu0 0
      %2003 = vmatprep.subr.bf16.mxu0 0
      %2004 = vmatpush1.bf16.msra.mxu0 0
      %2005 = vmatprep.subr.bf16.mxu0 0
      %2006 = vmatpush1.bf16.msra.mxu0 0
      %2007 = vmatprep.subr.bf16.mxu0 0
      %2008 = vmatpush1.bf16.msra.mxu0 0
      %2009 = vmatprep.subr.bf16.mxu0 0
      %2010 = vmatpush1.bf16.msra.mxu0 0
      %2011 = vmatprep.subr.bf16.mxu0 0
      %2012 = vmatpush1.bf16.msra.mxu0 0
      %2013 = vmatprep.subr.bf16.mxu0 0
      %2014 = vmatpush1.bf16.msra.mxu0 0
      %2015 = vmatprep.subr.bf16.mxu0 0
      %2016 = vmatpush1.bf16.msra.mxu0 0
      %2017 = vmatprep.subr.bf16.mxu0 0
      %2018 = vmatpush1.bf16.msra.mxu0 0
      %2019 = vmatprep.subr.bf16.mxu0 0
      %2020 = vmatpush1.bf16.msra.mxu0 0
      %2021 = vmatprep.subr.bf16.mxu0 0
      %2022 = vmatpush1.bf16.msra.mxu0 0
      %2023 = vmatprep.subr.bf16.mxu0 0
      %2024 = vmatpush1.bf16.msra.mxu0 0
      %2025 = vmatprep.subr.bf16.mxu0 0
      %2026 = vmatpush1.bf16.msra.mxu0 0
      %2027 = vmatprep.subr.bf16.mxu0 0
      %2028 = vmatpush1.bf16.msra.mxu0 0
      %2029 = vmatprep.subr.bf16.mxu0 0
      %2030 = vmatpush1.bf16.msra.mxu0 0
      %2031 = vmatprep.mubr.bf16.mxu0 0
      %2032 = vmatmul.mubr.bf16.gmra.mrb[0].mxu0 %v1997
      %v2033 = vpop.f32.mrb[0].mxu0
      %v2034 = vadd.f32 0.0, %v2033
      %v2035 = vpop.f32.mrb[0].mxu0
      %v2036 = vpop.f32.mrb[0].mxu0
      %v2037 = vadd.f32 0.0, %v2036
      %v2038 = vpop.f32.mrb[0].mxu0
      %2039 = vdwg.mxu0
      %v2040 = vpack.c.bf16 %v2037, %v2034
      %v2042 = vunpack.c.l.b16 %v2040
      %v2043 = vunpack.c.h.b16 %v2040
      %v2044 = vpack.c.b16 %v2042, %v2042
      %v2045 = vpack.c.b16 %v2043, %v2043
      %s2048 = scalar_lea.vmem %s306, 112
      %2049 = vst.msk [vmem:[%s2048] sm:$0xf] %vm445, %v2044
      %2050 = vst.msk [vmem:[%s2048 + $0x4] sm:$0xf] %vm445, %v2045
      %s2051 = scalar_lea.vmem %s295, 120
      %v2052 = vld [vmem:[%s2051] sm:$0xf]
      %v2053 = vld [vmem:[%s2051 + $0x4] sm:$0xf]
      %v2056 = vunpack.c.l.b16 %v2052
      %v2057 = vunpack.c.l.b16 %v2053
      %v2058 = vpack.c.b16 %v2057, %v2056
      %v2060 = vsel %vm331, %v2058, 0
      %2062 = vmatprep.subr.bf16.mxu0 0
      %2063 = vmatpush1.bf16.msra.mxu0 %v329
      %2064 = vmatprep.subr.bf16.mxu0 0
      %2065 = vmatpush1.bf16.msra.mxu0 0
      %2066 = vmatprep.subr.bf16.mxu0 0
      %2067 = vmatpush1.bf16.msra.mxu0 0
      %2068 = vmatprep.subr.bf16.mxu0 0
      %2069 = vmatpush1.bf16.msra.mxu0 0
      %2070 = vmatprep.subr.bf16.mxu0 0
      %2071 = vmatpush1.bf16.msra.mxu0 0
      %2072 = vmatprep.subr.bf16.mxu0 0
      %2073 = vmatpush1.bf16.msra.mxu0 0
      %2074 = vmatprep.subr.bf16.mxu0 0
      %2075 = vmatpush1.bf16.msra.mxu0 0
      %2076 = vmatprep.subr.bf16.mxu0 0
      %2077 = vmatpush1.bf16.msra.mxu0 0
      %2078 = vmatprep.subr.bf16.mxu0 0
      %2079 = vmatpush1.bf16.msra.mxu0 0
      %2080 = vmatprep.subr.bf16.mxu0 0
      %2081 = vmatpush1.bf16.msra.mxu0 0
      %2082 = vmatprep.subr.bf16.mxu0 0
      %2083 = vmatpush1.bf16.msra.mxu0 0
      %2084 = vmatprep.subr.bf16.mxu0 0
      %2085 = vmatpush1.bf16.msra.mxu0 0
      %2086 = vmatprep.subr.bf16.mxu0 0
      %2087 = vmatpush1.bf16.msra.mxu0 0
      %2088 = vmatprep.subr.bf16.mxu0 0
      %2089 = vmatpush1.bf16.msra.mxu0 0
      %2090 = vmatprep.subr.bf16.mxu0 0
      %2091 = vmatpush1.bf16.msra.mxu0 0
      %2092 = vmatprep.subr.bf16.mxu0 0
      %2093 = vmatpush1.bf16.msra.mxu0 0
      %2094 = vmatprep.mubr.bf16.mxu0 0
      %2095 = vmatmul.mubr.bf16.gmra.mrb[0].mxu0 %v2060
      %v2096 = vpop.f32.mrb[0].mxu0
      %v2097 = vadd.f32 %v1940, %v2096
      %v2098 = vpop.f32.mrb[0].mxu0
      %v2099 = vpop.f32.mrb[0].mxu0
      %v2100 = vadd.f32 %v1941, %v2099
      %v2101 = vpop.f32.mrb[0].mxu0
      %2102 = vdwg.mxu0
      %v2103 = vadd.f32 %v2097, %v380
      %v2104 = vadd.f32 %v2100, %v380
      %v2105 = vmax.f32 %v2103, 0.0
      %v2106 = vmax.f32 %v2104, 0.0
      %v2107 = vpack.c.bf16 %v2106, %v2105
      %v2109 = vsel %vm331, %v2107, 0
      %2111 = vmatprep.subr.bf16.mxu0 0
      %2112 = vmatpush1.bf16.msra.mxu0 %v391
      %2113 = vmatprep.subr.bf16.mxu0 0
      %2114 = vmatpush1.bf16.msra.mxu0 0
      %2115 = vmatprep.subr.bf16.mxu0 0
      %2116 = vmatpush1.bf16.msra.mxu0 0
      %2117 = vmatprep.subr.bf16.mxu0 0
      %2118 = vmatpush1.bf16.msra.mxu0 0
      %2119 = vmatprep.subr.bf16.mxu0 0
      %2120 = vmatpush1.bf16.msra.mxu0 0
      %2121 = vmatprep.subr.bf16.mxu0 0
      %2122 = vmatpush1.bf16.msra.mxu0 0
      %2123 = vmatprep.subr.bf16.mxu0 0
      %2124 = vmatpush1.bf16.msra.mxu0 0
      %2125 = vmatprep.subr.bf16.mxu0 0
      %2126 = vmatpush1.bf16.msra.mxu0 0
      %2127 = vmatprep.subr.bf16.mxu0 0
      %2128 = vmatpush1.bf16.msra.mxu0 0
      %2129 = vmatprep.subr.bf16.mxu0 0
      %2130 = vmatpush1.bf16.msra.mxu0 0
      %2131 = vmatprep.subr.bf16.mxu0 0
      %2132 = vmatpush1.bf16.msra.mxu0 0
      %2133 = vmatprep.subr.bf16.mxu0 0
      %2134 = vmatpush1.bf16.msra.mxu0 0
      %2135 = vmatprep.subr.bf16.mxu0 0
      %2136 = vmatpush1.bf16.msra.mxu0 0
      %2137 = vmatprep.subr.bf16.mxu0 0
      %2138 = vmatpush1.bf16.msra.mxu0 0
      %2139 = vmatprep.subr.bf16.mxu0 0
      %2140 = vmatpush1.bf16.msra.mxu0 0
      %2141 = vmatprep.subr.bf16.mxu0 0
      %2142 = vmatpush1.bf16.msra.mxu0 0
      %2143 = vmatprep.mubr.bf16.mxu0 0
      %2144 = vmatmul.mubr.bf16.gmra.mrb[0].mxu0 %v2109
      %v2145 = vpop.f32.mrb[0].mxu0
      %v2146 = vadd.f32 0.0, %v2145
      %v2147 = vpop.f32.mrb[0].mxu0
      %v2148 = vpop.f32.mrb[0].mxu0
      %v2149 = vadd.f32 0.0, %v2148
      %v2150 = vpop.f32.mrb[0].mxu0
      %2151 = vdwg.mxu0
      %v2152 = vpack.c.bf16 %v2149, %v2146
      %v2154 = vunpack.c.l.b16 %v2152
      %v2155 = vunpack.c.h.b16 %v2152
      %v2156 = vpack.c.b16 %v2154, %v2154
      %v2157 = vpack.c.b16 %v2155, %v2155
      %s2160 = scalar_lea.vmem %s306, 120
      %2161 = vst.msk [vmem:[%s2160] sm:$0xf] %vm445, %v2156
      %2162 = vst.msk [vmem:[%s2160 + $0x4] sm:$0xf] %vm445, %v2157
      %s2163 = smul.u32 16, %s21
      %p2164 = scmp.lt.s32.totalorder %s20, 1
      %s2165 = scalar_select %p2164, %s20, 1
      %p2166 = scmp.lt.s32.totalorder %s2163, 15
      %s2167 = scalar_select %p2166, %s2163, 15
      %s2168 = smul.addr %s2167, 2
      %s2169 = smul.addr %s2165, 32
      %s2170 = sadd.s32 %s2168, %s2169
      %s2171 = smul.addr %s2170, 4
      %s2172 = scalar_lea.vmem %s5, %s2171
      // Predicated region
      $region41: #{encoder_decoder_forward.16} parent=39 // pred_check
        %p2173 = pneg %p167
      $region42: #{encoder_decoder_forward.16} parent=39 // pred_check_branch
        %2175 = sbr.rel (%p2173) target = $region44
      $region43: #{encoder_decoder_forward.16} parent=39 // pred_region
        %s2176 = smul.u32 16, %s21
      $region44: #{encoder_decoder_forward.16} parent=39 // pred_fallthru
        _
    $region40: #{encoder_decoder_forward.16} parent=5 // pred_fallthru
      _
    %p2177 = scmp.le.s32.totalorder 2, %s11
    // Predicated region
    $region45: #{encoder_decoder_forward.16} parent=5 // pred_check
      %p2178 = pneg %p2177
    $region46: #{encoder_decoder_forward.16} parent=5 // pred_check_branch
      %2180 = sbr.rel (%p2178) target = $region48
    $region47: #{encoder_decoder_forward.16} parent=5 // pred_region
      %s2181 = ssub.s32 %s11, 2
      // Predicated region
      $region49: #{encoder_decoder_forward.16} parent=47 // pred_check
        %p2182 = pneg %p173
      $region50: #{encoder_decoder_forward.16} parent=47 // pred_check_branch
        %2184 = sbr.rel (%p2182) target = $region52
      $region51: #{encoder_decoder_forward.16} parent=47 // pred_region
        %s2185 = smul.u32 16, %s23
        %p2186 = scmp.lt.s32.totalorder %s22, 1
        %s2187 = scalar_select %p2186, %s22, 1
        %p2188 = scmp.lt.s32.totalorder %s2185, 15
        %s2189 = scalar_select %p2188, %s2185, 15
        %s2190 = smul.addr %s2189, 2
        %s2191 = smul.addr %s2187, 32
        %s2192 = sadd.s32 %s2190, %s2191
        %s2193 = smul.addr %s2192, 4
        %s2194 = scalar_lea.vmem %s5, %s2193
      $region52: #{encoder_decoder_forward.16} parent=47 // pred_fallthru
        _
    $region48: #{encoder_decoder_forward.16} parent=5 // pred_fallthru
      _
  $region6: #{encoder_decoder_forward.16} parent=0 // loop_footer
    %s15 = sadd.s32 1, %s11
  $region7: #{encoder_decoder_forward.16} parent=0 // loop_footer_branch
    %10 = sbr.rel target = $region3
  $region8: #{encoder_decoder_forward.16} parent=0 // loop_exit
    _

</llo_original>
